<compile_context>
chip_gen: v5e
topology: v5e:2x2
jax: 0.10.0
libtpu: 0.0.40
codegen_flags: <defaults>
</compile_context>

<pallas_src>
import jax
import jax.numpy as jnp
import numpy as np
from jax.experimental import pallas as pl
from jax.experimental.pallas import tpu as pltpu

EPS = 1e-5  # PyTorch LayerNorm default eps


def _layernorm(x, gamma, beta):
    mu = jnp.mean(x, axis=-1, keepdims=True)
    var = jnp.mean((x - mu) ** 2, axis=-1, keepdims=True)
    return (x - mu) * jax.lax.rsqrt(var + EPS) * gamma + beta


def triangle_kernel(x_ref, si_ref, sk_ref,
                    g1_ref, b1_ref,
                    wf_ref, bf_ref,
                    g2_ref, b2_ref,
                    wo_ref, bo_ref,
                    out_ref,
                    left_t_ref, right_t_ref, og_ref, mix_t_ref):
    # x_ref:      (1, n, C)     flattened pair features of the current batch
    # si_ref:     (1, L, 1, 1)  sequence mask, broadcasts over the i / j axis
    # sk_ref:     (1, L, 1)     sequence mask, broadcasts over the k axis
    # out_ref:    (1, TI*L, C)  current TI-row output block
    # left_t_ref / right_t_ref: (H, L, L) f32 scratch, gated+masked left/right
    #                           staged as [d, i|j, k] (MXU batch dim leading)
    # og_ref:     (n, H) f32 scratch, out gate for the whole batch
    # mix_t_ref:  (H, TI, L) f32 scratch, mix result of the current row block
    L = si_ref.shape[1]
    H = g2_ref.shape[1]
    TI = mix_t_ref.shape[1]
    ib = pl.program_id(1)

    # ---- per-batch prologue: LN, fused projection, gates, mask, staging ----
    @pl.when(ib == 0)
    def _prologue():
        x = x_ref[0].astype(jnp.float32)                         # (n, C)
        s_i = si_ref[0].astype(jnp.float32)                      # (L, 1, 1)
        s_k = sk_ref[0].astype(jnp.float32)                      # (L, 1)

        xn = _layernorm(x, g1_ref[...], b1_ref[...])

        # fused projection [left | right | left_gate | right_gate | out_gate]
        # (bf16 MXU operands, f32 accumulation).
        proj = jnp.dot(xn.astype(jnp.bfloat16), wf_ref[...],
                       preferred_element_type=jnp.float32) + bf_ref[...]
        left = proj[:, 0 * H:1 * H]
        right = proj[:, 1 * H:2 * H]
        lg = jax.nn.sigmoid(proj[:, 2 * H:3 * H])
        rg = jax.nn.sigmoid(proj[:, 3 * H:4 * H])
        og_ref[...] = jax.nn.sigmoid(proj[:, 4 * H:5 * H])       # (n, H)

        # gate + pair mask (mask commutes with the sigmoid gates)
        left3 = (left * lg).reshape(L, L, H) * s_i * s_k         # (i, k, d)
        right3 = (right * rg).reshape(L, L, H) * s_i * s_k       # (j, k, d)

        # stage as (d, i, k) / (d, j, k): L small rank-2 transposes per
        # operand, once per batch, so the triangle mix can be a batched MXU
        # matmul instead of a VPU/XLU reduction.
        for r in range(L):
            left_t_ref[:, r, :] = left3[r].T                     # (H, L)
            right_t_ref[:, r, :] = right3[r].T

    # ---- per-row-block triangle mix on the MXU ----
    i0 = pl.multiple_of(ib * TI, TI)
    lt = left_t_ref[:, pl.ds(i0, TI), :].astype(jnp.bfloat16)    # (H, TI, L)
    rt = right_t_ref[...].astype(jnp.bfloat16)                   # (H, L, L)
    # mix[d, a, j] = sum_k left[i0+a, k, d] * right[j, k, d]
    mix_t_ref[...] = jax.lax.dot_general(
        lt, rt,
        dimension_numbers=(((2,), (2,)), ((0,), (0,))),
        preferred_element_type=jnp.float32)                      # (H, TI, L)

    # back to (rows, H): TI small rank-2 transposes; row index = a*L + j
    mix = jnp.concatenate(
        [mix_t_ref[:, a, :].T for a in range(TI)], axis=0)       # (TI*L, H)

    # ---- epilogue: LayerNorm over H, out gate, output projection ----
    row0 = pl.multiple_of(ib * TI * L, TI * L)
    og = og_ref[pl.ds(row0, TI * L), :]                          # (TI*L, H)
    mix = _layernorm(mix, g2_ref[...], b2_ref[...]) * og
    y = jnp.dot(mix.astype(jnp.bfloat16), wo_ref[...],
                preferred_element_type=jnp.float32) + bo_ref[...]
    out_ref[0] = y.astype(out_ref.dtype)


def triangle_multiplicative(x, src_mask, params, *, row_block=8):
    """x: (B, L, L, C), src_mask: (B, L).  Returns (B, L, L, C)."""
    B, L, _, C = x.shape
    H = params["wl"].shape[1]
    n = L * L
    ti = row_block if (L % row_block == 0) else L
    n_blocks = L // ti

    # Fuse the five projections; MXU inputs in bf16, biases stay f32.
    # TODO(synk): with H, C multiples of 128 every chunk slice and the final
    # store are lane-aligned; consider padding for small H/C configs.
    w_fused = jnp.concatenate(
        [params["wl"], params["wr"], params["wlg"], params["wrg"], params["wog"]],
        axis=1).astype(jnp.bfloat16)                                 # (C, 5H)
    b_fused = jnp.concatenate(
        [params["bl"], params["br"], params["blg"], params["brg"], params["bog"]],
        axis=1).astype(jnp.float32)                                  # (1, 5H)
    wo_bf16 = params["wo"].astype(jnp.bfloat16)                      # (H, C)

    # free XLA-side layout ops
    x2 = x.reshape(B, n, C)
    s_i = src_mask.astype(jnp.float32).reshape(B, L, 1, 1)
    s_k = src_mask.astype(jnp.float32).reshape(B, L, 1)

    weights = (params["g1"], params["b1"], w_fused, b_fused,
               params["g2"], params["b2"], wo_bf16, params["bo"])

    def full_spec(a):
        nd = a.ndim
        return pl.BlockSpec(a.shape, lambda b, i, _nd=nd: (0,) * _nd)

    in_specs = ([pl.BlockSpec((1, n, C), lambda b, i: (b, 0, 0)),
                 pl.BlockSpec((1, L, 1, 1), lambda b, i: (b, 0, 0, 0)),
                 pl.BlockSpec((1, L, 1), lambda b, i: (b, 0, 0))]
                + [full_spec(w) for w in weights])

    nbytes = lambda a: int(a.size) * a.dtype.itemsize
    cost = pl.CostEstimate(
        flops=int(B * (2 * n * C * 5 * H          # fused projection
                       + 2 * L * L * L * H        # triangle mix (MXU)
                       + 2 * n * H * C            # output projection
                       + 10 * n * C + 14 * n * H)),  # layernorms + gating
        transcendentals=int(B * (3 * n * H + 2 * n)),
        bytes_accessed=int(nbytes(x2) * 2 + nbytes(s_i) + nbytes(s_k)
                           + sum(nbytes(w) for w in weights)),  # weights once
    )

    out2 = pl.pallas_call(
        triangle_kernel,
        out_shape=jax.ShapeDtypeStruct((B, n, C), x.dtype),
        grid=(B, n_blocks),
        in_specs=in_specs,
        out_specs=pl.BlockSpec((1, ti * L, C), lambda b, i: (b, i, 0)),
        scratch_shapes=[
            pltpu.VMEM((H, L, L), jnp.float32),   # staged left  [d, i, k]
            pltpu.VMEM((H, L, L), jnp.float32),   # staged right [d, j, k]
            pltpu.VMEM((n, H), jnp.float32),      # out gate
            pltpu.VMEM((H, ti, L), jnp.float32),  # mix of the current block
        ],
        compiler_params=pltpu.CompilerParams(
            dimension_semantics=("parallel", "arbitrary"),
            vmem_limit_bytes=32 * 1024 * 1024),
        cost_estimate=cost,
    )(x2, s_i, s_k, *weights)
    return out2.reshape(B, L, L, C)


def reference(x, src_mask, p):
    """Pure-JAX f32 reference mirroring the PyTorch forward."""
    mask = (src_mask[:, :, None] * src_mask[:, None, :])[..., None]   # (B,L,L,1)
    xn = _layernorm(x, p["g1"], p["b1"])
    left = xn @ p["wl"] + p["bl"]
    right = xn @ p["wr"] + p["br"]
    left = left * mask
    right = right * mask
    lg = jax.nn.sigmoid(xn @ p["wlg"] + p["blg"])
    rg = jax.nn.sigmoid(xn @ p["wrg"] + p["brg"])
    og = jax.nn.sigmoid(xn @ p["wog"] + p["bog"])
    left = left * lg
    right = right * rg
    out = jnp.einsum("bikd,bjkd->bijd", left, right)                  # ingoing mix
    out = _layernorm(out, p["g2"], p["b2"]) * og
    return out @ p["wo"] + p["bo"]


def make_params(key, dim, hidden):
    ks = jax.random.split(key, 6)
    f32 = jnp.float32
    return {
        # input LayerNorm
        "g1": jnp.ones((1, dim), f32), "b1": jnp.zeros((1, dim), f32),
        # left / right projections (random, deterministic)
        "wl": 0.1 * jax.random.normal(ks[0], (dim, hidden), f32),
        "bl": 0.1 * jax.random.normal(ks[1], (1, hidden), f32),
        "wr": 0.1 * jax.random.normal(ks[2], (dim, hidden), f32),
        "br": 0.1 * jax.random.normal(ks[3], (1, hidden), f32),
        # gates: module __init__ sets weight=0, bias=1
        "wlg": jnp.zeros((dim, hidden), f32), "blg": jnp.ones((1, hidden), f32),
        "wrg": jnp.zeros((dim, hidden), f32), "brg": jnp.ones((1, hidden), f32),
        "wog": jnp.zeros((dim, hidden), f32), "bog": jnp.ones((1, hidden), f32),
        # output LayerNorm
        "g2": jnp.ones((1, hidden), f32), "b2": jnp.zeros((1, hidden), f32),
        # output projection hidden -> dim
        "wo": 0.1 * jax.random.normal(ks[4], (hidden, dim), f32),
        "bo": 0.1 * jax.random.normal(ks[5], (1, dim), f32),
    }


if __name__ == "__main__":
    B, L, C, H = 2, 16, 32, 32

    key = jax.random.PRNGKey(0)
    kx, kp = jax.random.split(key)
    x = jax.random.normal(kx, (B, L, L, C), jnp.float32)
    # first sequence fully valid, second has 4 padded positions
    src_mask = jnp.stack([
        jnp.ones((L,), jnp.float32),
        jnp.concatenate([jnp.ones((L - 4,), jnp.float32), jnp.zeros((4,), jnp.float32)]),
    ])

    params = make_params(kp, C, H)

    y = jax.block_until_ready(triangle_multiplicative(x, src_mask, params))
    y_ref = jax.block_until_ready(reference(x, src_mask, params))

    assert y.shape == (B, L, L, C)
    # tolerance reflects bf16 MXU inputs (f32 accumulation) vs the f32 reference
    np.testing.assert_allclose(np.asarray(y), np.asarray(y_ref), rtol=3e-2, atol=3e-2)

    print("KERNEL_OK")
</pallas_src>

<mosaic_0001>
module attributes {stable_mosaic.version = 11 : i64} {
  func.func @triangle_kernel(%arg0: i32, %arg1: i32, %arg2: memref<1x256x32xf32, #tpu.memory_space<vmem>>, %arg3: memref<1x16x1x1xf32, #tpu.memory_space<vmem>>, %arg4: memref<1x16x1xf32, #tpu.memory_space<vmem>>, %arg5: memref<1x32xf32, #tpu.memory_space<vmem>>, %arg6: memref<1x32xf32, #tpu.memory_space<vmem>>, %arg7: memref<32x160xbf16, #tpu.memory_space<vmem>>, %arg8: memref<1x160xf32, #tpu.memory_space<vmem>>, %arg9: memref<1x32xf32, #tpu.memory_space<vmem>>, %arg10: memref<1x32xf32, #tpu.memory_space<vmem>>, %arg11: memref<32x32xbf16, #tpu.memory_space<vmem>>, %arg12: memref<1x32xf32, #tpu.memory_space<vmem>>, %arg13: memref<1x128x32xf32, #tpu.memory_space<vmem>>, %arg14: memref<32x16x16xf32, #tpu.memory_space<vmem>>, %arg15: memref<32x16x16xf32, #tpu.memory_space<vmem>>, %arg16: memref<256x32xf32, #tpu.memory_space<vmem>>, %arg17: memref<32x8x16xf32, #tpu.memory_space<vmem>>) attributes {dimension_semantics = [#tpu.dimension_semantics<parallel>, #tpu.dimension_semantics<arbitrary>], iteration_bounds = array<i64: 2, 2>, scalar_prefetch = 0 : i64, scratch_operands = 4 : i64, tpu.core_type = #tpu.core_type<tc>, window_params = [{transform_indices = @transform_0, window_bounds = array<i64: 1, 256, 32>}, {transform_indices = @transform_1, window_bounds = array<i64: 1, 16, 1, 1>}, {transform_indices = @transform_2, window_bounds = array<i64: 1, 16, 1>}, {pipeline_mode = #tpu.pipeline_mode<synchronous>, transform_indices = @transform_3, window_bounds = array<i64: 1, 32>}, {pipeline_mode = #tpu.pipeline_mode<synchronous>, transform_indices = @transform_4, window_bounds = array<i64: 1, 32>}, {pipeline_mode = #tpu.pipeline_mode<synchronous>, transform_indices = @transform_5, window_bounds = array<i64: 32, 160>}, {pipeline_mode = #tpu.pipeline_mode<synchronous>, transform_indices = @transform_6, window_bounds = array<i64: 1, 160>}, {pipeline_mode = #tpu.pipeline_mode<synchronous>, transform_indices = @transform_7, window_bounds = array<i64: 1, 32>}, {pipeline_mode = #tpu.pipeline_mode<synchronous>, transform_indices = @transform_8, window_bounds = array<i64: 1, 32>}, {pipeline_mode = #tpu.pipeline_mode<synchronous>, transform_indices = @transform_9, window_bounds = array<i64: 32, 32>}, {pipeline_mode = #tpu.pipeline_mode<synchronous>, transform_indices = @transform_10, window_bounds = array<i64: 1, 32>}, {transform_indices = @transform_11, window_bounds = array<i64: 1, 128, 32>}]} {
    %c0_i32 = arith.constant 0 : i32
    %0 = arith.cmpi eq, %arg1, %c0_i32 : i32
    %1 = arith.extui %0 : i1 to i32
    %c0_i32_0 = arith.constant 0 : i32
    %2 = arith.cmpi ne, %1, %c0_i32_0 : i32
    scf.if %2 {
      %c0_44 = arith.constant 0 : index
      %c0_45 = arith.constant 0 : index
      %c0_46 = arith.constant 0 : index
      %76 = vector.load %arg2[%c0_44, %c0_45, %c0_46] : memref<1x256x32xf32, #tpu.memory_space<vmem>>, vector<1x256x32xf32>
      %77 = vector.shape_cast %76 : vector<1x256x32xf32> to vector<256x32xf32>
      %c0_47 = arith.constant 0 : index
      %c0_48 = arith.constant 0 : index
      %c0_49 = arith.constant 0 : index
      %c0_50 = arith.constant 0 : index
      %78 = vector.load %arg3[%c0_47, %c0_48, %c0_49, %c0_50] : memref<1x16x1x1xf32, #tpu.memory_space<vmem>>, vector<1x16x1x1xf32>
      %79 = vector.shape_cast %78 : vector<1x16x1x1xf32> to vector<16x1x1xf32>
      %c0_51 = arith.constant 0 : index
      %c0_52 = arith.constant 0 : index
      %c0_53 = arith.constant 0 : index
      %80 = vector.load %arg4[%c0_51, %c0_52, %c0_53] : memref<1x16x1xf32, #tpu.memory_space<vmem>>, vector<1x16x1xf32>
      %81 = vector.shape_cast %80 : vector<1x16x1xf32> to vector<16x1xf32>
      %c0_54 = arith.constant 0 : index
      %c0_55 = arith.constant 0 : index
      %82 = vector.load %arg5[%c0_54, %c0_55] : memref<1x32xf32, #tpu.memory_space<vmem>>, vector<1x32xf32>
      %c0_56 = arith.constant 0 : index
      %c0_57 = arith.constant 0 : index
      %83 = vector.load %arg6[%c0_56, %c0_57] : memref<1x32xf32, #tpu.memory_space<vmem>>, vector<1x32xf32>
      %cst_58 = arith.constant dense<0.000000e+00> : vector<256xf32>
      %84 = vector.multi_reduction <add>, %77, %cst_58 [1] : vector<256x32xf32> to vector<256xf32>
      %85 = vector.shape_cast %84 : vector<256xf32> to vector<256x1xf32>
      %cst_59 = arith.constant 3.200000e+01 : f32
      %86 = vector.broadcast %cst_59 : f32 to vector<256x1xf32>
      %87 = arith.divf %85, %86 : vector<256x1xf32>
      %88 = vector.broadcast %87 : vector<256x1xf32> to vector<256x32xf32>
      %89 = arith.subf %77, %88 : vector<256x32xf32>
      %90 = arith.mulf %89, %89 : vector<256x32xf32>
      %cst_60 = arith.constant dense<0.000000e+00> : vector<256xf32>
      %91 = vector.multi_reduction <add>, %90, %cst_60 [1] : vector<256x32xf32> to vector<256xf32>
      %92 = vector.shape_cast %91 : vector<256xf32> to vector<256x1xf32>
      %cst_61 = arith.constant 3.200000e+01 : f32
      %93 = vector.broadcast %cst_61 : f32 to vector<256x1xf32>
      %94 = arith.divf %92, %93 : vector<256x1xf32>
      %95 = vector.broadcast %87 : vector<256x1xf32> to vector<256x32xf32>
      %96 = arith.subf %77, %95 : vector<256x32xf32>
      %cst_62 = arith.constant 9.99999974E-6 : f32
      %97 = vector.broadcast %cst_62 : f32 to vector<256x1xf32>
      %98 = arith.addf %94, %97 : vector<256x1xf32>
      %99 = math.rsqrt %98 : vector<256x1xf32>
      %100 = vector.broadcast %99 : vector<256x1xf32> to vector<256x32xf32>
      %101 = arith.mulf %96, %100 : vector<256x32xf32>
      %102 = vector.broadcast %82 : vector<1x32xf32> to vector<256x32xf32>
      %103 = arith.mulf %101, %102 : vector<256x32xf32>
      %104 = vector.broadcast %83 : vector<1x32xf32> to vector<256x32xf32>
      %105 = arith.addf %103, %104 : vector<256x32xf32>
      %106 = arith.truncf %105 : vector<256x32xf32> to vector<256x32xbf16>
      %c0_63 = arith.constant 0 : index
      %c0_64 = arith.constant 0 : index
      %107 = vector.load %arg7[%c0_63, %c0_64] : memref<32x160xbf16, #tpu.memory_space<vmem>>, vector<32x160xbf16>
      %cst_65 = arith.constant dense<0.000000e+00> : vector<256x160xf32>
      %108 = tpu.matmul %106, %107, %cst_65 {dimension_numbers = #tpu.dot_dimension_numbers<[1], [0], [0], [1], [0, 0, 1, 1], [], []>} : vector<256x32xbf16>, vector<32x160xbf16>, vector<256x160xf32> -> vector<256x160xf32>
      %c0_66 = arith.constant 0 : index
      %c0_67 = arith.constant 0 : index
      %109 = vector.load %arg8[%c0_66, %c0_67] : memref<1x160xf32, #tpu.memory_space<vmem>>, vector<1x160xf32>
      %110 = vector.broadcast %109 : vector<1x160xf32> to vector<256x160xf32>
      %111 = arith.addf %108, %110 : vector<256x160xf32>
      %112 = vector.extract_strided_slice %111 {offsets = [0, 0], sizes = [256, 32], strides = [1, 1]} : vector<256x160xf32> to vector<256x32xf32>
      %113 = vector.extract_strided_slice %111 {offsets = [0, 32], sizes = [256, 32], strides = [1, 1]} : vector<256x160xf32> to vector<256x32xf32>
      %114 = vector.extract_strided_slice %111 {offsets = [0, 64], sizes = [256, 32], strides = [1, 1]} : vector<256x160xf32> to vector<256x32xf32>
      %115 = arith.negf %114 : vector<256x32xf32>
      %116 = math.exp %115 : vector<256x32xf32>
      %cst_68 = arith.constant 1.000000e+00 : f32
      %117 = vector.broadcast %cst_68 : f32 to vector<256x32xf32>
      %118 = arith.addf %117, %116 : vector<256x32xf32>
      %119 = arith.divf %117, %118 : vector<256x32xf32>
      %120 = vector.extract_strided_slice %111 {offsets = [0, 96], sizes = [256, 32], strides = [1, 1]} : vector<256x160xf32> to vector<256x32xf32>
      %121 = arith.negf %120 : vector<256x32xf32>
      %122 = math.exp %121 : vector<256x32xf32>
      %cst_69 = arith.constant 1.000000e+00 : f32
      %123 = vector.broadcast %cst_69 : f32 to vector<256x32xf32>
      %124 = arith.addf %123, %122 : vector<256x32xf32>
      %125 = arith.divf %123, %124 : vector<256x32xf32>
      %126 = vector.extract_strided_slice %111 {offsets = [0, 128], sizes = [256, 32], strides = [1, 1]} : vector<256x160xf32> to vector<256x32xf32>
      %127 = arith.negf %126 : vector<256x32xf32>
      %128 = math.exp %127 : vector<256x32xf32>
      %cst_70 = arith.constant 1.000000e+00 : f32
      %129 = vector.broadcast %cst_70 : f32 to vector<256x32xf32>
      %130 = arith.addf %129, %128 : vector<256x32xf32>
      %131 = arith.divf %129, %130 : vector<256x32xf32>
      %c0_71 = arith.constant 0 : index
      %c0_72 = arith.constant 0 : index
      %132 = vector.load %arg16[%c0_71, %c0_72] : memref<256x32xf32, #tpu.memory_space<vmem>>, vector<256x32xf32>
      tpu.vector_store %arg16[%c0_71, %c0_72], %131 {strides = array<i32>} : memref<256x32xf32, #tpu.memory_space<vmem>>, vector<256x32xf32>,
      %133 = arith.mulf %112, %119 : vector<256x32xf32>
      %134 = vector.shape_cast %133 : vector<256x32xf32> to vector<16x16x32xf32>
      %135 = vector.broadcast %79 : vector<16x1x1xf32> to vector<16x16x32xf32>
      %136 = arith.mulf %134, %135 : vector<16x16x32xf32>
      %137 = vector.shape_cast %81 : vector<16x1xf32> to vector<1x16x1xf32>
      %138 = vector.broadcast %137 : vector<1x16x1xf32> to vector<16x16x32xf32>
      %139 = arith.mulf %136, %138 : vector<16x16x32xf32>
      %140 = arith.mulf %113, %125 : vector<256x32xf32>
      %141 = vector.shape_cast %140 : vector<256x32xf32> to vector<16x16x32xf32>
      %142 = vector.broadcast %79 : vector<16x1x1xf32> to vector<16x16x32xf32>
      %143 = arith.mulf %141, %142 : vector<16x16x32xf32>
      %144 = vector.shape_cast %81 : vector<16x1xf32> to vector<1x16x1xf32>
      %145 = vector.broadcast %144 : vector<1x16x1xf32> to vector<16x16x32xf32>
      %146 = arith.mulf %143, %145 : vector<16x16x32xf32>
      %147 = vector.extract_strided_slice %139 {offsets = [0, 0, 0], sizes = [1, 16, 32], strides = [1, 1, 1]} : vector<16x16x32xf32> to vector<1x16x32xf32>
      %148 = vector.shape_cast %147 : vector<1x16x32xf32> to vector<16x32xf32>
      %149 = tpu.transpose %148, [1, 0] : vector<16x32xf32> -> vector<32x16xf32>
      %c0_73 = arith.constant 0 : index
      %c0_74 = arith.constant 0 : index
      %c0_75 = arith.constant 0 : index
      %150 = vector.load %arg14[%c0_73, %c0_74, %c0_75] : memref<32x16x16xf32, #tpu.memory_space<vmem>>, vector<32x1x16xf32>
      %151 = vector.shape_cast %150 : vector<32x1x16xf32> to vector<32x16xf32>
      %152 = vector.shape_cast %149 : vector<32x16xf32> to vector<32x1x16xf32>
      tpu.vector_store %arg14[%c0_73, %c0_74, %c0_75], %152 {strides = array<i32>} : memref<32x16x16xf32, #tpu.memory_space<vmem>>, vector<32x1x16xf32>,
      %153 = vector.extract_strided_slice %146 {offsets = [0, 0, 0], sizes = [1, 16, 32], strides = [1, 1, 1]} : vector<16x16x32xf32> to vector<1x16x32xf32>
      %154 = vector.shape_cast %153 : vector<1x16x32xf32> to vector<16x32xf32>
      %155 = tpu.transpose %154, [1, 0] : vector<16x32xf32> -> vector<32x16xf32>
      %c0_76 = arith.constant 0 : index
      %c0_77 = arith.constant 0 : index
      %c0_78 = arith.constant 0 : index
      %156 = vector.load %arg15[%c0_76, %c0_77, %c0_78] : memref<32x16x16xf32, #tpu.memory_space<vmem>>, vector<32x1x16xf32>
      %157 = vector.shape_cast %156 : vector<32x1x16xf32> to vector<32x16xf32>
      %158 = vector.shape_cast %155 : vector<32x16xf32> to vector<32x1x16xf32>
      tpu.vector_store %arg15[%c0_76, %c0_77, %c0_78], %158 {strides = array<i32>} : memref<32x16x16xf32, #tpu.memory_space<vmem>>, vector<32x1x16xf32>,
      %159 = vector.extract_strided_slice %139 {offsets = [1, 0, 0], sizes = [1, 16, 32], strides = [1, 1, 1]} : vector<16x16x32xf32> to vector<1x16x32xf32>
      %160 = vector.shape_cast %159 : vector<1x16x32xf32> to vector<16x32xf32>
      %161 = tpu.transpose %160, [1, 0] : vector<16x32xf32> -> vector<32x16xf32>
      %c0_79 = arith.constant 0 : index
      %c1_80 = arith.constant 1 : index
      %c0_81 = arith.constant 0 : index
      %162 = vector.load %arg14[%c0_79, %c1_80, %c0_81] : memref<32x16x16xf32, #tpu.memory_space<vmem>>, vector<32x1x16xf32>
      %163 = vector.shape_cast %162 : vector<32x1x16xf32> to vector<32x16xf32>
      %164 = vector.shape_cast %161 : vector<32x16xf32> to vector<32x1x16xf32>
      tpu.vector_store %arg14[%c0_79, %c1_80, %c0_81], %164 {strides = array<i32>} : memref<32x16x16xf32, #tpu.memory_space<vmem>>, vector<32x1x16xf32>,
      %165 = vector.extract_strided_slice %146 {offsets = [1, 0, 0], sizes = [1, 16, 32], strides = [1, 1, 1]} : vector<16x16x32xf32> to vector<1x16x32xf32>
      %166 = vector.shape_cast %165 : vector<1x16x32xf32> to vector<16x32xf32>
      %167 = tpu.transpose %166, [1, 0] : vector<16x32xf32> -> vector<32x16xf32>
      %c0_82 = arith.constant 0 : index
      %c1_83 = arith.constant 1 : index
      %c0_84 = arith.constant 0 : index
      %168 = vector.load %arg15[%c0_82, %c1_83, %c0_84] : memref<32x16x16xf32, #tpu.memory_space<vmem>>, vector<32x1x16xf32>
      %169 = vector.shape_cast %168 : vector<32x1x16xf32> to vector<32x16xf32>
      %170 = vector.shape_cast %167 : vector<32x16xf32> to vector<32x1x16xf32>
      tpu.vector_store %arg15[%c0_82, %c1_83, %c0_84], %170 {strides = array<i32>} : memref<32x16x16xf32, #tpu.memory_space<vmem>>, vector<32x1x16xf32>,
      %171 = vector.extract_strided_slice %139 {offsets = [2, 0, 0], sizes = [1, 16, 32], strides = [1, 1, 1]} : vector<16x16x32xf32> to vector<1x16x32xf32>
      %172 = vector.shape_cast %171 : vector<1x16x32xf32> to vector<16x32xf32>
      %173 = tpu.transpose %172, [1, 0] : vector<16x32xf32> -> vector<32x16xf32>
      %c0_85 = arith.constant 0 : index
      %c2_86 = arith.constant 2 : index
      %c0_87 = arith.constant 0 : index
      %174 = vector.load %arg14[%c0_85, %c2_86, %c0_87] : memref<32x16x16xf32, #tpu.memory_space<vmem>>, vector<32x1x16xf32>
      %175 = vector.shape_cast %174 : vector<32x1x16xf32> to vector<32x16xf32>
      %176 = vector.shape_cast %173 : vector<32x16xf32> to vector<32x1x16xf32>
      tpu.vector_store %arg14[%c0_85, %c2_86, %c0_87], %176 {strides = array<i32>} : memref<32x16x16xf32, #tpu.memory_space<vmem>>, vector<32x1x16xf32>,
      %177 = vector.extract_strided_slice %146 {offsets = [2, 0, 0], sizes = [1, 16, 32], strides = [1, 1, 1]} : vector<16x16x32xf32> to vector<1x16x32xf32>
      %178 = vector.shape_cast %177 : vector<1x16x32xf32> to vector<16x32xf32>
      %179 = tpu.transpose %178, [1, 0] : vector<16x32xf32> -> vector<32x16xf32>
      %c0_88 = arith.constant 0 : index
      %c2_89 = arith.constant 2 : index
      %c0_90 = arith.constant 0 : index
      %180 = vector.load %arg15[%c0_88, %c2_89, %c0_90] : memref<32x16x16xf32, #tpu.memory_space<vmem>>, vector<32x1x16xf32>
      %181 = vector.shape_cast %180 : vector<32x1x16xf32> to vector<32x16xf32>
      %182 = vector.shape_cast %179 : vector<32x16xf32> to vector<32x1x16xf32>
      tpu.vector_store %arg15[%c0_88, %c2_89, %c0_90], %182 {strides = array<i32>} : memref<32x16x16xf32, #tpu.memory_space<vmem>>, vector<32x1x16xf32>,
      %183 = vector.extract_strided_slice %139 {offsets = [3, 0, 0], sizes = [1, 16, 32], strides = [1, 1, 1]} : vector<16x16x32xf32> to vector<1x16x32xf32>
      %184 = vector.shape_cast %183 : vector<1x16x32xf32> to vector<16x32xf32>
      %185 = tpu.transpose %184, [1, 0] : vector<16x32xf32> -> vector<32x16xf32>
      %c0_91 = arith.constant 0 : index
      %c3_92 = arith.constant 3 : index
      %c0_93 = arith.constant 0 : index
      %186 = vector.load %arg14[%c0_91, %c3_92, %c0_93] : memref<32x16x16xf32, #tpu.memory_space<vmem>>, vector<32x1x16xf32>
      %187 = vector.shape_cast %186 : vector<32x1x16xf32> to vector<32x16xf32>
      %188 = vector.shape_cast %185 : vector<32x16xf32> to vector<32x1x16xf32>
      tpu.vector_store %arg14[%c0_91, %c3_92, %c0_93], %188 {strides = array<i32>} : memref<32x16x16xf32, #tpu.memory_space<vmem>>, vector<32x1x16xf32>,
      %189 = vector.extract_strided_slice %146 {offsets = [3, 0, 0], sizes = [1, 16, 32], strides = [1, 1, 1]} : vector<16x16x32xf32> to vector<1x16x32xf32>
      %190 = vector.shape_cast %189 : vector<1x16x32xf32> to vector<16x32xf32>
      %191 = tpu.transpose %190, [1, 0] : vector<16x32xf32> -> vector<32x16xf32>
      %c0_94 = arith.constant 0 : index
      %c3_95 = arith.constant 3 : index
      %c0_96 = arith.constant 0 : index
      %192 = vector.load %arg15[%c0_94, %c3_95, %c0_96] : memref<32x16x16xf32, #tpu.memory_space<vmem>>, vector<32x1x16xf32>
      %193 = vector.shape_cast %192 : vector<32x1x16xf32> to vector<32x16xf32>
      %194 = vector.shape_cast %191 : vector<32x16xf32> to vector<32x1x16xf32>
      tpu.vector_store %arg15[%c0_94, %c3_95, %c0_96], %194 {strides = array<i32>} : memref<32x16x16xf32, #tpu.memory_space<vmem>>, vector<32x1x16xf32>,
      %195 = vector.extract_strided_slice %139 {offsets = [4, 0, 0], sizes = [1, 16, 32], strides = [1, 1, 1]} : vector<16x16x32xf32> to vector<1x16x32xf32>
      %196 = vector.shape_cast %195 : vector<1x16x32xf32> to vector<16x32xf32>
      %197 = tpu.transpose %196, [1, 0] : vector<16x32xf32> -> vector<32x16xf32>
      %c0_97 = arith.constant 0 : index
      %c4_98 = arith.constant 4 : index
      %c0_99 = arith.constant 0 : index
      %198 = vector.load %arg14[%c0_97, %c4_98, %c0_99] : memref<32x16x16xf32, #tpu.memory_space<vmem>>, vector<32x1x16xf32>
      %199 = vector.shape_cast %198 : vector<32x1x16xf32> to vector<32x16xf32>
      %200 = vector.shape_cast %197 : vector<32x16xf32> to vector<32x1x16xf32>
      tpu.vector_store %arg14[%c0_97, %c4_98, %c0_99], %200 {strides = array<i32>} : memref<32x16x16xf32, #tpu.memory_space<vmem>>, vector<32x1x16xf32>,
      %201 = vector.extract_strided_slice %146 {offsets = [4, 0, 0], sizes = [1, 16, 32], strides = [1, 1, 1]} : vector<16x16x32xf32> to vector<1x16x32xf32>
      %202 = vector.shape_cast %201 : vector<1x16x32xf32> to vector<16x32xf32>
      %203 = tpu.transpose %202, [1, 0] : vector<16x32xf32> -> vector<32x16xf32>
      %c0_100 = arith.constant 0 : index
      %c4_101 = arith.constant 4 : index
      %c0_102 = arith.constant 0 : index
      %204 = vector.load %arg15[%c0_100, %c4_101, %c0_102] : memref<32x16x16xf32, #tpu.memory_space<vmem>>, vector<32x1x16xf32>
      %205 = vector.shape_cast %204 : vector<32x1x16xf32> to vector<32x16xf32>
      %206 = vector.shape_cast %203 : vector<32x16xf32> to vector<32x1x16xf32>
      tpu.vector_store %arg15[%c0_100, %c4_101, %c0_102], %206 {strides = array<i32>} : memref<32x16x16xf32, #tpu.memory_space<vmem>>, vector<32x1x16xf32>,
      %207 = vector.extract_strided_slice %139 {offsets = [5, 0, 0], sizes = [1, 16, 32], strides = [1, 1, 1]} : vector<16x16x32xf32> to vector<1x16x32xf32>
      %208 = vector.shape_cast %207 : vector<1x16x32xf32> to vector<16x32xf32>
      %209 = tpu.transpose %208, [1, 0] : vector<16x32xf32> -> vector<32x16xf32>
      %c0_103 = arith.constant 0 : index
      %c5_104 = arith.constant 5 : index
      %c0_105 = arith.constant 0 : index
      %210 = vector.load %arg14[%c0_103, %c5_104, %c0_105] : memref<32x16x16xf32, #tpu.memory_space<vmem>>, vector<32x1x16xf32>
      %211 = vector.shape_cast %210 : vector<32x1x16xf32> to vector<32x16xf32>
      %212 = vector.shape_cast %209 : vector<32x16xf32> to vector<32x1x16xf32>
      tpu.vector_store %arg14[%c0_103, %c5_104, %c0_105], %212 {strides = array<i32>} : memref<32x16x16xf32, #tpu.memory_space<vmem>>, vector<32x1x16xf32>,
      %213 = vector.extract_strided_slice %146 {offsets = [5, 0, 0], sizes = [1, 16, 32], strides = [1, 1, 1]} : vector<16x16x32xf32> to vector<1x16x32xf32>
      %214 = vector.shape_cast %213 : vector<1x16x32xf32> to vector<16x32xf32>
      %215 = tpu.transpose %214, [1, 0] : vector<16x32xf32> -> vector<32x16xf32>
      %c0_106 = arith.constant 0 : index
      %c5_107 = arith.constant 5 : index
      %c0_108 = arith.constant 0 : index
      %216 = vector.load %arg15[%c0_106, %c5_107, %c0_108] : memref<32x16x16xf32, #tpu.memory_space<vmem>>, vector<32x1x16xf32>
      %217 = vector.shape_cast %216 : vector<32x1x16xf32> to vector<32x16xf32>
      %218 = vector.shape_cast %215 : vector<32x16xf32> to vector<32x1x16xf32>
      tpu.vector_store %arg15[%c0_106, %c5_107, %c0_108], %218 {strides = array<i32>} : memref<32x16x16xf32, #tpu.memory_space<vmem>>, vector<32x1x16xf32>,
      %219 = vector.extract_strided_slice %139 {offsets = [6, 0, 0], sizes = [1, 16, 32], strides = [1, 1, 1]} : vector<16x16x32xf32> to vector<1x16x32xf32>
      %220 = vector.shape_cast %219 : vector<1x16x32xf32> to vector<16x32xf32>
      %221 = tpu.transpose %220, [1, 0] : vector<16x32xf32> -> vector<32x16xf32>
      %c0_109 = arith.constant 0 : index
      %c6_110 = arith.constant 6 : index
      %c0_111 = arith.constant 0 : index
      %222 = vector.load %arg14[%c0_109, %c6_110, %c0_111] : memref<32x16x16xf32, #tpu.memory_space<vmem>>, vector<32x1x16xf32>
      %223 = vector.shape_cast %222 : vector<32x1x16xf32> to vector<32x16xf32>
      %224 = vector.shape_cast %221 : vector<32x16xf32> to vector<32x1x16xf32>
      tpu.vector_store %arg14[%c0_109, %c6_110, %c0_111], %224 {strides = array<i32>} : memref<32x16x16xf32, #tpu.memory_space<vmem>>, vector<32x1x16xf32>,
      %225 = vector.extract_strided_slice %146 {offsets = [6, 0, 0], sizes = [1, 16, 32], strides = [1, 1, 1]} : vector<16x16x32xf32> to vector<1x16x32xf32>
      %226 = vector.shape_cast %225 : vector<1x16x32xf32> to vector<16x32xf32>
      %227 = tpu.transpose %226, [1, 0] : vector<16x32xf32> -> vector<32x16xf32>
      %c0_112 = arith.constant 0 : index
      %c6_113 = arith.constant 6 : index
      %c0_114 = arith.constant 0 : index
      %228 = vector.load %arg15[%c0_112, %c6_113, %c0_114] : memref<32x16x16xf32, #tpu.memory_space<vmem>>, vector<32x1x16xf32>
      %229 = vector.shape_cast %228 : vector<32x1x16xf32> to vector<32x16xf32>
      %230 = vector.shape_cast %227 : vector<32x16xf32> to vector<32x1x16xf32>
      tpu.vector_store %arg15[%c0_112, %c6_113, %c0_114], %230 {strides = array<i32>} : memref<32x16x16xf32, #tpu.memory_space<vmem>>, vector<32x1x16xf32>,
      %231 = vector.extract_strided_slice %139 {offsets = [7, 0, 0], sizes = [1, 16, 32], strides = [1, 1, 1]} : vector<16x16x32xf32> to vector<1x16x32xf32>
      %232 = vector.shape_cast %231 : vector<1x16x32xf32> to vector<16x32xf32>
      %233 = tpu.transpose %232, [1, 0] : vector<16x32xf32> -> vector<32x16xf32>
      %c0_115 = arith.constant 0 : index
      %c7_116 = arith.constant 7 : index
      %c0_117 = arith.constant 0 : index
      %234 = vector.load %arg14[%c0_115, %c7_116, %c0_117] : memref<32x16x16xf32, #tpu.memory_space<vmem>>, vector<32x1x16xf32>
      %235 = vector.shape_cast %234 : vector<32x1x16xf32> to vector<32x16xf32>
      %236 = vector.shape_cast %233 : vector<32x16xf32> to vector<32x1x16xf32>
      tpu.vector_store %arg14[%c0_115, %c7_116, %c0_117], %236 {strides = array<i32>} : memref<32x16x16xf32, #tpu.memory_space<vmem>>, vector<32x1x16xf32>,
      %237 = vector.extract_strided_slice %146 {offsets = [7, 0, 0], sizes = [1, 16, 32], strides = [1, 1, 1]} : vector<16x16x32xf32> to vector<1x16x32xf32>
      %238 = vector.shape_cast %237 : vector<1x16x32xf32> to vector<16x32xf32>
      %239 = tpu.transpose %238, [1, 0] : vector<16x32xf32> -> vector<32x16xf32>
      %c0_118 = arith.constant 0 : index
      %c7_119 = arith.constant 7 : index
      %c0_120 = arith.constant 0 : index
      %240 = vector.load %arg15[%c0_118, %c7_119, %c0_120] : memref<32x16x16xf32, #tpu.memory_space<vmem>>, vector<32x1x16xf32>
      %241 = vector.shape_cast %240 : vector<32x1x16xf32> to vector<32x16xf32>
      %242 = vector.shape_cast %239 : vector<32x16xf32> to vector<32x1x16xf32>
      tpu.vector_store %arg15[%c0_118, %c7_119, %c0_120], %242 {strides = array<i32>} : memref<32x16x16xf32, #tpu.memory_space<vmem>>, vector<32x1x16xf32>,
      %243 = vector.extract_strided_slice %139 {offsets = [8, 0, 0], sizes = [1, 16, 32], strides = [1, 1, 1]} : vector<16x16x32xf32> to vector<1x16x32xf32>
      %244 = vector.shape_cast %243 : vector<1x16x32xf32> to vector<16x32xf32>
      %245 = tpu.transpose %244, [1, 0] : vector<16x32xf32> -> vector<32x16xf32>
      %c0_121 = arith.constant 0 : index
      %c8 = arith.constant 8 : index
      %c0_122 = arith.constant 0 : index
      %246 = vector.load %arg14[%c0_121, %c8, %c0_122] : memref<32x16x16xf32, #tpu.memory_space<vmem>>, vector<32x1x16xf32>
      %247 = vector.shape_cast %246 : vector<32x1x16xf32> to vector<32x16xf32>
      %248 = vector.shape_cast %245 : vector<32x16xf32> to vector<32x1x16xf32>
      tpu.vector_store %arg14[%c0_121, %c8, %c0_122], %248 {strides = array<i32>} : memref<32x16x16xf32, #tpu.memory_space<vmem>>, vector<32x1x16xf32>,
      %249 = vector.extract_strided_slice %146 {offsets = [8, 0, 0], sizes = [1, 16, 32], strides = [1, 1, 1]} : vector<16x16x32xf32> to vector<1x16x32xf32>
      %250 = vector.shape_cast %249 : vector<1x16x32xf32> to vector<16x32xf32>
      %251 = tpu.transpose %250, [1, 0] : vector<16x32xf32> -> vector<32x16xf32>
      %c0_123 = arith.constant 0 : index
      %c8_124 = arith.constant 8 : index
      %c0_125 = arith.constant 0 : index
      %252 = vector.load %arg15[%c0_123, %c8_124, %c0_125] : memref<32x16x16xf32, #tpu.memory_space<vmem>>, vector<32x1x16xf32>
      %253 = vector.shape_cast %252 : vector<32x1x16xf32> to vector<32x16xf32>
      %254 = vector.shape_cast %251 : vector<32x16xf32> to vector<32x1x16xf32>
      tpu.vector_store %arg15[%c0_123, %c8_124, %c0_125], %254 {strides = array<i32>} : memref<32x16x16xf32, #tpu.memory_space<vmem>>, vector<32x1x16xf32>,
      %255 = vector.extract_strided_slice %139 {offsets = [9, 0, 0], sizes = [1, 16, 32], strides = [1, 1, 1]} : vector<16x16x32xf32> to vector<1x16x32xf32>
      %256 = vector.shape_cast %255 : vector<1x16x32xf32> to vector<16x32xf32>
      %257 = tpu.transpose %256, [1, 0] : vector<16x32xf32> -> vector<32x16xf32>
      %c0_126 = arith.constant 0 : index
      %c9 = arith.constant 9 : index
      %c0_127 = arith.constant 0 : index
      %258 = vector.load %arg14[%c0_126, %c9, %c0_127] : memref<32x16x16xf32, #tpu.memory_space<vmem>>, vector<32x1x16xf32>
      %259 = vector.shape_cast %258 : vector<32x1x16xf32> to vector<32x16xf32>
      %260 = vector.shape_cast %257 : vector<32x16xf32> to vector<32x1x16xf32>
      tpu.vector_store %arg14[%c0_126, %c9, %c0_127], %260 {strides = array<i32>} : memref<32x16x16xf32, #tpu.memory_space<vmem>>, vector<32x1x16xf32>,
      %261 = vector.extract_strided_slice %146 {offsets = [9, 0, 0], sizes = [1, 16, 32], strides = [1, 1, 1]} : vector<16x16x32xf32> to vector<1x16x32xf32>
      %262 = vector.shape_cast %261 : vector<1x16x32xf32> to vector<16x32xf32>
      %263 = tpu.transpose %262, [1, 0] : vector<16x32xf32> -> vector<32x16xf32>
      %c0_128 = arith.constant 0 : index
      %c9_129 = arith.constant 9 : index
      %c0_130 = arith.constant 0 : index
      %264 = vector.load %arg15[%c0_128, %c9_129, %c0_130] : memref<32x16x16xf32, #tpu.memory_space<vmem>>, vector<32x1x16xf32>
      %265 = vector.shape_cast %264 : vector<32x1x16xf32> to vector<32x16xf32>
      %266 = vector.shape_cast %263 : vector<32x16xf32> to vector<32x1x16xf32>
      tpu.vector_store %arg15[%c0_128, %c9_129, %c0_130], %266 {strides = array<i32>} : memref<32x16x16xf32, #tpu.memory_space<vmem>>, vector<32x1x16xf32>,
      %267 = vector.extract_strided_slice %139 {offsets = [10, 0, 0], sizes = [1, 16, 32], strides = [1, 1, 1]} : vector<16x16x32xf32> to vector<1x16x32xf32>
      %268 = vector.shape_cast %267 : vector<1x16x32xf32> to vector<16x32xf32>
      %269 = tpu.transpose %268, [1, 0] : vector<16x32xf32> -> vector<32x16xf32>
      %c0_131 = arith.constant 0 : index
      %c10 = arith.constant 10 : index
      %c0_132 = arith.constant 0 : index
      %270 = vector.load %arg14[%c0_131, %c10, %c0_132] : memref<32x16x16xf32, #tpu.memory_space<vmem>>, vector<32x1x16xf32>
      %271 = vector.shape_cast %270 : vector<32x1x16xf32> to vector<32x16xf32>
      %272 = vector.shape_cast %269 : vector<32x16xf32> to vector<32x1x16xf32>
      tpu.vector_store %arg14[%c0_131, %c10, %c0_132], %272 {strides = array<i32>} : memref<32x16x16xf32, #tpu.memory_space<vmem>>, vector<32x1x16xf32>,
      %273 = vector.extract_strided_slice %146 {offsets = [10, 0, 0], sizes = [1, 16, 32], strides = [1, 1, 1]} : vector<16x16x32xf32> to vector<1x16x32xf32>
      %274 = vector.shape_cast %273 : vector<1x16x32xf32> to vector<16x32xf32>
      %275 = tpu.transpose %274, [1, 0] : vector<16x32xf32> -> vector<32x16xf32>
      %c0_133 = arith.constant 0 : index
      %c10_134 = arith.constant 10 : index
      %c0_135 = arith.constant 0 : index
      %276 = vector.load %arg15[%c0_133, %c10_134, %c0_135] : memref<32x16x16xf32, #tpu.memory_space<vmem>>, vector<32x1x16xf32>
      %277 = vector.shape_cast %276 : vector<32x1x16xf32> to vector<32x16xf32>
      %278 = vector.shape_cast %275 : vector<32x16xf32> to vector<32x1x16xf32>
      tpu.vector_store %arg15[%c0_133, %c10_134, %c0_135], %278 {strides = array<i32>} : memref<32x16x16xf32, #tpu.memory_space<vmem>>, vector<32x1x16xf32>,
      %279 = vector.extract_strided_slice %139 {offsets = [11, 0, 0], sizes = [1, 16, 32], strides = [1, 1, 1]} : vector<16x16x32xf32> to vector<1x16x32xf32>
      %280 = vector.shape_cast %279 : vector<1x16x32xf32> to vector<16x32xf32>
      %281 = tpu.transpose %280, [1, 0] : vector<16x32xf32> -> vector<32x16xf32>
      %c0_136 = arith.constant 0 : index
      %c11 = arith.constant 11 : index
      %c0_137 = arith.constant 0 : index
      %282 = vector.load %arg14[%c0_136, %c11, %c0_137] : memref<32x16x16xf32, #tpu.memory_space<vmem>>, vector<32x1x16xf32>
      %283 = vector.shape_cast %282 : vector<32x1x16xf32> to vector<32x16xf32>
      %284 = vector.shape_cast %281 : vector<32x16xf32> to vector<32x1x16xf32>
      tpu.vector_store %arg14[%c0_136, %c11, %c0_137], %284 {strides = array<i32>} : memref<32x16x16xf32, #tpu.memory_space<vmem>>, vector<32x1x16xf32>,
      %285 = vector.extract_strided_slice %146 {offsets = [11, 0, 0], sizes = [1, 16, 32], strides = [1, 1, 1]} : vector<16x16x32xf32> to vector<1x16x32xf32>
      %286 = vector.shape_cast %285 : vector<1x16x32xf32> to vector<16x32xf32>
      %287 = tpu.transpose %286, [1, 0] : vector<16x32xf32> -> vector<32x16xf32>
      %c0_138 = arith.constant 0 : index
      %c11_139 = arith.constant 11 : index
      %c0_140 = arith.constant 0 : index
      %288 = vector.load %arg15[%c0_138, %c11_139, %c0_140] : memref<32x16x16xf32, #tpu.memory_space<vmem>>, vector<32x1x16xf32>
      %289 = vector.shape_cast %288 : vector<32x1x16xf32> to vector<32x16xf32>
      %290 = vector.shape_cast %287 : vector<32x16xf32> to vector<32x1x16xf32>
      tpu.vector_store %arg15[%c0_138, %c11_139, %c0_140], %290 {strides = array<i32>} : memref<32x16x16xf32, #tpu.memory_space<vmem>>, vector<32x1x16xf32>,
      %291 = vector.extract_strided_slice %139 {offsets = [12, 0, 0], sizes = [1, 16, 32], strides = [1, 1, 1]} : vector<16x16x32xf32> to vector<1x16x32xf32>
      %292 = vector.shape_cast %291 : vector<1x16x32xf32> to vector<16x32xf32>
      %293 = tpu.transpose %292, [1, 0] : vector<16x32xf32> -> vector<32x16xf32>
      %c0_141 = arith.constant 0 : index
      %c12 = arith.constant 12 : index
      %c0_142 = arith.constant 0 : index
      %294 = vector.load %arg14[%c0_141, %c12, %c0_142] : memref<32x16x16xf32, #tpu.memory_space<vmem>>, vector<32x1x16xf32>
      %295 = vector.shape_cast %294 : vector<32x1x16xf32> to vector<32x16xf32>
      %296 = vector.shape_cast %293 : vector<32x16xf32> to vector<32x1x16xf32>
      tpu.vector_store %arg14[%c0_141, %c12, %c0_142], %296 {strides = array<i32>} : memref<32x16x16xf32, #tpu.memory_space<vmem>>, vector<32x1x16xf32>,
      %297 = vector.extract_strided_slice %146 {offsets = [12, 0, 0], sizes = [1, 16, 32], strides = [1, 1, 1]} : vector<16x16x32xf32> to vector<1x16x32xf32>
      %298 = vector.shape_cast %297 : vector<1x16x32xf32> to vector<16x32xf32>
      %299 = tpu.transpose %298, [1, 0] : vector<16x32xf32> -> vector<32x16xf32>
      %c0_143 = arith.constant 0 : index
      %c12_144 = arith.constant 12 : index
      %c0_145 = arith.constant 0 : index
      %300 = vector.load %arg15[%c0_143, %c12_144, %c0_145] : memref<32x16x16xf32, #tpu.memory_space<vmem>>, vector<32x1x16xf32>
      %301 = vector.shape_cast %300 : vector<32x1x16xf32> to vector<32x16xf32>
      %302 = vector.shape_cast %299 : vector<32x16xf32> to vector<32x1x16xf32>
      tpu.vector_store %arg15[%c0_143, %c12_144, %c0_145], %302 {strides = array<i32>} : memref<32x16x16xf32, #tpu.memory_space<vmem>>, vector<32x1x16xf32>,
      %303 = vector.extract_strided_slice %139 {offsets = [13, 0, 0], sizes = [1, 16, 32], strides = [1, 1, 1]} : vector<16x16x32xf32> to vector<1x16x32xf32>
      %304 = vector.shape_cast %303 : vector<1x16x32xf32> to vector<16x32xf32>
      %305 = tpu.transpose %304, [1, 0] : vector<16x32xf32> -> vector<32x16xf32>
      %c0_146 = arith.constant 0 : index
      %c13 = arith.constant 13 : index
      %c0_147 = arith.constant 0 : index
      %306 = vector.load %arg14[%c0_146, %c13, %c0_147] : memref<32x16x16xf32, #tpu.memory_space<vmem>>, vector<32x1x16xf32>
      %307 = vector.shape_cast %306 : vector<32x1x16xf32> to vector<32x16xf32>
      %308 = vector.shape_cast %305 : vector<32x16xf32> to vector<32x1x16xf32>
      tpu.vector_store %arg14[%c0_146, %c13, %c0_147], %308 {strides = array<i32>} : memref<32x16x16xf32, #tpu.memory_space<vmem>>, vector<32x1x16xf32>,
      %309 = vector.extract_strided_slice %146 {offsets = [13, 0, 0], sizes = [1, 16, 32], strides = [1, 1, 1]} : vector<16x16x32xf32> to vector<1x16x32xf32>
      %310 = vector.shape_cast %309 : vector<1x16x32xf32> to vector<16x32xf32>
      %311 = tpu.transpose %310, [1, 0] : vector<16x32xf32> -> vector<32x16xf32>
      %c0_148 = arith.constant 0 : index
      %c13_149 = arith.constant 13 : index
      %c0_150 = arith.constant 0 : index
      %312 = vector.load %arg15[%c0_148, %c13_149, %c0_150] : memref<32x16x16xf32, #tpu.memory_space<vmem>>, vector<32x1x16xf32>
      %313 = vector.shape_cast %312 : vector<32x1x16xf32> to vector<32x16xf32>
      %314 = vector.shape_cast %311 : vector<32x16xf32> to vector<32x1x16xf32>
      tpu.vector_store %arg15[%c0_148, %c13_149, %c0_150], %314 {strides = array<i32>} : memref<32x16x16xf32, #tpu.memory_space<vmem>>, vector<32x1x16xf32>,
      %315 = vector.extract_strided_slice %139 {offsets = [14, 0, 0], sizes = [1, 16, 32], strides = [1, 1, 1]} : vector<16x16x32xf32> to vector<1x16x32xf32>
      %316 = vector.shape_cast %315 : vector<1x16x32xf32> to vector<16x32xf32>
      %317 = tpu.transpose %316, [1, 0] : vector<16x32xf32> -> vector<32x16xf32>
      %c0_151 = arith.constant 0 : index
      %c14 = arith.constant 14 : index
      %c0_152 = arith.constant 0 : index
      %318 = vector.load %arg14[%c0_151, %c14, %c0_152] : memref<32x16x16xf32, #tpu.memory_space<vmem>>, vector<32x1x16xf32>
      %319 = vector.shape_cast %318 : vector<32x1x16xf32> to vector<32x16xf32>
      %320 = vector.shape_cast %317 : vector<32x16xf32> to vector<32x1x16xf32>
      tpu.vector_store %arg14[%c0_151, %c14, %c0_152], %320 {strides = array<i32>} : memref<32x16x16xf32, #tpu.memory_space<vmem>>, vector<32x1x16xf32>,
      %321 = vector.extract_strided_slice %146 {offsets = [14, 0, 0], sizes = [1, 16, 32], strides = [1, 1, 1]} : vector<16x16x32xf32> to vector<1x16x32xf32>
      %322 = vector.shape_cast %321 : vector<1x16x32xf32> to vector<16x32xf32>
      %323 = tpu.transpose %322, [1, 0] : vector<16x32xf32> -> vector<32x16xf32>
      %c0_153 = arith.constant 0 : index
      %c14_154 = arith.constant 14 : index
      %c0_155 = arith.constant 0 : index
      %324 = vector.load %arg15[%c0_153, %c14_154, %c0_155] : memref<32x16x16xf32, #tpu.memory_space<vmem>>, vector<32x1x16xf32>
      %325 = vector.shape_cast %324 : vector<32x1x16xf32> to vector<32x16xf32>
      %326 = vector.shape_cast %323 : vector<32x16xf32> to vector<32x1x16xf32>
      tpu.vector_store %arg15[%c0_153, %c14_154, %c0_155], %326 {strides = array<i32>} : memref<32x16x16xf32, #tpu.memory_space<vmem>>, vector<32x1x16xf32>,
      %327 = vector.extract_strided_slice %139 {offsets = [15, 0, 0], sizes = [1, 16, 32], strides = [1, 1, 1]} : vector<16x16x32xf32> to vector<1x16x32xf32>
      %328 = vector.shape_cast %327 : vector<1x16x32xf32> to vector<16x32xf32>
      %329 = tpu.transpose %328, [1, 0] : vector<16x32xf32> -> vector<32x16xf32>
      %c0_156 = arith.constant 0 : index
      %c15 = arith.constant 15 : index
      %c0_157 = arith.constant 0 : index
      %330 = vector.load %arg14[%c0_156, %c15, %c0_157] : memref<32x16x16xf32, #tpu.memory_space<vmem>>, vector<32x1x16xf32>
      %331 = vector.shape_cast %330 : vector<32x1x16xf32> to vector<32x16xf32>
      %332 = vector.shape_cast %329 : vector<32x16xf32> to vector<32x1x16xf32>
      tpu.vector_store %arg14[%c0_156, %c15, %c0_157], %332 {strides = array<i32>} : memref<32x16x16xf32, #tpu.memory_space<vmem>>, vector<32x1x16xf32>,
      %333 = vector.extract_strided_slice %146 {offsets = [15, 0, 0], sizes = [1, 16, 32], strides = [1, 1, 1]} : vector<16x16x32xf32> to vector<1x16x32xf32>
      %334 = vector.shape_cast %333 : vector<1x16x32xf32> to vector<16x32xf32>
      %335 = tpu.transpose %334, [1, 0] : vector<16x32xf32> -> vector<32x16xf32>
      %c0_158 = arith.constant 0 : index
      %c15_159 = arith.constant 15 : index
      %c0_160 = arith.constant 0 : index
      %336 = vector.load %arg15[%c0_158, %c15_159, %c0_160] : memref<32x16x16xf32, #tpu.memory_space<vmem>>, vector<32x1x16xf32>
      %337 = vector.shape_cast %336 : vector<32x1x16xf32> to vector<32x16xf32>
      %338 = vector.shape_cast %335 : vector<32x16xf32> to vector<32x1x16xf32>
      tpu.vector_store %arg15[%c0_158, %c15_159, %c0_160], %338 {strides = array<i32>} : memref<32x16x16xf32, #tpu.memory_space<vmem>>, vector<32x1x16xf32>,
    } else {
    }
    %c8_i32 = arith.constant 8 : i32
    %3 = arith.muli %arg1, %c8_i32 : i32
    %4 = tpu.assume_multiple %3, 8 : i32
    %c0 = arith.constant 0 : index
    %5 = arith.index_cast %4 : i32 to index
    %c0_1 = arith.constant 0 : index
    %6 = vector.load %arg14[%c0, %5, %c0_1] : memref<32x16x16xf32, #tpu.memory_space<vmem>>, vector<32x8x16xf32>
    %7 = arith.truncf %6 : vector<32x8x16xf32> to vector<32x8x16xbf16>
    %c0_2 = arith.constant 0 : index
    %c0_3 = arith.constant 0 : index
    %c0_4 = arith.constant 0 : index
    %8 = vector.load %arg15[%c0_2, %c0_3, %c0_4] : memref<32x16x16xf32, #tpu.memory_space<vmem>>, vector<32x16x16xf32>
    %9 = arith.truncf %8 : vector<32x16x16xf32> to vector<32x16x16xbf16>
    %cst = arith.constant dense<0.000000e+00> : vector<32x8x16xf32>
    %10 = tpu.matmul %7, %9, %cst {dimension_numbers = #tpu.dot_dimension_numbers<[2], [2], [1], [1], [0, 0, 0, 1, 1, 1], [0], [0]>} : vector<32x8x16xbf16>, vector<32x16x16xbf16>, vector<32x8x16xf32> -> vector<32x8x16xf32>
    %c0_5 = arith.constant 0 : index
    %c0_6 = arith.constant 0 : index
    %c0_7 = arith.constant 0 : index
    %11 = vector.load %arg17[%c0_5, %c0_6, %c0_7] : memref<32x8x16xf32, #tpu.memory_space<vmem>>, vector<32x8x16xf32>
    tpu.vector_store %arg17[%c0_5, %c0_6, %c0_7], %10 {strides = array<i32>} : memref<32x8x16xf32, #tpu.memory_space<vmem>>, vector<32x8x16xf32>,
    %c0_8 = arith.constant 0 : index
    %c0_9 = arith.constant 0 : index
    %c0_10 = arith.constant 0 : index
    %12 = vector.load %arg17[%c0_8, %c0_9, %c0_10] : memref<32x8x16xf32, #tpu.memory_space<vmem>>, vector<32x1x16xf32>
    %13 = vector.shape_cast %12 : vector<32x1x16xf32> to vector<32x16xf32>
    %14 = tpu.transpose %13, [1, 0] : vector<32x16xf32> -> vector<16x32xf32>
    %c0_11 = arith.constant 0 : index
    %c1 = arith.constant 1 : index
    %c0_12 = arith.constant 0 : index
    %15 = vector.load %arg17[%c0_11, %c1, %c0_12] : memref<32x8x16xf32, #tpu.memory_space<vmem>>, vector<32x1x16xf32>
    %16 = vector.shape_cast %15 : vector<32x1x16xf32> to vector<32x16xf32>
    %17 = tpu.transpose %16, [1, 0] : vector<32x16xf32> -> vector<16x32xf32>
    %c0_13 = arith.constant 0 : index
    %c2 = arith.constant 2 : index
    %c0_14 = arith.constant 0 : index
    %18 = vector.load %arg17[%c0_13, %c2, %c0_14] : memref<32x8x16xf32, #tpu.memory_space<vmem>>, vector<32x1x16xf32>
    %19 = vector.shape_cast %18 : vector<32x1x16xf32> to vector<32x16xf32>
    %20 = tpu.transpose %19, [1, 0] : vector<32x16xf32> -> vector<16x32xf32>
    %c0_15 = arith.constant 0 : index
    %c3 = arith.constant 3 : index
    %c0_16 = arith.constant 0 : index
    %21 = vector.load %arg17[%c0_15, %c3, %c0_16] : memref<32x8x16xf32, #tpu.memory_space<vmem>>, vector<32x1x16xf32>
    %22 = vector.shape_cast %21 : vector<32x1x16xf32> to vector<32x16xf32>
    %23 = tpu.transpose %22, [1, 0] : vector<32x16xf32> -> vector<16x32xf32>
    %c0_17 = arith.constant 0 : index
    %c4 = arith.constant 4 : index
    %c0_18 = arith.constant 0 : index
    %24 = vector.load %arg17[%c0_17, %c4, %c0_18] : memref<32x8x16xf32, #tpu.memory_space<vmem>>, vector<32x1x16xf32>
    %25 = vector.shape_cast %24 : vector<32x1x16xf32> to vector<32x16xf32>
    %26 = tpu.transpose %25, [1, 0] : vector<32x16xf32> -> vector<16x32xf32>
    %c0_19 = arith.constant 0 : index
    %c5 = arith.constant 5 : index
    %c0_20 = arith.constant 0 : index
    %27 = vector.load %arg17[%c0_19, %c5, %c0_20] : memref<32x8x16xf32, #tpu.memory_space<vmem>>, vector<32x1x16xf32>
    %28 = vector.shape_cast %27 : vector<32x1x16xf32> to vector<32x16xf32>
    %29 = tpu.transpose %28, [1, 0] : vector<32x16xf32> -> vector<16x32xf32>
    %c0_21 = arith.constant 0 : index
    %c6 = arith.constant 6 : index
    %c0_22 = arith.constant 0 : index
    %30 = vector.load %arg17[%c0_21, %c6, %c0_22] : memref<32x8x16xf32, #tpu.memory_space<vmem>>, vector<32x1x16xf32>
    %31 = vector.shape_cast %30 : vector<32x1x16xf32> to vector<32x16xf32>
    %32 = tpu.transpose %31, [1, 0] : vector<32x16xf32> -> vector<16x32xf32>
    %c0_23 = arith.constant 0 : index
    %c7 = arith.constant 7 : index
    %c0_24 = arith.constant 0 : index
    %33 = vector.load %arg17[%c0_23, %c7, %c0_24] : memref<32x8x16xf32, #tpu.memory_space<vmem>>, vector<32x1x16xf32>
    %34 = vector.shape_cast %33 : vector<32x1x16xf32> to vector<32x16xf32>
    %35 = tpu.transpose %34, [1, 0] : vector<32x16xf32> -> vector<16x32xf32>
    %36 = tpu.concatenate %14, %17, %20, %23, %26, %29, %32, %35 in 0 : vector<16x32xf32>, vector<16x32xf32>, vector<16x32xf32>, vector<16x32xf32>, vector<16x32xf32>, vector<16x32xf32>, vector<16x32xf32>, vector<16x32xf32> -> vector<128x32xf32>
    %c8_i32_25 = arith.constant 8 : i32
    %37 = arith.muli %arg1, %c8_i32_25 : i32
    %c16_i32 = arith.constant 16 : i32
    %38 = arith.muli %37, %c16_i32 : i32
    %39 = tpu.assume_multiple %38, 128 : i32
    %40 = arith.index_cast %39 : i32 to index
    %c0_26 = arith.constant 0 : index
    %41 = vector.load %arg16[%40, %c0_26] : memref<256x32xf32, #tpu.memory_space<vmem>>, vector<128x32xf32>
    %c0_27 = arith.constant 0 : index
    %c0_28 = arith.constant 0 : index
    %42 = vector.load %arg9[%c0_27, %c0_28] : memref<1x32xf32, #tpu.memory_space<vmem>>, vector<1x32xf32>
    %c0_29 = arith.constant 0 : index
    %c0_30 = arith.constant 0 : index
    %43 = vector.load %arg10[%c0_29, %c0_30] : memref<1x32xf32, #tpu.memory_space<vmem>>, vector<1x32xf32>
    %cst_31 = arith.constant dense<0.000000e+00> : vector<128xf32>
    %44 = vector.multi_reduction <add>, %36, %cst_31 [1] : vector<128x32xf32> to vector<128xf32>
    %45 = vector.shape_cast %44 : vector<128xf32> to vector<128x1xf32>
    %cst_32 = arith.constant 3.200000e+01 : f32
    %46 = vector.broadcast %cst_32 : f32 to vector<128x1xf32>
    %47 = arith.divf %45, %46 : vector<128x1xf32>
    %48 = vector.broadcast %47 : vector<128x1xf32> to vector<128x32xf32>
    %49 = arith.subf %36, %48 : vector<128x32xf32>
    %50 = arith.mulf %49, %49 : vector<128x32xf32>
    %cst_33 = arith.constant dense<0.000000e+00> : vector<128xf32>
    %51 = vector.multi_reduction <add>, %50, %cst_33 [1] : vector<128x32xf32> to vector<128xf32>
    %52 = vector.shape_cast %51 : vector<128xf32> to vector<128x1xf32>
    %cst_34 = arith.constant 3.200000e+01 : f32
    %53 = vector.broadcast %cst_34 : f32 to vector<128x1xf32>
    %54 = arith.divf %52, %53 : vector<128x1xf32>
    %55 = vector.broadcast %47 : vector<128x1xf32> to vector<128x32xf32>
    %56 = arith.subf %36, %55 : vector<128x32xf32>
    %cst_35 = arith.constant 9.99999974E-6 : f32
    %57 = vector.broadcast %cst_35 : f32 to vector<128x1xf32>
    %58 = arith.addf %54, %57 : vector<128x1xf32>
    %59 = math.rsqrt %58 : vector<128x1xf32>
    %60 = vector.broadcast %59 : vector<128x1xf32> to vector<128x32xf32>
    %61 = arith.mulf %56, %60 : vector<128x32xf32>
    %62 = vector.broadcast %42 : vector<1x32xf32> to vector<128x32xf32>
    %63 = arith.mulf %61, %62 : vector<128x32xf32>
    %64 = vector.broadcast %43 : vector<1x32xf32> to vector<128x32xf32>
    %65 = arith.addf %63, %64 : vector<128x32xf32>
    %66 = arith.mulf %65, %41 : vector<128x32xf32>
    %67 = arith.truncf %66 : vector<128x32xf32> to vector<128x32xbf16>
    %c0_36 = arith.constant 0 : index
    %c0_37 = arith.constant 0 : index
    %68 = vector.load %arg11[%c0_36, %c0_37] : memref<32x32xbf16, #tpu.memory_space<vmem>>, vector<32x32xbf16>
    %cst_38 = arith.constant dense<0.000000e+00> : vector<128x32xf32>
    %69 = tpu.matmul %67, %68, %cst_38 {dimension_numbers = #tpu.dot_dimension_numbers<[1], [0], [0], [1], [0, 0, 1, 1], [], []>} : vector<128x32xbf16>, vector<32x32xbf16>, vector<128x32xf32> -> vector<128x32xf32>
    %c0_39 = arith.constant 0 : index
    %c0_40 = arith.constant 0 : index
    %70 = vector.load %arg12[%c0_39, %c0_40] : memref<1x32xf32, #tpu.memory_space<vmem>>, vector<1x32xf32>
    %71 = vector.broadcast %70 : vector<1x32xf32> to vector<128x32xf32>
    %72 = arith.addf %69, %71 : vector<128x32xf32>
    %c0_41 = arith.constant 0 : index
    %c0_42 = arith.constant 0 : index
    %c0_43 = arith.constant 0 : index
    %73 = vector.load %arg13[%c0_41, %c0_42, %c0_43] : memref<1x128x32xf32, #tpu.memory_space<vmem>>, vector<1x128x32xf32>
    %74 = vector.shape_cast %73 : vector<1x128x32xf32> to vector<128x32xf32>
    %75 = vector.shape_cast %72 : vector<128x32xf32> to vector<1x128x32xf32>
    tpu.vector_store %arg13[%c0_41, %c0_42, %c0_43], %75 {strides = array<i32>} : memref<1x128x32xf32, #tpu.memory_space<vmem>>, vector<1x128x32xf32>,
    return
  }
  func.func @transform_0(%arg0: i32, %arg1: i32) -> (i32, i32, i32) {
    %c0_i32 = arith.constant 0 : i32
    %c0_i32_0 = arith.constant 0 : i32
    %c0_i32_1 = arith.constant 0 : i32
    return %arg0, %c0_i32, %c0_i32_0 : i32, i32, i32
  }
  func.func @transform_1(%arg0: i32, %arg1: i32) -> (i32, i32, i32, i32) {
    %c0_i32 = arith.constant 0 : i32
    %c0_i32_0 = arith.constant 0 : i32
    %c0_i32_1 = arith.constant 0 : i32
    %c0_i32_2 = arith.constant 0 : i32
    return %arg0, %c0_i32, %c0_i32_0, %c0_i32_1 : i32, i32, i32, i32
  }
  func.func @transform_2(%arg0: i32, %arg1: i32) -> (i32, i32, i32) {
    %c0_i32 = arith.constant 0 : i32
    %c0_i32_0 = arith.constant 0 : i32
    %c0_i32_1 = arith.constant 0 : i32
    return %arg0, %c0_i32, %c0_i32_0 : i32, i32, i32
  }
  func.func @transform_3(%arg0: i32, %arg1: i32) -> (i32, i32) {
    %c0_i32 = arith.constant 0 : i32
    %c0_i32_0 = arith.constant 0 : i32
    %c0_i32_1 = arith.constant 0 : i32
    return %c0_i32, %c0_i32_0 : i32, i32
  }
  func.func @transform_4(%arg0: i32, %arg1: i32) -> (i32, i32) {
    %c0_i32 = arith.constant 0 : i32
    %c0_i32_0 = arith.constant 0 : i32
    %c0_i32_1 = arith.constant 0 : i32
    return %c0_i32, %c0_i32_0 : i32, i32
  }
  func.func @transform_5(%arg0: i32, %arg1: i32) -> (i32, i32) {
    %c0_i32 = arith.constant 0 : i32
    %c0_i32_0 = arith.constant 0 : i32
    %c0_i32_1 = arith.constant 0 : i32
    return %c0_i32, %c0_i32_0 : i32, i32
  }
  func.func @transform_6(%arg0: i32, %arg1: i32) -> (i32, i32) {
    %c0_i32 = arith.constant 0 : i32
    %c0_i32_0 = arith.constant 0 : i32
    %c0_i32_1 = arith.constant 0 : i32
    return %c0_i32, %c0_i32_0 : i32, i32
  }
  func.func @transform_7(%arg0: i32, %arg1: i32) -> (i32, i32) {
    %c0_i32 = arith.constant 0 : i32
    %c0_i32_0 = arith.constant 0 : i32
    %c0_i32_1 = arith.constant 0 : i32
    return %c0_i32, %c0_i32_0 : i32, i32
  }
  func.func @transform_8(%arg0: i32, %arg1: i32) -> (i32, i32) {
    %c0_i32 = arith.constant 0 : i32
    %c0_i32_0 = arith.constant 0 : i32
    %c0_i32_1 = arith.constant 0 : i32
    return %c0_i32, %c0_i32_0 : i32, i32
  }
  func.func @transform_9(%arg0: i32, %arg1: i32) -> (i32, i32) {
    %c0_i32 = arith.constant 0 : i32
    %c0_i32_0 = arith.constant 0 : i32
    %c0_i32_1 = arith.constant 0 : i32
    return %c0_i32, %c0_i32_0 : i32, i32
  }
  func.func @transform_10(%arg0: i32, %arg1: i32) -> (i32, i32) {
    %c0_i32 = arith.constant 0 : i32
    %c0_i32_0 = arith.constant 0 : i32
    %c0_i32_1 = arith.constant 0 : i32
    return %c0_i32, %c0_i32_0 : i32, i32
  }
  func.func @transform_11(%arg0: i32, %arg1: i32) -> (i32, i32, i32) {
    %c0_i32 = arith.constant 0 : i32
    %c0_i32_0 = arith.constant 0 : i32
    return %arg0, %arg1, %c0_i32 : i32, i32, i32
  }
}

</mosaic_0001>

<llo_original>
// kernel: tpu_custom_call.1
$region0: #{tpu_custom_call.1}
  #allocation0 [shape = 'u32[]', space=smem, size = 0x4, offset = 0x4, fixed_abs, tag = 'smem constant byte address 0x4 - core index']
  #allocation1 [shape = 'u32[72,128]{1,0:T(1,128)}', space=vmem, size = 0x9000, scoped, tag = 'internal scratch']
  #allocation2 [shape = 'f32[32,16,16]{2,1,0:T(8,128)}', space=vmem, size = 0x40000, scoped, tag = 'scratch operand']
  #allocation3 [shape = 'f32[32,16,16]{2,1,0:T(8,128)}', space=vmem, size = 0x40000, scoped, tag = 'scratch operand']
  #allocation4 [shape = 'f32[256,32]{1,0:T(8,128)}', space=vmem, size = 0x20000, scoped, tag = 'scratch operand']
  #allocation5 [shape = 'f32[32,8,16]{2,1,0:T(8,128)}', space=vmem, size = 0x20000, scoped, tag = 'scratch operand']
  %s0 = inlined_call_operand.vmem [shape: f32[2,256,32], index: 0, kind: input, shape index: {}]
  %s1 = inlined_call_operand.vmem [shape: f32[2,16,1,1], index: 1, kind: input, shape index: {}]
  %s2 = inlined_call_operand.vmem [shape: f32[2,16,1], index: 2, kind: input, shape index: {}]
  %s3 = inlined_call_operand.vmem [shape: f32[1,32], index: 3, kind: input, shape index: {}]
  %s4 = inlined_call_operand.vmem [shape: f32[1,32], index: 4, kind: input, shape index: {}]
  %s5 = inlined_call_operand.vmem [shape: bf16[32,160], index: 5, kind: input, shape index: {}]
  %s6 = inlined_call_operand.vmem [shape: f32[1,160], index: 6, kind: input, shape index: {}]
  %s7 = inlined_call_operand.vmem [shape: f32[1,32], index: 7, kind: input, shape index: {}]
  %s8 = inlined_call_operand.vmem [shape: f32[1,32], index: 8, kind: input, shape index: {}]
  %s9 = inlined_call_operand.vmem [shape: bf16[32,32], index: 9, kind: input, shape index: {}]
  %s10 = inlined_call_operand.vmem [shape: f32[1,32], index: 10, kind: input, shape index: {}]
  %s11 = inlined_call_operand.vmem [shape: f32[2,256,32], index: 11, kind: output, shape index: {}]
  %s12 = sld [smem:[#allocation0]]
  $region81: #{tpu_custom_call.1} parent=0
    _
  %s14 = ssub.s32 1, %s12
  %s15 = scalar_select 0, %s14, %s12
  loop: start=0, step=1, limit=6
  $region2: #{tpu_custom_call.1} parent=0 // loop_pre_header
    _
  $region3: #{tpu_custom_call.1} parent=0 // loop_header
    %s17 = sphi 0, %s21
    %p18 = scmp.ge.s32.totalorder %s17, 6
    %s24 = sphi 0, %s36
    %s25 = sphi 0, %s32
    %s26 = sphi 0, %s24
    %s27 = sphi 0, %s25
    %s28 = sphi 0, %s26
    %s29 = sphi 0, %s27
    %s39 = sphi 0, %s41
    %s42 = sphi 0, %s39
    %s43 = sphi 0, %s42
    %s59 = sphi 0, %s43
    %s65 = sphi 0, %s67
    %s68 = sphi 0, %s65
    %s69 = sphi 0, %s68
    %s85 = sphi 0, %s69
    %s91 = sphi 0, %s93
    %s94 = sphi 0, %s91
    %s95 = sphi 0, %s94
    %s111 = sphi 0, %s95
    %s115 = sphi 0, %s115
    %s117 = sphi 0, %s115
    %s118 = sphi 0, %s117
    %s132 = sphi 0, %s118
    %s136 = sphi 0, %s136
    %s138 = sphi 0, %s136
    %s139 = sphi 0, %s138
    %s153 = sphi 0, %s139
    %s157 = sphi 0, %s157
    %s159 = sphi 0, %s157
    %s160 = sphi 0, %s159
    %s174 = sphi 0, %s160
    %s178 = sphi 0, %s178
    %s180 = sphi 0, %s178
    %s181 = sphi 0, %s180
    %s195 = sphi 0, %s181
    %s199 = sphi 0, %s199
    %s201 = sphi 0, %s199
    %s202 = sphi 0, %s201
    %s216 = sphi 0, %s202
    %s220 = sphi 0, %s220
    %s222 = sphi 0, %s220
    %s223 = sphi 0, %s222
    %s237 = sphi 0, %s223
    %s241 = sphi 0, %s241
    %s243 = sphi 0, %s241
    %s244 = sphi 0, %s243
    %s258 = sphi 0, %s244
    %s262 = sphi 0, %s262
    %s264 = sphi 0, %s262
    %s265 = sphi 0, %s264
    %s279 = sphi 0, %s265
    %s287 = sphi 0, %s289
    %s290 = sphi 0, %s287
    %s291 = sphi 0, %s290
    %s307 = sphi 0, %s291
  $region4: #{tpu_custom_call.1} parent=0 // loop_header_branch
    %20 = sbr.rel (%p18) target = $region8
  $region5: #{tpu_custom_call.1} parent=0 // loop_body
    %s22 = ssub.s32 %s17, 1
    %s23 = ssub.s32 %s17, 2
    %s30 = sadd.s32 1, %s25
    %p31 = scmp.ge.s32.totalorder %s30, 2
    %s32 = scalar_select %p31, 0, %s30
    %s33 = sadd.s32 1, %s24
    %s34 = scalar_select %p31, %s33, %s24
    %p35 = scmp.ge.s32.totalorder %s34, 2
    %s36 = scalar_select %p35, 0, %s34
    %s37 = ssub.s32 %s24, %s36
    %p38 = scmp.eq.s32.totalorder %s37, 0
    %s40 = sadd.s32 %s39, 1
    %s41 = scalar_select %p38, %s39, %s40
    %p44 = pneg %p38
    %p45 = scmp.eq.s32.totalorder %s17, 3
    %p46 = por %p44, %p45
    %p47 = scmp.ne.s32.totalorder %s39, %s42
    %p48 = scmp.eq.s32.totalorder %s17, 0
    %p49 = por %p47, %p48
    %p50 = scmp.ne.s32.totalorder %s39, %s42
    %p51 = scmp.eq.s32.totalorder %s22, 3
    %p52 = por %p50, %p51
    %p53 = scmp.ne.s32.totalorder %s42, %s43
    %p54 = scmp.eq.s32.totalorder %s22, 0
    %p55 = por %p53, %p54
    %p56 = scmp.ne.s32.totalorder %s42, %s43
    %p57 = scmp.eq.s32.totalorder %s23, 3
    %p58 = por %p56, %p57
    %p60 = scmp.ne.s32.totalorder %s43, %s59
    %p61 = scmp.eq.s32.totalorder %s23, 0
    %p62 = por %p60, %p61
    %s63 = ssub.s32 %s24, %s36
    %p64 = scmp.eq.s32.totalorder %s63, 0
    %s66 = sadd.s32 %s65, 1
    %s67 = scalar_select %p64, %s65, %s66
    %p70 = pneg %p64
    %p71 = scmp.eq.s32.totalorder %s17, 3
    %p72 = por %p70, %p71
    %p73 = scmp.ne.s32.totalorder %s65, %s68
    %p74 = scmp.eq.s32.totalorder %s17, 0
    %p75 = por %p73, %p74
    %p76 = scmp.ne.s32.totalorder %s65, %s68
    %p77 = scmp.eq.s32.totalorder %s22, 3
    %p78 = por %p76, %p77
    %p79 = scmp.ne.s32.totalorder %s68, %s69
    %p80 = scmp.eq.s32.totalorder %s22, 0
    %p81 = por %p79, %p80
    %p82 = scmp.ne.s32.totalorder %s68, %s69
    %p83 = scmp.eq.s32.totalorder %s23, 3
    %p84 = por %p82, %p83
    %p86 = scmp.ne.s32.totalorder %s69, %s85
    %p87 = scmp.eq.s32.totalorder %s23, 0
    %p88 = por %p86, %p87
    %s89 = ssub.s32 %s24, %s36
    %p90 = scmp.eq.s32.totalorder %s89, 0
    %s92 = sadd.s32 %s91, 1
    %s93 = scalar_select %p90, %s91, %s92
    %p96 = pneg %p90
    %p97 = scmp.eq.s32.totalorder %s17, 3
    %p98 = por %p96, %p97
    %p99 = scmp.ne.s32.totalorder %s91, %s94
    %p100 = scmp.eq.s32.totalorder %s17, 0
    %p101 = por %p99, %p100
    %p102 = scmp.ne.s32.totalorder %s91, %s94
    %p103 = scmp.eq.s32.totalorder %s22, 3
    %p104 = por %p102, %p103
    %p105 = scmp.ne.s32.totalorder %s94, %s95
    %p106 = scmp.eq.s32.totalorder %s22, 0
    %p107 = por %p105, %p106
    %p108 = scmp.ne.s32.totalorder %s94, %s95
    %p109 = scmp.eq.s32.totalorder %s23, 3
    %p110 = por %p108, %p109
    %p112 = scmp.ne.s32.totalorder %s95, %s111
    %p113 = scmp.eq.s32.totalorder %s23, 0
    %p114 = por %p112, %p113
    %s116 = sadd.s32 %s115, 1
    %p119 = scmp.eq.s32.totalorder %s17, 3
    %p120 = scmp.ne.s32.totalorder %s115, %s117
    %p121 = scmp.eq.s32.totalorder %s17, 0
    %p122 = por %p120, %p121
    %p123 = scmp.ne.s32.totalorder %s115, %s117
    %p124 = scmp.eq.s32.totalorder %s22, 3
    %p125 = por %p123, %p124
    %p126 = scmp.ne.s32.totalorder %s117, %s118
    %p127 = scmp.eq.s32.totalorder %s22, 0
    %p128 = por %p126, %p127
    %p129 = scmp.ne.s32.totalorder %s117, %s118
    %p130 = scmp.eq.s32.totalorder %s23, 3
    %p131 = por %p129, %p130
    %p133 = scmp.ne.s32.totalorder %s118, %s132
    %p134 = scmp.eq.s32.totalorder %s23, 0
    %p135 = por %p133, %p134
    %s137 = sadd.s32 %s136, 1
    %p140 = scmp.eq.s32.totalorder %s17, 3
    %p141 = scmp.ne.s32.totalorder %s136, %s138
    %p142 = scmp.eq.s32.totalorder %s17, 0
    %p143 = por %p141, %p142
    %p144 = scmp.ne.s32.totalorder %s136, %s138
    %p145 = scmp.eq.s32.totalorder %s22, 3
    %p146 = por %p144, %p145
    %p147 = scmp.ne.s32.totalorder %s138, %s139
    %p148 = scmp.eq.s32.totalorder %s22, 0
    %p149 = por %p147, %p148
    %p150 = scmp.ne.s32.totalorder %s138, %s139
    %p151 = scmp.eq.s32.totalorder %s23, 3
    %p152 = por %p150, %p151
    %p154 = scmp.ne.s32.totalorder %s139, %s153
    %p155 = scmp.eq.s32.totalorder %s23, 0
    %p156 = por %p154, %p155
    %s158 = sadd.s32 %s157, 1
    %p161 = scmp.eq.s32.totalorder %s17, 3
    %p162 = scmp.ne.s32.totalorder %s157, %s159
    %p163 = scmp.eq.s32.totalorder %s17, 0
    %p164 = por %p162, %p163
    %p165 = scmp.ne.s32.totalorder %s157, %s159
    %p166 = scmp.eq.s32.totalorder %s22, 3
    %p167 = por %p165, %p166
    %p168 = scmp.ne.s32.totalorder %s159, %s160
    %p169 = scmp.eq.s32.totalorder %s22, 0
    %p170 = por %p168, %p169
    %p171 = scmp.ne.s32.totalorder %s159, %s160
    %p172 = scmp.eq.s32.totalorder %s23, 3
    %p173 = por %p171, %p172
    %p175 = scmp.ne.s32.totalorder %s160, %s174
    %p176 = scmp.eq.s32.totalorder %s23, 0
    %p177 = por %p175, %p176
    %s179 = sadd.s32 %s178, 1
    %p182 = scmp.eq.s32.totalorder %s17, 3
    %p183 = scmp.ne.s32.totalorder %s178, %s180
    %p184 = scmp.eq.s32.totalorder %s17, 0
    %p185 = por %p183, %p184
    %p186 = scmp.ne.s32.totalorder %s178, %s180
    %p187 = scmp.eq.s32.totalorder %s22, 3
    %p188 = por %p186, %p187
    %p189 = scmp.ne.s32.totalorder %s180, %s181
    %p190 = scmp.eq.s32.totalorder %s22, 0
    %p191 = por %p189, %p190
    %p192 = scmp.ne.s32.totalorder %s180, %s181
    %p193 = scmp.eq.s32.totalorder %s23, 3
    %p194 = por %p192, %p193
    %p196 = scmp.ne.s32.totalorder %s181, %s195
    %p197 = scmp.eq.s32.totalorder %s23, 0
    %p198 = por %p196, %p197
    %s200 = sadd.s32 %s199, 1
    %p203 = scmp.eq.s32.totalorder %s17, 3
    %p204 = scmp.ne.s32.totalorder %s199, %s201
    %p205 = scmp.eq.s32.totalorder %s17, 0
    %p206 = por %p204, %p205
    %p207 = scmp.ne.s32.totalorder %s199, %s201
    %p208 = scmp.eq.s32.totalorder %s22, 3
    %p209 = por %p207, %p208
    %p210 = scmp.ne.s32.totalorder %s201, %s202
    %p211 = scmp.eq.s32.totalorder %s22, 0
    %p212 = por %p210, %p211
    %p213 = scmp.ne.s32.totalorder %s201, %s202
    %p214 = scmp.eq.s32.totalorder %s23, 3
    %p215 = por %p213, %p214
    %p217 = scmp.ne.s32.totalorder %s202, %s216
    %p218 = scmp.eq.s32.totalorder %s23, 0
    %p219 = por %p217, %p218
    %s221 = sadd.s32 %s220, 1
    %p224 = scmp.eq.s32.totalorder %s17, 3
    %p225 = scmp.ne.s32.totalorder %s220, %s222
    %p226 = scmp.eq.s32.totalorder %s17, 0
    %p227 = por %p225, %p226
    %p228 = scmp.ne.s32.totalorder %s220, %s222
    %p229 = scmp.eq.s32.totalorder %s22, 3
    %p230 = por %p228, %p229
    %p231 = scmp.ne.s32.totalorder %s222, %s223
    %p232 = scmp.eq.s32.totalorder %s22, 0
    %p233 = por %p231, %p232
    %p234 = scmp.ne.s32.totalorder %s222, %s223
    %p235 = scmp.eq.s32.totalorder %s23, 3
    %p236 = por %p234, %p235
    %p238 = scmp.ne.s32.totalorder %s223, %s237
    %p239 = scmp.eq.s32.totalorder %s23, 0
    %p240 = por %p238, %p239
    %s242 = sadd.s32 %s241, 1
    %p245 = scmp.eq.s32.totalorder %s17, 3
    %p246 = scmp.ne.s32.totalorder %s241, %s243
    %p247 = scmp.eq.s32.totalorder %s17, 0
    %p248 = por %p246, %p247
    %p249 = scmp.ne.s32.totalorder %s241, %s243
    %p250 = scmp.eq.s32.totalorder %s22, 3
    %p251 = por %p249, %p250
    %p252 = scmp.ne.s32.totalorder %s243, %s244
    %p253 = scmp.eq.s32.totalorder %s22, 0
    %p254 = por %p252, %p253
    %p255 = scmp.ne.s32.totalorder %s243, %s244
    %p256 = scmp.eq.s32.totalorder %s23, 3
    %p257 = por %p255, %p256
    %p259 = scmp.ne.s32.totalorder %s244, %s258
    %p260 = scmp.eq.s32.totalorder %s23, 0
    %p261 = por %p259, %p260
    %s263 = sadd.s32 %s262, 1
    %p266 = scmp.eq.s32.totalorder %s17, 3
    %p267 = scmp.ne.s32.totalorder %s262, %s264
    %p268 = scmp.eq.s32.totalorder %s17, 0
    %p269 = por %p267, %p268
    %p270 = scmp.ne.s32.totalorder %s262, %s264
    %p271 = scmp.eq.s32.totalorder %s22, 3
    %p272 = por %p270, %p271
    %p273 = scmp.ne.s32.totalorder %s264, %s265
    %p274 = scmp.eq.s32.totalorder %s22, 0
    %p275 = por %p273, %p274
    %p276 = scmp.ne.s32.totalorder %s264, %s265
    %p277 = scmp.eq.s32.totalorder %s23, 3
    %p278 = por %p276, %p277
    %p280 = scmp.ne.s32.totalorder %s265, %s279
    %p281 = scmp.eq.s32.totalorder %s23, 0
    %p282 = por %p280, %p281
    %s283 = ssub.s32 %s24, %s36
    %s284 = ssub.s32 %s25, %s32
    %s285 = sor.u32 %s283, %s284
    %p286 = scmp.eq.s32.totalorder %s285, 0
    %s288 = sadd.s32 %s287, 1
    %s289 = scalar_select %p286, %s287, %s288
    %p292 = pneg %p286
    %p293 = scmp.eq.s32.totalorder %s17, 3
    %p294 = por %p292, %p293
    %p295 = scmp.ne.s32.totalorder %s287, %s290
    %p296 = scmp.eq.s32.totalorder %s17, 0
    %p297 = por %p295, %p296
    %p298 = scmp.ne.s32.totalorder %s287, %s290
    %p299 = scmp.eq.s32.totalorder %s22, 3
    %p300 = por %p298, %p299
    %p301 = scmp.ne.s32.totalorder %s290, %s291
    %p302 = scmp.eq.s32.totalorder %s22, 0
    %p303 = por %p301, %p302
    %p304 = scmp.ne.s32.totalorder %s290, %s291
    %p305 = scmp.eq.s32.totalorder %s23, 3
    %p306 = por %p304, %p305
    %p308 = scmp.ne.s32.totalorder %s291, %s307
    %p309 = scmp.eq.s32.totalorder %s23, 0
    %p310 = por %p308, %p309
    %p311 = scmp.le.s32.totalorder 1, %s17
    %p312 = scmp.lt.s32.totalorder %s17, 5
    %p313 = pnand %p311, %p312
    %p314 = pneg %p313
    // Predicated region
    $region9: #{tpu_custom_call.1} parent=5 // pred_check
      _
    $region10: #{tpu_custom_call.1} parent=5 // pred_check_branch
      %316 = sbr.rel (%p313) target = $region12
    $region11: #{tpu_custom_call.1} parent=5 // pred_region
      %s317 = ssub.s32 %s17, 1
      // Predicated region
      $region13: #{tpu_custom_call.1} parent=11 // pred_check
        %p318 = pneg %p128
      $region14: #{tpu_custom_call.1} parent=11 // pred_check_branch
        %320 = sbr.rel (%p318) target = $region16
      $region15: #{tpu_custom_call.1} parent=11 // pred_region
        _
      $region16: #{tpu_custom_call.1} parent=11 // pred_fallthru
        _
      // Predicated region
      $region17: #{tpu_custom_call.1} parent=11 // pred_check
        %p321 = pneg %p149
      $region18: #{tpu_custom_call.1} parent=11 // pred_check_branch
        %323 = sbr.rel (%p321) target = $region20
      $region19: #{tpu_custom_call.1} parent=11 // pred_region
        _
      $region20: #{tpu_custom_call.1} parent=11 // pred_fallthru
        _
      // Predicated region
      $region21: #{tpu_custom_call.1} parent=11 // pred_check
        %p324 = pneg %p170
      $region22: #{tpu_custom_call.1} parent=11 // pred_check_branch
        %326 = sbr.rel (%p324) target = $region24
      $region23: #{tpu_custom_call.1} parent=11 // pred_region
        _
      $region24: #{tpu_custom_call.1} parent=11 // pred_fallthru
        _
      // Predicated region
      $region25: #{tpu_custom_call.1} parent=11 // pred_check
        %p327 = pneg %p191
      $region26: #{tpu_custom_call.1} parent=11 // pred_check_branch
        %329 = sbr.rel (%p327) target = $region28
      $region27: #{tpu_custom_call.1} parent=11 // pred_region
        _
      $region28: #{tpu_custom_call.1} parent=11 // pred_fallthru
        _
      // Predicated region
      $region29: #{tpu_custom_call.1} parent=11 // pred_check
        %p330 = pneg %p212
      $region30: #{tpu_custom_call.1} parent=11 // pred_check_branch
        %332 = sbr.rel (%p330) target = $region32
      $region31: #{tpu_custom_call.1} parent=11 // pred_region
        _
      $region32: #{tpu_custom_call.1} parent=11 // pred_fallthru
        _
      // Predicated region
      $region33: #{tpu_custom_call.1} parent=11 // pred_check
        %p333 = pneg %p233
      $region34: #{tpu_custom_call.1} parent=11 // pred_check_branch
        %335 = sbr.rel (%p333) target = $region36
      $region35: #{tpu_custom_call.1} parent=11 // pred_region
        _
      $region36: #{tpu_custom_call.1} parent=11 // pred_fallthru
        _
      // Predicated region
      $region37: #{tpu_custom_call.1} parent=11 // pred_check
        %p336 = pneg %p254
      $region38: #{tpu_custom_call.1} parent=11 // pred_check_branch
        %338 = sbr.rel (%p336) target = $region40
      $region39: #{tpu_custom_call.1} parent=11 // pred_region
        _
      $region40: #{tpu_custom_call.1} parent=11 // pred_fallthru
        _
      // Predicated region
      $region41: #{tpu_custom_call.1} parent=11 // pred_check
        %p339 = pneg %p275
      $region42: #{tpu_custom_call.1} parent=11 // pred_check_branch
        %341 = sbr.rel (%p339) target = $region44
      $region43: #{tpu_custom_call.1} parent=11 // pred_region
        _
      $region44: #{tpu_custom_call.1} parent=11 // pred_fallthru
        _
    $region12: #{tpu_custom_call.1} parent=5 // pred_fallthru
      _
    %p342 = scmp.lt.s32.totalorder %s17, 4
    // Predicated region
    $region45: #{tpu_custom_call.1} parent=5 // pred_check
      %p343 = pneg %p342
    $region46: #{tpu_custom_call.1} parent=5 // pred_check_branch
      %345 = sbr.rel (%p343) target = $region48
    $region47: #{tpu_custom_call.1} parent=5 // pred_region
      // Predicated region
      $region49: #{tpu_custom_call.1} parent=47 // pred_check
        %p346 = pneg %p49
      $region50: #{tpu_custom_call.1} parent=47 // pred_check_branch
        %348 = sbr.rel (%p346) target = $region52
      $region51: #{tpu_custom_call.1} parent=47 // pred_region
        %p349 = scmp.lt.s32.totalorder %s24, 1
        %s350 = scalar_select %p349, %s24, 1
        %s351 = smul.addr %s350, 32
        %s352 = smul.addr %s351, 8
        %s353 = scalar_lea.vmem %s0, %s352
      $region52: #{tpu_custom_call.1} parent=47 // pred_fallthru
        _
      // Predicated region
      $region53: #{tpu_custom_call.1} parent=47 // pred_check
        %p354 = pneg %p75
      $region54: #{tpu_custom_call.1} parent=47 // pred_check_branch
        %356 = sbr.rel (%p354) target = $region56
      $region55: #{tpu_custom_call.1} parent=47 // pred_region
        %p357 = scmp.lt.s32.totalorder %s24, 1
        %s358 = scalar_select %p357, %s24, 1
        %s359 = smul.addr %s358, 16
        %s360 = scalar_lea.vmem %s1, %s359
      $region56: #{tpu_custom_call.1} parent=47 // pred_fallthru
        _
      // Predicated region
      $region57: #{tpu_custom_call.1} parent=47 // pred_check
        %p361 = pneg %p101
      $region58: #{tpu_custom_call.1} parent=47 // pred_check_branch
        %363 = sbr.rel (%p361) target = $region60
      $region59: #{tpu_custom_call.1} parent=47 // pred_region
        %p364 = scmp.lt.s32.totalorder %s24, 1
        %s365 = scalar_select %p364, %s24, 1
        %s366 = smul.addr %s365, 2
        %s367 = smul.addr %s366, 8
        %s368 = scalar_lea.vmem %s2, %s367
      $region60: #{tpu_custom_call.1} parent=47 // pred_fallthru
        _
    $region48: #{tpu_custom_call.1} parent=5 // pred_fallthru
      _
    %p369 = scmp.le.s32.totalorder 1, %s17
    %p370 = scmp.lt.s32.totalorder %s17, 5
    %p371 = pnand %p369, %p370
    %p372 = pneg %p371
    // Predicated region
    $region61: #{tpu_custom_call.1} parent=5 // pred_check
      _
    $region62: #{tpu_custom_call.1} parent=5 // pred_check_branch
      %374 = sbr.rel (%p371) target = $region64
    $region63: #{tpu_custom_call.1} parent=5 // pred_region
      %s375 = ssub.s32 %s17, 1
      %p376 = scmp.lt.s32.totalorder %s26, 1
      %s377 = scalar_select %p376, %s26, 1
      %s378 = smul.addr %s377, 32
      %s379 = smul.addr %s378, 8
      %s380 = scalar_lea.vmem %s0, %s379
      %p381 = pneg %p55
      %p382 = pneg %p52
      %p383 = scmp.lt.s32.totalorder %s26, 1
      %s384 = scalar_select %p383, %s26, 1
      %s385 = smul.addr %s384, 16
      %s386 = scalar_lea.vmem %s1, %s385
      %p387 = pneg %p81
      %p388 = pneg %p78
      %p389 = scmp.lt.s32.totalorder %s26, 1
      %s390 = scalar_select %p389, %s26, 1
      %s391 = smul.addr %s390, 2
      %s392 = smul.addr %s391, 8
      %s393 = scalar_lea.vmem %s2, %s392
      %p394 = pneg %p107
      %p395 = pneg %p104
      %p396 = pneg %p128
      %p397 = pneg %p125
      %p398 = pneg %p149
      %p399 = pneg %p146
      %p400 = pneg %p170
      %p401 = pneg %p167
      %p402 = pneg %p191
      %p403 = pneg %p188
      %p404 = pneg %p212
      %p405 = pneg %p209
      %p406 = pneg %p233
      %p407 = pneg %p230
      %p408 = pneg %p254
      %p409 = pneg %p251
      %p410 = pneg %p275
      %p411 = pneg %p272
      %p412 = pneg %p303
      %p413 = pneg %p300
      %s414 = smul.u32 16, %s27
      %p415 = scmp.lt.s32.totalorder %s26, 1
      %s416 = scalar_select %p415, %s26, 1
      %p417 = scmp.lt.s32.totalorder %s414, 31
      %s418 = scalar_select %p417, %s414, 31
      %s419 = smul.addr %s416, 32
      %s420 = sadd.s32 %s418, %s419
      %s421 = smul.addr %s420, 8
      %s422 = scalar_lea.vmem %s11, %s421
      %p423 = scmp.lt.s32.totalorder %s26, 1
      %s424 = scalar_select %p423, %s26, 1
      %s425 = smul.addr %s424, 32
      %s426 = smul.addr %s425, 8
      %s427 = scalar_lea.vmem %s0, %s426
      %p428 = scmp.lt.s32.totalorder %s26, 1
      %s429 = scalar_select %p428, %s26, 1
      %s430 = smul.addr %s429, 16
      %s431 = scalar_lea.vmem %s1, %s430
      %p432 = scmp.lt.s32.totalorder %s26, 1
      %s433 = scalar_select %p432, %s26, 1
      %s434 = smul.addr %s433, 2
      %s435 = smul.addr %s434, 8
      %s436 = scalar_lea.vmem %s2, %s435
      %s437 = smul.u32 16, %s27
      %p438 = scmp.lt.s32.totalorder %s26, 1
      %s439 = scalar_select %p438, %s26, 1
      %p440 = scmp.lt.s32.totalorder %s437, 31
      %s441 = scalar_select %p440, %s437, 31
      %s442 = smul.addr %s439, 32
      %s443 = sadd.s32 %s441, %s442
      %s444 = smul.addr %s443, 8
      %s445 = scalar_lea.vmem %s11, %s444
      %s446 = smul.u32 16, %s27
      %p448 = scmp.eq.s32.totalorder %s27, 0
      // Predicated region
      $region65: #{tpu_custom_call.1} parent=63 // pred_check
        %p449 = pneg %p448
      $region66: #{tpu_custom_call.1} parent=63 // pred_check_branch
        %451 = sbr.rel (%p449) target = $region68
      $region67: #{tpu_custom_call.1} parent=63 // pred_region
        %v452 = vld [vmem:[%s427] sm:$0xff]
        %v453 = vld [vmem:[%s427 + $0x8] sm:$0xff]
        %v454 = vld [vmem:[%s427 + $0x10] sm:$0xff]
        %v455 = vld [vmem:[%s427 + $0x18] sm:$0xff]
        %v456 = vld [vmem:[%s427 + $0x20] sm:$0xff]
        %v457 = vld [vmem:[%s427 + $0x28] sm:$0xff]
        %v458 = vld [vmem:[%s427 + $0x30] sm:$0xff]
        %v459 = vld [vmem:[%s427 + $0x38] sm:$0xff]
        %v460 = vld [vmem:[%s427 + $0x40] sm:$0xff]
        %v461 = vld [vmem:[%s427 + $0x48] sm:$0xff]
        %v462 = vld [vmem:[%s427 + $0x50] sm:$0xff]
        %v463 = vld [vmem:[%s427 + $0x58] sm:$0xff]
        %v464 = vld [vmem:[%s427 + $0x60] sm:$0xff]
        %v465 = vld [vmem:[%s427 + $0x68] sm:$0xff]
        %v466 = vld [vmem:[%s427 + $0x70] sm:$0xff]
        %v467 = vld [vmem:[%s427 + $0x78] sm:$0xff]
        %v468 = vld [vmem:[%s427 + $0x80] sm:$0xff]
        %v469 = vld [vmem:[%s427 + $0x88] sm:$0xff]
        %v470 = vld [vmem:[%s427 + $0x90] sm:$0xff]
        %v471 = vld [vmem:[%s427 + $0x98] sm:$0xff]
        %v472 = vld [vmem:[%s427 + $0xa0] sm:$0xff]
        %v473 = vld [vmem:[%s427 + $0xa8] sm:$0xff]
        %v474 = vld [vmem:[%s427 + $0xb0] sm:$0xff]
        %v475 = vld [vmem:[%s427 + $0xb8] sm:$0xff]
        %v476 = vld [vmem:[%s427 + $0xc0] sm:$0xff]
        %v477 = vld [vmem:[%s427 + $0xc8] sm:$0xff]
        %v478 = vld [vmem:[%s427 + $0xd0] sm:$0xff]
        %v479 = vld [vmem:[%s427 + $0xd8] sm:$0xff]
        %v480 = vld [vmem:[%s427 + $0xe0] sm:$0xff]
        %v481 = vld [vmem:[%s427 + $0xe8] sm:$0xff]
        %v482 = vld [vmem:[%s427 + $0xf0] sm:$0xff]
        %v483 = vld [vmem:[%s427 + $0xf8] sm:$0xff]
        %v484 = vld [vmem:[%s431] sm:$0x1]
        %v485 = vld [vmem:[%s431 + $0x1] sm:$0x1]
        %v486 = vld [vmem:[%s431 + $0x2] sm:$0x1]
        %v487 = vld [vmem:[%s431 + $0x3] sm:$0x1]
        %v488 = vld [vmem:[%s431 + $0x4] sm:$0x1]
        %v489 = vld [vmem:[%s431 + $0x5] sm:$0x1]
        %v490 = vld [vmem:[%s431 + $0x6] sm:$0x1]
        %v491 = vld [vmem:[%s431 + $0x7] sm:$0x1]
        %v492 = vld [vmem:[%s431 + $0x8] sm:$0x1]
        %v493 = vld [vmem:[%s431 + $0x9] sm:$0x1]
        %v494 = vld [vmem:[%s431 + $0xa] sm:$0x1]
        %v495 = vld [vmem:[%s431 + $0xb] sm:$0x1]
        %v496 = vld [vmem:[%s431 + $0xc] sm:$0x1]
        %v497 = vld [vmem:[%s431 + $0xd] sm:$0x1]
        %v498 = vld [vmem:[%s431 + $0xe] sm:$0x1]
        %v499 = vld [vmem:[%s431 + $0xf] sm:$0x1]
        %v500 = vld [vmem:[%s436] sm:$0xff]
        %v501 = vld [vmem:[%s436 + $0x8] sm:$0xff]
        %v502 = vld [vmem:[%s3] sm:$0x1]
        %v503 = vld [vmem:[%s4] sm:$0x1]
        %vm504 = vcmask 261120
        %v505 = vsel %vm504, %v452, 0.0
        %506 = vadd.xlane.f32.xlu0 %v505
        %v507 = vpop.xlane.xlu0 %506
        %v508 = vsel %vm504, %v453, 0.0
        %509 = vadd.xlane.f32.xlu0 %v508
        %v510 = vpop.xlane.xlu0 %509
        %v511 = vsel %vm504, %v454, 0.0
        %512 = vadd.xlane.f32.xlu0 %v511
        %v513 = vpop.xlane.xlu0 %512
        %v514 = vsel %vm504, %v455, 0.0
        %515 = vadd.xlane.f32.xlu0 %v514
        %v516 = vpop.xlane.xlu0 %515
        %v517 = vsel %vm504, %v456, 0.0
        %518 = vadd.xlane.f32.xlu0 %v517
        %v519 = vpop.xlane.xlu0 %518
        %v520 = vsel %vm504, %v457, 0.0
        %521 = vadd.xlane.f32.xlu0 %v520
        %v522 = vpop.xlane.xlu0 %521
        %v523 = vsel %vm504, %v458, 0.0
        %524 = vadd.xlane.f32.xlu0 %v523
        %v525 = vpop.xlane.xlu0 %524
        %v526 = vsel %vm504, %v459, 0.0
        %527 = vadd.xlane.f32.xlu0 %v526
        %v528 = vpop.xlane.xlu0 %527
        %v529 = vsel %vm504, %v460, 0.0
        %530 = vadd.xlane.f32.xlu0 %v529
        %v531 = vpop.xlane.xlu0 %530
        %v532 = vsel %vm504, %v461, 0.0
        %533 = vadd.xlane.f32.xlu0 %v532
        %v534 = vpop.xlane.xlu0 %533
        %v535 = vsel %vm504, %v462, 0.0
        %536 = vadd.xlane.f32.xlu0 %v535
        %v537 = vpop.xlane.xlu0 %536
        %v538 = vsel %vm504, %v463, 0.0
        %539 = vadd.xlane.f32.xlu0 %v538
        %v540 = vpop.xlane.xlu0 %539
        %v541 = vsel %vm504, %v464, 0.0
        %542 = vadd.xlane.f32.xlu0 %v541
        %v543 = vpop.xlane.xlu0 %542
        %v544 = vsel %vm504, %v465, 0.0
        %545 = vadd.xlane.f32.xlu0 %v544
        %v546 = vpop.xlane.xlu0 %545
        %v547 = vsel %vm504, %v466, 0.0
        %548 = vadd.xlane.f32.xlu0 %v547
        %v549 = vpop.xlane.xlu0 %548
        %v550 = vsel %vm504, %v467, 0.0
        %551 = vadd.xlane.f32.xlu0 %v550
        %v552 = vpop.xlane.xlu0 %551
        %v553 = vsel %vm504, %v468, 0.0
        %554 = vadd.xlane.f32.xlu0 %v553
        %v555 = vpop.xlane.xlu0 %554
        %v556 = vsel %vm504, %v469, 0.0
        %557 = vadd.xlane.f32.xlu0 %v556
        %v558 = vpop.xlane.xlu0 %557
        %v559 = vsel %vm504, %v470, 0.0
        %560 = vadd.xlane.f32.xlu0 %v559
        %v561 = vpop.xlane.xlu0 %560
        %v562 = vsel %vm504, %v471, 0.0
        %563 = vadd.xlane.f32.xlu0 %v562
        %v564 = vpop.xlane.xlu0 %563
        %v565 = vsel %vm504, %v472, 0.0
        %566 = vadd.xlane.f32.xlu0 %v565
        %v567 = vpop.xlane.xlu0 %566
        %v568 = vsel %vm504, %v473, 0.0
        %569 = vadd.xlane.f32.xlu0 %v568
        %v570 = vpop.xlane.xlu0 %569
        %v571 = vsel %vm504, %v474, 0.0
        %572 = vadd.xlane.f32.xlu0 %v571
        %v573 = vpop.xlane.xlu0 %572
        %v574 = vsel %vm504, %v475, 0.0
        %575 = vadd.xlane.f32.xlu0 %v574
        %v576 = vpop.xlane.xlu0 %575
        %v577 = vsel %vm504, %v476, 0.0
        %578 = vadd.xlane.f32.xlu0 %v577
        %v579 = vpop.xlane.xlu0 %578
        %v580 = vsel %vm504, %v477, 0.0
        %581 = vadd.xlane.f32.xlu0 %v580
        %v582 = vpop.xlane.xlu0 %581
        %v583 = vsel %vm504, %v478, 0.0
        %584 = vadd.xlane.f32.xlu0 %v583
        %v585 = vpop.xlane.xlu0 %584
        %v586 = vsel %vm504, %v479, 0.0
        %587 = vadd.xlane.f32.xlu0 %v586
        %v588 = vpop.xlane.xlu0 %587
        %v589 = vsel %vm504, %v480, 0.0
        %590 = vadd.xlane.f32.xlu0 %v589
        %v591 = vpop.xlane.xlu0 %590
        %v592 = vsel %vm504, %v481, 0.0
        %593 = vadd.xlane.f32.xlu0 %v592
        %v594 = vpop.xlane.xlu0 %593
        %v595 = vsel %vm504, %v482, 0.0
        %596 = vadd.xlane.f32.xlu0 %v595
        %v597 = vpop.xlane.xlu0 %596
        %v598 = vsel %vm504, %v483, 0.0
        %599 = vadd.xlane.f32.xlu0 %v598
        %v600 = vpop.xlane.xlu0 %599
        %v601 = vrcp.pop 32.0
        %v602 = vmul.f32 32.0, %v601
        %v603 = vsub.f32 1.0, %v602
        %v604 = vmul.f32 %v601, %v603
        %v605 = vadd.f32 %v601, %v604
        %vm606 = vweird.f32 %v601
        %v607 = vsel %vm606, %v601, %v605
        %v608 = vmul.f32 %v507, %v607
        %v609 = vmul.f32 %v510, %v607
        %v610 = vmul.f32 %v513, %v607
        %v611 = vmul.f32 %v516, %v607
        %v612 = vmul.f32 %v519, %v607
        %v613 = vmul.f32 %v522, %v607
        %v614 = vmul.f32 %v525, %v607
        %v615 = vmul.f32 %v528, %v607
        %v616 = vmul.f32 %v531, %v607
        %v617 = vmul.f32 %v534, %v607
        %v618 = vmul.f32 %v537, %v607
        %v619 = vmul.f32 %v540, %v607
        %v620 = vmul.f32 %v543, %v607
        %v621 = vmul.f32 %v546, %v607
        %v622 = vmul.f32 %v549, %v607
        %v623 = vmul.f32 %v552, %v607
        %v624 = vmul.f32 %v555, %v607
        %v625 = vmul.f32 %v558, %v607
        %v626 = vmul.f32 %v561, %v607
        %v627 = vmul.f32 %v564, %v607
        %v628 = vmul.f32 %v567, %v607
        %v629 = vmul.f32 %v570, %v607
        %v630 = vmul.f32 %v573, %v607
        %v631 = vmul.f32 %v576, %v607
        %v632 = vmul.f32 %v579, %v607
        %v633 = vmul.f32 %v582, %v607
        %v634 = vmul.f32 %v585, %v607
        %v635 = vmul.f32 %v588, %v607
        %v636 = vmul.f32 %v591, %v607
        %v637 = vmul.f32 %v594, %v607
        %v638 = vmul.f32 %v597, %v607
        %v639 = vmul.f32 %v600, %v607
        %v640 = vsub.f32 %v452, %v608
        %v641 = vsub.f32 %v453, %v609
        %v642 = vsub.f32 %v454, %v610
        %v643 = vsub.f32 %v455, %v611
        %v644 = vsub.f32 %v456, %v612
        %v645 = vsub.f32 %v457, %v613
        %v646 = vsub.f32 %v458, %v614
        %v647 = vsub.f32 %v459, %v615
        %v648 = vsub.f32 %v460, %v616
        %v649 = vsub.f32 %v461, %v617
        %v650 = vsub.f32 %v462, %v618
        %v651 = vsub.f32 %v463, %v619
        %v652 = vsub.f32 %v464, %v620
        %v653 = vsub.f32 %v465, %v621
        %v654 = vsub.f32 %v466, %v622
        %v655 = vsub.f32 %v467, %v623
        %v656 = vsub.f32 %v468, %v624
        %v657 = vsub.f32 %v469, %v625
        %v658 = vsub.f32 %v470, %v626
        %v659 = vsub.f32 %v471, %v627
        %v660 = vsub.f32 %v472, %v628
        %v661 = vsub.f32 %v473, %v629
        %v662 = vsub.f32 %v474, %v630
        %v663 = vsub.f32 %v475, %v631
        %v664 = vsub.f32 %v476, %v632
        %v665 = vsub.f32 %v477, %v633
        %v666 = vsub.f32 %v478, %v634
        %v667 = vsub.f32 %v479, %v635
        %v668 = vsub.f32 %v480, %v636
        %v669 = vsub.f32 %v481, %v637
        %v670 = vsub.f32 %v482, %v638
        %v671 = vsub.f32 %v483, %v639
        %v672 = vmul.f32 %v640, %v640
        %v673 = vmul.f32 %v641, %v641
        %v674 = vmul.f32 %v642, %v642
        %v675 = vmul.f32 %v643, %v643
        %v676 = vmul.f32 %v644, %v644
        %v677 = vmul.f32 %v645, %v645
        %v678 = vmul.f32 %v646, %v646
        %v679 = vmul.f32 %v647, %v647
        %v680 = vmul.f32 %v648, %v648
        %v681 = vmul.f32 %v649, %v649
        %v682 = vmul.f32 %v650, %v650
        %v683 = vmul.f32 %v651, %v651
        %v684 = vmul.f32 %v652, %v652
        %v685 = vmul.f32 %v653, %v653
        %v686 = vmul.f32 %v654, %v654
        %v687 = vmul.f32 %v655, %v655
        %v688 = vmul.f32 %v656, %v656
        %v689 = vmul.f32 %v657, %v657
        %v690 = vmul.f32 %v658, %v658
        %v691 = vmul.f32 %v659, %v659
        %v692 = vmul.f32 %v660, %v660
        %v693 = vmul.f32 %v661, %v661
        %v694 = vmul.f32 %v662, %v662
        %v695 = vmul.f32 %v663, %v663
        %v696 = vmul.f32 %v664, %v664
        %v697 = vmul.f32 %v665, %v665
        %v698 = vmul.f32 %v666, %v666
        %v699 = vmul.f32 %v667, %v667
        %v700 = vmul.f32 %v668, %v668
        %v701 = vmul.f32 %v669, %v669
        %v702 = vmul.f32 %v670, %v670
        %v703 = vmul.f32 %v671, %v671
        %v704 = vsel %vm504, %v672, 0.0
        %705 = vadd.xlane.f32.xlu0 %v704
        %v706 = vpop.xlane.xlu0 %705
        %v707 = vsel %vm504, %v673, 0.0
        %708 = vadd.xlane.f32.xlu0 %v707
        %v709 = vpop.xlane.xlu0 %708
        %v710 = vsel %vm504, %v674, 0.0
        %711 = vadd.xlane.f32.xlu0 %v710
        %v712 = vpop.xlane.xlu0 %711
        %v713 = vsel %vm504, %v675, 0.0
        %714 = vadd.xlane.f32.xlu0 %v713
        %v715 = vpop.xlane.xlu0 %714
        %v716 = vsel %vm504, %v676, 0.0
        %717 = vadd.xlane.f32.xlu0 %v716
        %v718 = vpop.xlane.xlu0 %717
        %v719 = vsel %vm504, %v677, 0.0
        %720 = vadd.xlane.f32.xlu0 %v719
        %v721 = vpop.xlane.xlu0 %720
        %v722 = vsel %vm504, %v678, 0.0
        %723 = vadd.xlane.f32.xlu0 %v722
        %v724 = vpop.xlane.xlu0 %723
        %v725 = vsel %vm504, %v679, 0.0
        %726 = vadd.xlane.f32.xlu0 %v725
        %v727 = vpop.xlane.xlu0 %726
        %v728 = vsel %vm504, %v680, 0.0
        %729 = vadd.xlane.f32.xlu0 %v728
        %v730 = vpop.xlane.xlu0 %729
        %v731 = vsel %vm504, %v681, 0.0
        %732 = vadd.xlane.f32.xlu0 %v731
        %v733 = vpop.xlane.xlu0 %732
        %v734 = vsel %vm504, %v682, 0.0
        %735 = vadd.xlane.f32.xlu0 %v734
        %v736 = vpop.xlane.xlu0 %735
        %v737 = vsel %vm504, %v683, 0.0
        %738 = vadd.xlane.f32.xlu0 %v737
        %v739 = vpop.xlane.xlu0 %738
        %v740 = vsel %vm504, %v684, 0.0
        %741 = vadd.xlane.f32.xlu0 %v740
        %v742 = vpop.xlane.xlu0 %741
        %v743 = vsel %vm504, %v685, 0.0
        %744 = vadd.xlane.f32.xlu0 %v743
        %v745 = vpop.xlane.xlu0 %744
        %v746 = vsel %vm504, %v686, 0.0
        %747 = vadd.xlane.f32.xlu0 %v746
        %v748 = vpop.xlane.xlu0 %747
        %v749 = vsel %vm504, %v687, 0.0
        %750 = vadd.xlane.f32.xlu0 %v749
        %v751 = vpop.xlane.xlu0 %750
        %v752 = vsel %vm504, %v688, 0.0
        %753 = vadd.xlane.f32.xlu0 %v752
        %v754 = vpop.xlane.xlu0 %753
        %v755 = vsel %vm504, %v689, 0.0
        %756 = vadd.xlane.f32.xlu0 %v755
        %v757 = vpop.xlane.xlu0 %756
        %v758 = vsel %vm504, %v690, 0.0
        %759 = vadd.xlane.f32.xlu0 %v758
        %v760 = vpop.xlane.xlu0 %759
        %v761 = vsel %vm504, %v691, 0.0
        %762 = vadd.xlane.f32.xlu0 %v761
        %v763 = vpop.xlane.xlu0 %762
        %v764 = vsel %vm504, %v692, 0.0
        %765 = vadd.xlane.f32.xlu0 %v764
        %v766 = vpop.xlane.xlu0 %765
        %v767 = vsel %vm504, %v693, 0.0
        %768 = vadd.xlane.f32.xlu0 %v767
        %v769 = vpop.xlane.xlu0 %768
        %v770 = vsel %vm504, %v694, 0.0
        %771 = vadd.xlane.f32.xlu0 %v770
        %v772 = vpop.xlane.xlu0 %771
        %v773 = vsel %vm504, %v695, 0.0
        %774 = vadd.xlane.f32.xlu0 %v773
        %v775 = vpop.xlane.xlu0 %774
        %v776 = vsel %vm504, %v696, 0.0
        %777 = vadd.xlane.f32.xlu0 %v776
        %v778 = vpop.xlane.xlu0 %777
        %v779 = vsel %vm504, %v697, 0.0
        %780 = vadd.xlane.f32.xlu0 %v779
        %v781 = vpop.xlane.xlu0 %780
        %v782 = vsel %vm504, %v698, 0.0
        %783 = vadd.xlane.f32.xlu0 %v782
        %v784 = vpop.xlane.xlu0 %783
        %v785 = vsel %vm504, %v699, 0.0
        %786 = vadd.xlane.f32.xlu0 %v785
        %v787 = vpop.xlane.xlu0 %786
        %v788 = vsel %vm504, %v700, 0.0
        %789 = vadd.xlane.f32.xlu0 %v788
        %v790 = vpop.xlane.xlu0 %789
        %v791 = vsel %vm504, %v701, 0.0
        %792 = vadd.xlane.f32.xlu0 %v791
        %v793 = vpop.xlane.xlu0 %792
        %v794 = vsel %vm504, %v702, 0.0
        %795 = vadd.xlane.f32.xlu0 %v794
        %v796 = vpop.xlane.xlu0 %795
        %v797 = vsel %vm504, %v703, 0.0
        %798 = vadd.xlane.f32.xlu0 %v797
        %v799 = vpop.xlane.xlu0 %798
        %v800 = vmul.f32 %v706, %v607
        %v801 = vmul.f32 %v709, %v607
        %v802 = vmul.f32 %v712, %v607
        %v803 = vmul.f32 %v715, %v607
        %v804 = vmul.f32 %v718, %v607
        %v805 = vmul.f32 %v721, %v607
        %v806 = vmul.f32 %v724, %v607
        %v807 = vmul.f32 %v727, %v607
        %v808 = vmul.f32 %v730, %v607
        %v809 = vmul.f32 %v733, %v607
        %v810 = vmul.f32 %v736, %v607
        %v811 = vmul.f32 %v739, %v607
        %v812 = vmul.f32 %v742, %v607
        %v813 = vmul.f32 %v745, %v607
        %v814 = vmul.f32 %v748, %v607
        %v815 = vmul.f32 %v751, %v607
        %v816 = vmul.f32 %v754, %v607
        %v817 = vmul.f32 %v757, %v607
        %v818 = vmul.f32 %v760, %v607
        %v819 = vmul.f32 %v763, %v607
        %v820 = vmul.f32 %v766, %v607
        %v821 = vmul.f32 %v769, %v607
        %v822 = vmul.f32 %v772, %v607
        %v823 = vmul.f32 %v775, %v607
        %v824 = vmul.f32 %v778, %v607
        %v825 = vmul.f32 %v781, %v607
        %v826 = vmul.f32 %v784, %v607
        %v827 = vmul.f32 %v787, %v607
        %v828 = vmul.f32 %v790, %v607
        %v829 = vmul.f32 %v793, %v607
        %v830 = vmul.f32 %v796, %v607
        %v831 = vmul.f32 %v799, %v607
        %v832 = vadd.f32 %v800, 1e-05
        %v833 = vadd.f32 %v801, 1e-05
        %v834 = vadd.f32 %v802, 1e-05
        %v835 = vadd.f32 %v803, 1e-05
        %v836 = vadd.f32 %v804, 1e-05
        %v837 = vadd.f32 %v805, 1e-05
        %v838 = vadd.f32 %v806, 1e-05
        %v839 = vadd.f32 %v807, 1e-05
        %v840 = vadd.f32 %v808, 1e-05
        %v841 = vadd.f32 %v809, 1e-05
        %v842 = vadd.f32 %v810, 1e-05
        %v843 = vadd.f32 %v811, 1e-05
        %v844 = vadd.f32 %v812, 1e-05
        %v845 = vadd.f32 %v813, 1e-05
        %v846 = vadd.f32 %v814, 1e-05
        %v847 = vadd.f32 %v815, 1e-05
        %v848 = vadd.f32 %v816, 1e-05
        %v849 = vadd.f32 %v817, 1e-05
        %v850 = vadd.f32 %v818, 1e-05
        %v851 = vadd.f32 %v819, 1e-05
        %v852 = vadd.f32 %v820, 1e-05
        %v853 = vadd.f32 %v821, 1e-05
        %v854 = vadd.f32 %v822, 1e-05
        %v855 = vadd.f32 %v823, 1e-05
        %v856 = vadd.f32 %v824, 1e-05
        %v857 = vadd.f32 %v825, 1e-05
        %v858 = vadd.f32 %v826, 1e-05
        %v859 = vadd.f32 %v827, 1e-05
        %v860 = vadd.f32 %v828, 1e-05
        %v861 = vadd.f32 %v829, 1e-05
        %v862 = vadd.f32 %v830, 1e-05
        %v863 = vadd.f32 %v831, 1e-05
        %v864 = vrsqrt.pop %v832
        %v865 = vmul.f32 %v864, %v832
        %v866 = vmul.f32 %v865, %v864
        %v867 = vmul.f32 0.5, %v866
        %v868 = vsub.f32 1.5, %v867
        %v869 = vmul.f32 %v864, %v868
        %vm870 = vweird.f32 %v832
        %vm871 = vweird.f32 %v864
        %vm872 = vmor %vm870, %vm871
        %v873 = vsel %vm872, %v864, %v869
        %v874 = vrsqrt.pop %v833
        %v875 = vmul.f32 %v874, %v833
        %v876 = vmul.f32 %v875, %v874
        %v877 = vmul.f32 0.5, %v876
        %v878 = vsub.f32 1.5, %v877
        %v879 = vmul.f32 %v874, %v878
        %vm880 = vweird.f32 %v833
        %vm881 = vweird.f32 %v874
        %vm882 = vmor %vm880, %vm881
        %v883 = vsel %vm882, %v874, %v879
        %v884 = vrsqrt.pop %v834
        %v885 = vmul.f32 %v884, %v834
        %v886 = vmul.f32 %v885, %v884
        %v887 = vmul.f32 0.5, %v886
        %v888 = vsub.f32 1.5, %v887
        %v889 = vmul.f32 %v884, %v888
        %vm890 = vweird.f32 %v834
        %vm891 = vweird.f32 %v884
        %vm892 = vmor %vm890, %vm891
        %v893 = vsel %vm892, %v884, %v889
        %v894 = vrsqrt.pop %v835
        %v895 = vmul.f32 %v894, %v835
        %v896 = vmul.f32 %v895, %v894
        %v897 = vmul.f32 0.5, %v896
        %v898 = vsub.f32 1.5, %v897
        %v899 = vmul.f32 %v894, %v898
        %vm900 = vweird.f32 %v835
        %vm901 = vweird.f32 %v894
        %vm902 = vmor %vm900, %vm901
        %v903 = vsel %vm902, %v894, %v899
        %v904 = vrsqrt.pop %v836
        %v905 = vmul.f32 %v904, %v836
        %v906 = vmul.f32 %v905, %v904
        %v907 = vmul.f32 0.5, %v906
        %v908 = vsub.f32 1.5, %v907
        %v909 = vmul.f32 %v904, %v908
        %vm910 = vweird.f32 %v836
        %vm911 = vweird.f32 %v904
        %vm912 = vmor %vm910, %vm911
        %v913 = vsel %vm912, %v904, %v909
        %v914 = vrsqrt.pop %v837
        %v915 = vmul.f32 %v914, %v837
        %v916 = vmul.f32 %v915, %v914
        %v917 = vmul.f32 0.5, %v916
        %v918 = vsub.f32 1.5, %v917
        %v919 = vmul.f32 %v914, %v918
        %vm920 = vweird.f32 %v837
        %vm921 = vweird.f32 %v914
        %vm922 = vmor %vm920, %vm921
        %v923 = vsel %vm922, %v914, %v919
        %v924 = vrsqrt.pop %v838
        %v925 = vmul.f32 %v924, %v838
        %v926 = vmul.f32 %v925, %v924
        %v927 = vmul.f32 0.5, %v926
        %v928 = vsub.f32 1.5, %v927
        %v929 = vmul.f32 %v924, %v928
        %vm930 = vweird.f32 %v838
        %vm931 = vweird.f32 %v924
        %vm932 = vmor %vm930, %vm931
        %v933 = vsel %vm932, %v924, %v929
        %v934 = vrsqrt.pop %v839
        %v935 = vmul.f32 %v934, %v839
        %v936 = vmul.f32 %v935, %v934
        %v937 = vmul.f32 0.5, %v936
        %v938 = vsub.f32 1.5, %v937
        %v939 = vmul.f32 %v934, %v938
        %vm940 = vweird.f32 %v839
        %vm941 = vweird.f32 %v934
        %vm942 = vmor %vm940, %vm941
        %v943 = vsel %vm942, %v934, %v939
        %v944 = vrsqrt.pop %v840
        %v945 = vmul.f32 %v944, %v840
        %v946 = vmul.f32 %v945, %v944
        %v947 = vmul.f32 0.5, %v946
        %v948 = vsub.f32 1.5, %v947
        %v949 = vmul.f32 %v944, %v948
        %vm950 = vweird.f32 %v840
        %vm951 = vweird.f32 %v944
        %vm952 = vmor %vm950, %vm951
        %v953 = vsel %vm952, %v944, %v949
        %v954 = vrsqrt.pop %v841
        %v955 = vmul.f32 %v954, %v841
        %v956 = vmul.f32 %v955, %v954
        %v957 = vmul.f32 0.5, %v956
        %v958 = vsub.f32 1.5, %v957
        %v959 = vmul.f32 %v954, %v958
        %vm960 = vweird.f32 %v841
        %vm961 = vweird.f32 %v954
        %vm962 = vmor %vm960, %vm961
        %v963 = vsel %vm962, %v954, %v959
        %v964 = vrsqrt.pop %v842
        %v965 = vmul.f32 %v964, %v842
        %v966 = vmul.f32 %v965, %v964
        %v967 = vmul.f32 0.5, %v966
        %v968 = vsub.f32 1.5, %v967
        %v969 = vmul.f32 %v964, %v968
        %vm970 = vweird.f32 %v842
        %vm971 = vweird.f32 %v964
        %vm972 = vmor %vm970, %vm971
        %v973 = vsel %vm972, %v964, %v969
        %v974 = vrsqrt.pop %v843
        %v975 = vmul.f32 %v974, %v843
        %v976 = vmul.f32 %v975, %v974
        %v977 = vmul.f32 0.5, %v976
        %v978 = vsub.f32 1.5, %v977
        %v979 = vmul.f32 %v974, %v978
        %vm980 = vweird.f32 %v843
        %vm981 = vweird.f32 %v974
        %vm982 = vmor %vm980, %vm981
        %v983 = vsel %vm982, %v974, %v979
        %v984 = vrsqrt.pop %v844
        %v985 = vmul.f32 %v984, %v844
        %v986 = vmul.f32 %v985, %v984
        %v987 = vmul.f32 0.5, %v986
        %v988 = vsub.f32 1.5, %v987
        %v989 = vmul.f32 %v984, %v988
        %vm990 = vweird.f32 %v844
        %vm991 = vweird.f32 %v984
        %vm992 = vmor %vm990, %vm991
        %v993 = vsel %vm992, %v984, %v989
        %v994 = vrsqrt.pop %v845
        %v995 = vmul.f32 %v994, %v845
        %v996 = vmul.f32 %v995, %v994
        %v997 = vmul.f32 0.5, %v996
        %v998 = vsub.f32 1.5, %v997
        %v999 = vmul.f32 %v994, %v998
        %vm1000 = vweird.f32 %v845
        %vm1001 = vweird.f32 %v994
        %vm1002 = vmor %vm1000, %vm1001
        %v1003 = vsel %vm1002, %v994, %v999
        %v1004 = vrsqrt.pop %v846
        %v1005 = vmul.f32 %v1004, %v846
        %v1006 = vmul.f32 %v1005, %v1004
        %v1007 = vmul.f32 0.5, %v1006
        %v1008 = vsub.f32 1.5, %v1007
        %v1009 = vmul.f32 %v1004, %v1008
        %vm1010 = vweird.f32 %v846
        %vm1011 = vweird.f32 %v1004
        %vm1012 = vmor %vm1010, %vm1011
        %v1013 = vsel %vm1012, %v1004, %v1009
        %v1014 = vrsqrt.pop %v847
        %v1015 = vmul.f32 %v1014, %v847
        %v1016 = vmul.f32 %v1015, %v1014
        %v1017 = vmul.f32 0.5, %v1016
        %v1018 = vsub.f32 1.5, %v1017
        %v1019 = vmul.f32 %v1014, %v1018
        %vm1020 = vweird.f32 %v847
        %vm1021 = vweird.f32 %v1014
        %vm1022 = vmor %vm1020, %vm1021
        %v1023 = vsel %vm1022, %v1014, %v1019
        %v1024 = vrsqrt.pop %v848
        %v1025 = vmul.f32 %v1024, %v848
        %v1026 = vmul.f32 %v1025, %v1024
        %v1027 = vmul.f32 0.5, %v1026
        %v1028 = vsub.f32 1.5, %v1027
        %v1029 = vmul.f32 %v1024, %v1028
        %vm1030 = vweird.f32 %v848
        %vm1031 = vweird.f32 %v1024
        %vm1032 = vmor %vm1030, %vm1031
        %v1033 = vsel %vm1032, %v1024, %v1029
        %v1034 = vrsqrt.pop %v849
        %v1035 = vmul.f32 %v1034, %v849
        %v1036 = vmul.f32 %v1035, %v1034
        %v1037 = vmul.f32 0.5, %v1036
        %v1038 = vsub.f32 1.5, %v1037
        %v1039 = vmul.f32 %v1034, %v1038
        %vm1040 = vweird.f32 %v849
        %vm1041 = vweird.f32 %v1034
        %vm1042 = vmor %vm1040, %vm1041
        %v1043 = vsel %vm1042, %v1034, %v1039
        %v1044 = vrsqrt.pop %v850
        %v1045 = vmul.f32 %v1044, %v850
        %v1046 = vmul.f32 %v1045, %v1044
        %v1047 = vmul.f32 0.5, %v1046
        %v1048 = vsub.f32 1.5, %v1047
        %v1049 = vmul.f32 %v1044, %v1048
        %vm1050 = vweird.f32 %v850
        %vm1051 = vweird.f32 %v1044
        %vm1052 = vmor %vm1050, %vm1051
        %v1053 = vsel %vm1052, %v1044, %v1049
        %v1054 = vrsqrt.pop %v851
        %v1055 = vmul.f32 %v1054, %v851
        %v1056 = vmul.f32 %v1055, %v1054
        %v1057 = vmul.f32 0.5, %v1056
        %v1058 = vsub.f32 1.5, %v1057
        %v1059 = vmul.f32 %v1054, %v1058
        %vm1060 = vweird.f32 %v851
        %vm1061 = vweird.f32 %v1054
        %vm1062 = vmor %vm1060, %vm1061
        %v1063 = vsel %vm1062, %v1054, %v1059
        %v1064 = vrsqrt.pop %v852
        %v1065 = vmul.f32 %v1064, %v852
        %v1066 = vmul.f32 %v1065, %v1064
        %v1067 = vmul.f32 0.5, %v1066
        %v1068 = vsub.f32 1.5, %v1067
        %v1069 = vmul.f32 %v1064, %v1068
        %vm1070 = vweird.f32 %v852
        %vm1071 = vweird.f32 %v1064
        %vm1072 = vmor %vm1070, %vm1071
        %v1073 = vsel %vm1072, %v1064, %v1069
        %v1074 = vrsqrt.pop %v853
        %v1075 = vmul.f32 %v1074, %v853
        %v1076 = vmul.f32 %v1075, %v1074
        %v1077 = vmul.f32 0.5, %v1076
        %v1078 = vsub.f32 1.5, %v1077
        %v1079 = vmul.f32 %v1074, %v1078
        %vm1080 = vweird.f32 %v853
        %vm1081 = vweird.f32 %v1074
        %vm1082 = vmor %vm1080, %vm1081
        %v1083 = vsel %vm1082, %v1074, %v1079
        %v1084 = vrsqrt.pop %v854
        %v1085 = vmul.f32 %v1084, %v854
        %v1086 = vmul.f32 %v1085, %v1084
        %v1087 = vmul.f32 0.5, %v1086
        %v1088 = vsub.f32 1.5, %v1087
        %v1089 = vmul.f32 %v1084, %v1088
        %vm1090 = vweird.f32 %v854
        %vm1091 = vweird.f32 %v1084
        %vm1092 = vmor %vm1090, %vm1091
        %v1093 = vsel %vm1092, %v1084, %v1089
        %v1094 = vrsqrt.pop %v855
        %v1095 = vmul.f32 %v1094, %v855
        %v1096 = vmul.f32 %v1095, %v1094
        %v1097 = vmul.f32 0.5, %v1096
        %v1098 = vsub.f32 1.5, %v1097
        %v1099 = vmul.f32 %v1094, %v1098
        %vm1100 = vweird.f32 %v855
        %vm1101 = vweird.f32 %v1094
        %vm1102 = vmor %vm1100, %vm1101
        %v1103 = vsel %vm1102, %v1094, %v1099
        %v1104 = vrsqrt.pop %v856
        %v1105 = vmul.f32 %v1104, %v856
        %v1106 = vmul.f32 %v1105, %v1104
        %v1107 = vmul.f32 0.5, %v1106
        %v1108 = vsub.f32 1.5, %v1107
        %v1109 = vmul.f32 %v1104, %v1108
        %vm1110 = vweird.f32 %v856
        %vm1111 = vweird.f32 %v1104
        %vm1112 = vmor %vm1110, %vm1111
        %v1113 = vsel %vm1112, %v1104, %v1109
        %v1114 = vrsqrt.pop %v857
        %v1115 = vmul.f32 %v1114, %v857
        %v1116 = vmul.f32 %v1115, %v1114
        %v1117 = vmul.f32 0.5, %v1116
        %v1118 = vsub.f32 1.5, %v1117
        %v1119 = vmul.f32 %v1114, %v1118
        %vm1120 = vweird.f32 %v857
        %vm1121 = vweird.f32 %v1114
        %vm1122 = vmor %vm1120, %vm1121
        %v1123 = vsel %vm1122, %v1114, %v1119
        %v1124 = vrsqrt.pop %v858
        %v1125 = vmul.f32 %v1124, %v858
        %v1126 = vmul.f32 %v1125, %v1124
        %v1127 = vmul.f32 0.5, %v1126
        %v1128 = vsub.f32 1.5, %v1127
        %v1129 = vmul.f32 %v1124, %v1128
        %vm1130 = vweird.f32 %v858
        %vm1131 = vweird.f32 %v1124
        %vm1132 = vmor %vm1130, %vm1131
        %v1133 = vsel %vm1132, %v1124, %v1129
        %v1134 = vrsqrt.pop %v859
        %v1135 = vmul.f32 %v1134, %v859
        %v1136 = vmul.f32 %v1135, %v1134
        %v1137 = vmul.f32 0.5, %v1136
        %v1138 = vsub.f32 1.5, %v1137
        %v1139 = vmul.f32 %v1134, %v1138
        %vm1140 = vweird.f32 %v859
        %vm1141 = vweird.f32 %v1134
        %vm1142 = vmor %vm1140, %vm1141
        %v1143 = vsel %vm1142, %v1134, %v1139
        %v1144 = vrsqrt.pop %v860
        %v1145 = vmul.f32 %v1144, %v860
        %v1146 = vmul.f32 %v1145, %v1144
        %v1147 = vmul.f32 0.5, %v1146
        %v1148 = vsub.f32 1.5, %v1147
        %v1149 = vmul.f32 %v1144, %v1148
        %vm1150 = vweird.f32 %v860
        %vm1151 = vweird.f32 %v1144
        %vm1152 = vmor %vm1150, %vm1151
        %v1153 = vsel %vm1152, %v1144, %v1149
        %v1154 = vrsqrt.pop %v861
        %v1155 = vmul.f32 %v1154, %v861
        %v1156 = vmul.f32 %v1155, %v1154
        %v1157 = vmul.f32 0.5, %v1156
        %v1158 = vsub.f32 1.5, %v1157
        %v1159 = vmul.f32 %v1154, %v1158
        %vm1160 = vweird.f32 %v861
        %vm1161 = vweird.f32 %v1154
        %vm1162 = vmor %vm1160, %vm1161
        %v1163 = vsel %vm1162, %v1154, %v1159
        %v1164 = vrsqrt.pop %v862
        %v1165 = vmul.f32 %v1164, %v862
        %v1166 = vmul.f32 %v1165, %v1164
        %v1167 = vmul.f32 0.5, %v1166
        %v1168 = vsub.f32 1.5, %v1167
        %v1169 = vmul.f32 %v1164, %v1168
        %vm1170 = vweird.f32 %v862
        %vm1171 = vweird.f32 %v1164
        %vm1172 = vmor %vm1170, %vm1171
        %v1173 = vsel %vm1172, %v1164, %v1169
        %v1174 = vrsqrt.pop %v863
        %v1175 = vmul.f32 %v1174, %v863
        %v1176 = vmul.f32 %v1175, %v1174
        %v1177 = vmul.f32 0.5, %v1176
        %v1178 = vsub.f32 1.5, %v1177
        %v1179 = vmul.f32 %v1174, %v1178
        %vm1180 = vweird.f32 %v863
        %vm1181 = vweird.f32 %v1174
        %vm1182 = vmor %vm1180, %vm1181
        %v1183 = vsel %vm1182, %v1174, %v1179
        %v1184 = vmul.f32 %v640, %v873
        %v1185 = vmul.f32 %v641, %v883
        %v1186 = vmul.f32 %v642, %v893
        %v1187 = vmul.f32 %v643, %v903
        %v1188 = vmul.f32 %v644, %v913
        %v1189 = vmul.f32 %v645, %v923
        %v1190 = vmul.f32 %v646, %v933
        %v1191 = vmul.f32 %v647, %v943
        %v1192 = vmul.f32 %v648, %v953
        %v1193 = vmul.f32 %v649, %v963
        %v1194 = vmul.f32 %v650, %v973
        %v1195 = vmul.f32 %v651, %v983
        %v1196 = vmul.f32 %v652, %v993
        %v1197 = vmul.f32 %v653, %v1003
        %v1198 = vmul.f32 %v654, %v1013
        %v1199 = vmul.f32 %v655, %v1023
        %v1200 = vmul.f32 %v656, %v1033
        %v1201 = vmul.f32 %v657, %v1043
        %v1202 = vmul.f32 %v658, %v1053
        %v1203 = vmul.f32 %v659, %v1063
        %v1204 = vmul.f32 %v660, %v1073
        %v1205 = vmul.f32 %v661, %v1083
        %v1206 = vmul.f32 %v662, %v1093
        %v1207 = vmul.f32 %v663, %v1103
        %v1208 = vmul.f32 %v664, %v1113
        %v1209 = vmul.f32 %v665, %v1123
        %v1210 = vmul.f32 %v666, %v1133
        %v1211 = vmul.f32 %v667, %v1143
        %v1212 = vmul.f32 %v668, %v1153
        %v1213 = vmul.f32 %v669, %v1163
        %v1214 = vmul.f32 %v670, %v1173
        %v1215 = vmul.f32 %v671, %v1183
        %v1217 = vperm.slane %v502, 0
        %v1219 = vmul.f32 %v1184, %v1217
        %v1220 = vmul.f32 %v1185, %v1217
        %v1221 = vmul.f32 %v1186, %v1217
        %v1222 = vmul.f32 %v1187, %v1217
        %v1223 = vmul.f32 %v1188, %v1217
        %v1224 = vmul.f32 %v1189, %v1217
        %v1225 = vmul.f32 %v1190, %v1217
        %v1226 = vmul.f32 %v1191, %v1217
        %v1227 = vmul.f32 %v1192, %v1217
        %v1228 = vmul.f32 %v1193, %v1217
        %v1229 = vmul.f32 %v1194, %v1217
        %v1230 = vmul.f32 %v1195, %v1217
        %v1231 = vmul.f32 %v1196, %v1217
        %v1232 = vmul.f32 %v1197, %v1217
        %v1233 = vmul.f32 %v1198, %v1217
        %v1234 = vmul.f32 %v1199, %v1217
        %v1235 = vmul.f32 %v1200, %v1217
        %v1236 = vmul.f32 %v1201, %v1217
        %v1237 = vmul.f32 %v1202, %v1217
        %v1238 = vmul.f32 %v1203, %v1217
        %v1239 = vmul.f32 %v1204, %v1217
        %v1240 = vmul.f32 %v1205, %v1217
        %v1241 = vmul.f32 %v1206, %v1217
        %v1242 = vmul.f32 %v1207, %v1217
        %v1243 = vmul.f32 %v1208, %v1217
        %v1244 = vmul.f32 %v1209, %v1217
        %v1245 = vmul.f32 %v1210, %v1217
        %v1246 = vmul.f32 %v1211, %v1217
        %v1247 = vmul.f32 %v1212, %v1217
        %v1248 = vmul.f32 %v1213, %v1217
        %v1249 = vmul.f32 %v1214, %v1217
        %v1250 = vmul.f32 %v1215, %v1217
        %v1252 = vperm.slane %v503, 0
        %v1254 = vadd.f32 %v1219, %v1252
        %v1255 = vadd.f32 %v1220, %v1252
        %v1256 = vadd.f32 %v1221, %v1252
        %v1257 = vadd.f32 %v1222, %v1252
        %v1258 = vadd.f32 %v1223, %v1252
        %v1259 = vadd.f32 %v1224, %v1252
        %v1260 = vadd.f32 %v1225, %v1252
        %v1261 = vadd.f32 %v1226, %v1252
        %v1262 = vadd.f32 %v1227, %v1252
        %v1263 = vadd.f32 %v1228, %v1252
        %v1264 = vadd.f32 %v1229, %v1252
        %v1265 = vadd.f32 %v1230, %v1252
        %v1266 = vadd.f32 %v1231, %v1252
        %v1267 = vadd.f32 %v1232, %v1252
        %v1268 = vadd.f32 %v1233, %v1252
        %v1269 = vadd.f32 %v1234, %v1252
        %v1270 = vadd.f32 %v1235, %v1252
        %v1271 = vadd.f32 %v1236, %v1252
        %v1272 = vadd.f32 %v1237, %v1252
        %v1273 = vadd.f32 %v1238, %v1252
        %v1274 = vadd.f32 %v1239, %v1252
        %v1275 = vadd.f32 %v1240, %v1252
        %v1276 = vadd.f32 %v1241, %v1252
        %v1277 = vadd.f32 %v1242, %v1252
        %v1278 = vadd.f32 %v1243, %v1252
        %v1279 = vadd.f32 %v1244, %v1252
        %v1280 = vadd.f32 %v1245, %v1252
        %v1281 = vadd.f32 %v1246, %v1252
        %v1282 = vadd.f32 %v1247, %v1252
        %v1283 = vadd.f32 %v1248, %v1252
        %v1284 = vadd.f32 %v1249, %v1252
        %v1285 = vadd.f32 %v1250, %v1252
        %v1286 = vpack.c.bf16 %v1255, %v1254
        %v1287 = vpack.c.bf16 %v1257, %v1256
        %v1288 = vpack.c.bf16 %v1259, %v1258
        %v1289 = vpack.c.bf16 %v1261, %v1260
        %v1290 = vpack.c.bf16 %v1263, %v1262
        %v1291 = vpack.c.bf16 %v1265, %v1264
        %v1292 = vpack.c.bf16 %v1267, %v1266
        %v1293 = vpack.c.bf16 %v1269, %v1268
        %v1294 = vpack.c.bf16 %v1271, %v1270
        %v1295 = vpack.c.bf16 %v1273, %v1272
        %v1296 = vpack.c.bf16 %v1275, %v1274
        %v1297 = vpack.c.bf16 %v1277, %v1276
        %v1298 = vpack.c.bf16 %v1279, %v1278
        %v1299 = vpack.c.bf16 %v1281, %v1280
        %v1300 = vpack.c.bf16 %v1283, %v1282
        %v1301 = vpack.c.bf16 %v1285, %v1284
        %v1302 = vld [vmem:[%s5] sm:$0xff]
        %v1303 = vld [vmem:[%s5 + $0x8] sm:$0xff]
        %v1304 = vld [vmem:[%s5 + $0x10] sm:$0xff]
        %v1305 = vld [vmem:[%s5 + $0x18] sm:$0xff]
        %v1306 = vld [vmem:[%s6] sm:$0x3]
        %v1308 = vperm.slane %v1306, 0
        %v1309 = vperm.slane %v1306, 1
        %v1316 = vunpack.c.l.b16 %v1302
        %v1317 = vunpack.c.h.b16 %v1302
        %v1318 = vunpack.c.l.b16 %v1303
        %v1319 = vunpack.c.h.b16 %v1303
        %v1320 = vunpack.c.l.b16 %v1304
        %v1321 = vunpack.c.h.b16 %v1304
        %v1322 = vunpack.c.l.b16 %v1305
        %v1323 = vunpack.c.h.b16 %v1305
        %v1324 = vpack.c.b16 %v1318, %v1316
        %v1325 = vpack.c.b16 %v1319, %v1317
        %v1326 = vpack.c.b16 %v1322, %v1320
        %v1327 = vpack.c.b16 %v1323, %v1321
        %v1333 = vsel %vm504, %v1286, 0
        %v1336 = vsel %vm504, %v1287, 0
        %v1339 = vsel %vm504, %v1288, 0
        %v1342 = vsel %vm504, %v1289, 0
        %v1345 = vsel %vm504, %v1290, 0
        %v1348 = vsel %vm504, %v1291, 0
        %v1351 = vsel %vm504, %v1292, 0
        %v1354 = vsel %vm504, %v1293, 0
        %v1357 = vsel %vm504, %v1294, 0
        %v1360 = vsel %vm504, %v1295, 0
        %v1363 = vsel %vm504, %v1296, 0
        %v1366 = vsel %vm504, %v1297, 0
        %v1369 = vsel %vm504, %v1298, 0
        %v1372 = vsel %vm504, %v1299, 0
        %v1375 = vsel %vm504, %v1300, 0
        %v1378 = vsel %vm504, %v1301, 0
        %1380 = vmatpush.bf16.msra.mxu0 0
        %1381 = vmatpush.bf16.msra.mxu0 0
        %1382 = vmatpush.bf16.msra.mxu0 0
        %1383 = vmatpush.bf16.msra.mxu0 0
        %1384 = vmatpush.bf16.msra.mxu0 0
        %1385 = vmatpush.bf16.msra.mxu0 0
        %1386 = vmatpush.bf16.msra.mxu0 %v1326
        %1387 = vmatpush.bf16.msra.mxu0 %v1324
        %1388 = vmatmul.bf16.gmra.mxu0 %v1333
        %v1389 = vpop.f32.mrf.mxu0
        %v1390 = vadd.f32 %v1308, %v1389
        %v1391 = vpop.f32.mrf.mxu0
        %v1392 = vadd.f32 %v1308, %v1391
        %1393 = vmatmul.bf16.gmra.mxu0 %v1336
        %v1394 = vpop.f32.mrf.mxu0
        %v1395 = vadd.f32 %v1308, %v1394
        %v1396 = vpop.f32.mrf.mxu0
        %v1397 = vadd.f32 %v1308, %v1396
        %1398 = vmatmul.bf16.gmra.mxu0 %v1339
        %v1399 = vpop.f32.mrf.mxu0
        %v1400 = vadd.f32 %v1308, %v1399
        %v1401 = vpop.f32.mrf.mxu0
        %v1402 = vadd.f32 %v1308, %v1401
        %1403 = vmatmul.bf16.gmra.mxu0 %v1342
        %v1404 = vpop.f32.mrf.mxu0
        %v1405 = vadd.f32 %v1308, %v1404
        %v1406 = vpop.f32.mrf.mxu0
        %v1407 = vadd.f32 %v1308, %v1406
        %1408 = vmatmul.bf16.gmra.mxu0 %v1345
        %v1409 = vpop.f32.mrf.mxu0
        %v1410 = vadd.f32 %v1308, %v1409
        %v1411 = vpop.f32.mrf.mxu0
        %v1412 = vadd.f32 %v1308, %v1411
        %1413 = vmatmul.bf16.gmra.mxu0 %v1348
        %v1414 = vpop.f32.mrf.mxu0
        %v1415 = vadd.f32 %v1308, %v1414
        %v1416 = vpop.f32.mrf.mxu0
        %v1417 = vadd.f32 %v1308, %v1416
        %1418 = vmatmul.bf16.gmra.mxu0 %v1351
        %v1419 = vpop.f32.mrf.mxu0
        %v1420 = vadd.f32 %v1308, %v1419
        %v1421 = vpop.f32.mrf.mxu0
        %v1422 = vadd.f32 %v1308, %v1421
        %1423 = vmatmul.bf16.gmra.mxu0 %v1354
        %v1424 = vpop.f32.mrf.mxu0
        %v1425 = vadd.f32 %v1308, %v1424
        %v1426 = vpop.f32.mrf.mxu0
        %v1427 = vadd.f32 %v1308, %v1426
        %1428 = vmatmul.bf16.gmra.mxu0 %v1357
        %v1429 = vpop.f32.mrf.mxu0
        %v1430 = vadd.f32 %v1308, %v1429
        %v1431 = vpop.f32.mrf.mxu0
        %v1432 = vadd.f32 %v1308, %v1431
        %1433 = vmatmul.bf16.gmra.mxu0 %v1360
        %v1434 = vpop.f32.mrf.mxu0
        %v1435 = vadd.f32 %v1308, %v1434
        %v1436 = vpop.f32.mrf.mxu0
        %v1437 = vadd.f32 %v1308, %v1436
        %1438 = vmatmul.bf16.gmra.mxu0 %v1363
        %v1439 = vpop.f32.mrf.mxu0
        %v1440 = vadd.f32 %v1308, %v1439
        %v1441 = vpop.f32.mrf.mxu0
        %v1442 = vadd.f32 %v1308, %v1441
        %1443 = vmatmul.bf16.gmra.mxu0 %v1366
        %v1444 = vpop.f32.mrf.mxu0
        %v1445 = vadd.f32 %v1308, %v1444
        %v1446 = vpop.f32.mrf.mxu0
        %v1447 = vadd.f32 %v1308, %v1446
        %1448 = vmatmul.bf16.gmra.mxu0 %v1369
        %v1449 = vpop.f32.mrf.mxu0
        %v1450 = vadd.f32 %v1308, %v1449
        %v1451 = vpop.f32.mrf.mxu0
        %v1452 = vadd.f32 %v1308, %v1451
        %1453 = vmatmul.bf16.gmra.mxu0 %v1372
        %v1454 = vpop.f32.mrf.mxu0
        %v1455 = vadd.f32 %v1308, %v1454
        %v1456 = vpop.f32.mrf.mxu0
        %v1457 = vadd.f32 %v1308, %v1456
        %1458 = vmatmul.bf16.gmra.mxu0 %v1375
        %v1459 = vpop.f32.mrf.mxu0
        %v1460 = vadd.f32 %v1308, %v1459
        %v1461 = vpop.f32.mrf.mxu0
        %v1462 = vadd.f32 %v1308, %v1461
        %1463 = vmatmul.bf16.gmra.mxu0 %v1378
        %v1464 = vpop.f32.mrf.mxu0
        %v1465 = vadd.f32 %v1308, %v1464
        %v1466 = vpop.f32.mrf.mxu0
        %v1467 = vadd.f32 %v1308, %v1466
        %1468 = vdwg.mxu0
        %1469 = vmatpush.bf16.msra.mxu0 0
        %1470 = vmatpush.bf16.msra.mxu0 0
        %1471 = vmatpush.bf16.msra.mxu0 0
        %1472 = vmatpush.bf16.msra.mxu0 0
        %1473 = vmatpush.bf16.msra.mxu0 0
        %1474 = vmatpush.bf16.msra.mxu0 0
        %1475 = vmatpush.bf16.msra.mxu0 %v1327
        %1476 = vmatpush.bf16.msra.mxu0 %v1325
        %1477 = vmatmul.bf16.gmra.mxu0 %v1333
        %v1478 = vpop.f32.mrf.mxu0
        %v1479 = vadd.f32 %v1309, %v1478
        %v1480 = vpop.f32.mrf.mxu0
        %v1481 = vadd.f32 %v1309, %v1480
        %1482 = vmatmul.bf16.gmra.mxu0 %v1336
        %v1483 = vpop.f32.mrf.mxu0
        %v1484 = vadd.f32 %v1309, %v1483
        %v1485 = vpop.f32.mrf.mxu0
        %v1486 = vadd.f32 %v1309, %v1485
        %1487 = vmatmul.bf16.gmra.mxu0 %v1339
        %v1488 = vpop.f32.mrf.mxu0
        %v1489 = vadd.f32 %v1309, %v1488
        %v1490 = vpop.f32.mrf.mxu0
        %v1491 = vadd.f32 %v1309, %v1490
        %1492 = vmatmul.bf16.gmra.mxu0 %v1342
        %v1493 = vpop.f32.mrf.mxu0
        %v1494 = vadd.f32 %v1309, %v1493
        %v1495 = vpop.f32.mrf.mxu0
        %v1496 = vadd.f32 %v1309, %v1495
        %1497 = vmatmul.bf16.gmra.mxu0 %v1345
        %v1498 = vpop.f32.mrf.mxu0
        %v1499 = vadd.f32 %v1309, %v1498
        %v1500 = vpop.f32.mrf.mxu0
        %v1501 = vadd.f32 %v1309, %v1500
        %1502 = vmatmul.bf16.gmra.mxu0 %v1348
        %v1503 = vpop.f32.mrf.mxu0
        %v1504 = vadd.f32 %v1309, %v1503
        %v1505 = vpop.f32.mrf.mxu0
        %v1506 = vadd.f32 %v1309, %v1505
        %1507 = vmatmul.bf16.gmra.mxu0 %v1351
        %v1508 = vpop.f32.mrf.mxu0
        %v1509 = vadd.f32 %v1309, %v1508
        %v1510 = vpop.f32.mrf.mxu0
        %v1511 = vadd.f32 %v1309, %v1510
        %1512 = vmatmul.bf16.gmra.mxu0 %v1354
        %v1513 = vpop.f32.mrf.mxu0
        %v1514 = vadd.f32 %v1309, %v1513
        %v1515 = vpop.f32.mrf.mxu0
        %v1516 = vadd.f32 %v1309, %v1515
        %1517 = vmatmul.bf16.gmra.mxu0 %v1357
        %v1518 = vpop.f32.mrf.mxu0
        %v1519 = vadd.f32 %v1309, %v1518
        %v1520 = vpop.f32.mrf.mxu0
        %v1521 = vadd.f32 %v1309, %v1520
        %1522 = vmatmul.bf16.gmra.mxu0 %v1360
        %v1523 = vpop.f32.mrf.mxu0
        %v1524 = vadd.f32 %v1309, %v1523
        %v1525 = vpop.f32.mrf.mxu0
        %v1526 = vadd.f32 %v1309, %v1525
        %1527 = vmatmul.bf16.gmra.mxu0 %v1363
        %v1528 = vpop.f32.mrf.mxu0
        %v1529 = vadd.f32 %v1309, %v1528
        %v1530 = vpop.f32.mrf.mxu0
        %v1531 = vadd.f32 %v1309, %v1530
        %1532 = vmatmul.bf16.gmra.mxu0 %v1366
        %v1533 = vpop.f32.mrf.mxu0
        %v1534 = vadd.f32 %v1309, %v1533
        %v1535 = vpop.f32.mrf.mxu0
        %v1536 = vadd.f32 %v1309, %v1535
        %1537 = vmatmul.bf16.gmra.mxu0 %v1369
        %v1538 = vpop.f32.mrf.mxu0
        %v1539 = vadd.f32 %v1309, %v1538
        %v1540 = vpop.f32.mrf.mxu0
        %v1541 = vadd.f32 %v1309, %v1540
        %1542 = vmatmul.bf16.gmra.mxu0 %v1372
        %v1543 = vpop.f32.mrf.mxu0
        %v1544 = vadd.f32 %v1309, %v1543
        %v1545 = vpop.f32.mrf.mxu0
        %v1546 = vadd.f32 %v1309, %v1545
        %1547 = vmatmul.bf16.gmra.mxu0 %v1375
        %v1548 = vpop.f32.mrf.mxu0
        %v1549 = vadd.f32 %v1309, %v1548
        %v1550 = vpop.f32.mrf.mxu0
        %v1551 = vadd.f32 %v1309, %v1550
        %1552 = vmatmul.bf16.gmra.mxu0 %v1378
        %v1553 = vpop.f32.mrf.mxu0
        %v1554 = vadd.f32 %v1309, %v1553
        %v1555 = vpop.f32.mrf.mxu0
        %v1556 = vadd.f32 %v1309, %v1555
        %1557 = vdwg.mxu0
        %v1558 = vxor.u32 %v1390, 2147483648
        %v1559 = vxor.u32 %v1392, 2147483648
        %v1560 = vxor.u32 %v1395, 2147483648
        %v1561 = vxor.u32 %v1397, 2147483648
        %v1562 = vxor.u32 %v1400, 2147483648
        %v1563 = vxor.u32 %v1402, 2147483648
        %v1564 = vxor.u32 %v1405, 2147483648
        %v1565 = vxor.u32 %v1407, 2147483648
        %v1566 = vxor.u32 %v1410, 2147483648
        %v1567 = vxor.u32 %v1412, 2147483648
        %v1568 = vxor.u32 %v1415, 2147483648
        %v1569 = vxor.u32 %v1417, 2147483648
        %v1570 = vxor.u32 %v1420, 2147483648
        %v1571 = vxor.u32 %v1422, 2147483648
        %v1572 = vxor.u32 %v1425, 2147483648
        %v1573 = vxor.u32 %v1427, 2147483648
        %v1574 = vxor.u32 %v1430, 2147483648
        %v1575 = vxor.u32 %v1432, 2147483648
        %v1576 = vxor.u32 %v1435, 2147483648
        %v1577 = vxor.u32 %v1437, 2147483648
        %v1578 = vxor.u32 %v1440, 2147483648
        %v1579 = vxor.u32 %v1442, 2147483648
        %v1580 = vxor.u32 %v1445, 2147483648
        %v1581 = vxor.u32 %v1447, 2147483648
        %v1582 = vxor.u32 %v1450, 2147483648
        %v1583 = vxor.u32 %v1452, 2147483648
        %v1584 = vxor.u32 %v1455, 2147483648
        %v1585 = vxor.u32 %v1457, 2147483648
        %v1586 = vxor.u32 %v1460, 2147483648
        %v1587 = vxor.u32 %v1462, 2147483648
        %v1588 = vxor.u32 %v1465, 2147483648
        %v1589 = vxor.u32 %v1467, 2147483648
        %v1590 = vmul.f32 %v1558, 1.442695
        %v1591 = vpow.pop %v1590
        %v1592 = vmul.f32 %v1559, 1.442695
        %v1593 = vpow.pop %v1592
        %v1594 = vmul.f32 %v1560, 1.442695
        %v1595 = vpow.pop %v1594
        %v1596 = vmul.f32 %v1561, 1.442695
        %v1597 = vpow.pop %v1596
        %v1598 = vmul.f32 %v1562, 1.442695
        %v1599 = vpow.pop %v1598
        %v1600 = vmul.f32 %v1563, 1.442695
        %v1601 = vpow.pop %v1600
        %v1602 = vmul.f32 %v1564, 1.442695
        %v1603 = vpow.pop %v1602
        %v1604 = vmul.f32 %v1565, 1.442695
        %v1605 = vpow.pop %v1604
        %v1606 = vmul.f32 %v1566, 1.442695
        %v1607 = vpow.pop %v1606
        %v1608 = vmul.f32 %v1567, 1.442695
        %v1609 = vpow.pop %v1608
        %v1610 = vmul.f32 %v1568, 1.442695
        %v1611 = vpow.pop %v1610
        %v1612 = vmul.f32 %v1569, 1.442695
        %v1613 = vpow.pop %v1612
        %v1614 = vmul.f32 %v1570, 1.442695
        %v1615 = vpow.pop %v1614
        %v1616 = vmul.f32 %v1571, 1.442695
        %v1617 = vpow.pop %v1616
        %v1618 = vmul.f32 %v1572, 1.442695
        %v1619 = vpow.pop %v1618
        %v1620 = vmul.f32 %v1573, 1.442695
        %v1621 = vpow.pop %v1620
        %v1622 = vmul.f32 %v1574, 1.442695
        %v1623 = vpow.pop %v1622
        %v1624 = vmul.f32 %v1575, 1.442695
        %v1625 = vpow.pop %v1624
        %v1626 = vmul.f32 %v1576, 1.442695
        %v1627 = vpow.pop %v1626
        %v1628 = vmul.f32 %v1577, 1.442695
        %v1629 = vpow.pop %v1628
        %v1630 = vmul.f32 %v1578, 1.442695
        %v1631 = vpow.pop %v1630
        %v1632 = vmul.f32 %v1579, 1.442695
        %v1633 = vpow.pop %v1632
        %v1634 = vmul.f32 %v1580, 1.442695
        %v1635 = vpow.pop %v1634
        %v1636 = vmul.f32 %v1581, 1.442695
        %v1637 = vpow.pop %v1636
        %v1638 = vmul.f32 %v1582, 1.442695
        %v1639 = vpow.pop %v1638
        %v1640 = vmul.f32 %v1583, 1.442695
        %v1641 = vpow.pop %v1640
        %v1642 = vmul.f32 %v1584, 1.442695
        %v1643 = vpow.pop %v1642
        %v1644 = vmul.f32 %v1585, 1.442695
        %v1645 = vpow.pop %v1644
        %v1646 = vmul.f32 %v1586, 1.442695
        %v1647 = vpow.pop %v1646
        %v1648 = vmul.f32 %v1587, 1.442695
        %v1649 = vpow.pop %v1648
        %v1650 = vmul.f32 %v1588, 1.442695
        %v1651 = vpow.pop %v1650
        %v1652 = vmul.f32 %v1589, 1.442695
        %v1653 = vpow.pop %v1652
        %v1654 = vadd.f32 %v1591, 1.0
        %v1655 = vadd.f32 %v1593, 1.0
        %v1656 = vadd.f32 %v1595, 1.0
        %v1657 = vadd.f32 %v1597, 1.0
        %v1658 = vadd.f32 %v1599, 1.0
        %v1659 = vadd.f32 %v1601, 1.0
        %v1660 = vadd.f32 %v1603, 1.0
        %v1661 = vadd.f32 %v1605, 1.0
        %v1662 = vadd.f32 %v1607, 1.0
        %v1663 = vadd.f32 %v1609, 1.0
        %v1664 = vadd.f32 %v1611, 1.0
        %v1665 = vadd.f32 %v1613, 1.0
        %v1666 = vadd.f32 %v1615, 1.0
        %v1667 = vadd.f32 %v1617, 1.0
        %v1668 = vadd.f32 %v1619, 1.0
        %v1669 = vadd.f32 %v1621, 1.0
        %v1670 = vadd.f32 %v1623, 1.0
        %v1671 = vadd.f32 %v1625, 1.0
        %v1672 = vadd.f32 %v1627, 1.0
        %v1673 = vadd.f32 %v1629, 1.0
        %v1674 = vadd.f32 %v1631, 1.0
        %v1675 = vadd.f32 %v1633, 1.0
        %v1676 = vadd.f32 %v1635, 1.0
        %v1677 = vadd.f32 %v1637, 1.0
        %v1678 = vadd.f32 %v1639, 1.0
        %v1679 = vadd.f32 %v1641, 1.0
        %v1680 = vadd.f32 %v1643, 1.0
        %v1681 = vadd.f32 %v1645, 1.0
        %v1682 = vadd.f32 %v1647, 1.0
        %v1683 = vadd.f32 %v1649, 1.0
        %v1684 = vadd.f32 %v1651, 1.0
        %v1685 = vadd.f32 %v1653, 1.0
        %v1686 = vrcp.pop %v1654
        %v1687 = vmul.f32 %v1654, %v1686
        %v1688 = vsub.f32 1.0, %v1687
        %v1689 = vmul.f32 %v1686, %v1688
        %v1690 = vadd.f32 %v1686, %v1689
        %vm1691 = vweird.f32 %v1654
        %vm1692 = vweird.f32 %v1686
        %vm1693 = vmor %vm1691, %vm1692
        %v1694 = vsel %vm1693, %v1686, %v1690
        %v1695 = vand.u32 2147483647, %v1654
        %vm1696 = vcmp.eq.f32.partialorder %v1695, 8.507059e+37
        %v1697 = vand.u32 %v1654, 2147483648
        %v1698 = vor.u32 1.1754944e-38, %v1697
        %v1699 = vsel %vm1696, %v1698, %v1694
        %v1700 = vmul.f32 1.0, %v1699
        %v1701 = vrcp.pop %v1655
        %v1702 = vmul.f32 %v1655, %v1701
        %v1703 = vsub.f32 1.0, %v1702
        %v1704 = vmul.f32 %v1701, %v1703
        %v1705 = vadd.f32 %v1701, %v1704
        %vm1706 = vweird.f32 %v1655
        %vm1707 = vweird.f32 %v1701
        %vm1708 = vmor %vm1706, %vm1707
        %v1709 = vsel %vm1708, %v1701, %v1705
        %v1710 = vand.u32 2147483647, %v1655
        %vm1711 = vcmp.eq.f32.partialorder %v1710, 8.507059e+37
        %v1712 = vand.u32 %v1655, 2147483648
        %v1713 = vor.u32 1.1754944e-38, %v1712
        %v1714 = vsel %vm1711, %v1713, %v1709
        %v1715 = vmul.f32 1.0, %v1714
        %v1716 = vrcp.pop %v1656
        %v1717 = vmul.f32 %v1656, %v1716
        %v1718 = vsub.f32 1.0, %v1717
        %v1719 = vmul.f32 %v1716, %v1718
        %v1720 = vadd.f32 %v1716, %v1719
        %vm1721 = vweird.f32 %v1656
        %vm1722 = vweird.f32 %v1716
        %vm1723 = vmor %vm1721, %vm1722
        %v1724 = vsel %vm1723, %v1716, %v1720
        %v1725 = vand.u32 2147483647, %v1656
        %vm1726 = vcmp.eq.f32.partialorder %v1725, 8.507059e+37
        %v1727 = vand.u32 %v1656, 2147483648
        %v1728 = vor.u32 1.1754944e-38, %v1727
        %v1729 = vsel %vm1726, %v1728, %v1724
        %v1730 = vmul.f32 1.0, %v1729
        %v1731 = vrcp.pop %v1657
        %v1732 = vmul.f32 %v1657, %v1731
        %v1733 = vsub.f32 1.0, %v1732
        %v1734 = vmul.f32 %v1731, %v1733
        %v1735 = vadd.f32 %v1731, %v1734
        %vm1736 = vweird.f32 %v1657
        %vm1737 = vweird.f32 %v1731
        %vm1738 = vmor %vm1736, %vm1737
        %v1739 = vsel %vm1738, %v1731, %v1735
        %v1740 = vand.u32 2147483647, %v1657
        %vm1741 = vcmp.eq.f32.partialorder %v1740, 8.507059e+37
        %v1742 = vand.u32 %v1657, 2147483648
        %v1743 = vor.u32 1.1754944e-38, %v1742
        %v1744 = vsel %vm1741, %v1743, %v1739
        %v1745 = vmul.f32 1.0, %v1744
        %v1746 = vrcp.pop %v1658
        %v1747 = vmul.f32 %v1658, %v1746
        %v1748 = vsub.f32 1.0, %v1747
        %v1749 = vmul.f32 %v1746, %v1748
        %v1750 = vadd.f32 %v1746, %v1749
        %vm1751 = vweird.f32 %v1658
        %vm1752 = vweird.f32 %v1746
        %vm1753 = vmor %vm1751, %vm1752
        %v1754 = vsel %vm1753, %v1746, %v1750
        %v1755 = vand.u32 2147483647, %v1658
        %vm1756 = vcmp.eq.f32.partialorder %v1755, 8.507059e+37
        %v1757 = vand.u32 %v1658, 2147483648
        %v1758 = vor.u32 1.1754944e-38, %v1757
        %v1759 = vsel %vm1756, %v1758, %v1754
        %v1760 = vmul.f32 1.0, %v1759
        %v1761 = vrcp.pop %v1659
        %v1762 = vmul.f32 %v1659, %v1761
        %v1763 = vsub.f32 1.0, %v1762
        %v1764 = vmul.f32 %v1761, %v1763
        %v1765 = vadd.f32 %v1761, %v1764
        %vm1766 = vweird.f32 %v1659
        %vm1767 = vweird.f32 %v1761
        %vm1768 = vmor %vm1766, %vm1767
        %v1769 = vsel %vm1768, %v1761, %v1765
        %v1770 = vand.u32 2147483647, %v1659
        %vm1771 = vcmp.eq.f32.partialorder %v1770, 8.507059e+37
        %v1772 = vand.u32 %v1659, 2147483648
        %v1773 = vor.u32 1.1754944e-38, %v1772
        %v1774 = vsel %vm1771, %v1773, %v1769
        %v1775 = vmul.f32 1.0, %v1774
        %v1776 = vrcp.pop %v1660
        %v1777 = vmul.f32 %v1660, %v1776
        %v1778 = vsub.f32 1.0, %v1777
        %v1779 = vmul.f32 %v1776, %v1778
        %v1780 = vadd.f32 %v1776, %v1779
        %vm1781 = vweird.f32 %v1660
        %vm1782 = vweird.f32 %v1776
        %vm1783 = vmor %vm1781, %vm1782
        %v1784 = vsel %vm1783, %v1776, %v1780
        %v1785 = vand.u32 2147483647, %v1660
        %vm1786 = vcmp.eq.f32.partialorder %v1785, 8.507059e+37
        %v1787 = vand.u32 %v1660, 2147483648
        %v1788 = vor.u32 1.1754944e-38, %v1787
        %v1789 = vsel %vm1786, %v1788, %v1784
        %v1790 = vmul.f32 1.0, %v1789
        %v1791 = vrcp.pop %v1661
        %v1792 = vmul.f32 %v1661, %v1791
        %v1793 = vsub.f32 1.0, %v1792
        %v1794 = vmul.f32 %v1791, %v1793
        %v1795 = vadd.f32 %v1791, %v1794
        %vm1796 = vweird.f32 %v1661
        %vm1797 = vweird.f32 %v1791
        %vm1798 = vmor %vm1796, %vm1797
        %v1799 = vsel %vm1798, %v1791, %v1795
        %v1800 = vand.u32 2147483647, %v1661
        %vm1801 = vcmp.eq.f32.partialorder %v1800, 8.507059e+37
        %v1802 = vand.u32 %v1661, 2147483648
        %v1803 = vor.u32 1.1754944e-38, %v1802
        %v1804 = vsel %vm1801, %v1803, %v1799
        %v1805 = vmul.f32 1.0, %v1804
        %v1806 = vrcp.pop %v1662
        %v1807 = vmul.f32 %v1662, %v1806
        %v1808 = vsub.f32 1.0, %v1807
        %v1809 = vmul.f32 %v1806, %v1808
        %v1810 = vadd.f32 %v1806, %v1809
        %vm1811 = vweird.f32 %v1662
        %vm1812 = vweird.f32 %v1806
        %vm1813 = vmor %vm1811, %vm1812
        %v1814 = vsel %vm1813, %v1806, %v1810
        %v1815 = vand.u32 2147483647, %v1662
        %vm1816 = vcmp.eq.f32.partialorder %v1815, 8.507059e+37
        %v1817 = vand.u32 %v1662, 2147483648
        %v1818 = vor.u32 1.1754944e-38, %v1817
        %v1819 = vsel %vm1816, %v1818, %v1814
        %v1820 = vmul.f32 1.0, %v1819
        %v1821 = vrcp.pop %v1663
        %v1822 = vmul.f32 %v1663, %v1821
        %v1823 = vsub.f32 1.0, %v1822
        %v1824 = vmul.f32 %v1821, %v1823
        %v1825 = vadd.f32 %v1821, %v1824
        %vm1826 = vweird.f32 %v1663
        %vm1827 = vweird.f32 %v1821
        %vm1828 = vmor %vm1826, %vm1827
        %v1829 = vsel %vm1828, %v1821, %v1825
        %v1830 = vand.u32 2147483647, %v1663
        %vm1831 = vcmp.eq.f32.partialorder %v1830, 8.507059e+37
        %v1832 = vand.u32 %v1663, 2147483648
        %v1833 = vor.u32 1.1754944e-38, %v1832
        %v1834 = vsel %vm1831, %v1833, %v1829
        %v1835 = vmul.f32 1.0, %v1834
        %v1836 = vrcp.pop %v1664
        %v1837 = vmul.f32 %v1664, %v1836
        %v1838 = vsub.f32 1.0, %v1837
        %v1839 = vmul.f32 %v1836, %v1838
        %v1840 = vadd.f32 %v1836, %v1839
        %vm1841 = vweird.f32 %v1664
        %vm1842 = vweird.f32 %v1836
        %vm1843 = vmor %vm1841, %vm1842
        %v1844 = vsel %vm1843, %v1836, %v1840
        %v1845 = vand.u32 2147483647, %v1664
        %vm1846 = vcmp.eq.f32.partialorder %v1845, 8.507059e+37
        %v1847 = vand.u32 %v1664, 2147483648
        %v1848 = vor.u32 1.1754944e-38, %v1847
        %v1849 = vsel %vm1846, %v1848, %v1844
        %v1850 = vmul.f32 1.0, %v1849
        %v1851 = vrcp.pop %v1665
        %v1852 = vmul.f32 %v1665, %v1851
        %v1853 = vsub.f32 1.0, %v1852
        %v1854 = vmul.f32 %v1851, %v1853
        %v1855 = vadd.f32 %v1851, %v1854
        %vm1856 = vweird.f32 %v1665
        %vm1857 = vweird.f32 %v1851
        %vm1858 = vmor %vm1856, %vm1857
        %v1859 = vsel %vm1858, %v1851, %v1855
        %v1860 = vand.u32 2147483647, %v1665
        %vm1861 = vcmp.eq.f32.partialorder %v1860, 8.507059e+37
        %v1862 = vand.u32 %v1665, 2147483648
        %v1863 = vor.u32 1.1754944e-38, %v1862
        %v1864 = vsel %vm1861, %v1863, %v1859
        %v1865 = vmul.f32 1.0, %v1864
        %v1866 = vrcp.pop %v1666
        %v1867 = vmul.f32 %v1666, %v1866
        %v1868 = vsub.f32 1.0, %v1867
        %v1869 = vmul.f32 %v1866, %v1868
        %v1870 = vadd.f32 %v1866, %v1869
        %vm1871 = vweird.f32 %v1666
        %vm1872 = vweird.f32 %v1866
        %vm1873 = vmor %vm1871, %vm1872
        %v1874 = vsel %vm1873, %v1866, %v1870
        %v1875 = vand.u32 2147483647, %v1666
        %vm1876 = vcmp.eq.f32.partialorder %v1875, 8.507059e+37
        %v1877 = vand.u32 %v1666, 2147483648
        %v1878 = vor.u32 1.1754944e-38, %v1877
        %v1879 = vsel %vm1876, %v1878, %v1874
        %v1880 = vmul.f32 1.0, %v1879
        %v1881 = vrcp.pop %v1667
        %v1882 = vmul.f32 %v1667, %v1881
        %v1883 = vsub.f32 1.0, %v1882
        %v1884 = vmul.f32 %v1881, %v1883
        %v1885 = vadd.f32 %v1881, %v1884
        %vm1886 = vweird.f32 %v1667
        %vm1887 = vweird.f32 %v1881
        %vm1888 = vmor %vm1886, %vm1887
        %v1889 = vsel %vm1888, %v1881, %v1885
        %v1890 = vand.u32 2147483647, %v1667
        %vm1891 = vcmp.eq.f32.partialorder %v1890, 8.507059e+37
        %v1892 = vand.u32 %v1667, 2147483648
        %v1893 = vor.u32 1.1754944e-38, %v1892
        %v1894 = vsel %vm1891, %v1893, %v1889
        %v1895 = vmul.f32 1.0, %v1894
        %v1896 = vrcp.pop %v1668
        %v1897 = vmul.f32 %v1668, %v1896
        %v1898 = vsub.f32 1.0, %v1897
        %v1899 = vmul.f32 %v1896, %v1898
        %v1900 = vadd.f32 %v1896, %v1899
        %vm1901 = vweird.f32 %v1668
        %vm1902 = vweird.f32 %v1896
        %vm1903 = vmor %vm1901, %vm1902
        %v1904 = vsel %vm1903, %v1896, %v1900
        %v1905 = vand.u32 2147483647, %v1668
        %vm1906 = vcmp.eq.f32.partialorder %v1905, 8.507059e+37
        %v1907 = vand.u32 %v1668, 2147483648
        %v1908 = vor.u32 1.1754944e-38, %v1907
        %v1909 = vsel %vm1906, %v1908, %v1904
        %v1910 = vmul.f32 1.0, %v1909
        %v1911 = vrcp.pop %v1669
        %v1912 = vmul.f32 %v1669, %v1911
        %v1913 = vsub.f32 1.0, %v1912
        %v1914 = vmul.f32 %v1911, %v1913
        %v1915 = vadd.f32 %v1911, %v1914
        %vm1916 = vweird.f32 %v1669
        %vm1917 = vweird.f32 %v1911
        %vm1918 = vmor %vm1916, %vm1917
        %v1919 = vsel %vm1918, %v1911, %v1915
        %v1920 = vand.u32 2147483647, %v1669
        %vm1921 = vcmp.eq.f32.partialorder %v1920, 8.507059e+37
        %v1922 = vand.u32 %v1669, 2147483648
        %v1923 = vor.u32 1.1754944e-38, %v1922
        %v1924 = vsel %vm1921, %v1923, %v1919
        %v1925 = vmul.f32 1.0, %v1924
        %v1926 = vrcp.pop %v1670
        %v1927 = vmul.f32 %v1670, %v1926
        %v1928 = vsub.f32 1.0, %v1927
        %v1929 = vmul.f32 %v1926, %v1928
        %v1930 = vadd.f32 %v1926, %v1929
        %vm1931 = vweird.f32 %v1670
        %vm1932 = vweird.f32 %v1926
        %vm1933 = vmor %vm1931, %vm1932
        %v1934 = vsel %vm1933, %v1926, %v1930
        %v1935 = vand.u32 2147483647, %v1670
        %vm1936 = vcmp.eq.f32.partialorder %v1935, 8.507059e+37
        %v1937 = vand.u32 %v1670, 2147483648
        %v1938 = vor.u32 1.1754944e-38, %v1937
        %v1939 = vsel %vm1936, %v1938, %v1934
        %v1940 = vmul.f32 1.0, %v1939
        %v1941 = vrcp.pop %v1671
        %v1942 = vmul.f32 %v1671, %v1941
        %v1943 = vsub.f32 1.0, %v1942
        %v1944 = vmul.f32 %v1941, %v1943
        %v1945 = vadd.f32 %v1941, %v1944
        %vm1946 = vweird.f32 %v1671
        %vm1947 = vweird.f32 %v1941
        %vm1948 = vmor %vm1946, %vm1947
        %v1949 = vsel %vm1948, %v1941, %v1945
        %v1950 = vand.u32 2147483647, %v1671
        %vm1951 = vcmp.eq.f32.partialorder %v1950, 8.507059e+37
        %v1952 = vand.u32 %v1671, 2147483648
        %v1953 = vor.u32 1.1754944e-38, %v1952
        %v1954 = vsel %vm1951, %v1953, %v1949
        %v1955 = vmul.f32 1.0, %v1954
        %v1956 = vrcp.pop %v1672
        %v1957 = vmul.f32 %v1672, %v1956
        %v1958 = vsub.f32 1.0, %v1957
        %v1959 = vmul.f32 %v1956, %v1958
        %v1960 = vadd.f32 %v1956, %v1959
        %vm1961 = vweird.f32 %v1672
        %vm1962 = vweird.f32 %v1956
        %vm1963 = vmor %vm1961, %vm1962
        %v1964 = vsel %vm1963, %v1956, %v1960
        %v1965 = vand.u32 2147483647, %v1672
        %vm1966 = vcmp.eq.f32.partialorder %v1965, 8.507059e+37
        %v1967 = vand.u32 %v1672, 2147483648
        %v1968 = vor.u32 1.1754944e-38, %v1967
        %v1969 = vsel %vm1966, %v1968, %v1964
        %v1970 = vmul.f32 1.0, %v1969
        %v1971 = vrcp.pop %v1673
        %v1972 = vmul.f32 %v1673, %v1971
        %v1973 = vsub.f32 1.0, %v1972
        %v1974 = vmul.f32 %v1971, %v1973
        %v1975 = vadd.f32 %v1971, %v1974
        %vm1976 = vweird.f32 %v1673
        %vm1977 = vweird.f32 %v1971
        %vm1978 = vmor %vm1976, %vm1977
        %v1979 = vsel %vm1978, %v1971, %v1975
        %v1980 = vand.u32 2147483647, %v1673
        %vm1981 = vcmp.eq.f32.partialorder %v1980, 8.507059e+37
        %v1982 = vand.u32 %v1673, 2147483648
        %v1983 = vor.u32 1.1754944e-38, %v1982
        %v1984 = vsel %vm1981, %v1983, %v1979
        %v1985 = vmul.f32 1.0, %v1984
        %v1986 = vrcp.pop %v1674
        %v1987 = vmul.f32 %v1674, %v1986
        %v1988 = vsub.f32 1.0, %v1987
        %v1989 = vmul.f32 %v1986, %v1988
        %v1990 = vadd.f32 %v1986, %v1989
        %vm1991 = vweird.f32 %v1674
        %vm1992 = vweird.f32 %v1986
        %vm1993 = vmor %vm1991, %vm1992
        %v1994 = vsel %vm1993, %v1986, %v1990
        %v1995 = vand.u32 2147483647, %v1674
        %vm1996 = vcmp.eq.f32.partialorder %v1995, 8.507059e+37
        %v1997 = vand.u32 %v1674, 2147483648
        %v1998 = vor.u32 1.1754944e-38, %v1997
        %v1999 = vsel %vm1996, %v1998, %v1994
        %v2000 = vmul.f32 1.0, %v1999
        %v2001 = vrcp.pop %v1675
        %v2002 = vmul.f32 %v1675, %v2001
        %v2003 = vsub.f32 1.0, %v2002
        %v2004 = vmul.f32 %v2001, %v2003
        %v2005 = vadd.f32 %v2001, %v2004
        %vm2006 = vweird.f32 %v1675
        %vm2007 = vweird.f32 %v2001
        %vm2008 = vmor %vm2006, %vm2007
        %v2009 = vsel %vm2008, %v2001, %v2005
        %v2010 = vand.u32 2147483647, %v1675
        %vm2011 = vcmp.eq.f32.partialorder %v2010, 8.507059e+37
        %v2012 = vand.u32 %v1675, 2147483648
        %v2013 = vor.u32 1.1754944e-38, %v2012
        %v2014 = vsel %vm2011, %v2013, %v2009
        %v2015 = vmul.f32 1.0, %v2014
        %v2016 = vrcp.pop %v1676
        %v2017 = vmul.f32 %v1676, %v2016
        %v2018 = vsub.f32 1.0, %v2017
        %v2019 = vmul.f32 %v2016, %v2018
        %v2020 = vadd.f32 %v2016, %v2019
        %vm2021 = vweird.f32 %v1676
        %vm2022 = vweird.f32 %v2016
        %vm2023 = vmor %vm2021, %vm2022
        %v2024 = vsel %vm2023, %v2016, %v2020
        %v2025 = vand.u32 2147483647, %v1676
        %vm2026 = vcmp.eq.f32.partialorder %v2025, 8.507059e+37
        %v2027 = vand.u32 %v1676, 2147483648
        %v2028 = vor.u32 1.1754944e-38, %v2027
        %v2029 = vsel %vm2026, %v2028, %v2024
        %v2030 = vmul.f32 1.0, %v2029
        %v2031 = vrcp.pop %v1677
        %v2032 = vmul.f32 %v1677, %v2031
        %v2033 = vsub.f32 1.0, %v2032
        %v2034 = vmul.f32 %v2031, %v2033
        %v2035 = vadd.f32 %v2031, %v2034
        %vm2036 = vweird.f32 %v1677
        %vm2037 = vweird.f32 %v2031
        %vm2038 = vmor %vm2036, %vm2037
        %v2039 = vsel %vm2038, %v2031, %v2035
        %v2040 = vand.u32 2147483647, %v1677
        %vm2041 = vcmp.eq.f32.partialorder %v2040, 8.507059e+37
        %v2042 = vand.u32 %v1677, 2147483648
        %v2043 = vor.u32 1.1754944e-38, %v2042
        %v2044 = vsel %vm2041, %v2043, %v2039
        %v2045 = vmul.f32 1.0, %v2044
        %v2046 = vrcp.pop %v1678
        %v2047 = vmul.f32 %v1678, %v2046
        %v2048 = vsub.f32 1.0, %v2047
        %v2049 = vmul.f32 %v2046, %v2048
        %v2050 = vadd.f32 %v2046, %v2049
        %vm2051 = vweird.f32 %v1678
        %vm2052 = vweird.f32 %v2046
        %vm2053 = vmor %vm2051, %vm2052
        %v2054 = vsel %vm2053, %v2046, %v2050
        %v2055 = vand.u32 2147483647, %v1678
        %vm2056 = vcmp.eq.f32.partialorder %v2055, 8.507059e+37
        %v2057 = vand.u32 %v1678, 2147483648
        %v2058 = vor.u32 1.1754944e-38, %v2057
        %v2059 = vsel %vm2056, %v2058, %v2054
        %v2060 = vmul.f32 1.0, %v2059
        %v2061 = vrcp.pop %v1679
        %v2062 = vmul.f32 %v1679, %v2061
        %v2063 = vsub.f32 1.0, %v2062
        %v2064 = vmul.f32 %v2061, %v2063
        %v2065 = vadd.f32 %v2061, %v2064
        %vm2066 = vweird.f32 %v1679
        %vm2067 = vweird.f32 %v2061
        %vm2068 = vmor %vm2066, %vm2067
        %v2069 = vsel %vm2068, %v2061, %v2065
        %v2070 = vand.u32 2147483647, %v1679
        %vm2071 = vcmp.eq.f32.partialorder %v2070, 8.507059e+37
        %v2072 = vand.u32 %v1679, 2147483648
        %v2073 = vor.u32 1.1754944e-38, %v2072
        %v2074 = vsel %vm2071, %v2073, %v2069
        %v2075 = vmul.f32 1.0, %v2074
        %v2076 = vrcp.pop %v1680
        %v2077 = vmul.f32 %v1680, %v2076
        %v2078 = vsub.f32 1.0, %v2077
        %v2079 = vmul.f32 %v2076, %v2078
        %v2080 = vadd.f32 %v2076, %v2079
        %vm2081 = vweird.f32 %v1680
        %vm2082 = vweird.f32 %v2076
        %vm2083 = vmor %vm2081, %vm2082
        %v2084 = vsel %vm2083, %v2076, %v2080
        %v2085 = vand.u32 2147483647, %v1680
        %vm2086 = vcmp.eq.f32.partialorder %v2085, 8.507059e+37
        %v2087 = vand.u32 %v1680, 2147483648
        %v2088 = vor.u32 1.1754944e-38, %v2087
        %v2089 = vsel %vm2086, %v2088, %v2084
        %v2090 = vmul.f32 1.0, %v2089
        %v2091 = vrcp.pop %v1681
        %v2092 = vmul.f32 %v1681, %v2091
        %v2093 = vsub.f32 1.0, %v2092
        %v2094 = vmul.f32 %v2091, %v2093
        %v2095 = vadd.f32 %v2091, %v2094
        %vm2096 = vweird.f32 %v1681
        %vm2097 = vweird.f32 %v2091
        %vm2098 = vmor %vm2096, %vm2097
        %v2099 = vsel %vm2098, %v2091, %v2095
        %v2100 = vand.u32 2147483647, %v1681
        %vm2101 = vcmp.eq.f32.partialorder %v2100, 8.507059e+37
        %v2102 = vand.u32 %v1681, 2147483648
        %v2103 = vor.u32 1.1754944e-38, %v2102
        %v2104 = vsel %vm2101, %v2103, %v2099
        %v2105 = vmul.f32 1.0, %v2104
        %v2106 = vrcp.pop %v1682
        %v2107 = vmul.f32 %v1682, %v2106
        %v2108 = vsub.f32 1.0, %v2107
        %v2109 = vmul.f32 %v2106, %v2108
        %v2110 = vadd.f32 %v2106, %v2109
        %vm2111 = vweird.f32 %v1682
        %vm2112 = vweird.f32 %v2106
        %vm2113 = vmor %vm2111, %vm2112
        %v2114 = vsel %vm2113, %v2106, %v2110
        %v2115 = vand.u32 2147483647, %v1682
        %vm2116 = vcmp.eq.f32.partialorder %v2115, 8.507059e+37
        %v2117 = vand.u32 %v1682, 2147483648
        %v2118 = vor.u32 1.1754944e-38, %v2117
        %v2119 = vsel %vm2116, %v2118, %v2114
        %v2120 = vmul.f32 1.0, %v2119
        %v2121 = vrcp.pop %v1683
        %v2122 = vmul.f32 %v1683, %v2121
        %v2123 = vsub.f32 1.0, %v2122
        %v2124 = vmul.f32 %v2121, %v2123
        %v2125 = vadd.f32 %v2121, %v2124
        %vm2126 = vweird.f32 %v1683
        %vm2127 = vweird.f32 %v2121
        %vm2128 = vmor %vm2126, %vm2127
        %v2129 = vsel %vm2128, %v2121, %v2125
        %v2130 = vand.u32 2147483647, %v1683
        %vm2131 = vcmp.eq.f32.partialorder %v2130, 8.507059e+37
        %v2132 = vand.u32 %v1683, 2147483648
        %v2133 = vor.u32 1.1754944e-38, %v2132
        %v2134 = vsel %vm2131, %v2133, %v2129
        %v2135 = vmul.f32 1.0, %v2134
        %v2136 = vrcp.pop %v1684
        %v2137 = vmul.f32 %v1684, %v2136
        %v2138 = vsub.f32 1.0, %v2137
        %v2139 = vmul.f32 %v2136, %v2138
        %v2140 = vadd.f32 %v2136, %v2139
        %vm2141 = vweird.f32 %v1684
        %vm2142 = vweird.f32 %v2136
        %vm2143 = vmor %vm2141, %vm2142
        %v2144 = vsel %vm2143, %v2136, %v2140
        %v2145 = vand.u32 2147483647, %v1684
        %vm2146 = vcmp.eq.f32.partialorder %v2145, 8.507059e+37
        %v2147 = vand.u32 %v1684, 2147483648
        %v2148 = vor.u32 1.1754944e-38, %v2147
        %v2149 = vsel %vm2146, %v2148, %v2144
        %v2150 = vmul.f32 1.0, %v2149
        %v2151 = vrcp.pop %v1685
        %v2152 = vmul.f32 %v1685, %v2151
        %v2153 = vsub.f32 1.0, %v2152
        %v2154 = vmul.f32 %v2151, %v2153
        %v2155 = vadd.f32 %v2151, %v2154
        %vm2156 = vweird.f32 %v1685
        %vm2157 = vweird.f32 %v2151
        %vm2158 = vmor %vm2156, %vm2157
        %v2159 = vsel %vm2158, %v2151, %v2155
        %v2160 = vand.u32 2147483647, %v1685
        %vm2161 = vcmp.eq.f32.partialorder %v2160, 8.507059e+37
        %v2162 = vand.u32 %v1685, 2147483648
        %v2163 = vor.u32 1.1754944e-38, %v2162
        %v2164 = vsel %vm2161, %v2163, %v2159
        %v2165 = vmul.f32 1.0, %v2164
        %v2166 = vxor.u32 %v1479, 2147483648
        %v2167 = vxor.u32 %v1481, 2147483648
        %v2168 = vxor.u32 %v1484, 2147483648
        %v2169 = vxor.u32 %v1486, 2147483648
        %v2170 = vxor.u32 %v1489, 2147483648
        %v2171 = vxor.u32 %v1491, 2147483648
        %v2172 = vxor.u32 %v1494, 2147483648
        %v2173 = vxor.u32 %v1496, 2147483648
        %v2174 = vxor.u32 %v1499, 2147483648
        %v2175 = vxor.u32 %v1501, 2147483648
        %v2176 = vxor.u32 %v1504, 2147483648
        %v2177 = vxor.u32 %v1506, 2147483648
        %v2178 = vxor.u32 %v1509, 2147483648
        %v2179 = vxor.u32 %v1511, 2147483648
        %v2180 = vxor.u32 %v1514, 2147483648
        %v2181 = vxor.u32 %v1516, 2147483648
        %v2182 = vxor.u32 %v1519, 2147483648
        %v2183 = vxor.u32 %v1521, 2147483648
        %v2184 = vxor.u32 %v1524, 2147483648
        %v2185 = vxor.u32 %v1526, 2147483648
        %v2186 = vxor.u32 %v1529, 2147483648
        %v2187 = vxor.u32 %v1531, 2147483648
        %v2188 = vxor.u32 %v1534, 2147483648
        %v2189 = vxor.u32 %v1536, 2147483648
        %v2190 = vxor.u32 %v1539, 2147483648
        %v2191 = vxor.u32 %v1541, 2147483648
        %v2192 = vxor.u32 %v1544, 2147483648
        %v2193 = vxor.u32 %v1546, 2147483648
        %v2194 = vxor.u32 %v1549, 2147483648
        %v2195 = vxor.u32 %v1551, 2147483648
        %v2196 = vxor.u32 %v1554, 2147483648
        %v2197 = vxor.u32 %v1556, 2147483648
        %v2198 = vmul.f32 %v2166, 1.442695
        %v2199 = vpow.pop %v2198
        %v2200 = vmul.f32 %v2167, 1.442695
        %v2201 = vpow.pop %v2200
        %v2202 = vmul.f32 %v2168, 1.442695
        %v2203 = vpow.pop %v2202
        %v2204 = vmul.f32 %v2169, 1.442695
        %v2205 = vpow.pop %v2204
        %v2206 = vmul.f32 %v2170, 1.442695
        %v2207 = vpow.pop %v2206
        %v2208 = vmul.f32 %v2171, 1.442695
        %v2209 = vpow.pop %v2208
        %v2210 = vmul.f32 %v2172, 1.442695
        %v2211 = vpow.pop %v2210
        %v2212 = vmul.f32 %v2173, 1.442695
        %v2213 = vpow.pop %v2212
        %v2214 = vmul.f32 %v2174, 1.442695
        %v2215 = vpow.pop %v2214
        %v2216 = vmul.f32 %v2175, 1.442695
        %v2217 = vpow.pop %v2216
        %v2218 = vmul.f32 %v2176, 1.442695
        %v2219 = vpow.pop %v2218
        %v2220 = vmul.f32 %v2177, 1.442695
        %v2221 = vpow.pop %v2220
        %v2222 = vmul.f32 %v2178, 1.442695
        %v2223 = vpow.pop %v2222
        %v2224 = vmul.f32 %v2179, 1.442695
        %v2225 = vpow.pop %v2224
        %v2226 = vmul.f32 %v2180, 1.442695
        %v2227 = vpow.pop %v2226
        %v2228 = vmul.f32 %v2181, 1.442695
        %v2229 = vpow.pop %v2228
        %v2230 = vmul.f32 %v2182, 1.442695
        %v2231 = vpow.pop %v2230
        %v2232 = vmul.f32 %v2183, 1.442695
        %v2233 = vpow.pop %v2232
        %v2234 = vmul.f32 %v2184, 1.442695
        %v2235 = vpow.pop %v2234
        %v2236 = vmul.f32 %v2185, 1.442695
        %v2237 = vpow.pop %v2236
        %v2238 = vmul.f32 %v2186, 1.442695
        %v2239 = vpow.pop %v2238
        %v2240 = vmul.f32 %v2187, 1.442695
        %v2241 = vpow.pop %v2240
        %v2242 = vmul.f32 %v2188, 1.442695
        %v2243 = vpow.pop %v2242
        %v2244 = vmul.f32 %v2189, 1.442695
        %v2245 = vpow.pop %v2244
        %v2246 = vmul.f32 %v2190, 1.442695
        %v2247 = vpow.pop %v2246
        %v2248 = vmul.f32 %v2191, 1.442695
        %v2249 = vpow.pop %v2248
        %v2250 = vmul.f32 %v2192, 1.442695
        %v2251 = vpow.pop %v2250
        %v2252 = vmul.f32 %v2193, 1.442695
        %v2253 = vpow.pop %v2252
        %v2254 = vmul.f32 %v2194, 1.442695
        %v2255 = vpow.pop %v2254
        %v2256 = vmul.f32 %v2195, 1.442695
        %v2257 = vpow.pop %v2256
        %v2258 = vmul.f32 %v2196, 1.442695
        %v2259 = vpow.pop %v2258
        %v2260 = vmul.f32 %v2197, 1.442695
        %v2261 = vpow.pop %v2260
        %v2262 = vadd.f32 %v2199, 1.0
        %v2263 = vadd.f32 %v2201, 1.0
        %v2264 = vadd.f32 %v2203, 1.0
        %v2265 = vadd.f32 %v2205, 1.0
        %v2266 = vadd.f32 %v2207, 1.0
        %v2267 = vadd.f32 %v2209, 1.0
        %v2268 = vadd.f32 %v2211, 1.0
        %v2269 = vadd.f32 %v2213, 1.0
        %v2270 = vadd.f32 %v2215, 1.0
        %v2271 = vadd.f32 %v2217, 1.0
        %v2272 = vadd.f32 %v2219, 1.0
        %v2273 = vadd.f32 %v2221, 1.0
        %v2274 = vadd.f32 %v2223, 1.0
        %v2275 = vadd.f32 %v2225, 1.0
        %v2276 = vadd.f32 %v2227, 1.0
        %v2277 = vadd.f32 %v2229, 1.0
        %v2278 = vadd.f32 %v2231, 1.0
        %v2279 = vadd.f32 %v2233, 1.0
        %v2280 = vadd.f32 %v2235, 1.0
        %v2281 = vadd.f32 %v2237, 1.0
        %v2282 = vadd.f32 %v2239, 1.0
        %v2283 = vadd.f32 %v2241, 1.0
        %v2284 = vadd.f32 %v2243, 1.0
        %v2285 = vadd.f32 %v2245, 1.0
        %v2286 = vadd.f32 %v2247, 1.0
        %v2287 = vadd.f32 %v2249, 1.0
        %v2288 = vadd.f32 %v2251, 1.0
        %v2289 = vadd.f32 %v2253, 1.0
        %v2290 = vadd.f32 %v2255, 1.0
        %v2291 = vadd.f32 %v2257, 1.0
        %v2292 = vadd.f32 %v2259, 1.0
        %v2293 = vadd.f32 %v2261, 1.0
        %v2294 = vrcp.pop %v2262
        %v2295 = vmul.f32 %v2262, %v2294
        %v2296 = vsub.f32 1.0, %v2295
        %v2297 = vmul.f32 %v2294, %v2296
        %v2298 = vadd.f32 %v2294, %v2297
        %vm2299 = vweird.f32 %v2262
        %vm2300 = vweird.f32 %v2294
        %vm2301 = vmor %vm2299, %vm2300
        %v2302 = vsel %vm2301, %v2294, %v2298
        %v2303 = vand.u32 2147483647, %v2262
        %vm2304 = vcmp.eq.f32.partialorder %v2303, 8.507059e+37
        %v2305 = vand.u32 %v2262, 2147483648
        %v2306 = vor.u32 1.1754944e-38, %v2305
        %v2307 = vsel %vm2304, %v2306, %v2302
        %v2308 = vmul.f32 1.0, %v2307
        %v2309 = vrcp.pop %v2263
        %v2310 = vmul.f32 %v2263, %v2309
        %v2311 = vsub.f32 1.0, %v2310
        %v2312 = vmul.f32 %v2309, %v2311
        %v2313 = vadd.f32 %v2309, %v2312
        %vm2314 = vweird.f32 %v2263
        %vm2315 = vweird.f32 %v2309
        %vm2316 = vmor %vm2314, %vm2315
        %v2317 = vsel %vm2316, %v2309, %v2313
        %v2318 = vand.u32 2147483647, %v2263
        %vm2319 = vcmp.eq.f32.partialorder %v2318, 8.507059e+37
        %v2320 = vand.u32 %v2263, 2147483648
        %v2321 = vor.u32 1.1754944e-38, %v2320
        %v2322 = vsel %vm2319, %v2321, %v2317
        %v2323 = vmul.f32 1.0, %v2322
        %v2324 = vrcp.pop %v2264
        %v2325 = vmul.f32 %v2264, %v2324
        %v2326 = vsub.f32 1.0, %v2325
        %v2327 = vmul.f32 %v2324, %v2326
        %v2328 = vadd.f32 %v2324, %v2327
        %vm2329 = vweird.f32 %v2264
        %vm2330 = vweird.f32 %v2324
        %vm2331 = vmor %vm2329, %vm2330
        %v2332 = vsel %vm2331, %v2324, %v2328
        %v2333 = vand.u32 2147483647, %v2264
        %vm2334 = vcmp.eq.f32.partialorder %v2333, 8.507059e+37
        %v2335 = vand.u32 %v2264, 2147483648
        %v2336 = vor.u32 1.1754944e-38, %v2335
        %v2337 = vsel %vm2334, %v2336, %v2332
        %v2338 = vmul.f32 1.0, %v2337
        %v2339 = vrcp.pop %v2265
        %v2340 = vmul.f32 %v2265, %v2339
        %v2341 = vsub.f32 1.0, %v2340
        %v2342 = vmul.f32 %v2339, %v2341
        %v2343 = vadd.f32 %v2339, %v2342
        %vm2344 = vweird.f32 %v2265
        %vm2345 = vweird.f32 %v2339
        %vm2346 = vmor %vm2344, %vm2345
        %v2347 = vsel %vm2346, %v2339, %v2343
        %v2348 = vand.u32 2147483647, %v2265
        %vm2349 = vcmp.eq.f32.partialorder %v2348, 8.507059e+37
        %v2350 = vand.u32 %v2265, 2147483648
        %v2351 = vor.u32 1.1754944e-38, %v2350
        %v2352 = vsel %vm2349, %v2351, %v2347
        %v2353 = vmul.f32 1.0, %v2352
        %v2354 = vrcp.pop %v2266
        %v2355 = vmul.f32 %v2266, %v2354
        %v2356 = vsub.f32 1.0, %v2355
        %v2357 = vmul.f32 %v2354, %v2356
        %v2358 = vadd.f32 %v2354, %v2357
        %vm2359 = vweird.f32 %v2266
        %vm2360 = vweird.f32 %v2354
        %vm2361 = vmor %vm2359, %vm2360
        %v2362 = vsel %vm2361, %v2354, %v2358
        %v2363 = vand.u32 2147483647, %v2266
        %vm2364 = vcmp.eq.f32.partialorder %v2363, 8.507059e+37
        %v2365 = vand.u32 %v2266, 2147483648
        %v2366 = vor.u32 1.1754944e-38, %v2365
        %v2367 = vsel %vm2364, %v2366, %v2362
        %v2368 = vmul.f32 1.0, %v2367
        %v2369 = vrcp.pop %v2267
        %v2370 = vmul.f32 %v2267, %v2369
        %v2371 = vsub.f32 1.0, %v2370
        %v2372 = vmul.f32 %v2369, %v2371
        %v2373 = vadd.f32 %v2369, %v2372
        %vm2374 = vweird.f32 %v2267
        %vm2375 = vweird.f32 %v2369
        %vm2376 = vmor %vm2374, %vm2375
        %v2377 = vsel %vm2376, %v2369, %v2373
        %v2378 = vand.u32 2147483647, %v2267
        %vm2379 = vcmp.eq.f32.partialorder %v2378, 8.507059e+37
        %v2380 = vand.u32 %v2267, 2147483648
        %v2381 = vor.u32 1.1754944e-38, %v2380
        %v2382 = vsel %vm2379, %v2381, %v2377
        %v2383 = vmul.f32 1.0, %v2382
        %v2384 = vrcp.pop %v2268
        %v2385 = vmul.f32 %v2268, %v2384
        %v2386 = vsub.f32 1.0, %v2385
        %v2387 = vmul.f32 %v2384, %v2386
        %v2388 = vadd.f32 %v2384, %v2387
        %vm2389 = vweird.f32 %v2268
        %vm2390 = vweird.f32 %v2384
        %vm2391 = vmor %vm2389, %vm2390
        %v2392 = vsel %vm2391, %v2384, %v2388
        %v2393 = vand.u32 2147483647, %v2268
        %vm2394 = vcmp.eq.f32.partialorder %v2393, 8.507059e+37
        %v2395 = vand.u32 %v2268, 2147483648
        %v2396 = vor.u32 1.1754944e-38, %v2395
        %v2397 = vsel %vm2394, %v2396, %v2392
        %v2398 = vmul.f32 1.0, %v2397
        %v2399 = vrcp.pop %v2269
        %v2400 = vmul.f32 %v2269, %v2399
        %v2401 = vsub.f32 1.0, %v2400
        %v2402 = vmul.f32 %v2399, %v2401
        %v2403 = vadd.f32 %v2399, %v2402
        %vm2404 = vweird.f32 %v2269
        %vm2405 = vweird.f32 %v2399
        %vm2406 = vmor %vm2404, %vm2405
        %v2407 = vsel %vm2406, %v2399, %v2403
        %v2408 = vand.u32 2147483647, %v2269
        %vm2409 = vcmp.eq.f32.partialorder %v2408, 8.507059e+37
        %v2410 = vand.u32 %v2269, 2147483648
        %v2411 = vor.u32 1.1754944e-38, %v2410
        %v2412 = vsel %vm2409, %v2411, %v2407
        %v2413 = vmul.f32 1.0, %v2412
        %v2414 = vrcp.pop %v2270
        %v2415 = vmul.f32 %v2270, %v2414
        %v2416 = vsub.f32 1.0, %v2415
        %v2417 = vmul.f32 %v2414, %v2416
        %v2418 = vadd.f32 %v2414, %v2417
        %vm2419 = vweird.f32 %v2270
        %vm2420 = vweird.f32 %v2414
        %vm2421 = vmor %vm2419, %vm2420
        %v2422 = vsel %vm2421, %v2414, %v2418
        %v2423 = vand.u32 2147483647, %v2270
        %vm2424 = vcmp.eq.f32.partialorder %v2423, 8.507059e+37
        %v2425 = vand.u32 %v2270, 2147483648
        %v2426 = vor.u32 1.1754944e-38, %v2425
        %v2427 = vsel %vm2424, %v2426, %v2422
        %v2428 = vmul.f32 1.0, %v2427
        %v2429 = vrcp.pop %v2271
        %v2430 = vmul.f32 %v2271, %v2429
        %v2431 = vsub.f32 1.0, %v2430
        %v2432 = vmul.f32 %v2429, %v2431
        %v2433 = vadd.f32 %v2429, %v2432
        %vm2434 = vweird.f32 %v2271
        %vm2435 = vweird.f32 %v2429
        %vm2436 = vmor %vm2434, %vm2435
        %v2437 = vsel %vm2436, %v2429, %v2433
        %v2438 = vand.u32 2147483647, %v2271
        %vm2439 = vcmp.eq.f32.partialorder %v2438, 8.507059e+37
        %v2440 = vand.u32 %v2271, 2147483648
        %v2441 = vor.u32 1.1754944e-38, %v2440
        %v2442 = vsel %vm2439, %v2441, %v2437
        %v2443 = vmul.f32 1.0, %v2442
        %v2444 = vrcp.pop %v2272
        %v2445 = vmul.f32 %v2272, %v2444
        %v2446 = vsub.f32 1.0, %v2445
        %v2447 = vmul.f32 %v2444, %v2446
        %v2448 = vadd.f32 %v2444, %v2447
        %vm2449 = vweird.f32 %v2272
        %vm2450 = vweird.f32 %v2444
        %vm2451 = vmor %vm2449, %vm2450
        %v2452 = vsel %vm2451, %v2444, %v2448
        %v2453 = vand.u32 2147483647, %v2272
        %vm2454 = vcmp.eq.f32.partialorder %v2453, 8.507059e+37
        %v2455 = vand.u32 %v2272, 2147483648
        %v2456 = vor.u32 1.1754944e-38, %v2455
        %v2457 = vsel %vm2454, %v2456, %v2452
        %v2458 = vmul.f32 1.0, %v2457
        %v2459 = vrcp.pop %v2273
        %v2460 = vmul.f32 %v2273, %v2459
        %v2461 = vsub.f32 1.0, %v2460
        %v2462 = vmul.f32 %v2459, %v2461
        %v2463 = vadd.f32 %v2459, %v2462
        %vm2464 = vweird.f32 %v2273
        %vm2465 = vweird.f32 %v2459
        %vm2466 = vmor %vm2464, %vm2465
        %v2467 = vsel %vm2466, %v2459, %v2463
        %v2468 = vand.u32 2147483647, %v2273
        %vm2469 = vcmp.eq.f32.partialorder %v2468, 8.507059e+37
        %v2470 = vand.u32 %v2273, 2147483648
        %v2471 = vor.u32 1.1754944e-38, %v2470
        %v2472 = vsel %vm2469, %v2471, %v2467
        %v2473 = vmul.f32 1.0, %v2472
        %v2474 = vrcp.pop %v2274
        %v2475 = vmul.f32 %v2274, %v2474
        %v2476 = vsub.f32 1.0, %v2475
        %v2477 = vmul.f32 %v2474, %v2476
        %v2478 = vadd.f32 %v2474, %v2477
        %vm2479 = vweird.f32 %v2274
        %vm2480 = vweird.f32 %v2474
        %vm2481 = vmor %vm2479, %vm2480
        %v2482 = vsel %vm2481, %v2474, %v2478
        %v2483 = vand.u32 2147483647, %v2274
        %vm2484 = vcmp.eq.f32.partialorder %v2483, 8.507059e+37
        %v2485 = vand.u32 %v2274, 2147483648
        %v2486 = vor.u32 1.1754944e-38, %v2485
        %v2487 = vsel %vm2484, %v2486, %v2482
        %v2488 = vmul.f32 1.0, %v2487
        %v2489 = vrcp.pop %v2275
        %v2490 = vmul.f32 %v2275, %v2489
        %v2491 = vsub.f32 1.0, %v2490
        %v2492 = vmul.f32 %v2489, %v2491
        %v2493 = vadd.f32 %v2489, %v2492
        %vm2494 = vweird.f32 %v2275
        %vm2495 = vweird.f32 %v2489
        %vm2496 = vmor %vm2494, %vm2495
        %v2497 = vsel %vm2496, %v2489, %v2493
        %v2498 = vand.u32 2147483647, %v2275
        %vm2499 = vcmp.eq.f32.partialorder %v2498, 8.507059e+37
        %v2500 = vand.u32 %v2275, 2147483648
        %v2501 = vor.u32 1.1754944e-38, %v2500
        %v2502 = vsel %vm2499, %v2501, %v2497
        %v2503 = vmul.f32 1.0, %v2502
        %v2504 = vrcp.pop %v2276
        %v2505 = vmul.f32 %v2276, %v2504
        %v2506 = vsub.f32 1.0, %v2505
        %v2507 = vmul.f32 %v2504, %v2506
        %v2508 = vadd.f32 %v2504, %v2507
        %vm2509 = vweird.f32 %v2276
        %vm2510 = vweird.f32 %v2504
        %vm2511 = vmor %vm2509, %vm2510
        %v2512 = vsel %vm2511, %v2504, %v2508
        %v2513 = vand.u32 2147483647, %v2276
        %vm2514 = vcmp.eq.f32.partialorder %v2513, 8.507059e+37
        %v2515 = vand.u32 %v2276, 2147483648
        %v2516 = vor.u32 1.1754944e-38, %v2515
        %v2517 = vsel %vm2514, %v2516, %v2512
        %v2518 = vmul.f32 1.0, %v2517
        %v2519 = vrcp.pop %v2277
        %v2520 = vmul.f32 %v2277, %v2519
        %v2521 = vsub.f32 1.0, %v2520
        %v2522 = vmul.f32 %v2519, %v2521
        %v2523 = vadd.f32 %v2519, %v2522
        %vm2524 = vweird.f32 %v2277
        %vm2525 = vweird.f32 %v2519
        %vm2526 = vmor %vm2524, %vm2525
        %v2527 = vsel %vm2526, %v2519, %v2523
        %v2528 = vand.u32 2147483647, %v2277
        %vm2529 = vcmp.eq.f32.partialorder %v2528, 8.507059e+37
        %v2530 = vand.u32 %v2277, 2147483648
        %v2531 = vor.u32 1.1754944e-38, %v2530
        %v2532 = vsel %vm2529, %v2531, %v2527
        %v2533 = vmul.f32 1.0, %v2532
        %v2534 = vrcp.pop %v2278
        %v2535 = vmul.f32 %v2278, %v2534
        %v2536 = vsub.f32 1.0, %v2535
        %v2537 = vmul.f32 %v2534, %v2536
        %v2538 = vadd.f32 %v2534, %v2537
        %vm2539 = vweird.f32 %v2278
        %vm2540 = vweird.f32 %v2534
        %vm2541 = vmor %vm2539, %vm2540
        %v2542 = vsel %vm2541, %v2534, %v2538
        %v2543 = vand.u32 2147483647, %v2278
        %vm2544 = vcmp.eq.f32.partialorder %v2543, 8.507059e+37
        %v2545 = vand.u32 %v2278, 2147483648
        %v2546 = vor.u32 1.1754944e-38, %v2545
        %v2547 = vsel %vm2544, %v2546, %v2542
        %v2548 = vmul.f32 1.0, %v2547
        %v2549 = vrcp.pop %v2279
        %v2550 = vmul.f32 %v2279, %v2549
        %v2551 = vsub.f32 1.0, %v2550
        %v2552 = vmul.f32 %v2549, %v2551
        %v2553 = vadd.f32 %v2549, %v2552
        %vm2554 = vweird.f32 %v2279
        %vm2555 = vweird.f32 %v2549
        %vm2556 = vmor %vm2554, %vm2555
        %v2557 = vsel %vm2556, %v2549, %v2553
        %v2558 = vand.u32 2147483647, %v2279
        %vm2559 = vcmp.eq.f32.partialorder %v2558, 8.507059e+37
        %v2560 = vand.u32 %v2279, 2147483648
        %v2561 = vor.u32 1.1754944e-38, %v2560
        %v2562 = vsel %vm2559, %v2561, %v2557
        %v2563 = vmul.f32 1.0, %v2562
        %v2564 = vrcp.pop %v2280
        %v2565 = vmul.f32 %v2280, %v2564
        %v2566 = vsub.f32 1.0, %v2565
        %v2567 = vmul.f32 %v2564, %v2566
        %v2568 = vadd.f32 %v2564, %v2567
        %vm2569 = vweird.f32 %v2280
        %vm2570 = vweird.f32 %v2564
        %vm2571 = vmor %vm2569, %vm2570
        %v2572 = vsel %vm2571, %v2564, %v2568
        %v2573 = vand.u32 2147483647, %v2280
        %vm2574 = vcmp.eq.f32.partialorder %v2573, 8.507059e+37
        %v2575 = vand.u32 %v2280, 2147483648
        %v2576 = vor.u32 1.1754944e-38, %v2575
        %v2577 = vsel %vm2574, %v2576, %v2572
        %v2578 = vmul.f32 1.0, %v2577
        %v2579 = vrcp.pop %v2281
        %v2580 = vmul.f32 %v2281, %v2579
        %v2581 = vsub.f32 1.0, %v2580
        %v2582 = vmul.f32 %v2579, %v2581
        %v2583 = vadd.f32 %v2579, %v2582
        %vm2584 = vweird.f32 %v2281
        %vm2585 = vweird.f32 %v2579
        %vm2586 = vmor %vm2584, %vm2585
        %v2587 = vsel %vm2586, %v2579, %v2583
        %v2588 = vand.u32 2147483647, %v2281
        %vm2589 = vcmp.eq.f32.partialorder %v2588, 8.507059e+37
        %v2590 = vand.u32 %v2281, 2147483648
        %v2591 = vor.u32 1.1754944e-38, %v2590
        %v2592 = vsel %vm2589, %v2591, %v2587
        %v2593 = vmul.f32 1.0, %v2592
        %v2594 = vrcp.pop %v2282
        %v2595 = vmul.f32 %v2282, %v2594
        %v2596 = vsub.f32 1.0, %v2595
        %v2597 = vmul.f32 %v2594, %v2596
        %v2598 = vadd.f32 %v2594, %v2597
        %vm2599 = vweird.f32 %v2282
        %vm2600 = vweird.f32 %v2594
        %vm2601 = vmor %vm2599, %vm2600
        %v2602 = vsel %vm2601, %v2594, %v2598
        %v2603 = vand.u32 2147483647, %v2282
        %vm2604 = vcmp.eq.f32.partialorder %v2603, 8.507059e+37
        %v2605 = vand.u32 %v2282, 2147483648
        %v2606 = vor.u32 1.1754944e-38, %v2605
        %v2607 = vsel %vm2604, %v2606, %v2602
        %v2608 = vmul.f32 1.0, %v2607
        %v2609 = vrcp.pop %v2283
        %v2610 = vmul.f32 %v2283, %v2609
        %v2611 = vsub.f32 1.0, %v2610
        %v2612 = vmul.f32 %v2609, %v2611
        %v2613 = vadd.f32 %v2609, %v2612
        %vm2614 = vweird.f32 %v2283
        %vm2615 = vweird.f32 %v2609
        %vm2616 = vmor %vm2614, %vm2615
        %v2617 = vsel %vm2616, %v2609, %v2613
        %v2618 = vand.u32 2147483647, %v2283
        %vm2619 = vcmp.eq.f32.partialorder %v2618, 8.507059e+37
        %v2620 = vand.u32 %v2283, 2147483648
        %v2621 = vor.u32 1.1754944e-38, %v2620
        %v2622 = vsel %vm2619, %v2621, %v2617
        %v2623 = vmul.f32 1.0, %v2622
        %v2624 = vrcp.pop %v2284
        %v2625 = vmul.f32 %v2284, %v2624
        %v2626 = vsub.f32 1.0, %v2625
        %v2627 = vmul.f32 %v2624, %v2626
        %v2628 = vadd.f32 %v2624, %v2627
        %vm2629 = vweird.f32 %v2284
        %vm2630 = vweird.f32 %v2624
        %vm2631 = vmor %vm2629, %vm2630
        %v2632 = vsel %vm2631, %v2624, %v2628
        %v2633 = vand.u32 2147483647, %v2284
        %vm2634 = vcmp.eq.f32.partialorder %v2633, 8.507059e+37
        %v2635 = vand.u32 %v2284, 2147483648
        %v2636 = vor.u32 1.1754944e-38, %v2635
        %v2637 = vsel %vm2634, %v2636, %v2632
        %v2638 = vmul.f32 1.0, %v2637
        %v2639 = vrcp.pop %v2285
        %v2640 = vmul.f32 %v2285, %v2639
        %v2641 = vsub.f32 1.0, %v2640
        %v2642 = vmul.f32 %v2639, %v2641
        %v2643 = vadd.f32 %v2639, %v2642
        %vm2644 = vweird.f32 %v2285
        %vm2645 = vweird.f32 %v2639
        %vm2646 = vmor %vm2644, %vm2645
        %v2647 = vsel %vm2646, %v2639, %v2643
        %v2648 = vand.u32 2147483647, %v2285
        %vm2649 = vcmp.eq.f32.partialorder %v2648, 8.507059e+37
        %v2650 = vand.u32 %v2285, 2147483648
        %v2651 = vor.u32 1.1754944e-38, %v2650
        %v2652 = vsel %vm2649, %v2651, %v2647
        %v2653 = vmul.f32 1.0, %v2652
        %v2654 = vrcp.pop %v2286
        %v2655 = vmul.f32 %v2286, %v2654
        %v2656 = vsub.f32 1.0, %v2655
        %v2657 = vmul.f32 %v2654, %v2656
        %v2658 = vadd.f32 %v2654, %v2657
        %vm2659 = vweird.f32 %v2286
        %vm2660 = vweird.f32 %v2654
        %vm2661 = vmor %vm2659, %vm2660
        %v2662 = vsel %vm2661, %v2654, %v2658
        %v2663 = vand.u32 2147483647, %v2286
        %vm2664 = vcmp.eq.f32.partialorder %v2663, 8.507059e+37
        %v2665 = vand.u32 %v2286, 2147483648
        %v2666 = vor.u32 1.1754944e-38, %v2665
        %v2667 = vsel %vm2664, %v2666, %v2662
        %v2668 = vmul.f32 1.0, %v2667
        %v2669 = vrcp.pop %v2287
        %v2670 = vmul.f32 %v2287, %v2669
        %v2671 = vsub.f32 1.0, %v2670
        %v2672 = vmul.f32 %v2669, %v2671
        %v2673 = vadd.f32 %v2669, %v2672
        %vm2674 = vweird.f32 %v2287
        %vm2675 = vweird.f32 %v2669
        %vm2676 = vmor %vm2674, %vm2675
        %v2677 = vsel %vm2676, %v2669, %v2673
        %v2678 = vand.u32 2147483647, %v2287
        %vm2679 = vcmp.eq.f32.partialorder %v2678, 8.507059e+37
        %v2680 = vand.u32 %v2287, 2147483648
        %v2681 = vor.u32 1.1754944e-38, %v2680
        %v2682 = vsel %vm2679, %v2681, %v2677
        %v2683 = vmul.f32 1.0, %v2682
        %v2684 = vrcp.pop %v2288
        %v2685 = vmul.f32 %v2288, %v2684
        %v2686 = vsub.f32 1.0, %v2685
        %v2687 = vmul.f32 %v2684, %v2686
        %v2688 = vadd.f32 %v2684, %v2687
        %vm2689 = vweird.f32 %v2288
        %vm2690 = vweird.f32 %v2684
        %vm2691 = vmor %vm2689, %vm2690
        %v2692 = vsel %vm2691, %v2684, %v2688
        %v2693 = vand.u32 2147483647, %v2288
        %vm2694 = vcmp.eq.f32.partialorder %v2693, 8.507059e+37
        %v2695 = vand.u32 %v2288, 2147483648
        %v2696 = vor.u32 1.1754944e-38, %v2695
        %v2697 = vsel %vm2694, %v2696, %v2692
        %v2698 = vmul.f32 1.0, %v2697
        %v2699 = vrcp.pop %v2289
        %v2700 = vmul.f32 %v2289, %v2699
        %v2701 = vsub.f32 1.0, %v2700
        %v2702 = vmul.f32 %v2699, %v2701
        %v2703 = vadd.f32 %v2699, %v2702
        %vm2704 = vweird.f32 %v2289
        %vm2705 = vweird.f32 %v2699
        %vm2706 = vmor %vm2704, %vm2705
        %v2707 = vsel %vm2706, %v2699, %v2703
        %v2708 = vand.u32 2147483647, %v2289
        %vm2709 = vcmp.eq.f32.partialorder %v2708, 8.507059e+37
        %v2710 = vand.u32 %v2289, 2147483648
        %v2711 = vor.u32 1.1754944e-38, %v2710
        %v2712 = vsel %vm2709, %v2711, %v2707
        %v2713 = vmul.f32 1.0, %v2712
        %v2714 = vrcp.pop %v2290
        %v2715 = vmul.f32 %v2290, %v2714
        %v2716 = vsub.f32 1.0, %v2715
        %v2717 = vmul.f32 %v2714, %v2716
        %v2718 = vadd.f32 %v2714, %v2717
        %vm2719 = vweird.f32 %v2290
        %vm2720 = vweird.f32 %v2714
        %vm2721 = vmor %vm2719, %vm2720
        %v2722 = vsel %vm2721, %v2714, %v2718
        %v2723 = vand.u32 2147483647, %v2290
        %vm2724 = vcmp.eq.f32.partialorder %v2723, 8.507059e+37
        %v2725 = vand.u32 %v2290, 2147483648
        %v2726 = vor.u32 1.1754944e-38, %v2725
        %v2727 = vsel %vm2724, %v2726, %v2722
        %v2728 = vmul.f32 1.0, %v2727
        %v2729 = vrcp.pop %v2291
        %v2730 = vmul.f32 %v2291, %v2729
        %v2731 = vsub.f32 1.0, %v2730
        %v2732 = vmul.f32 %v2729, %v2731
        %v2733 = vadd.f32 %v2729, %v2732
        %vm2734 = vweird.f32 %v2291
        %vm2735 = vweird.f32 %v2729
        %vm2736 = vmor %vm2734, %vm2735
        %v2737 = vsel %vm2736, %v2729, %v2733
        %v2738 = vand.u32 2147483647, %v2291
        %vm2739 = vcmp.eq.f32.partialorder %v2738, 8.507059e+37
        %v2740 = vand.u32 %v2291, 2147483648
        %v2741 = vor.u32 1.1754944e-38, %v2740
        %v2742 = vsel %vm2739, %v2741, %v2737
        %v2743 = vmul.f32 1.0, %v2742
        %v2744 = vrcp.pop %v2292
        %v2745 = vmul.f32 %v2292, %v2744
        %v2746 = vsub.f32 1.0, %v2745
        %v2747 = vmul.f32 %v2744, %v2746
        %v2748 = vadd.f32 %v2744, %v2747
        %vm2749 = vweird.f32 %v2292
        %vm2750 = vweird.f32 %v2744
        %vm2751 = vmor %vm2749, %vm2750
        %v2752 = vsel %vm2751, %v2744, %v2748
        %v2753 = vand.u32 2147483647, %v2292
        %vm2754 = vcmp.eq.f32.partialorder %v2753, 8.507059e+37
        %v2755 = vand.u32 %v2292, 2147483648
        %v2756 = vor.u32 1.1754944e-38, %v2755
        %v2757 = vsel %vm2754, %v2756, %v2752
        %v2758 = vmul.f32 1.0, %v2757
        %v2759 = vrcp.pop %v2293
        %v2760 = vmul.f32 %v2293, %v2759
        %v2761 = vsub.f32 1.0, %v2760
        %v2762 = vmul.f32 %v2759, %v2761
        %v2763 = vadd.f32 %v2759, %v2762
        %vm2764 = vweird.f32 %v2293
        %vm2765 = vweird.f32 %v2759
        %vm2766 = vmor %vm2764, %vm2765
        %v2767 = vsel %vm2766, %v2759, %v2763
        %v2768 = vand.u32 2147483647, %v2293
        %vm2769 = vcmp.eq.f32.partialorder %v2768, 8.507059e+37
        %v2770 = vand.u32 %v2293, 2147483648
        %v2771 = vor.u32 1.1754944e-38, %v2770
        %v2772 = vsel %vm2769, %v2771, %v2767
        %v2773 = vmul.f32 1.0, %v2772
        %2774 = vst.msk [vmem:[#allocation4] sm:$0xff] %vm504, %v2308
        %2775 = vst.msk [vmem:[#allocation4 + $0x8] sm:$0xff] %vm504, %v2323
        %2776 = vst.msk [vmem:[#allocation4 + $0x10] sm:$0xff] %vm504, %v2338
        %2777 = vst.msk [vmem:[#allocation4 + $0x18] sm:$0xff] %vm504, %v2353
        %2778 = vst.msk [vmem:[#allocation4 + $0x20] sm:$0xff] %vm504, %v2368
        %2779 = vst.msk [vmem:[#allocation4 + $0x28] sm:$0xff] %vm504, %v2383
        %2780 = vst.msk [vmem:[#allocation4 + $0x30] sm:$0xff] %vm504, %v2398
        %2781 = vst.msk [vmem:[#allocation4 + $0x38] sm:$0xff] %vm504, %v2413
        %2782 = vst.msk [vmem:[#allocation4 + $0x40] sm:$0xff] %vm504, %v2428
        %2783 = vst.msk [vmem:[#allocation4 + $0x48] sm:$0xff] %vm504, %v2443
        %2784 = vst.msk [vmem:[#allocation4 + $0x50] sm:$0xff] %vm504, %v2458
        %2785 = vst.msk [vmem:[#allocation4 + $0x58] sm:$0xff] %vm504, %v2473
        %2786 = vst.msk [vmem:[#allocation4 + $0x60] sm:$0xff] %vm504, %v2488
        %2787 = vst.msk [vmem:[#allocation4 + $0x68] sm:$0xff] %vm504, %v2503
        %2788 = vst.msk [vmem:[#allocation4 + $0x70] sm:$0xff] %vm504, %v2518
        %2789 = vst.msk [vmem:[#allocation4 + $0x78] sm:$0xff] %vm504, %v2533
        %2790 = vst.msk [vmem:[#allocation4 + $0x80] sm:$0xff] %vm504, %v2548
        %2791 = vst.msk [vmem:[#allocation4 + $0x88] sm:$0xff] %vm504, %v2563
        %2792 = vst.msk [vmem:[#allocation4 + $0x90] sm:$0xff] %vm504, %v2578
        %2793 = vst.msk [vmem:[#allocation4 + $0x98] sm:$0xff] %vm504, %v2593
        %2794 = vst.msk [vmem:[#allocation4 + $0xa0] sm:$0xff] %vm504, %v2608
        %2795 = vst.msk [vmem:[#allocation4 + $0xa8] sm:$0xff] %vm504, %v2623
        %2796 = vst.msk [vmem:[#allocation4 + $0xb0] sm:$0xff] %vm504, %v2638
        %2797 = vst.msk [vmem:[#allocation4 + $0xb8] sm:$0xff] %vm504, %v2653
        %2798 = vst.msk [vmem:[#allocation4 + $0xc0] sm:$0xff] %vm504, %v2668
        %2799 = vst.msk [vmem:[#allocation4 + $0xc8] sm:$0xff] %vm504, %v2683
        %2800 = vst.msk [vmem:[#allocation4 + $0xd0] sm:$0xff] %vm504, %v2698
        %2801 = vst.msk [vmem:[#allocation4 + $0xd8] sm:$0xff] %vm504, %v2713
        %2802 = vst.msk [vmem:[#allocation4 + $0xe0] sm:$0xff] %vm504, %v2728
        %2803 = vst.msk [vmem:[#allocation4 + $0xe8] sm:$0xff] %vm504, %v2743
        %2804 = vst.msk [vmem:[#allocation4 + $0xf0] sm:$0xff] %vm504, %v2758
        %2805 = vst.msk [vmem:[#allocation4 + $0xf8] sm:$0xff] %vm504, %v2773
        %2838 = vrot.lane.b32.xlu0 %v1700, 64
        %v2839 = vpop.permute.xlu0 %2838
        %2840 = vrot.lane.b32.xlu0 %v1715, 64
        %v2841 = vpop.permute.xlu0 %2840
        %2842 = vrot.lane.b32.xlu0 %v1730, 64
        %v2843 = vpop.permute.xlu0 %2842
        %2844 = vrot.lane.b32.xlu0 %v1745, 64
        %v2845 = vpop.permute.xlu0 %2844
        %2846 = vrot.lane.b32.xlu0 %v1760, 64
        %v2847 = vpop.permute.xlu0 %2846
        %2848 = vrot.lane.b32.xlu0 %v1775, 64
        %v2849 = vpop.permute.xlu0 %2848
        %2850 = vrot.lane.b32.xlu0 %v1790, 64
        %v2851 = vpop.permute.xlu0 %2850
        %2852 = vrot.lane.b32.xlu0 %v1805, 64
        %v2853 = vpop.permute.xlu0 %2852
        %2854 = vrot.lane.b32.xlu0 %v1820, 64
        %v2855 = vpop.permute.xlu0 %2854
        %2856 = vrot.lane.b32.xlu0 %v1835, 64
        %v2857 = vpop.permute.xlu0 %2856
        %2858 = vrot.lane.b32.xlu0 %v1850, 64
        %v2859 = vpop.permute.xlu0 %2858
        %2860 = vrot.lane.b32.xlu0 %v1865, 64
        %v2861 = vpop.permute.xlu0 %2860
        %2862 = vrot.lane.b32.xlu0 %v1880, 64
        %v2863 = vpop.permute.xlu0 %2862
        %2864 = vrot.lane.b32.xlu0 %v1895, 64
        %v2865 = vpop.permute.xlu0 %2864
        %2866 = vrot.lane.b32.xlu0 %v1910, 64
        %v2867 = vpop.permute.xlu0 %2866
        %2868 = vrot.lane.b32.xlu0 %v1925, 64
        %v2869 = vpop.permute.xlu0 %2868
        %2870 = vrot.lane.b32.xlu0 %v1940, 64
        %v2871 = vpop.permute.xlu0 %2870
        %2872 = vrot.lane.b32.xlu0 %v1955, 64
        %v2873 = vpop.permute.xlu0 %2872
        %2874 = vrot.lane.b32.xlu0 %v1970, 64
        %v2875 = vpop.permute.xlu0 %2874
        %2876 = vrot.lane.b32.xlu0 %v1985, 64
        %v2877 = vpop.permute.xlu0 %2876
        %2878 = vrot.lane.b32.xlu0 %v2000, 64
        %v2879 = vpop.permute.xlu0 %2878
        %2880 = vrot.lane.b32.xlu0 %v2015, 64
        %v2881 = vpop.permute.xlu0 %2880
        %2882 = vrot.lane.b32.xlu0 %v2030, 64
        %v2883 = vpop.permute.xlu0 %2882
        %2884 = vrot.lane.b32.xlu0 %v2045, 64
        %v2885 = vpop.permute.xlu0 %2884
        %2886 = vrot.lane.b32.xlu0 %v2060, 64
        %v2887 = vpop.permute.xlu0 %2886
        %2888 = vrot.lane.b32.xlu0 %v2075, 64
        %v2889 = vpop.permute.xlu0 %2888
        %2890 = vrot.lane.b32.xlu0 %v2090, 64
        %v2891 = vpop.permute.xlu0 %2890
        %2892 = vrot.lane.b32.xlu0 %v2105, 64
        %v2893 = vpop.permute.xlu0 %2892
        %2894 = vrot.lane.b32.xlu0 %v2120, 64
        %v2895 = vpop.permute.xlu0 %2894
        %2896 = vrot.lane.b32.xlu0 %v2135, 64
        %v2897 = vpop.permute.xlu0 %2896
        %2898 = vrot.lane.b32.xlu0 %v2150, 64
        %v2899 = vpop.permute.xlu0 %2898
        %2900 = vrot.lane.b32.xlu0 %v2165, 64
        %v2901 = vpop.permute.xlu0 %2900
        %v2934 = vmul.f32 %v1390, %v2839
        %v2935 = vmul.f32 %v1392, %v2841
        %v2936 = vmul.f32 %v1395, %v2843
        %v2937 = vmul.f32 %v1397, %v2845
        %v2938 = vmul.f32 %v1400, %v2847
        %v2939 = vmul.f32 %v1402, %v2849
        %v2940 = vmul.f32 %v1405, %v2851
        %v2941 = vmul.f32 %v1407, %v2853
        %v2942 = vmul.f32 %v1410, %v2855
        %v2943 = vmul.f32 %v1412, %v2857
        %v2944 = vmul.f32 %v1415, %v2859
        %v2945 = vmul.f32 %v1417, %v2861
        %v2946 = vmul.f32 %v1420, %v2863
        %v2947 = vmul.f32 %v1422, %v2865
        %v2948 = vmul.f32 %v1425, %v2867
        %v2949 = vmul.f32 %v1427, %v2869
        %v2950 = vmul.f32 %v1430, %v2871
        %v2951 = vmul.f32 %v1432, %v2873
        %v2952 = vmul.f32 %v1435, %v2875
        %v2953 = vmul.f32 %v1437, %v2877
        %v2954 = vmul.f32 %v1440, %v2879
        %v2955 = vmul.f32 %v1442, %v2881
        %v2956 = vmul.f32 %v1445, %v2883
        %v2957 = vmul.f32 %v1447, %v2885
        %v2958 = vmul.f32 %v1450, %v2887
        %v2959 = vmul.f32 %v1452, %v2889
        %v2960 = vmul.f32 %v1455, %v2891
        %v2961 = vmul.f32 %v1457, %v2893
        %v2962 = vmul.f32 %v1460, %v2895
        %v2963 = vmul.f32 %v1462, %v2897
        %v2964 = vmul.f32 %v1465, %v2899
        %v2965 = vmul.f32 %v1467, %v2901
        %v2982 = vperm.slane %v484, 0
        %v2983 = vperm.slane %v485, 0
        %v2984 = vperm.slane %v486, 0
        %v2985 = vperm.slane %v487, 0
        %v2986 = vperm.slane %v488, 0
        %v2987 = vperm.slane %v489, 0
        %v2988 = vperm.slane %v490, 0
        %v2989 = vperm.slane %v491, 0
        %v2990 = vperm.slane %v492, 0
        %v2991 = vperm.slane %v493, 0
        %v2992 = vperm.slane %v494, 0
        %v2993 = vperm.slane %v495, 0
        %v2994 = vperm.slane %v496, 0
        %v2995 = vperm.slane %v497, 0
        %v2996 = vperm.slane %v498, 0
        %v2997 = vperm.slane %v499, 0
        %2998 = vset.pattern.permute.xlu0 0
        %2999 = vperm.xlu0 %2998, %v2982
        %v3000 = vpop.permute.xlu0 %2999
        %3002 = vset.pattern.permute.xlu0 0
        %3003 = vperm.xlu0 %3002, %v2983
        %v3004 = vpop.permute.xlu0 %3003
        %3006 = vset.pattern.permute.xlu0 0
        %3007 = vperm.xlu0 %3006, %v2984
        %v3008 = vpop.permute.xlu0 %3007
        %3010 = vset.pattern.permute.xlu0 0
        %3011 = vperm.xlu0 %3010, %v2985
        %v3012 = vpop.permute.xlu0 %3011
        %3014 = vset.pattern.permute.xlu0 0
        %3015 = vperm.xlu0 %3014, %v2986
        %v3016 = vpop.permute.xlu0 %3015
        %3018 = vset.pattern.permute.xlu0 0
        %3019 = vperm.xlu0 %3018, %v2987
        %v3020 = vpop.permute.xlu0 %3019
        %3022 = vset.pattern.permute.xlu0 0
        %3023 = vperm.xlu0 %3022, %v2988
        %v3024 = vpop.permute.xlu0 %3023
        %3026 = vset.pattern.permute.xlu0 0
        %3027 = vperm.xlu0 %3026, %v2989
        %v3028 = vpop.permute.xlu0 %3027
        %3030 = vset.pattern.permute.xlu0 0
        %3031 = vperm.xlu0 %3030, %v2990
        %v3032 = vpop.permute.xlu0 %3031
        %3034 = vset.pattern.permute.xlu0 0
        %3035 = vperm.xlu0 %3034, %v2991
        %v3036 = vpop.permute.xlu0 %3035
        %3038 = vset.pattern.permute.xlu0 0
        %3039 = vperm.xlu0 %3038, %v2992
        %v3040 = vpop.permute.xlu0 %3039
        %3042 = vset.pattern.permute.xlu0 0
        %3043 = vperm.xlu0 %3042, %v2993
        %v3044 = vpop.permute.xlu0 %3043
        %3046 = vset.pattern.permute.xlu0 0
        %3047 = vperm.xlu0 %3046, %v2994
        %v3048 = vpop.permute.xlu0 %3047
        %3050 = vset.pattern.permute.xlu0 0
        %3051 = vperm.xlu0 %3050, %v2995
        %v3052 = vpop.permute.xlu0 %3051
        %3054 = vset.pattern.permute.xlu0 0
        %3055 = vperm.xlu0 %3054, %v2996
        %v3056 = vpop.permute.xlu0 %3055
        %3058 = vset.pattern.permute.xlu0 0
        %3059 = vperm.xlu0 %3058, %v2997
        %v3060 = vpop.permute.xlu0 %3059
        %v3062 = vmul.f32 %v2934, %v3000
        %v3063 = vmul.f32 %v2935, %v3000
        %v3064 = vmul.f32 %v2936, %v3004
        %v3065 = vmul.f32 %v2937, %v3004
        %v3066 = vmul.f32 %v2938, %v3008
        %v3067 = vmul.f32 %v2939, %v3008
        %v3068 = vmul.f32 %v2940, %v3012
        %v3069 = vmul.f32 %v2941, %v3012
        %v3070 = vmul.f32 %v2942, %v3016
        %v3071 = vmul.f32 %v2943, %v3016
        %v3072 = vmul.f32 %v2944, %v3020
        %v3073 = vmul.f32 %v2945, %v3020
        %v3074 = vmul.f32 %v2946, %v3024
        %v3075 = vmul.f32 %v2947, %v3024
        %v3076 = vmul.f32 %v2948, %v3028
        %v3077 = vmul.f32 %v2949, %v3028
        %v3078 = vmul.f32 %v2950, %v3032
        %v3079 = vmul.f32 %v2951, %v3032
        %v3080 = vmul.f32 %v2952, %v3036
        %v3081 = vmul.f32 %v2953, %v3036
        %v3082 = vmul.f32 %v2954, %v3040
        %v3083 = vmul.f32 %v2955, %v3040
        %v3084 = vmul.f32 %v2956, %v3044
        %v3085 = vmul.f32 %v2957, %v3044
        %v3086 = vmul.f32 %v2958, %v3048
        %v3087 = vmul.f32 %v2959, %v3048
        %v3088 = vmul.f32 %v2960, %v3052
        %v3089 = vmul.f32 %v2961, %v3052
        %v3090 = vmul.f32 %v2962, %v3056
        %v3091 = vmul.f32 %v2963, %v3056
        %v3092 = vmul.f32 %v2964, %v3060
        %v3093 = vmul.f32 %v2965, %v3060
        %3095 = vset.pattern.permute.xlu0 0
        %3096 = vperm.xlu0 %3095, %v500
        %v3097 = vpop.permute.xlu0 %3096
        %3100 = vset.pattern.permute.xlu0 0
        %3101 = vperm.xlu0 %3100, %v501
        %v3102 = vpop.permute.xlu0 %3101
        %v3104 = vmul.f32 %v3062, %v3097
        %v3105 = vmul.f32 %v3063, %v3102
        %v3106 = vmul.f32 %v3064, %v3097
        %v3107 = vmul.f32 %v3065, %v3102
        %v3108 = vmul.f32 %v3066, %v3097
        %v3109 = vmul.f32 %v3067, %v3102
        %v3110 = vmul.f32 %v3068, %v3097
        %v3111 = vmul.f32 %v3069, %v3102
        %v3112 = vmul.f32 %v3070, %v3097
        %v3113 = vmul.f32 %v3071, %v3102
        %v3114 = vmul.f32 %v3072, %v3097
        %v3115 = vmul.f32 %v3073, %v3102
        %v3116 = vmul.f32 %v3074, %v3097
        %v3117 = vmul.f32 %v3075, %v3102
        %v3118 = vmul.f32 %v3076, %v3097
        %v3119 = vmul.f32 %v3077, %v3102
        %v3120 = vmul.f32 %v3078, %v3097
        %v3121 = vmul.f32 %v3079, %v3102
        %v3122 = vmul.f32 %v3080, %v3097
        %v3123 = vmul.f32 %v3081, %v3102
        %v3124 = vmul.f32 %v3082, %v3097
        %v3125 = vmul.f32 %v3083, %v3102
        %v3126 = vmul.f32 %v3084, %v3097
        %v3127 = vmul.f32 %v3085, %v3102
        %v3128 = vmul.f32 %v3086, %v3097
        %v3129 = vmul.f32 %v3087, %v3102
        %v3130 = vmul.f32 %v3088, %v3097
        %v3131 = vmul.f32 %v3089, %v3102
        %v3132 = vmul.f32 %v3090, %v3097
        %v3133 = vmul.f32 %v3091, %v3102
        %v3134 = vmul.f32 %v3092, %v3097
        %v3135 = vmul.f32 %v3093, %v3102
        %3136 = vxpose.xlu0.b32.start [1/16] %v3104, 128
        %3137 = vxpose.xlu0.b32.cont [2/16] %v3105, 128
        %3138 = vxpose.xlu0.b32.cont [3/16] 0.0, 128
        %3139 = vxpose.xlu0.b32.cont [4/16] 0.0, 128
        %3140 = vxpose.xlu0.b32.cont [5/16] 0.0, 128
        %3141 = vxpose.xlu0.b32.cont [6/16] 0.0, 128
        %3142 = vxpose.xlu0.b32.cont [7/16] 0.0, 128
        %3143 = vxpose.xlu0.b32.cont [8/16] 0.0, 128
        %3144 = vxpose.xlu0.b32.cont [9/16] 0.0, 128
        %3145 = vxpose.xlu0.b32.cont [10/16] 0.0, 128
        %3146 = vxpose.xlu0.b32.cont [11/16] 0.0, 128
        %3147 = vxpose.xlu0.b32.cont [12/16] 0.0, 128
        %3148 = vxpose.xlu0.b32.cont [13/16] 0.0, 128
        %3149 = vxpose.xlu0.b32.cont [14/16] 0.0, 128
        %3150 = vxpose.xlu0.b32.cont [15/16] 0.0, 128
        %3151 = vxpose.xlu0.b32.end [16/16] 0.0, 128
        %v3152 = vpop.trf.xlu0
        %v3153 = vpop.trf.xlu0
        %v3154 = vpop.trf.xlu0
        %v3155 = vpop.trf.xlu0
        %v3156 = vpop.trf.xlu0
        %v3157 = vpop.trf.xlu0
        %v3158 = vpop.trf.xlu0
        %v3159 = vpop.trf.xlu0
        %v3160 = vpop.trf.xlu0
        %v3161 = vpop.trf.xlu0
        %v3162 = vpop.trf.xlu0
        %v3163 = vpop.trf.xlu0
        %v3164 = vpop.trf.xlu0
        %v3165 = vpop.trf.xlu0
        %v3166 = vpop.trf.xlu0
        %v3167 = vpop.trf.xlu0
        %v3172 = vrot.slane %v3152, 1
        %v3173 = vrot.slane %v3152, 2
        %v3174 = vrot.slane %v3152, 3
        %v3175 = vrot.slane %v3152, 4
        %v3176 = vrot.slane %v3152, 5
        %v3177 = vrot.slane %v3152, 6
        %v3178 = vrot.slane %v3152, 7
        %v3179 = vrot.slane %v3153, 1
        %v3180 = vrot.slane %v3153, 2
        %v3181 = vrot.slane %v3153, 3
        %v3182 = vrot.slane %v3153, 4
        %v3183 = vrot.slane %v3153, 5
        %v3184 = vrot.slane %v3153, 6
        %v3185 = vrot.slane %v3153, 7
        %v3186 = vrot.slane %v3154, 1
        %v3187 = vrot.slane %v3154, 2
        %v3188 = vrot.slane %v3154, 3
        %v3189 = vrot.slane %v3154, 4
        %v3190 = vrot.slane %v3154, 5
        %v3191 = vrot.slane %v3154, 6
        %v3192 = vrot.slane %v3154, 7
        %v3193 = vrot.slane %v3155, 1
        %v3194 = vrot.slane %v3155, 2
        %v3195 = vrot.slane %v3155, 3
        %v3196 = vrot.slane %v3155, 4
        %v3197 = vrot.slane %v3155, 5
        %v3198 = vrot.slane %v3155, 6
        %v3199 = vrot.slane %v3155, 7
        %vm3228 = vcmask 122880
        %3229 = vst.msk [vmem:[#allocation2] sm:$0x1] %vm3228, %v3152
        %3230 = vst.msk [vmem:[#allocation2 + $0x10] sm:$0x1] %vm3228, %v3172
        %3231 = vst.msk [vmem:[#allocation2 + $0x20] sm:$0x1] %vm3228, %v3173
        %3232 = vst.msk [vmem:[#allocation2 + $0x30] sm:$0x1] %vm3228, %v3174
        %3233 = vst.msk [vmem:[#allocation2 + $0x40] sm:$0x1] %vm3228, %v3175
        %3234 = vst.msk [vmem:[#allocation2 + $0x50] sm:$0x1] %vm3228, %v3176
        %3235 = vst.msk [vmem:[#allocation2 + $0x60] sm:$0x1] %vm3228, %v3177
        %3236 = vst.msk [vmem:[#allocation2 + $0x70] sm:$0x1] %vm3228, %v3178
        %3237 = vst.msk [vmem:[#allocation2 + $0x80] sm:$0x1] %vm3228, %v3153
        %3238 = vst.msk [vmem:[#allocation2 + $0x90] sm:$0x1] %vm3228, %v3179
        %3239 = vst.msk [vmem:[#allocation2 + $0xa0] sm:$0x1] %vm3228, %v3180
        %3240 = vst.msk [vmem:[#allocation2 + $0xb0] sm:$0x1] %vm3228, %v3181
        %3241 = vst.msk [vmem:[#allocation2 + $0xc0] sm:$0x1] %vm3228, %v3182
        %3242 = vst.msk [vmem:[#allocation2 + $0xd0] sm:$0x1] %vm3228, %v3183
        %3243 = vst.msk [vmem:[#allocation2 + $0xe0] sm:$0x1] %vm3228, %v3184
        %3244 = vst.msk [vmem:[#allocation2 + $0xf0] sm:$0x1] %vm3228, %v3185
        %3245 = vst.msk [vmem:[#allocation2 + $0x100] sm:$0x1] %vm3228, %v3154
        %3246 = vst.msk [vmem:[#allocation2 + $0x110] sm:$0x1] %vm3228, %v3186
        %3247 = vst.msk [vmem:[#allocation2 + $0x120] sm:$0x1] %vm3228, %v3187
        %3248 = vst.msk [vmem:[#allocation2 + $0x130] sm:$0x1] %vm3228, %v3188
        %3249 = vst.msk [vmem:[#allocation2 + $0x140] sm:$0x1] %vm3228, %v3189
        %3250 = vst.msk [vmem:[#allocation2 + $0x150] sm:$0x1] %vm3228, %v3190
        %3251 = vst.msk [vmem:[#allocation2 + $0x160] sm:$0x1] %vm3228, %v3191
        %3252 = vst.msk [vmem:[#allocation2 + $0x170] sm:$0x1] %vm3228, %v3192
        %3253 = vst.msk [vmem:[#allocation2 + $0x180] sm:$0x1] %vm3228, %v3155
        %3254 = vst.msk [vmem:[#allocation2 + $0x190] sm:$0x1] %vm3228, %v3193
        %3255 = vst.msk [vmem:[#allocation2 + $0x1a0] sm:$0x1] %vm3228, %v3194
        %3256 = vst.msk [vmem:[#allocation2 + $0x1b0] sm:$0x1] %vm3228, %v3195
        %3257 = vst.msk [vmem:[#allocation2 + $0x1c0] sm:$0x1] %vm3228, %v3196
        %3258 = vst.msk [vmem:[#allocation2 + $0x1d0] sm:$0x1] %vm3228, %v3197
        %3259 = vst.msk [vmem:[#allocation2 + $0x1e0] sm:$0x1] %vm3228, %v3198
        %3260 = vst.msk [vmem:[#allocation2 + $0x1f0] sm:$0x1] %vm3228, %v3199
        %3263 = vrot.lane.b32.xlu0 %v3104, 96
        %v3264 = vpop.permute.xlu0 %3263
        %3265 = vrot.lane.b32.xlu0 %v3105, 96
        %v3266 = vpop.permute.xlu0 %3265
        %3269 = vxpose.xlu0.b32.start [1/16] %v3264, 128
        %3270 = vxpose.xlu0.b32.cont [2/16] %v3266, 128
        %3271 = vxpose.xlu0.b32.cont [3/16] 0.0, 128
        %3272 = vxpose.xlu0.b32.cont [4/16] 0.0, 128
        %3273 = vxpose.xlu0.b32.cont [5/16] 0.0, 128
        %3274 = vxpose.xlu0.b32.cont [6/16] 0.0, 128
        %3275 = vxpose.xlu0.b32.cont [7/16] 0.0, 128
        %3276 = vxpose.xlu0.b32.cont [8/16] 0.0, 128
        %3277 = vxpose.xlu0.b32.cont [9/16] 0.0, 128
        %3278 = vxpose.xlu0.b32.cont [10/16] 0.0, 128
        %3279 = vxpose.xlu0.b32.cont [11/16] 0.0, 128
        %3280 = vxpose.xlu0.b32.cont [12/16] 0.0, 128
        %3281 = vxpose.xlu0.b32.cont [13/16] 0.0, 128
        %3282 = vxpose.xlu0.b32.cont [14/16] 0.0, 128
        %3283 = vxpose.xlu0.b32.cont [15/16] 0.0, 128
        %3284 = vxpose.xlu0.b32.end [16/16] 0.0, 128
        %v3285 = vpop.trf.xlu0
        %v3286 = vpop.trf.xlu0
        %v3287 = vpop.trf.xlu0
        %v3288 = vpop.trf.xlu0
        %v3289 = vpop.trf.xlu0
        %v3290 = vpop.trf.xlu0
        %v3291 = vpop.trf.xlu0
        %v3292 = vpop.trf.xlu0
        %v3293 = vpop.trf.xlu0
        %v3294 = vpop.trf.xlu0
        %v3295 = vpop.trf.xlu0
        %v3296 = vpop.trf.xlu0
        %v3297 = vpop.trf.xlu0
        %v3298 = vpop.trf.xlu0
        %v3299 = vpop.trf.xlu0
        %v3300 = vpop.trf.xlu0
        %v3305 = vrot.slane %v3285, 1
        %v3306 = vrot.slane %v3285, 2
        %v3307 = vrot.slane %v3285, 3
        %v3308 = vrot.slane %v3285, 4
        %v3309 = vrot.slane %v3285, 5
        %v3310 = vrot.slane %v3285, 6
        %v3311 = vrot.slane %v3285, 7
        %v3312 = vrot.slane %v3286, 1
        %v3313 = vrot.slane %v3286, 2
        %v3314 = vrot.slane %v3286, 3
        %v3315 = vrot.slane %v3286, 4
        %v3316 = vrot.slane %v3286, 5
        %v3317 = vrot.slane %v3286, 6
        %v3318 = vrot.slane %v3286, 7
        %v3319 = vrot.slane %v3287, 1
        %v3320 = vrot.slane %v3287, 2
        %v3321 = vrot.slane %v3287, 3
        %v3322 = vrot.slane %v3287, 4
        %v3323 = vrot.slane %v3287, 5
        %v3324 = vrot.slane %v3287, 6
        %v3325 = vrot.slane %v3287, 7
        %v3326 = vrot.slane %v3288, 1
        %v3327 = vrot.slane %v3288, 2
        %v3328 = vrot.slane %v3288, 3
        %v3329 = vrot.slane %v3288, 4
        %v3330 = vrot.slane %v3288, 5
        %v3331 = vrot.slane %v3288, 6
        %v3332 = vrot.slane %v3288, 7
        %3361 = vst.msk [vmem:[#allocation3] sm:$0x1] %vm3228, %v3285
        %3362 = vst.msk [vmem:[#allocation3 + $0x10] sm:$0x1] %vm3228, %v3305
        %3363 = vst.msk [vmem:[#allocation3 + $0x20] sm:$0x1] %vm3228, %v3306
        %3364 = vst.msk [vmem:[#allocation3 + $0x30] sm:$0x1] %vm3228, %v3307
        %3365 = vst.msk [vmem:[#allocation3 + $0x40] sm:$0x1] %vm3228, %v3308
        %3366 = vst.msk [vmem:[#allocation3 + $0x50] sm:$0x1] %vm3228, %v3309
        %3367 = vst.msk [vmem:[#allocation3 + $0x60] sm:$0x1] %vm3228, %v3310
        %3368 = vst.msk [vmem:[#allocation3 + $0x70] sm:$0x1] %vm3228, %v3311
        %3369 = vst.msk [vmem:[#allocation3 + $0x80] sm:$0x1] %vm3228, %v3286
        %3370 = vst.msk [vmem:[#allocation3 + $0x90] sm:$0x1] %vm3228, %v3312
        %3371 = vst.msk [vmem:[#allocation3 + $0xa0] sm:$0x1] %vm3228, %v3313
        %3372 = vst.msk [vmem:[#allocation3 + $0xb0] sm:$0x1] %vm3228, %v3314
        %3373 = vst.msk [vmem:[#allocation3 + $0xc0] sm:$0x1] %vm3228, %v3315
        %3374 = vst.msk [vmem:[#allocation3 + $0xd0] sm:$0x1] %vm3228, %v3316
        %3375 = vst.msk [vmem:[#allocation3 + $0xe0] sm:$0x1] %vm3228, %v3317
        %3376 = vst.msk [vmem:[#allocation3 + $0xf0] sm:$0x1] %vm3228, %v3318
        %3377 = vst.msk [vmem:[#allocation3 + $0x100] sm:$0x1] %vm3228, %v3287
        %3378 = vst.msk [vmem:[#allocation3 + $0x110] sm:$0x1] %vm3228, %v3319
        %3379 = vst.msk [vmem:[#allocation3 + $0x120] sm:$0x1] %vm3228, %v3320
        %3380 = vst.msk [vmem:[#allocation3 + $0x130] sm:$0x1] %vm3228, %v3321
        %3381 = vst.msk [vmem:[#allocation3 + $0x140] sm:$0x1] %vm3228, %v3322
        %3382 = vst.msk [vmem:[#allocation3 + $0x150] sm:$0x1] %vm3228, %v3323
        %3383 = vst.msk [vmem:[#allocation3 + $0x160] sm:$0x1] %vm3228, %v3324
        %3384 = vst.msk [vmem:[#allocation3 + $0x170] sm:$0x1] %vm3228, %v3325
        %3385 = vst.msk [vmem:[#allocation3 + $0x180] sm:$0x1] %vm3228, %v3288
        %3386 = vst.msk [vmem:[#allocation3 + $0x190] sm:$0x1] %vm3228, %v3326
        %3387 = vst.msk [vmem:[#allocation3 + $0x1a0] sm:$0x1] %vm3228, %v3327
        %3388 = vst.msk [vmem:[#allocation3 + $0x1b0] sm:$0x1] %vm3228, %v3328
        %3389 = vst.msk [vmem:[#allocation3 + $0x1c0] sm:$0x1] %vm3228, %v3329
        %3390 = vst.msk [vmem:[#allocation3 + $0x1d0] sm:$0x1] %vm3228, %v3330
        %3391 = vst.msk [vmem:[#allocation3 + $0x1e0] sm:$0x1] %vm3228, %v3331
        %3392 = vst.msk [vmem:[#allocation3 + $0x1f0] sm:$0x1] %vm3228, %v3332
        %3393 = vxpose.xlu0.b32.start [1/16] %v3106, 128
        %3394 = vxpose.xlu0.b32.cont [2/16] %v3107, 128
        %3395 = vxpose.xlu0.b32.cont [3/16] 0.0, 128
        %3396 = vxpose.xlu0.b32.cont [4/16] 0.0, 128
        %3397 = vxpose.xlu0.b32.cont [5/16] 0.0, 128
        %3398 = vxpose.xlu0.b32.cont [6/16] 0.0, 128
        %3399 = vxpose.xlu0.b32.cont [7/16] 0.0, 128
        %3400 = vxpose.xlu0.b32.cont [8/16] 0.0, 128
        %3401 = vxpose.xlu0.b32.cont [9/16] 0.0, 128
        %3402 = vxpose.xlu0.b32.cont [10/16] 0.0, 128
        %3403 = vxpose.xlu0.b32.cont [11/16] 0.0, 128
        %3404 = vxpose.xlu0.b32.cont [12/16] 0.0, 128
        %3405 = vxpose.xlu0.b32.cont [13/16] 0.0, 128
        %3406 = vxpose.xlu0.b32.cont [14/16] 0.0, 128
        %3407 = vxpose.xlu0.b32.cont [15/16] 0.0, 128
        %3408 = vxpose.xlu0.b32.end [16/16] 0.0, 128
        %v3409 = vpop.trf.xlu0
        %v3410 = vpop.trf.xlu0
        %v3411 = vpop.trf.xlu0
        %v3412 = vpop.trf.xlu0
        %v3413 = vpop.trf.xlu0
        %v3414 = vpop.trf.xlu0
        %v3415 = vpop.trf.xlu0
        %v3416 = vpop.trf.xlu0
        %v3417 = vpop.trf.xlu0
        %v3418 = vpop.trf.xlu0
        %v3419 = vpop.trf.xlu0
        %v3420 = vpop.trf.xlu0
        %v3421 = vpop.trf.xlu0
        %v3422 = vpop.trf.xlu0
        %v3423 = vpop.trf.xlu0
        %v3424 = vpop.trf.xlu0
        %v3429 = vrot.slane %v3409, 1
        %v3430 = vrot.slane %v3409, 2
        %v3431 = vrot.slane %v3409, 3
        %v3432 = vrot.slane %v3409, 4
        %v3433 = vrot.slane %v3409, 5
        %v3434 = vrot.slane %v3409, 6
        %v3435 = vrot.slane %v3409, 7
        %v3436 = vrot.slane %v3410, 1
        %v3437 = vrot.slane %v3410, 2
        %v3438 = vrot.slane %v3410, 3
        %v3439 = vrot.slane %v3410, 4
        %v3440 = vrot.slane %v3410, 5
        %v3441 = vrot.slane %v3410, 6
        %v3442 = vrot.slane %v3410, 7
        %v3443 = vrot.slane %v3411, 1
        %v3444 = vrot.slane %v3411, 2
        %v3445 = vrot.slane %v3411, 3
        %v3446 = vrot.slane %v3411, 4
        %v3447 = vrot.slane %v3411, 5
        %v3448 = vrot.slane %v3411, 6
        %v3449 = vrot.slane %v3411, 7
        %v3450 = vrot.slane %v3412, 1
        %v3451 = vrot.slane %v3412, 2
        %v3452 = vrot.slane %v3412, 3
        %v3453 = vrot.slane %v3412, 4
        %v3454 = vrot.slane %v3412, 5
        %v3455 = vrot.slane %v3412, 6
        %v3456 = vrot.slane %v3412, 7
        %3485 = vst.msk [vmem:[#allocation2 + $0x1] sm:$0x1] %vm3228, %v3409
        %3486 = vst.msk [vmem:[#allocation2 + $0x11] sm:$0x1] %vm3228, %v3429
        %3487 = vst.msk [vmem:[#allocation2 + $0x21] sm:$0x1] %vm3228, %v3430
        %3488 = vst.msk [vmem:[#allocation2 + $0x31] sm:$0x1] %vm3228, %v3431
        %3489 = vst.msk [vmem:[#allocation2 + $0x41] sm:$0x1] %vm3228, %v3432
        %3490 = vst.msk [vmem:[#allocation2 + $0x51] sm:$0x1] %vm3228, %v3433
        %3491 = vst.msk [vmem:[#allocation2 + $0x61] sm:$0x1] %vm3228, %v3434
        %3492 = vst.msk [vmem:[#allocation2 + $0x71] sm:$0x1] %vm3228, %v3435
        %3493 = vst.msk [vmem:[#allocation2 + $0x81] sm:$0x1] %vm3228, %v3410
        %3494 = vst.msk [vmem:[#allocation2 + $0x91] sm:$0x1] %vm3228, %v3436
        %3495 = vst.msk [vmem:[#allocation2 + $0xa1] sm:$0x1] %vm3228, %v3437
        %3496 = vst.msk [vmem:[#allocation2 + $0xb1] sm:$0x1] %vm3228, %v3438
        %3497 = vst.msk [vmem:[#allocation2 + $0xc1] sm:$0x1] %vm3228, %v3439
        %3498 = vst.msk [vmem:[#allocation2 + $0xd1] sm:$0x1] %vm3228, %v3440
        %3499 = vst.msk [vmem:[#allocation2 + $0xe1] sm:$0x1] %vm3228, %v3441
        %3500 = vst.msk [vmem:[#allocation2 + $0xf1] sm:$0x1] %vm3228, %v3442
        %3501 = vst.msk [vmem:[#allocation2 + $0x101] sm:$0x1] %vm3228, %v3411
        %3502 = vst.msk [vmem:[#allocation2 + $0x111] sm:$0x1] %vm3228, %v3443
        %3503 = vst.msk [vmem:[#allocation2 + $0x121] sm:$0x1] %vm3228, %v3444
        %3504 = vst.msk [vmem:[#allocation2 + $0x131] sm:$0x1] %vm3228, %v3445
        %3505 = vst.msk [vmem:[#allocation2 + $0x141] sm:$0x1] %vm3228, %v3446
        %3506 = vst.msk [vmem:[#allocation2 + $0x151] sm:$0x1] %vm3228, %v3447
        %3507 = vst.msk [vmem:[#allocation2 + $0x161] sm:$0x1] %vm3228, %v3448
        %3508 = vst.msk [vmem:[#allocation2 + $0x171] sm:$0x1] %vm3228, %v3449
        %3509 = vst.msk [vmem:[#allocation2 + $0x181] sm:$0x1] %vm3228, %v3412
        %3510 = vst.msk [vmem:[#allocation2 + $0x191] sm:$0x1] %vm3228, %v3450
        %3511 = vst.msk [vmem:[#allocation2 + $0x1a1] sm:$0x1] %vm3228, %v3451
        %3512 = vst.msk [vmem:[#allocation2 + $0x1b1] sm:$0x1] %vm3228, %v3452
        %3513 = vst.msk [vmem:[#allocation2 + $0x1c1] sm:$0x1] %vm3228, %v3453
        %3514 = vst.msk [vmem:[#allocation2 + $0x1d1] sm:$0x1] %vm3228, %v3454
        %3515 = vst.msk [vmem:[#allocation2 + $0x1e1] sm:$0x1] %vm3228, %v3455
        %3516 = vst.msk [vmem:[#allocation2 + $0x1f1] sm:$0x1] %vm3228, %v3456
        %3519 = vrot.lane.b32.xlu0 %v3106, 96
        %v3520 = vpop.permute.xlu0 %3519
        %3521 = vrot.lane.b32.xlu0 %v3107, 96
        %v3522 = vpop.permute.xlu0 %3521
        %3525 = vxpose.xlu0.b32.start [1/16] %v3520, 128
        %3526 = vxpose.xlu0.b32.cont [2/16] %v3522, 128
        %3527 = vxpose.xlu0.b32.cont [3/16] 0.0, 128
        %3528 = vxpose.xlu0.b32.cont [4/16] 0.0, 128
        %3529 = vxpose.xlu0.b32.cont [5/16] 0.0, 128
        %3530 = vxpose.xlu0.b32.cont [6/16] 0.0, 128
        %3531 = vxpose.xlu0.b32.cont [7/16] 0.0, 128
        %3532 = vxpose.xlu0.b32.cont [8/16] 0.0, 128
        %3533 = vxpose.xlu0.b32.cont [9/16] 0.0, 128
        %3534 = vxpose.xlu0.b32.cont [10/16] 0.0, 128
        %3535 = vxpose.xlu0.b32.cont [11/16] 0.0, 128
        %3536 = vxpose.xlu0.b32.cont [12/16] 0.0, 128
        %3537 = vxpose.xlu0.b32.cont [13/16] 0.0, 128
        %3538 = vxpose.xlu0.b32.cont [14/16] 0.0, 128
        %3539 = vxpose.xlu0.b32.cont [15/16] 0.0, 128
        %3540 = vxpose.xlu0.b32.end [16/16] 0.0, 128
        %v3541 = vpop.trf.xlu0
        %v3542 = vpop.trf.xlu0
        %v3543 = vpop.trf.xlu0
        %v3544 = vpop.trf.xlu0
        %v3545 = vpop.trf.xlu0
        %v3546 = vpop.trf.xlu0
        %v3547 = vpop.trf.xlu0
        %v3548 = vpop.trf.xlu0
        %v3549 = vpop.trf.xlu0
        %v3550 = vpop.trf.xlu0
        %v3551 = vpop.trf.xlu0
        %v3552 = vpop.trf.xlu0
        %v3553 = vpop.trf.xlu0
        %v3554 = vpop.trf.xlu0
        %v3555 = vpop.trf.xlu0
        %v3556 = vpop.trf.xlu0
        %v3561 = vrot.slane %v3541, 1
        %v3562 = vrot.slane %v3541, 2
        %v3563 = vrot.slane %v3541, 3
        %v3564 = vrot.slane %v3541, 4
        %v3565 = vrot.slane %v3541, 5
        %v3566 = vrot.slane %v3541, 6
        %v3567 = vrot.slane %v3541, 7
        %v3568 = vrot.slane %v3542, 1
        %v3569 = vrot.slane %v3542, 2
        %v3570 = vrot.slane %v3542, 3
        %v3571 = vrot.slane %v3542, 4
        %v3572 = vrot.slane %v3542, 5
        %v3573 = vrot.slane %v3542, 6
        %v3574 = vrot.slane %v3542, 7
        %v3575 = vrot.slane %v3543, 1
        %v3576 = vrot.slane %v3543, 2
        %v3577 = vrot.slane %v3543, 3
        %v3578 = vrot.slane %v3543, 4
        %v3579 = vrot.slane %v3543, 5
        %v3580 = vrot.slane %v3543, 6
        %v3581 = vrot.slane %v3543, 7
        %v3582 = vrot.slane %v3544, 1
        %v3583 = vrot.slane %v3544, 2
        %v3584 = vrot.slane %v3544, 3
        %v3585 = vrot.slane %v3544, 4
        %v3586 = vrot.slane %v3544, 5
        %v3587 = vrot.slane %v3544, 6
        %v3588 = vrot.slane %v3544, 7
        %3617 = vst.msk [vmem:[#allocation3 + $0x1] sm:$0x1] %vm3228, %v3541
        %3618 = vst.msk [vmem:[#allocation3 + $0x11] sm:$0x1] %vm3228, %v3561
        %3619 = vst.msk [vmem:[#allocation3 + $0x21] sm:$0x1] %vm3228, %v3562
        %3620 = vst.msk [vmem:[#allocation3 + $0x31] sm:$0x1] %vm3228, %v3563
        %3621 = vst.msk [vmem:[#allocation3 + $0x41] sm:$0x1] %vm3228, %v3564
        %3622 = vst.msk [vmem:[#allocation3 + $0x51] sm:$0x1] %vm3228, %v3565
        %3623 = vst.msk [vmem:[#allocation3 + $0x61] sm:$0x1] %vm3228, %v3566
        %3624 = vst.msk [vmem:[#allocation3 + $0x71] sm:$0x1] %vm3228, %v3567
        %3625 = vst.msk [vmem:[#allocation3 + $0x81] sm:$0x1] %vm3228, %v3542
        %3626 = vst.msk [vmem:[#allocation3 + $0x91] sm:$0x1] %vm3228, %v3568
        %3627 = vst.msk [vmem:[#allocation3 + $0xa1] sm:$0x1] %vm3228, %v3569
        %3628 = vst.msk [vmem:[#allocation3 + $0xb1] sm:$0x1] %vm3228, %v3570
        %3629 = vst.msk [vmem:[#allocation3 + $0xc1] sm:$0x1] %vm3228, %v3571
        %3630 = vst.msk [vmem:[#allocation3 + $0xd1] sm:$0x1] %vm3228, %v3572
        %3631 = vst.msk [vmem:[#allocation3 + $0xe1] sm:$0x1] %vm3228, %v3573
        %3632 = vst.msk [vmem:[#allocation3 + $0xf1] sm:$0x1] %vm3228, %v3574
        %3633 = vst.msk [vmem:[#allocation3 + $0x101] sm:$0x1] %vm3228, %v3543
        %3634 = vst.msk [vmem:[#allocation3 + $0x111] sm:$0x1] %vm3228, %v3575
        %3635 = vst.msk [vmem:[#allocation3 + $0x121] sm:$0x1] %vm3228, %v3576
        %3636 = vst.msk [vmem:[#allocation3 + $0x131] sm:$0x1] %vm3228, %v3577
        %3637 = vst.msk [vmem:[#allocation3 + $0x141] sm:$0x1] %vm3228, %v3578
        %3638 = vst.msk [vmem:[#allocation3 + $0x151] sm:$0x1] %vm3228, %v3579
        %3639 = vst.msk [vmem:[#allocation3 + $0x161] sm:$0x1] %vm3228, %v3580
        %3640 = vst.msk [vmem:[#allocation3 + $0x171] sm:$0x1] %vm3228, %v3581
        %3641 = vst.msk [vmem:[#allocation3 + $0x181] sm:$0x1] %vm3228, %v3544
        %3642 = vst.msk [vmem:[#allocation3 + $0x191] sm:$0x1] %vm3228, %v3582
        %3643 = vst.msk [vmem:[#allocation3 + $0x1a1] sm:$0x1] %vm3228, %v3583
        %3644 = vst.msk [vmem:[#allocation3 + $0x1b1] sm:$0x1] %vm3228, %v3584
        %3645 = vst.msk [vmem:[#allocation3 + $0x1c1] sm:$0x1] %vm3228, %v3585
        %3646 = vst.msk [vmem:[#allocation3 + $0x1d1] sm:$0x1] %vm3228, %v3586
        %3647 = vst.msk [vmem:[#allocation3 + $0x1e1] sm:$0x1] %vm3228, %v3587
        %3648 = vst.msk [vmem:[#allocation3 + $0x1f1] sm:$0x1] %vm3228, %v3588
        %3649 = vxpose.xlu0.b32.start [1/16] %v3108, 128
        %3650 = vxpose.xlu0.b32.cont [2/16] %v3109, 128
        %3651 = vxpose.xlu0.b32.cont [3/16] 0.0, 128
        %3652 = vxpose.xlu0.b32.cont [4/16] 0.0, 128
        %3653 = vxpose.xlu0.b32.cont [5/16] 0.0, 128
        %3654 = vxpose.xlu0.b32.cont [6/16] 0.0, 128
        %3655 = vxpose.xlu0.b32.cont [7/16] 0.0, 128
        %3656 = vxpose.xlu0.b32.cont [8/16] 0.0, 128
        %3657 = vxpose.xlu0.b32.cont [9/16] 0.0, 128
        %3658 = vxpose.xlu0.b32.cont [10/16] 0.0, 128
        %3659 = vxpose.xlu0.b32.cont [11/16] 0.0, 128
        %3660 = vxpose.xlu0.b32.cont [12/16] 0.0, 128
        %3661 = vxpose.xlu0.b32.cont [13/16] 0.0, 128
        %3662 = vxpose.xlu0.b32.cont [14/16] 0.0, 128
        %3663 = vxpose.xlu0.b32.cont [15/16] 0.0, 128
        %3664 = vxpose.xlu0.b32.end [16/16] 0.0, 128
        %v3665 = vpop.trf.xlu0
        %v3666 = vpop.trf.xlu0
        %v3667 = vpop.trf.xlu0
        %v3668 = vpop.trf.xlu0
        %v3669 = vpop.trf.xlu0
        %v3670 = vpop.trf.xlu0
        %v3671 = vpop.trf.xlu0
        %v3672 = vpop.trf.xlu0
        %v3673 = vpop.trf.xlu0
        %v3674 = vpop.trf.xlu0
        %v3675 = vpop.trf.xlu0
        %v3676 = vpop.trf.xlu0
        %v3677 = vpop.trf.xlu0
        %v3678 = vpop.trf.xlu0
        %v3679 = vpop.trf.xlu0
        %v3680 = vpop.trf.xlu0
        %v3685 = vrot.slane %v3665, 1
        %v3686 = vrot.slane %v3665, 2
        %v3687 = vrot.slane %v3665, 3
        %v3688 = vrot.slane %v3665, 4
        %v3689 = vrot.slane %v3665, 5
        %v3690 = vrot.slane %v3665, 6
        %v3691 = vrot.slane %v3665, 7
        %v3692 = vrot.slane %v3666, 1
        %v3693 = vrot.slane %v3666, 2
        %v3694 = vrot.slane %v3666, 3
        %v3695 = vrot.slane %v3666, 4
        %v3696 = vrot.slane %v3666, 5
        %v3697 = vrot.slane %v3666, 6
        %v3698 = vrot.slane %v3666, 7
        %v3699 = vrot.slane %v3667, 1
        %v3700 = vrot.slane %v3667, 2
        %v3701 = vrot.slane %v3667, 3
        %v3702 = vrot.slane %v3667, 4
        %v3703 = vrot.slane %v3667, 5
        %v3704 = vrot.slane %v3667, 6
        %v3705 = vrot.slane %v3667, 7
        %v3706 = vrot.slane %v3668, 1
        %v3707 = vrot.slane %v3668, 2
        %v3708 = vrot.slane %v3668, 3
        %v3709 = vrot.slane %v3668, 4
        %v3710 = vrot.slane %v3668, 5
        %v3711 = vrot.slane %v3668, 6
        %v3712 = vrot.slane %v3668, 7
        %3741 = vst.msk [vmem:[#allocation2 + $0x2] sm:$0x1] %vm3228, %v3665
        %3742 = vst.msk [vmem:[#allocation2 + $0x12] sm:$0x1] %vm3228, %v3685
        %3743 = vst.msk [vmem:[#allocation2 + $0x22] sm:$0x1] %vm3228, %v3686
        %3744 = vst.msk [vmem:[#allocation2 + $0x32] sm:$0x1] %vm3228, %v3687
        %3745 = vst.msk [vmem:[#allocation2 + $0x42] sm:$0x1] %vm3228, %v3688
        %3746 = vst.msk [vmem:[#allocation2 + $0x52] sm:$0x1] %vm3228, %v3689
        %3747 = vst.msk [vmem:[#allocation2 + $0x62] sm:$0x1] %vm3228, %v3690
        %3748 = vst.msk [vmem:[#allocation2 + $0x72] sm:$0x1] %vm3228, %v3691
        %3749 = vst.msk [vmem:[#allocation2 + $0x82] sm:$0x1] %vm3228, %v3666
        %3750 = vst.msk [vmem:[#allocation2 + $0x92] sm:$0x1] %vm3228, %v3692
        %3751 = vst.msk [vmem:[#allocation2 + $0xa2] sm:$0x1] %vm3228, %v3693
        %3752 = vst.msk [vmem:[#allocation2 + $0xb2] sm:$0x1] %vm3228, %v3694
        %3753 = vst.msk [vmem:[#allocation2 + $0xc2] sm:$0x1] %vm3228, %v3695
        %3754 = vst.msk [vmem:[#allocation2 + $0xd2] sm:$0x1] %vm3228, %v3696
        %3755 = vst.msk [vmem:[#allocation2 + $0xe2] sm:$0x1] %vm3228, %v3697
        %3756 = vst.msk [vmem:[#allocation2 + $0xf2] sm:$0x1] %vm3228, %v3698
        %3757 = vst.msk [vmem:[#allocation2 + $0x102] sm:$0x1] %vm3228, %v3667
        %3758 = vst.msk [vmem:[#allocation2 + $0x112] sm:$0x1] %vm3228, %v3699
        %3759 = vst.msk [vmem:[#allocation2 + $0x122] sm:$0x1] %vm3228, %v3700
        %3760 = vst.msk [vmem:[#allocation2 + $0x132] sm:$0x1] %vm3228, %v3701
        %3761 = vst.msk [vmem:[#allocation2 + $0x142] sm:$0x1] %vm3228, %v3702
        %3762 = vst.msk [vmem:[#allocation2 + $0x152] sm:$0x1] %vm3228, %v3703
        %3763 = vst.msk [vmem:[#allocation2 + $0x162] sm:$0x1] %vm3228, %v3704
        %3764 = vst.msk [vmem:[#allocation2 + $0x172] sm:$0x1] %vm3228, %v3705
        %3765 = vst.msk [vmem:[#allocation2 + $0x182] sm:$0x1] %vm3228, %v3668
        %3766 = vst.msk [vmem:[#allocation2 + $0x192] sm:$0x1] %vm3228, %v3706
        %3767 = vst.msk [vmem:[#allocation2 + $0x1a2] sm:$0x1] %vm3228, %v3707
        %3768 = vst.msk [vmem:[#allocation2 + $0x1b2] sm:$0x1] %vm3228, %v3708
        %3769 = vst.msk [vmem:[#allocation2 + $0x1c2] sm:$0x1] %vm3228, %v3709
        %3770 = vst.msk [vmem:[#allocation2 + $0x1d2] sm:$0x1] %vm3228, %v3710
        %3771 = vst.msk [vmem:[#allocation2 + $0x1e2] sm:$0x1] %vm3228, %v3711
        %3772 = vst.msk [vmem:[#allocation2 + $0x1f2] sm:$0x1] %vm3228, %v3712
        %3775 = vrot.lane.b32.xlu0 %v3108, 96
        %v3776 = vpop.permute.xlu0 %3775
        %3777 = vrot.lane.b32.xlu0 %v3109, 96
        %v3778 = vpop.permute.xlu0 %3777
        %3781 = vxpose.xlu0.b32.start [1/16] %v3776, 128
        %3782 = vxpose.xlu0.b32.cont [2/16] %v3778, 128
        %3783 = vxpose.xlu0.b32.cont [3/16] 0.0, 128
        %3784 = vxpose.xlu0.b32.cont [4/16] 0.0, 128
        %3785 = vxpose.xlu0.b32.cont [5/16] 0.0, 128
        %3786 = vxpose.xlu0.b32.cont [6/16] 0.0, 128
        %3787 = vxpose.xlu0.b32.cont [7/16] 0.0, 128
        %3788 = vxpose.xlu0.b32.cont [8/16] 0.0, 128
        %3789 = vxpose.xlu0.b32.cont [9/16] 0.0, 128
        %3790 = vxpose.xlu0.b32.cont [10/16] 0.0, 128
        %3791 = vxpose.xlu0.b32.cont [11/16] 0.0, 128
        %3792 = vxpose.xlu0.b32.cont [12/16] 0.0, 128
        %3793 = vxpose.xlu0.b32.cont [13/16] 0.0, 128
        %3794 = vxpose.xlu0.b32.cont [14/16] 0.0, 128
        %3795 = vxpose.xlu0.b32.cont [15/16] 0.0, 128
        %3796 = vxpose.xlu0.b32.end [16/16] 0.0, 128
        %v3797 = vpop.trf.xlu0
        %v3798 = vpop.trf.xlu0
        %v3799 = vpop.trf.xlu0
        %v3800 = vpop.trf.xlu0
        %v3801 = vpop.trf.xlu0
        %v3802 = vpop.trf.xlu0
        %v3803 = vpop.trf.xlu0
        %v3804 = vpop.trf.xlu0
        %v3805 = vpop.trf.xlu0
        %v3806 = vpop.trf.xlu0
        %v3807 = vpop.trf.xlu0
        %v3808 = vpop.trf.xlu0
        %v3809 = vpop.trf.xlu0
        %v3810 = vpop.trf.xlu0
        %v3811 = vpop.trf.xlu0
        %v3812 = vpop.trf.xlu0
        %v3817 = vrot.slane %v3797, 1
        %v3818 = vrot.slane %v3797, 2
        %v3819 = vrot.slane %v3797, 3
        %v3820 = vrot.slane %v3797, 4
        %v3821 = vrot.slane %v3797, 5
        %v3822 = vrot.slane %v3797, 6
        %v3823 = vrot.slane %v3797, 7
        %v3824 = vrot.slane %v3798, 1
        %v3825 = vrot.slane %v3798, 2
        %v3826 = vrot.slane %v3798, 3
        %v3827 = vrot.slane %v3798, 4
        %v3828 = vrot.slane %v3798, 5
        %v3829 = vrot.slane %v3798, 6
        %v3830 = vrot.slane %v3798, 7
        %v3831 = vrot.slane %v3799, 1
        %v3832 = vrot.slane %v3799, 2
        %v3833 = vrot.slane %v3799, 3
        %v3834 = vrot.slane %v3799, 4
        %v3835 = vrot.slane %v3799, 5
        %v3836 = vrot.slane %v3799, 6
        %v3837 = vrot.slane %v3799, 7
        %v3838 = vrot.slane %v3800, 1
        %v3839 = vrot.slane %v3800, 2
        %v3840 = vrot.slane %v3800, 3
        %v3841 = vrot.slane %v3800, 4
        %v3842 = vrot.slane %v3800, 5
        %v3843 = vrot.slane %v3800, 6
        %v3844 = vrot.slane %v3800, 7
        %3873 = vst.msk [vmem:[#allocation3 + $0x2] sm:$0x1] %vm3228, %v3797
        %3874 = vst.msk [vmem:[#allocation3 + $0x12] sm:$0x1] %vm3228, %v3817
        %3875 = vst.msk [vmem:[#allocation3 + $0x22] sm:$0x1] %vm3228, %v3818
        %3876 = vst.msk [vmem:[#allocation3 + $0x32] sm:$0x1] %vm3228, %v3819
        %3877 = vst.msk [vmem:[#allocation3 + $0x42] sm:$0x1] %vm3228, %v3820
        %3878 = vst.msk [vmem:[#allocation3 + $0x52] sm:$0x1] %vm3228, %v3821
        %3879 = vst.msk [vmem:[#allocation3 + $0x62] sm:$0x1] %vm3228, %v3822
        %3880 = vst.msk [vmem:[#allocation3 + $0x72] sm:$0x1] %vm3228, %v3823
        %3881 = vst.msk [vmem:[#allocation3 + $0x82] sm:$0x1] %vm3228, %v3798
        %3882 = vst.msk [vmem:[#allocation3 + $0x92] sm:$0x1] %vm3228, %v3824
        %3883 = vst.msk [vmem:[#allocation3 + $0xa2] sm:$0x1] %vm3228, %v3825
        %3884 = vst.msk [vmem:[#allocation3 + $0xb2] sm:$0x1] %vm3228, %v3826
        %3885 = vst.msk [vmem:[#allocation3 + $0xc2] sm:$0x1] %vm3228, %v3827
        %3886 = vst.msk [vmem:[#allocation3 + $0xd2] sm:$0x1] %vm3228, %v3828
        %3887 = vst.msk [vmem:[#allocation3 + $0xe2] sm:$0x1] %vm3228, %v3829
        %3888 = vst.msk [vmem:[#allocation3 + $0xf2] sm:$0x1] %vm3228, %v3830
        %3889 = vst.msk [vmem:[#allocation3 + $0x102] sm:$0x1] %vm3228, %v3799
        %3890 = vst.msk [vmem:[#allocation3 + $0x112] sm:$0x1] %vm3228, %v3831
        %3891 = vst.msk [vmem:[#allocation3 + $0x122] sm:$0x1] %vm3228, %v3832
        %3892 = vst.msk [vmem:[#allocation3 + $0x132] sm:$0x1] %vm3228, %v3833
        %3893 = vst.msk [vmem:[#allocation3 + $0x142] sm:$0x1] %vm3228, %v3834
        %3894 = vst.msk [vmem:[#allocation3 + $0x152] sm:$0x1] %vm3228, %v3835
        %3895 = vst.msk [vmem:[#allocation3 + $0x162] sm:$0x1] %vm3228, %v3836
        %3896 = vst.msk [vmem:[#allocation3 + $0x172] sm:$0x1] %vm3228, %v3837
        %3897 = vst.msk [vmem:[#allocation3 + $0x182] sm:$0x1] %vm3228, %v3800
        %3898 = vst.msk [vmem:[#allocation3 + $0x192] sm:$0x1] %vm3228, %v3838
        %3899 = vst.msk [vmem:[#allocation3 + $0x1a2] sm:$0x1] %vm3228, %v3839
        %3900 = vst.msk [vmem:[#allocation3 + $0x1b2] sm:$0x1] %vm3228, %v3840
        %3901 = vst.msk [vmem:[#allocation3 + $0x1c2] sm:$0x1] %vm3228, %v3841
        %3902 = vst.msk [vmem:[#allocation3 + $0x1d2] sm:$0x1] %vm3228, %v3842
        %3903 = vst.msk [vmem:[#allocation3 + $0x1e2] sm:$0x1] %vm3228, %v3843
        %3904 = vst.msk [vmem:[#allocation3 + $0x1f2] sm:$0x1] %vm3228, %v3844
        %3905 = vxpose.xlu0.b32.start [1/16] %v3110, 128
        %3906 = vxpose.xlu0.b32.cont [2/16] %v3111, 128
        %3907 = vxpose.xlu0.b32.cont [3/16] 0.0, 128
        %3908 = vxpose.xlu0.b32.cont [4/16] 0.0, 128
        %3909 = vxpose.xlu0.b32.cont [5/16] 0.0, 128
        %3910 = vxpose.xlu0.b32.cont [6/16] 0.0, 128
        %3911 = vxpose.xlu0.b32.cont [7/16] 0.0, 128
        %3912 = vxpose.xlu0.b32.cont [8/16] 0.0, 128
        %3913 = vxpose.xlu0.b32.cont [9/16] 0.0, 128
        %3914 = vxpose.xlu0.b32.cont [10/16] 0.0, 128
        %3915 = vxpose.xlu0.b32.cont [11/16] 0.0, 128
        %3916 = vxpose.xlu0.b32.cont [12/16] 0.0, 128
        %3917 = vxpose.xlu0.b32.cont [13/16] 0.0, 128
        %3918 = vxpose.xlu0.b32.cont [14/16] 0.0, 128
        %3919 = vxpose.xlu0.b32.cont [15/16] 0.0, 128
        %3920 = vxpose.xlu0.b32.end [16/16] 0.0, 128
        %v3921 = vpop.trf.xlu0
        %v3922 = vpop.trf.xlu0
        %v3923 = vpop.trf.xlu0
        %v3924 = vpop.trf.xlu0
        %v3925 = vpop.trf.xlu0
        %v3926 = vpop.trf.xlu0
        %v3927 = vpop.trf.xlu0
        %v3928 = vpop.trf.xlu0
        %v3929 = vpop.trf.xlu0
        %v3930 = vpop.trf.xlu0
        %v3931 = vpop.trf.xlu0
        %v3932 = vpop.trf.xlu0
        %v3933 = vpop.trf.xlu0
        %v3934 = vpop.trf.xlu0
        %v3935 = vpop.trf.xlu0
        %v3936 = vpop.trf.xlu0
        %v3941 = vrot.slane %v3921, 1
        %v3942 = vrot.slane %v3921, 2
        %v3943 = vrot.slane %v3921, 3
        %v3944 = vrot.slane %v3921, 4
        %v3945 = vrot.slane %v3921, 5
        %v3946 = vrot.slane %v3921, 6
        %v3947 = vrot.slane %v3921, 7
        %v3948 = vrot.slane %v3922, 1
        %v3949 = vrot.slane %v3922, 2
        %v3950 = vrot.slane %v3922, 3
        %v3951 = vrot.slane %v3922, 4
        %v3952 = vrot.slane %v3922, 5
        %v3953 = vrot.slane %v3922, 6
        %v3954 = vrot.slane %v3922, 7
        %v3955 = vrot.slane %v3923, 1
        %v3956 = vrot.slane %v3923, 2
        %v3957 = vrot.slane %v3923, 3
        %v3958 = vrot.slane %v3923, 4
        %v3959 = vrot.slane %v3923, 5
        %v3960 = vrot.slane %v3923, 6
        %v3961 = vrot.slane %v3923, 7
        %v3962 = vrot.slane %v3924, 1
        %v3963 = vrot.slane %v3924, 2
        %v3964 = vrot.slane %v3924, 3
        %v3965 = vrot.slane %v3924, 4
        %v3966 = vrot.slane %v3924, 5
        %v3967 = vrot.slane %v3924, 6
        %v3968 = vrot.slane %v3924, 7
        %3997 = vst.msk [vmem:[#allocation2 + $0x3] sm:$0x1] %vm3228, %v3921
        %3998 = vst.msk [vmem:[#allocation2 + $0x13] sm:$0x1] %vm3228, %v3941
        %3999 = vst.msk [vmem:[#allocation2 + $0x23] sm:$0x1] %vm3228, %v3942
        %4000 = vst.msk [vmem:[#allocation2 + $0x33] sm:$0x1] %vm3228, %v3943
        %4001 = vst.msk [vmem:[#allocation2 + $0x43] sm:$0x1] %vm3228, %v3944
        %4002 = vst.msk [vmem:[#allocation2 + $0x53] sm:$0x1] %vm3228, %v3945
        %4003 = vst.msk [vmem:[#allocation2 + $0x63] sm:$0x1] %vm3228, %v3946
        %4004 = vst.msk [vmem:[#allocation2 + $0x73] sm:$0x1] %vm3228, %v3947
        %4005 = vst.msk [vmem:[#allocation2 + $0x83] sm:$0x1] %vm3228, %v3922
        %4006 = vst.msk [vmem:[#allocation2 + $0x93] sm:$0x1] %vm3228, %v3948
        %4007 = vst.msk [vmem:[#allocation2 + $0xa3] sm:$0x1] %vm3228, %v3949
        %4008 = vst.msk [vmem:[#allocation2 + $0xb3] sm:$0x1] %vm3228, %v3950
        %4009 = vst.msk [vmem:[#allocation2 + $0xc3] sm:$0x1] %vm3228, %v3951
        %4010 = vst.msk [vmem:[#allocation2 + $0xd3] sm:$0x1] %vm3228, %v3952
        %4011 = vst.msk [vmem:[#allocation2 + $0xe3] sm:$0x1] %vm3228, %v3953
        %4012 = vst.msk [vmem:[#allocation2 + $0xf3] sm:$0x1] %vm3228, %v3954
        %4013 = vst.msk [vmem:[#allocation2 + $0x103] sm:$0x1] %vm3228, %v3923
        %4014 = vst.msk [vmem:[#allocation2 + $0x113] sm:$0x1] %vm3228, %v3955
        %4015 = vst.msk [vmem:[#allocation2 + $0x123] sm:$0x1] %vm3228, %v3956
        %4016 = vst.msk [vmem:[#allocation2 + $0x133] sm:$0x1] %vm3228, %v3957
        %4017 = vst.msk [vmem:[#allocation2 + $0x143] sm:$0x1] %vm3228, %v3958
        %4018 = vst.msk [vmem:[#allocation2 + $0x153] sm:$0x1] %vm3228, %v3959
        %4019 = vst.msk [vmem:[#allocation2 + $0x163] sm:$0x1] %vm3228, %v3960
        %4020 = vst.msk [vmem:[#allocation2 + $0x173] sm:$0x1] %vm3228, %v3961
        %4021 = vst.msk [vmem:[#allocation2 + $0x183] sm:$0x1] %vm3228, %v3924
        %4022 = vst.msk [vmem:[#allocation2 + $0x193] sm:$0x1] %vm3228, %v3962
        %4023 = vst.msk [vmem:[#allocation2 + $0x1a3] sm:$0x1] %vm3228, %v3963
        %4024 = vst.msk [vmem:[#allocation2 + $0x1b3] sm:$0x1] %vm3228, %v3964
        %4025 = vst.msk [vmem:[#allocation2 + $0x1c3] sm:$0x1] %vm3228, %v3965
        %4026 = vst.msk [vmem:[#allocation2 + $0x1d3] sm:$0x1] %vm3228, %v3966
        %4027 = vst.msk [vmem:[#allocation2 + $0x1e3] sm:$0x1] %vm3228, %v3967
        %4028 = vst.msk [vmem:[#allocation2 + $0x1f3] sm:$0x1] %vm3228, %v3968
        %4031 = vrot.lane.b32.xlu0 %v3110, 96
        %v4032 = vpop.permute.xlu0 %4031
        %4033 = vrot.lane.b32.xlu0 %v3111, 96
        %v4034 = vpop.permute.xlu0 %4033
        %4037 = vxpose.xlu0.b32.start [1/16] %v4032, 128
        %4038 = vxpose.xlu0.b32.cont [2/16] %v4034, 128
        %4039 = vxpose.xlu0.b32.cont [3/16] 0.0, 128
        %4040 = vxpose.xlu0.b32.cont [4/16] 0.0, 128
        %4041 = vxpose.xlu0.b32.cont [5/16] 0.0, 128
        %4042 = vxpose.xlu0.b32.cont [6/16] 0.0, 128
        %4043 = vxpose.xlu0.b32.cont [7/16] 0.0, 128
        %4044 = vxpose.xlu0.b32.cont [8/16] 0.0, 128
        %4045 = vxpose.xlu0.b32.cont [9/16] 0.0, 128
        %4046 = vxpose.xlu0.b32.cont [10/16] 0.0, 128
        %4047 = vxpose.xlu0.b32.cont [11/16] 0.0, 128
        %4048 = vxpose.xlu0.b32.cont [12/16] 0.0, 128
        %4049 = vxpose.xlu0.b32.cont [13/16] 0.0, 128
        %4050 = vxpose.xlu0.b32.cont [14/16] 0.0, 128
        %4051 = vxpose.xlu0.b32.cont [15/16] 0.0, 128
        %4052 = vxpose.xlu0.b32.end [16/16] 0.0, 128
        %v4053 = vpop.trf.xlu0
        %v4054 = vpop.trf.xlu0
        %v4055 = vpop.trf.xlu0
        %v4056 = vpop.trf.xlu0
        %v4057 = vpop.trf.xlu0
        %v4058 = vpop.trf.xlu0
        %v4059 = vpop.trf.xlu0
        %v4060 = vpop.trf.xlu0
        %v4061 = vpop.trf.xlu0
        %v4062 = vpop.trf.xlu0
        %v4063 = vpop.trf.xlu0
        %v4064 = vpop.trf.xlu0
        %v4065 = vpop.trf.xlu0
        %v4066 = vpop.trf.xlu0
        %v4067 = vpop.trf.xlu0
        %v4068 = vpop.trf.xlu0
        %v4073 = vrot.slane %v4053, 1
        %v4074 = vrot.slane %v4053, 2
        %v4075 = vrot.slane %v4053, 3
        %v4076 = vrot.slane %v4053, 4
        %v4077 = vrot.slane %v4053, 5
        %v4078 = vrot.slane %v4053, 6
        %v4079 = vrot.slane %v4053, 7
        %v4080 = vrot.slane %v4054, 1
        %v4081 = vrot.slane %v4054, 2
        %v4082 = vrot.slane %v4054, 3
        %v4083 = vrot.slane %v4054, 4
        %v4084 = vrot.slane %v4054, 5
        %v4085 = vrot.slane %v4054, 6
        %v4086 = vrot.slane %v4054, 7
        %v4087 = vrot.slane %v4055, 1
        %v4088 = vrot.slane %v4055, 2
        %v4089 = vrot.slane %v4055, 3
        %v4090 = vrot.slane %v4055, 4
        %v4091 = vrot.slane %v4055, 5
        %v4092 = vrot.slane %v4055, 6
        %v4093 = vrot.slane %v4055, 7
        %v4094 = vrot.slane %v4056, 1
        %v4095 = vrot.slane %v4056, 2
        %v4096 = vrot.slane %v4056, 3
        %v4097 = vrot.slane %v4056, 4
        %v4098 = vrot.slane %v4056, 5
        %v4099 = vrot.slane %v4056, 6
        %v4100 = vrot.slane %v4056, 7
        %4129 = vst.msk [vmem:[#allocation3 + $0x3] sm:$0x1] %vm3228, %v4053
        %4130 = vst.msk [vmem:[#allocation3 + $0x13] sm:$0x1] %vm3228, %v4073
        %4131 = vst.msk [vmem:[#allocation3 + $0x23] sm:$0x1] %vm3228, %v4074
        %4132 = vst.msk [vmem:[#allocation3 + $0x33] sm:$0x1] %vm3228, %v4075
        %4133 = vst.msk [vmem:[#allocation3 + $0x43] sm:$0x1] %vm3228, %v4076
        %4134 = vst.msk [vmem:[#allocation3 + $0x53] sm:$0x1] %vm3228, %v4077
        %4135 = vst.msk [vmem:[#allocation3 + $0x63] sm:$0x1] %vm3228, %v4078
        %4136 = vst.msk [vmem:[#allocation3 + $0x73] sm:$0x1] %vm3228, %v4079
        %4137 = vst.msk [vmem:[#allocation3 + $0x83] sm:$0x1] %vm3228, %v4054
        %4138 = vst.msk [vmem:[#allocation3 + $0x93] sm:$0x1] %vm3228, %v4080
        %4139 = vst.msk [vmem:[#allocation3 + $0xa3] sm:$0x1] %vm3228, %v4081
        %4140 = vst.msk [vmem:[#allocation3 + $0xb3] sm:$0x1] %vm3228, %v4082
        %4141 = vst.msk [vmem:[#allocation3 + $0xc3] sm:$0x1] %vm3228, %v4083
        %4142 = vst.msk [vmem:[#allocation3 + $0xd3] sm:$0x1] %vm3228, %v4084
        %4143 = vst.msk [vmem:[#allocation3 + $0xe3] sm:$0x1] %vm3228, %v4085
        %4144 = vst.msk [vmem:[#allocation3 + $0xf3] sm:$0x1] %vm3228, %v4086
        %4145 = vst.msk [vmem:[#allocation3 + $0x103] sm:$0x1] %vm3228, %v4055
        %4146 = vst.msk [vmem:[#allocation3 + $0x113] sm:$0x1] %vm3228, %v4087
        %4147 = vst.msk [vmem:[#allocation3 + $0x123] sm:$0x1] %vm3228, %v4088
        %4148 = vst.msk [vmem:[#allocation3 + $0x133] sm:$0x1] %vm3228, %v4089
        %4149 = vst.msk [vmem:[#allocation3 + $0x143] sm:$0x1] %vm3228, %v4090
        %4150 = vst.msk [vmem:[#allocation3 + $0x153] sm:$0x1] %vm3228, %v4091
        %4151 = vst.msk [vmem:[#allocation3 + $0x163] sm:$0x1] %vm3228, %v4092
        %4152 = vst.msk [vmem:[#allocation3 + $0x173] sm:$0x1] %vm3228, %v4093
        %4153 = vst.msk [vmem:[#allocation3 + $0x183] sm:$0x1] %vm3228, %v4056
        %4154 = vst.msk [vmem:[#allocation3 + $0x193] sm:$0x1] %vm3228, %v4094
        %4155 = vst.msk [vmem:[#allocation3 + $0x1a3] sm:$0x1] %vm3228, %v4095
        %4156 = vst.msk [vmem:[#allocation3 + $0x1b3] sm:$0x1] %vm3228, %v4096
        %4157 = vst.msk [vmem:[#allocation3 + $0x1c3] sm:$0x1] %vm3228, %v4097
        %4158 = vst.msk [vmem:[#allocation3 + $0x1d3] sm:$0x1] %vm3228, %v4098
        %4159 = vst.msk [vmem:[#allocation3 + $0x1e3] sm:$0x1] %vm3228, %v4099
        %4160 = vst.msk [vmem:[#allocation3 + $0x1f3] sm:$0x1] %vm3228, %v4100
        %4161 = vxpose.xlu0.b32.start [1/16] %v3112, 128
        %4162 = vxpose.xlu0.b32.cont [2/16] %v3113, 128
        %4163 = vxpose.xlu0.b32.cont [3/16] 0.0, 128
        %4164 = vxpose.xlu0.b32.cont [4/16] 0.0, 128
        %4165 = vxpose.xlu0.b32.cont [5/16] 0.0, 128
        %4166 = vxpose.xlu0.b32.cont [6/16] 0.0, 128
        %4167 = vxpose.xlu0.b32.cont [7/16] 0.0, 128
        %4168 = vxpose.xlu0.b32.cont [8/16] 0.0, 128
        %4169 = vxpose.xlu0.b32.cont [9/16] 0.0, 128
        %4170 = vxpose.xlu0.b32.cont [10/16] 0.0, 128
        %4171 = vxpose.xlu0.b32.cont [11/16] 0.0, 128
        %4172 = vxpose.xlu0.b32.cont [12/16] 0.0, 128
        %4173 = vxpose.xlu0.b32.cont [13/16] 0.0, 128
        %4174 = vxpose.xlu0.b32.cont [14/16] 0.0, 128
        %4175 = vxpose.xlu0.b32.cont [15/16] 0.0, 128
        %4176 = vxpose.xlu0.b32.end [16/16] 0.0, 128
        %v4177 = vpop.trf.xlu0
        %v4178 = vpop.trf.xlu0
        %v4179 = vpop.trf.xlu0
        %v4180 = vpop.trf.xlu0
        %v4181 = vpop.trf.xlu0
        %v4182 = vpop.trf.xlu0
        %v4183 = vpop.trf.xlu0
        %v4184 = vpop.trf.xlu0
        %v4185 = vpop.trf.xlu0
        %v4186 = vpop.trf.xlu0
        %v4187 = vpop.trf.xlu0
        %v4188 = vpop.trf.xlu0
        %v4189 = vpop.trf.xlu0
        %v4190 = vpop.trf.xlu0
        %v4191 = vpop.trf.xlu0
        %v4192 = vpop.trf.xlu0
        %v4197 = vrot.slane %v4177, 1
        %v4198 = vrot.slane %v4177, 2
        %v4199 = vrot.slane %v4177, 3
        %v4200 = vrot.slane %v4177, 4
        %v4201 = vrot.slane %v4177, 5
        %v4202 = vrot.slane %v4177, 6
        %v4203 = vrot.slane %v4177, 7
        %v4204 = vrot.slane %v4178, 1
        %v4205 = vrot.slane %v4178, 2
        %v4206 = vrot.slane %v4178, 3
        %v4207 = vrot.slane %v4178, 4
        %v4208 = vrot.slane %v4178, 5
        %v4209 = vrot.slane %v4178, 6
        %v4210 = vrot.slane %v4178, 7
        %v4211 = vrot.slane %v4179, 1
        %v4212 = vrot.slane %v4179, 2
        %v4213 = vrot.slane %v4179, 3
        %v4214 = vrot.slane %v4179, 4
        %v4215 = vrot.slane %v4179, 5
        %v4216 = vrot.slane %v4179, 6
        %v4217 = vrot.slane %v4179, 7
        %v4218 = vrot.slane %v4180, 1
        %v4219 = vrot.slane %v4180, 2
        %v4220 = vrot.slane %v4180, 3
        %v4221 = vrot.slane %v4180, 4
        %v4222 = vrot.slane %v4180, 5
        %v4223 = vrot.slane %v4180, 6
        %v4224 = vrot.slane %v4180, 7
        %4253 = vst.msk [vmem:[#allocation2 + $0x4] sm:$0x1] %vm3228, %v4177
        %4254 = vst.msk [vmem:[#allocation2 + $0x14] sm:$0x1] %vm3228, %v4197
        %4255 = vst.msk [vmem:[#allocation2 + $0x24] sm:$0x1] %vm3228, %v4198
        %4256 = vst.msk [vmem:[#allocation2 + $0x34] sm:$0x1] %vm3228, %v4199
        %4257 = vst.msk [vmem:[#allocation2 + $0x44] sm:$0x1] %vm3228, %v4200
        %4258 = vst.msk [vmem:[#allocation2 + $0x54] sm:$0x1] %vm3228, %v4201
        %4259 = vst.msk [vmem:[#allocation2 + $0x64] sm:$0x1] %vm3228, %v4202
        %4260 = vst.msk [vmem:[#allocation2 + $0x74] sm:$0x1] %vm3228, %v4203
        %4261 = vst.msk [vmem:[#allocation2 + $0x84] sm:$0x1] %vm3228, %v4178
        %4262 = vst.msk [vmem:[#allocation2 + $0x94] sm:$0x1] %vm3228, %v4204
        %4263 = vst.msk [vmem:[#allocation2 + $0xa4] sm:$0x1] %vm3228, %v4205
        %4264 = vst.msk [vmem:[#allocation2 + $0xb4] sm:$0x1] %vm3228, %v4206
        %4265 = vst.msk [vmem:[#allocation2 + $0xc4] sm:$0x1] %vm3228, %v4207
        %4266 = vst.msk [vmem:[#allocation2 + $0xd4] sm:$0x1] %vm3228, %v4208
        %4267 = vst.msk [vmem:[#allocation2 + $0xe4] sm:$0x1] %vm3228, %v4209
        %4268 = vst.msk [vmem:[#allocation2 + $0xf4] sm:$0x1] %vm3228, %v4210
        %4269 = vst.msk [vmem:[#allocation2 + $0x104] sm:$0x1] %vm3228, %v4179
        %4270 = vst.msk [vmem:[#allocation2 + $0x114] sm:$0x1] %vm3228, %v4211
        %4271 = vst.msk [vmem:[#allocation2 + $0x124] sm:$0x1] %vm3228, %v4212
        %4272 = vst.msk [vmem:[#allocation2 + $0x134] sm:$0x1] %vm3228, %v4213
        %4273 = vst.msk [vmem:[#allocation2 + $0x144] sm:$0x1] %vm3228, %v4214
        %4274 = vst.msk [vmem:[#allocation2 + $0x154] sm:$0x1] %vm3228, %v4215
        %4275 = vst.msk [vmem:[#allocation2 + $0x164] sm:$0x1] %vm3228, %v4216
        %4276 = vst.msk [vmem:[#allocation2 + $0x174] sm:$0x1] %vm3228, %v4217
        %4277 = vst.msk [vmem:[#allocation2 + $0x184] sm:$0x1] %vm3228, %v4180
        %4278 = vst.msk [vmem:[#allocation2 + $0x194] sm:$0x1] %vm3228, %v4218
        %4279 = vst.msk [vmem:[#allocation2 + $0x1a4] sm:$0x1] %vm3228, %v4219
        %4280 = vst.msk [vmem:[#allocation2 + $0x1b4] sm:$0x1] %vm3228, %v4220
        %4281 = vst.msk [vmem:[#allocation2 + $0x1c4] sm:$0x1] %vm3228, %v4221
        %4282 = vst.msk [vmem:[#allocation2 + $0x1d4] sm:$0x1] %vm3228, %v4222
        %4283 = vst.msk [vmem:[#allocation2 + $0x1e4] sm:$0x1] %vm3228, %v4223
        %4284 = vst.msk [vmem:[#allocation2 + $0x1f4] sm:$0x1] %vm3228, %v4224
        %4287 = vrot.lane.b32.xlu0 %v3112, 96
        %v4288 = vpop.permute.xlu0 %4287
        %4289 = vrot.lane.b32.xlu0 %v3113, 96
        %v4290 = vpop.permute.xlu0 %4289
        %4293 = vxpose.xlu0.b32.start [1/16] %v4288, 128
        %4294 = vxpose.xlu0.b32.cont [2/16] %v4290, 128
        %4295 = vxpose.xlu0.b32.cont [3/16] 0.0, 128
        %4296 = vxpose.xlu0.b32.cont [4/16] 0.0, 128
        %4297 = vxpose.xlu0.b32.cont [5/16] 0.0, 128
        %4298 = vxpose.xlu0.b32.cont [6/16] 0.0, 128
        %4299 = vxpose.xlu0.b32.cont [7/16] 0.0, 128
        %4300 = vxpose.xlu0.b32.cont [8/16] 0.0, 128
        %4301 = vxpose.xlu0.b32.cont [9/16] 0.0, 128
        %4302 = vxpose.xlu0.b32.cont [10/16] 0.0, 128
        %4303 = vxpose.xlu0.b32.cont [11/16] 0.0, 128
        %4304 = vxpose.xlu0.b32.cont [12/16] 0.0, 128
        %4305 = vxpose.xlu0.b32.cont [13/16] 0.0, 128
        %4306 = vxpose.xlu0.b32.cont [14/16] 0.0, 128
        %4307 = vxpose.xlu0.b32.cont [15/16] 0.0, 128
        %4308 = vxpose.xlu0.b32.end [16/16] 0.0, 128
        %v4309 = vpop.trf.xlu0
        %v4310 = vpop.trf.xlu0
        %v4311 = vpop.trf.xlu0
        %v4312 = vpop.trf.xlu0
        %v4313 = vpop.trf.xlu0
        %v4314 = vpop.trf.xlu0
        %v4315 = vpop.trf.xlu0
        %v4316 = vpop.trf.xlu0
        %v4317 = vpop.trf.xlu0
        %v4318 = vpop.trf.xlu0
        %v4319 = vpop.trf.xlu0
        %v4320 = vpop.trf.xlu0
        %v4321 = vpop.trf.xlu0
        %v4322 = vpop.trf.xlu0
        %v4323 = vpop.trf.xlu0
        %v4324 = vpop.trf.xlu0
        %v4329 = vrot.slane %v4309, 1
        %v4330 = vrot.slane %v4309, 2
        %v4331 = vrot.slane %v4309, 3
        %v4332 = vrot.slane %v4309, 4
        %v4333 = vrot.slane %v4309, 5
        %v4334 = vrot.slane %v4309, 6
        %v4335 = vrot.slane %v4309, 7
        %v4336 = vrot.slane %v4310, 1
        %v4337 = vrot.slane %v4310, 2
        %v4338 = vrot.slane %v4310, 3
        %v4339 = vrot.slane %v4310, 4
        %v4340 = vrot.slane %v4310, 5
        %v4341 = vrot.slane %v4310, 6
        %v4342 = vrot.slane %v4310, 7
        %v4343 = vrot.slane %v4311, 1
        %v4344 = vrot.slane %v4311, 2
        %v4345 = vrot.slane %v4311, 3
        %v4346 = vrot.slane %v4311, 4
        %v4347 = vrot.slane %v4311, 5
        %v4348 = vrot.slane %v4311, 6
        %v4349 = vrot.slane %v4311, 7
        %v4350 = vrot.slane %v4312, 1
        %v4351 = vrot.slane %v4312, 2
        %v4352 = vrot.slane %v4312, 3
        %v4353 = vrot.slane %v4312, 4
        %v4354 = vrot.slane %v4312, 5
        %v4355 = vrot.slane %v4312, 6
        %v4356 = vrot.slane %v4312, 7
        %4385 = vst.msk [vmem:[#allocation3 + $0x4] sm:$0x1] %vm3228, %v4309
        %4386 = vst.msk [vmem:[#allocation3 + $0x14] sm:$0x1] %vm3228, %v4329
        %4387 = vst.msk [vmem:[#allocation3 + $0x24] sm:$0x1] %vm3228, %v4330
        %4388 = vst.msk [vmem:[#allocation3 + $0x34] sm:$0x1] %vm3228, %v4331
        %4389 = vst.msk [vmem:[#allocation3 + $0x44] sm:$0x1] %vm3228, %v4332
        %4390 = vst.msk [vmem:[#allocation3 + $0x54] sm:$0x1] %vm3228, %v4333
        %4391 = vst.msk [vmem:[#allocation3 + $0x64] sm:$0x1] %vm3228, %v4334
        %4392 = vst.msk [vmem:[#allocation3 + $0x74] sm:$0x1] %vm3228, %v4335
        %4393 = vst.msk [vmem:[#allocation3 + $0x84] sm:$0x1] %vm3228, %v4310
        %4394 = vst.msk [vmem:[#allocation3 + $0x94] sm:$0x1] %vm3228, %v4336
        %4395 = vst.msk [vmem:[#allocation3 + $0xa4] sm:$0x1] %vm3228, %v4337
        %4396 = vst.msk [vmem:[#allocation3 + $0xb4] sm:$0x1] %vm3228, %v4338
        %4397 = vst.msk [vmem:[#allocation3 + $0xc4] sm:$0x1] %vm3228, %v4339
        %4398 = vst.msk [vmem:[#allocation3 + $0xd4] sm:$0x1] %vm3228, %v4340
        %4399 = vst.msk [vmem:[#allocation3 + $0xe4] sm:$0x1] %vm3228, %v4341
        %4400 = vst.msk [vmem:[#allocation3 + $0xf4] sm:$0x1] %vm3228, %v4342
        %4401 = vst.msk [vmem:[#allocation3 + $0x104] sm:$0x1] %vm3228, %v4311
        %4402 = vst.msk [vmem:[#allocation3 + $0x114] sm:$0x1] %vm3228, %v4343
        %4403 = vst.msk [vmem:[#allocation3 + $0x124] sm:$0x1] %vm3228, %v4344
        %4404 = vst.msk [vmem:[#allocation3 + $0x134] sm:$0x1] %vm3228, %v4345
        %4405 = vst.msk [vmem:[#allocation3 + $0x144] sm:$0x1] %vm3228, %v4346
        %4406 = vst.msk [vmem:[#allocation3 + $0x154] sm:$0x1] %vm3228, %v4347
        %4407 = vst.msk [vmem:[#allocation3 + $0x164] sm:$0x1] %vm3228, %v4348
        %4408 = vst.msk [vmem:[#allocation3 + $0x174] sm:$0x1] %vm3228, %v4349
        %4409 = vst.msk [vmem:[#allocation3 + $0x184] sm:$0x1] %vm3228, %v4312
        %4410 = vst.msk [vmem:[#allocation3 + $0x194] sm:$0x1] %vm3228, %v4350
        %4411 = vst.msk [vmem:[#allocation3 + $0x1a4] sm:$0x1] %vm3228, %v4351
        %4412 = vst.msk [vmem:[#allocation3 + $0x1b4] sm:$0x1] %vm3228, %v4352
        %4413 = vst.msk [vmem:[#allocation3 + $0x1c4] sm:$0x1] %vm3228, %v4353
        %4414 = vst.msk [vmem:[#allocation3 + $0x1d4] sm:$0x1] %vm3228, %v4354
        %4415 = vst.msk [vmem:[#allocation3 + $0x1e4] sm:$0x1] %vm3228, %v4355
        %4416 = vst.msk [vmem:[#allocation3 + $0x1f4] sm:$0x1] %vm3228, %v4356
        %4417 = vxpose.xlu0.b32.start [1/16] %v3114, 128
        %4418 = vxpose.xlu0.b32.cont [2/16] %v3115, 128
        %4419 = vxpose.xlu0.b32.cont [3/16] 0.0, 128
        %4420 = vxpose.xlu0.b32.cont [4/16] 0.0, 128
        %4421 = vxpose.xlu0.b32.cont [5/16] 0.0, 128
        %4422 = vxpose.xlu0.b32.cont [6/16] 0.0, 128
        %4423 = vxpose.xlu0.b32.cont [7/16] 0.0, 128
        %4424 = vxpose.xlu0.b32.cont [8/16] 0.0, 128
        %4425 = vxpose.xlu0.b32.cont [9/16] 0.0, 128
        %4426 = vxpose.xlu0.b32.cont [10/16] 0.0, 128
        %4427 = vxpose.xlu0.b32.cont [11/16] 0.0, 128
        %4428 = vxpose.xlu0.b32.cont [12/16] 0.0, 128
        %4429 = vxpose.xlu0.b32.cont [13/16] 0.0, 128
        %4430 = vxpose.xlu0.b32.cont [14/16] 0.0, 128
        %4431 = vxpose.xlu0.b32.cont [15/16] 0.0, 128
        %4432 = vxpose.xlu0.b32.end [16/16] 0.0, 128
        %v4433 = vpop.trf.xlu0
        %v4434 = vpop.trf.xlu0
        %v4435 = vpop.trf.xlu0
        %v4436 = vpop.trf.xlu0
        %v4437 = vpop.trf.xlu0
        %v4438 = vpop.trf.xlu0
        %v4439 = vpop.trf.xlu0
        %v4440 = vpop.trf.xlu0
        %v4441 = vpop.trf.xlu0
        %v4442 = vpop.trf.xlu0
        %v4443 = vpop.trf.xlu0
        %v4444 = vpop.trf.xlu0
        %v4445 = vpop.trf.xlu0
        %v4446 = vpop.trf.xlu0
        %v4447 = vpop.trf.xlu0
        %v4448 = vpop.trf.xlu0
        %v4453 = vrot.slane %v4433, 1
        %v4454 = vrot.slane %v4433, 2
        %v4455 = vrot.slane %v4433, 3
        %v4456 = vrot.slane %v4433, 4
        %v4457 = vrot.slane %v4433, 5
        %v4458 = vrot.slane %v4433, 6
        %v4459 = vrot.slane %v4433, 7
        %v4460 = vrot.slane %v4434, 1
        %v4461 = vrot.slane %v4434, 2
        %v4462 = vrot.slane %v4434, 3
        %v4463 = vrot.slane %v4434, 4
        %v4464 = vrot.slane %v4434, 5
        %v4465 = vrot.slane %v4434, 6
        %v4466 = vrot.slane %v4434, 7
        %v4467 = vrot.slane %v4435, 1
        %v4468 = vrot.slane %v4435, 2
        %v4469 = vrot.slane %v4435, 3
        %v4470 = vrot.slane %v4435, 4
        %v4471 = vrot.slane %v4435, 5
        %v4472 = vrot.slane %v4435, 6
        %v4473 = vrot.slane %v4435, 7
        %v4474 = vrot.slane %v4436, 1
        %v4475 = vrot.slane %v4436, 2
        %v4476 = vrot.slane %v4436, 3
        %v4477 = vrot.slane %v4436, 4
        %v4478 = vrot.slane %v4436, 5
        %v4479 = vrot.slane %v4436, 6
        %v4480 = vrot.slane %v4436, 7
        %4509 = vst.msk [vmem:[#allocation2 + $0x5] sm:$0x1] %vm3228, %v4433
        %4510 = vst.msk [vmem:[#allocation2 + $0x15] sm:$0x1] %vm3228, %v4453
        %4511 = vst.msk [vmem:[#allocation2 + $0x25] sm:$0x1] %vm3228, %v4454
        %4512 = vst.msk [vmem:[#allocation2 + $0x35] sm:$0x1] %vm3228, %v4455
        %4513 = vst.msk [vmem:[#allocation2 + $0x45] sm:$0x1] %vm3228, %v4456
        %4514 = vst.msk [vmem:[#allocation2 + $0x55] sm:$0x1] %vm3228, %v4457
        %4515 = vst.msk [vmem:[#allocation2 + $0x65] sm:$0x1] %vm3228, %v4458
        %4516 = vst.msk [vmem:[#allocation2 + $0x75] sm:$0x1] %vm3228, %v4459
        %4517 = vst.msk [vmem:[#allocation2 + $0x85] sm:$0x1] %vm3228, %v4434
        %4518 = vst.msk [vmem:[#allocation2 + $0x95] sm:$0x1] %vm3228, %v4460
        %4519 = vst.msk [vmem:[#allocation2 + $0xa5] sm:$0x1] %vm3228, %v4461
        %4520 = vst.msk [vmem:[#allocation2 + $0xb5] sm:$0x1] %vm3228, %v4462
        %4521 = vst.msk [vmem:[#allocation2 + $0xc5] sm:$0x1] %vm3228, %v4463
        %4522 = vst.msk [vmem:[#allocation2 + $0xd5] sm:$0x1] %vm3228, %v4464
        %4523 = vst.msk [vmem:[#allocation2 + $0xe5] sm:$0x1] %vm3228, %v4465
        %4524 = vst.msk [vmem:[#allocation2 + $0xf5] sm:$0x1] %vm3228, %v4466
        %4525 = vst.msk [vmem:[#allocation2 + $0x105] sm:$0x1] %vm3228, %v4435
        %4526 = vst.msk [vmem:[#allocation2 + $0x115] sm:$0x1] %vm3228, %v4467
        %4527 = vst.msk [vmem:[#allocation2 + $0x125] sm:$0x1] %vm3228, %v4468
        %4528 = vst.msk [vmem:[#allocation2 + $0x135] sm:$0x1] %vm3228, %v4469
        %4529 = vst.msk [vmem:[#allocation2 + $0x145] sm:$0x1] %vm3228, %v4470
        %4530 = vst.msk [vmem:[#allocation2 + $0x155] sm:$0x1] %vm3228, %v4471
        %4531 = vst.msk [vmem:[#allocation2 + $0x165] sm:$0x1] %vm3228, %v4472
        %4532 = vst.msk [vmem:[#allocation2 + $0x175] sm:$0x1] %vm3228, %v4473
        %4533 = vst.msk [vmem:[#allocation2 + $0x185] sm:$0x1] %vm3228, %v4436
        %4534 = vst.msk [vmem:[#allocation2 + $0x195] sm:$0x1] %vm3228, %v4474
        %4535 = vst.msk [vmem:[#allocation2 + $0x1a5] sm:$0x1] %vm3228, %v4475
        %4536 = vst.msk [vmem:[#allocation2 + $0x1b5] sm:$0x1] %vm3228, %v4476
        %4537 = vst.msk [vmem:[#allocation2 + $0x1c5] sm:$0x1] %vm3228, %v4477
        %4538 = vst.msk [vmem:[#allocation2 + $0x1d5] sm:$0x1] %vm3228, %v4478
        %4539 = vst.msk [vmem:[#allocation2 + $0x1e5] sm:$0x1] %vm3228, %v4479
        %4540 = vst.msk [vmem:[#allocation2 + $0x1f5] sm:$0x1] %vm3228, %v4480
        %4543 = vrot.lane.b32.xlu0 %v3114, 96
        %v4544 = vpop.permute.xlu0 %4543
        %4545 = vrot.lane.b32.xlu0 %v3115, 96
        %v4546 = vpop.permute.xlu0 %4545
        %4549 = vxpose.xlu0.b32.start [1/16] %v4544, 128
        %4550 = vxpose.xlu0.b32.cont [2/16] %v4546, 128
        %4551 = vxpose.xlu0.b32.cont [3/16] 0.0, 128
        %4552 = vxpose.xlu0.b32.cont [4/16] 0.0, 128
        %4553 = vxpose.xlu0.b32.cont [5/16] 0.0, 128
        %4554 = vxpose.xlu0.b32.cont [6/16] 0.0, 128
        %4555 = vxpose.xlu0.b32.cont [7/16] 0.0, 128
        %4556 = vxpose.xlu0.b32.cont [8/16] 0.0, 128
        %4557 = vxpose.xlu0.b32.cont [9/16] 0.0, 128
        %4558 = vxpose.xlu0.b32.cont [10/16] 0.0, 128
        %4559 = vxpose.xlu0.b32.cont [11/16] 0.0, 128
        %4560 = vxpose.xlu0.b32.cont [12/16] 0.0, 128
        %4561 = vxpose.xlu0.b32.cont [13/16] 0.0, 128
        %4562 = vxpose.xlu0.b32.cont [14/16] 0.0, 128
        %4563 = vxpose.xlu0.b32.cont [15/16] 0.0, 128
        %4564 = vxpose.xlu0.b32.end [16/16] 0.0, 128
        %v4565 = vpop.trf.xlu0
        %v4566 = vpop.trf.xlu0
        %v4567 = vpop.trf.xlu0
        %v4568 = vpop.trf.xlu0
        %v4569 = vpop.trf.xlu0
        %v4570 = vpop.trf.xlu0
        %v4571 = vpop.trf.xlu0
        %v4572 = vpop.trf.xlu0
        %v4573 = vpop.trf.xlu0
        %v4574 = vpop.trf.xlu0
        %v4575 = vpop.trf.xlu0
        %v4576 = vpop.trf.xlu0
        %v4577 = vpop.trf.xlu0
        %v4578 = vpop.trf.xlu0
        %v4579 = vpop.trf.xlu0
        %v4580 = vpop.trf.xlu0
        %v4585 = vrot.slane %v4565, 1
        %v4586 = vrot.slane %v4565, 2
        %v4587 = vrot.slane %v4565, 3
        %v4588 = vrot.slane %v4565, 4
        %v4589 = vrot.slane %v4565, 5
        %v4590 = vrot.slane %v4565, 6
        %v4591 = vrot.slane %v4565, 7
        %v4592 = vrot.slane %v4566, 1
        %v4593 = vrot.slane %v4566, 2
        %v4594 = vrot.slane %v4566, 3
        %v4595 = vrot.slane %v4566, 4
        %v4596 = vrot.slane %v4566, 5
        %v4597 = vrot.slane %v4566, 6
        %v4598 = vrot.slane %v4566, 7
        %v4599 = vrot.slane %v4567, 1
        %v4600 = vrot.slane %v4567, 2
        %v4601 = vrot.slane %v4567, 3
        %v4602 = vrot.slane %v4567, 4
        %v4603 = vrot.slane %v4567, 5
        %v4604 = vrot.slane %v4567, 6
        %v4605 = vrot.slane %v4567, 7
        %v4606 = vrot.slane %v4568, 1
        %v4607 = vrot.slane %v4568, 2
        %v4608 = vrot.slane %v4568, 3
        %v4609 = vrot.slane %v4568, 4
        %v4610 = vrot.slane %v4568, 5
        %v4611 = vrot.slane %v4568, 6
        %v4612 = vrot.slane %v4568, 7
        %4641 = vst.msk [vmem:[#allocation3 + $0x5] sm:$0x1] %vm3228, %v4565
        %4642 = vst.msk [vmem:[#allocation3 + $0x15] sm:$0x1] %vm3228, %v4585
        %4643 = vst.msk [vmem:[#allocation3 + $0x25] sm:$0x1] %vm3228, %v4586
        %4644 = vst.msk [vmem:[#allocation3 + $0x35] sm:$0x1] %vm3228, %v4587
        %4645 = vst.msk [vmem:[#allocation3 + $0x45] sm:$0x1] %vm3228, %v4588
        %4646 = vst.msk [vmem:[#allocation3 + $0x55] sm:$0x1] %vm3228, %v4589
        %4647 = vst.msk [vmem:[#allocation3 + $0x65] sm:$0x1] %vm3228, %v4590
        %4648 = vst.msk [vmem:[#allocation3 + $0x75] sm:$0x1] %vm3228, %v4591
        %4649 = vst.msk [vmem:[#allocation3 + $0x85] sm:$0x1] %vm3228, %v4566
        %4650 = vst.msk [vmem:[#allocation3 + $0x95] sm:$0x1] %vm3228, %v4592
        %4651 = vst.msk [vmem:[#allocation3 + $0xa5] sm:$0x1] %vm3228, %v4593
        %4652 = vst.msk [vmem:[#allocation3 + $0xb5] sm:$0x1] %vm3228, %v4594
        %4653 = vst.msk [vmem:[#allocation3 + $0xc5] sm:$0x1] %vm3228, %v4595
        %4654 = vst.msk [vmem:[#allocation3 + $0xd5] sm:$0x1] %vm3228, %v4596
        %4655 = vst.msk [vmem:[#allocation3 + $0xe5] sm:$0x1] %vm3228, %v4597
        %4656 = vst.msk [vmem:[#allocation3 + $0xf5] sm:$0x1] %vm3228, %v4598
        %4657 = vst.msk [vmem:[#allocation3 + $0x105] sm:$0x1] %vm3228, %v4567
        %4658 = vst.msk [vmem:[#allocation3 + $0x115] sm:$0x1] %vm3228, %v4599
        %4659 = vst.msk [vmem:[#allocation3 + $0x125] sm:$0x1] %vm3228, %v4600
        %4660 = vst.msk [vmem:[#allocation3 + $0x135] sm:$0x1] %vm3228, %v4601
        %4661 = vst.msk [vmem:[#allocation3 + $0x145] sm:$0x1] %vm3228, %v4602
        %4662 = vst.msk [vmem:[#allocation3 + $0x155] sm:$0x1] %vm3228, %v4603
        %4663 = vst.msk [vmem:[#allocation3 + $0x165] sm:$0x1] %vm3228, %v4604
        %4664 = vst.msk [vmem:[#allocation3 + $0x175] sm:$0x1] %vm3228, %v4605
        %4665 = vst.msk [vmem:[#allocation3 + $0x185] sm:$0x1] %vm3228, %v4568
        %4666 = vst.msk [vmem:[#allocation3 + $0x195] sm:$0x1] %vm3228, %v4606
        %4667 = vst.msk [vmem:[#allocation3 + $0x1a5] sm:$0x1] %vm3228, %v4607
        %4668 = vst.msk [vmem:[#allocation3 + $0x1b5] sm:$0x1] %vm3228, %v4608
        %4669 = vst.msk [vmem:[#allocation3 + $0x1c5] sm:$0x1] %vm3228, %v4609
        %4670 = vst.msk [vmem:[#allocation3 + $0x1d5] sm:$0x1] %vm3228, %v4610
        %4671 = vst.msk [vmem:[#allocation3 + $0x1e5] sm:$0x1] %vm3228, %v4611
        %4672 = vst.msk [vmem:[#allocation3 + $0x1f5] sm:$0x1] %vm3228, %v4612
        %4673 = vxpose.xlu0.b32.start [1/16] %v3116, 128
        %4674 = vxpose.xlu0.b32.cont [2/16] %v3117, 128
        %4675 = vxpose.xlu0.b32.cont [3/16] 0.0, 128
        %4676 = vxpose.xlu0.b32.cont [4/16] 0.0, 128
        %4677 = vxpose.xlu0.b32.cont [5/16] 0.0, 128
        %4678 = vxpose.xlu0.b32.cont [6/16] 0.0, 128
        %4679 = vxpose.xlu0.b32.cont [7/16] 0.0, 128
        %4680 = vxpose.xlu0.b32.cont [8/16] 0.0, 128
        %4681 = vxpose.xlu0.b32.cont [9/16] 0.0, 128
        %4682 = vxpose.xlu0.b32.cont [10/16] 0.0, 128
        %4683 = vxpose.xlu0.b32.cont [11/16] 0.0, 128
        %4684 = vxpose.xlu0.b32.cont [12/16] 0.0, 128
        %4685 = vxpose.xlu0.b32.cont [13/16] 0.0, 128
        %4686 = vxpose.xlu0.b32.cont [14/16] 0.0, 128
        %4687 = vxpose.xlu0.b32.cont [15/16] 0.0, 128
        %4688 = vxpose.xlu0.b32.end [16/16] 0.0, 128
        %v4689 = vpop.trf.xlu0
        %v4690 = vpop.trf.xlu0
        %v4691 = vpop.trf.xlu0
        %v4692 = vpop.trf.xlu0
        %v4693 = vpop.trf.xlu0
        %v4694 = vpop.trf.xlu0
        %v4695 = vpop.trf.xlu0
        %v4696 = vpop.trf.xlu0
        %v4697 = vpop.trf.xlu0
        %v4698 = vpop.trf.xlu0
        %v4699 = vpop.trf.xlu0
        %v4700 = vpop.trf.xlu0
        %v4701 = vpop.trf.xlu0
        %v4702 = vpop.trf.xlu0
        %v4703 = vpop.trf.xlu0
        %v4704 = vpop.trf.xlu0
        %v4709 = vrot.slane %v4689, 1
        %v4710 = vrot.slane %v4689, 2
        %v4711 = vrot.slane %v4689, 3
        %v4712 = vrot.slane %v4689, 4
        %v4713 = vrot.slane %v4689, 5
        %v4714 = vrot.slane %v4689, 6
        %v4715 = vrot.slane %v4689, 7
        %v4716 = vrot.slane %v4690, 1
        %v4717 = vrot.slane %v4690, 2
        %v4718 = vrot.slane %v4690, 3
        %v4719 = vrot.slane %v4690, 4
        %v4720 = vrot.slane %v4690, 5
        %v4721 = vrot.slane %v4690, 6
        %v4722 = vrot.slane %v4690, 7
        %v4723 = vrot.slane %v4691, 1
        %v4724 = vrot.slane %v4691, 2
        %v4725 = vrot.slane %v4691, 3
        %v4726 = vrot.slane %v4691, 4
        %v4727 = vrot.slane %v4691, 5
        %v4728 = vrot.slane %v4691, 6
        %v4729 = vrot.slane %v4691, 7
        %v4730 = vrot.slane %v4692, 1
        %v4731 = vrot.slane %v4692, 2
        %v4732 = vrot.slane %v4692, 3
        %v4733 = vrot.slane %v4692, 4
        %v4734 = vrot.slane %v4692, 5
        %v4735 = vrot.slane %v4692, 6
        %v4736 = vrot.slane %v4692, 7
        %4765 = vst.msk [vmem:[#allocation2 + $0x6] sm:$0x1] %vm3228, %v4689
        %4766 = vst.msk [vmem:[#allocation2 + $0x16] sm:$0x1] %vm3228, %v4709
        %4767 = vst.msk [vmem:[#allocation2 + $0x26] sm:$0x1] %vm3228, %v4710
        %4768 = vst.msk [vmem:[#allocation2 + $0x36] sm:$0x1] %vm3228, %v4711
        %4769 = vst.msk [vmem:[#allocation2 + $0x46] sm:$0x1] %vm3228, %v4712
        %4770 = vst.msk [vmem:[#allocation2 + $0x56] sm:$0x1] %vm3228, %v4713
        %4771 = vst.msk [vmem:[#allocation2 + $0x66] sm:$0x1] %vm3228, %v4714
        %4772 = vst.msk [vmem:[#allocation2 + $0x76] sm:$0x1] %vm3228, %v4715
        %4773 = vst.msk [vmem:[#allocation2 + $0x86] sm:$0x1] %vm3228, %v4690
        %4774 = vst.msk [vmem:[#allocation2 + $0x96] sm:$0x1] %vm3228, %v4716
        %4775 = vst.msk [vmem:[#allocation2 + $0xa6] sm:$0x1] %vm3228, %v4717
        %4776 = vst.msk [vmem:[#allocation2 + $0xb6] sm:$0x1] %vm3228, %v4718
        %4777 = vst.msk [vmem:[#allocation2 + $0xc6] sm:$0x1] %vm3228, %v4719
        %4778 = vst.msk [vmem:[#allocation2 + $0xd6] sm:$0x1] %vm3228, %v4720
        %4779 = vst.msk [vmem:[#allocation2 + $0xe6] sm:$0x1] %vm3228, %v4721
        %4780 = vst.msk [vmem:[#allocation2 + $0xf6] sm:$0x1] %vm3228, %v4722
        %4781 = vst.msk [vmem:[#allocation2 + $0x106] sm:$0x1] %vm3228, %v4691
        %4782 = vst.msk [vmem:[#allocation2 + $0x116] sm:$0x1] %vm3228, %v4723
        %4783 = vst.msk [vmem:[#allocation2 + $0x126] sm:$0x1] %vm3228, %v4724
        %4784 = vst.msk [vmem:[#allocation2 + $0x136] sm:$0x1] %vm3228, %v4725
        %4785 = vst.msk [vmem:[#allocation2 + $0x146] sm:$0x1] %vm3228, %v4726
        %4786 = vst.msk [vmem:[#allocation2 + $0x156] sm:$0x1] %vm3228, %v4727
        %4787 = vst.msk [vmem:[#allocation2 + $0x166] sm:$0x1] %vm3228, %v4728
        %4788 = vst.msk [vmem:[#allocation2 + $0x176] sm:$0x1] %vm3228, %v4729
        %4789 = vst.msk [vmem:[#allocation2 + $0x186] sm:$0x1] %vm3228, %v4692
        %4790 = vst.msk [vmem:[#allocation2 + $0x196] sm:$0x1] %vm3228, %v4730
        %4791 = vst.msk [vmem:[#allocation2 + $0x1a6] sm:$0x1] %vm3228, %v4731
        %4792 = vst.msk [vmem:[#allocation2 + $0x1b6] sm:$0x1] %vm3228, %v4732
        %4793 = vst.msk [vmem:[#allocation2 + $0x1c6] sm:$0x1] %vm3228, %v4733
        %4794 = vst.msk [vmem:[#allocation2 + $0x1d6] sm:$0x1] %vm3228, %v4734
        %4795 = vst.msk [vmem:[#allocation2 + $0x1e6] sm:$0x1] %vm3228, %v4735
        %4796 = vst.msk [vmem:[#allocation2 + $0x1f6] sm:$0x1] %vm3228, %v4736
        %4799 = vrot.lane.b32.xlu0 %v3116, 96
        %v4800 = vpop.permute.xlu0 %4799
        %4801 = vrot.lane.b32.xlu0 %v3117, 96
        %v4802 = vpop.permute.xlu0 %4801
        %4805 = vxpose.xlu0.b32.start [1/16] %v4800, 128
        %4806 = vxpose.xlu0.b32.cont [2/16] %v4802, 128
        %4807 = vxpose.xlu0.b32.cont [3/16] 0.0, 128
        %4808 = vxpose.xlu0.b32.cont [4/16] 0.0, 128
        %4809 = vxpose.xlu0.b32.cont [5/16] 0.0, 128
        %4810 = vxpose.xlu0.b32.cont [6/16] 0.0, 128
        %4811 = vxpose.xlu0.b32.cont [7/16] 0.0, 128
        %4812 = vxpose.xlu0.b32.cont [8/16] 0.0, 128
        %4813 = vxpose.xlu0.b32.cont [9/16] 0.0, 128
        %4814 = vxpose.xlu0.b32.cont [10/16] 0.0, 128
        %4815 = vxpose.xlu0.b32.cont [11/16] 0.0, 128
        %4816 = vxpose.xlu0.b32.cont [12/16] 0.0, 128
        %4817 = vxpose.xlu0.b32.cont [13/16] 0.0, 128
        %4818 = vxpose.xlu0.b32.cont [14/16] 0.0, 128
        %4819 = vxpose.xlu0.b32.cont [15/16] 0.0, 128
        %4820 = vxpose.xlu0.b32.end [16/16] 0.0, 128
        %v4821 = vpop.trf.xlu0
        %v4822 = vpop.trf.xlu0
        %v4823 = vpop.trf.xlu0
        %v4824 = vpop.trf.xlu0
        %v4825 = vpop.trf.xlu0
        %v4826 = vpop.trf.xlu0
        %v4827 = vpop.trf.xlu0
        %v4828 = vpop.trf.xlu0
        %v4829 = vpop.trf.xlu0
        %v4830 = vpop.trf.xlu0
        %v4831 = vpop.trf.xlu0
        %v4832 = vpop.trf.xlu0
        %v4833 = vpop.trf.xlu0
        %v4834 = vpop.trf.xlu0
        %v4835 = vpop.trf.xlu0
        %v4836 = vpop.trf.xlu0
        %v4841 = vrot.slane %v4821, 1
        %v4842 = vrot.slane %v4821, 2
        %v4843 = vrot.slane %v4821, 3
        %v4844 = vrot.slane %v4821, 4
        %v4845 = vrot.slane %v4821, 5
        %v4846 = vrot.slane %v4821, 6
        %v4847 = vrot.slane %v4821, 7
        %v4848 = vrot.slane %v4822, 1
        %v4849 = vrot.slane %v4822, 2
        %v4850 = vrot.slane %v4822, 3
        %v4851 = vrot.slane %v4822, 4
        %v4852 = vrot.slane %v4822, 5
        %v4853 = vrot.slane %v4822, 6
        %v4854 = vrot.slane %v4822, 7
        %v4855 = vrot.slane %v4823, 1
        %v4856 = vrot.slane %v4823, 2
        %v4857 = vrot.slane %v4823, 3
        %v4858 = vrot.slane %v4823, 4
        %v4859 = vrot.slane %v4823, 5
        %v4860 = vrot.slane %v4823, 6
        %v4861 = vrot.slane %v4823, 7
        %v4862 = vrot.slane %v4824, 1
        %v4863 = vrot.slane %v4824, 2
        %v4864 = vrot.slane %v4824, 3
        %v4865 = vrot.slane %v4824, 4
        %v4866 = vrot.slane %v4824, 5
        %v4867 = vrot.slane %v4824, 6
        %v4868 = vrot.slane %v4824, 7
        %4897 = vst.msk [vmem:[#allocation3 + $0x6] sm:$0x1] %vm3228, %v4821
        %4898 = vst.msk [vmem:[#allocation3 + $0x16] sm:$0x1] %vm3228, %v4841
        %4899 = vst.msk [vmem:[#allocation3 + $0x26] sm:$0x1] %vm3228, %v4842
        %4900 = vst.msk [vmem:[#allocation3 + $0x36] sm:$0x1] %vm3228, %v4843
        %4901 = vst.msk [vmem:[#allocation3 + $0x46] sm:$0x1] %vm3228, %v4844
        %4902 = vst.msk [vmem:[#allocation3 + $0x56] sm:$0x1] %vm3228, %v4845
        %4903 = vst.msk [vmem:[#allocation3 + $0x66] sm:$0x1] %vm3228, %v4846
        %4904 = vst.msk [vmem:[#allocation3 + $0x76] sm:$0x1] %vm3228, %v4847
        %4905 = vst.msk [vmem:[#allocation3 + $0x86] sm:$0x1] %vm3228, %v4822
        %4906 = vst.msk [vmem:[#allocation3 + $0x96] sm:$0x1] %vm3228, %v4848
        %4907 = vst.msk [vmem:[#allocation3 + $0xa6] sm:$0x1] %vm3228, %v4849
        %4908 = vst.msk [vmem:[#allocation3 + $0xb6] sm:$0x1] %vm3228, %v4850
        %4909 = vst.msk [vmem:[#allocation3 + $0xc6] sm:$0x1] %vm3228, %v4851
        %4910 = vst.msk [vmem:[#allocation3 + $0xd6] sm:$0x1] %vm3228, %v4852
        %4911 = vst.msk [vmem:[#allocation3 + $0xe6] sm:$0x1] %vm3228, %v4853
        %4912 = vst.msk [vmem:[#allocation3 + $0xf6] sm:$0x1] %vm3228, %v4854
        %4913 = vst.msk [vmem:[#allocation3 + $0x106] sm:$0x1] %vm3228, %v4823
        %4914 = vst.msk [vmem:[#allocation3 + $0x116] sm:$0x1] %vm3228, %v4855
        %4915 = vst.msk [vmem:[#allocation3 + $0x126] sm:$0x1] %vm3228, %v4856
        %4916 = vst.msk [vmem:[#allocation3 + $0x136] sm:$0x1] %vm3228, %v4857
        %4917 = vst.msk [vmem:[#allocation3 + $0x146] sm:$0x1] %vm3228, %v4858
        %4918 = vst.msk [vmem:[#allocation3 + $0x156] sm:$0x1] %vm3228, %v4859
        %4919 = vst.msk [vmem:[#allocation3 + $0x166] sm:$0x1] %vm3228, %v4860
        %4920 = vst.msk [vmem:[#allocation3 + $0x176] sm:$0x1] %vm3228, %v4861
        %4921 = vst.msk [vmem:[#allocation3 + $0x186] sm:$0x1] %vm3228, %v4824
        %4922 = vst.msk [vmem:[#allocation3 + $0x196] sm:$0x1] %vm3228, %v4862
        %4923 = vst.msk [vmem:[#allocation3 + $0x1a6] sm:$0x1] %vm3228, %v4863
        %4924 = vst.msk [vmem:[#allocation3 + $0x1b6] sm:$0x1] %vm3228, %v4864
        %4925 = vst.msk [vmem:[#allocation3 + $0x1c6] sm:$0x1] %vm3228, %v4865
        %4926 = vst.msk [vmem:[#allocation3 + $0x1d6] sm:$0x1] %vm3228, %v4866
        %4927 = vst.msk [vmem:[#allocation3 + $0x1e6] sm:$0x1] %vm3228, %v4867
        %4928 = vst.msk [vmem:[#allocation3 + $0x1f6] sm:$0x1] %vm3228, %v4868
        %4929 = vxpose.xlu0.b32.start [1/16] %v3118, 128
        %4930 = vxpose.xlu0.b32.cont [2/16] %v3119, 128
        %4931 = vxpose.xlu0.b32.cont [3/16] 0.0, 128
        %4932 = vxpose.xlu0.b32.cont [4/16] 0.0, 128
        %4933 = vxpose.xlu0.b32.cont [5/16] 0.0, 128
        %4934 = vxpose.xlu0.b32.cont [6/16] 0.0, 128
        %4935 = vxpose.xlu0.b32.cont [7/16] 0.0, 128
        %4936 = vxpose.xlu0.b32.cont [8/16] 0.0, 128
        %4937 = vxpose.xlu0.b32.cont [9/16] 0.0, 128
        %4938 = vxpose.xlu0.b32.cont [10/16] 0.0, 128
        %4939 = vxpose.xlu0.b32.cont [11/16] 0.0, 128
        %4940 = vxpose.xlu0.b32.cont [12/16] 0.0, 128
        %4941 = vxpose.xlu0.b32.cont [13/16] 0.0, 128
        %4942 = vxpose.xlu0.b32.cont [14/16] 0.0, 128
        %4943 = vxpose.xlu0.b32.cont [15/16] 0.0, 128
        %4944 = vxpose.xlu0.b32.end [16/16] 0.0, 128
        %v4945 = vpop.trf.xlu0
        %v4946 = vpop.trf.xlu0
        %v4947 = vpop.trf.xlu0
        %v4948 = vpop.trf.xlu0
        %v4949 = vpop.trf.xlu0
        %v4950 = vpop.trf.xlu0
        %v4951 = vpop.trf.xlu0
        %v4952 = vpop.trf.xlu0
        %v4953 = vpop.trf.xlu0
        %v4954 = vpop.trf.xlu0
        %v4955 = vpop.trf.xlu0
        %v4956 = vpop.trf.xlu0
        %v4957 = vpop.trf.xlu0
        %v4958 = vpop.trf.xlu0
        %v4959 = vpop.trf.xlu0
        %v4960 = vpop.trf.xlu0
        %v4965 = vrot.slane %v4945, 1
        %v4966 = vrot.slane %v4945, 2
        %v4967 = vrot.slane %v4945, 3
        %v4968 = vrot.slane %v4945, 4
        %v4969 = vrot.slane %v4945, 5
        %v4970 = vrot.slane %v4945, 6
        %v4971 = vrot.slane %v4945, 7
        %v4972 = vrot.slane %v4946, 1
        %v4973 = vrot.slane %v4946, 2
        %v4974 = vrot.slane %v4946, 3
        %v4975 = vrot.slane %v4946, 4
        %v4976 = vrot.slane %v4946, 5
        %v4977 = vrot.slane %v4946, 6
        %v4978 = vrot.slane %v4946, 7
        %v4979 = vrot.slane %v4947, 1
        %v4980 = vrot.slane %v4947, 2
        %v4981 = vrot.slane %v4947, 3
        %v4982 = vrot.slane %v4947, 4
        %v4983 = vrot.slane %v4947, 5
        %v4984 = vrot.slane %v4947, 6
        %v4985 = vrot.slane %v4947, 7
        %v4986 = vrot.slane %v4948, 1
        %v4987 = vrot.slane %v4948, 2
        %v4988 = vrot.slane %v4948, 3
        %v4989 = vrot.slane %v4948, 4
        %v4990 = vrot.slane %v4948, 5
        %v4991 = vrot.slane %v4948, 6
        %v4992 = vrot.slane %v4948, 7
        %5021 = vst.msk [vmem:[#allocation2 + $0x7] sm:$0x1] %vm3228, %v4945
        %5022 = vst.msk [vmem:[#allocation2 + $0x17] sm:$0x1] %vm3228, %v4965
        %5023 = vst.msk [vmem:[#allocation2 + $0x27] sm:$0x1] %vm3228, %v4966
        %5024 = vst.msk [vmem:[#allocation2 + $0x37] sm:$0x1] %vm3228, %v4967
        %5025 = vst.msk [vmem:[#allocation2 + $0x47] sm:$0x1] %vm3228, %v4968
        %5026 = vst.msk [vmem:[#allocation2 + $0x57] sm:$0x1] %vm3228, %v4969
        %5027 = vst.msk [vmem:[#allocation2 + $0x67] sm:$0x1] %vm3228, %v4970
        %5028 = vst.msk [vmem:[#allocation2 + $0x77] sm:$0x1] %vm3228, %v4971
        %5029 = vst.msk [vmem:[#allocation2 + $0x87] sm:$0x1] %vm3228, %v4946
        %5030 = vst.msk [vmem:[#allocation2 + $0x97] sm:$0x1] %vm3228, %v4972
        %5031 = vst.msk [vmem:[#allocation2 + $0xa7] sm:$0x1] %vm3228, %v4973
        %5032 = vst.msk [vmem:[#allocation2 + $0xb7] sm:$0x1] %vm3228, %v4974
        %5033 = vst.msk [vmem:[#allocation2 + $0xc7] sm:$0x1] %vm3228, %v4975
        %5034 = vst.msk [vmem:[#allocation2 + $0xd7] sm:$0x1] %vm3228, %v4976
        %5035 = vst.msk [vmem:[#allocation2 + $0xe7] sm:$0x1] %vm3228, %v4977
        %5036 = vst.msk [vmem:[#allocation2 + $0xf7] sm:$0x1] %vm3228, %v4978
        %5037 = vst.msk [vmem:[#allocation2 + $0x107] sm:$0x1] %vm3228, %v4947
        %5038 = vst.msk [vmem:[#allocation2 + $0x117] sm:$0x1] %vm3228, %v4979
        %5039 = vst.msk [vmem:[#allocation2 + $0x127] sm:$0x1] %vm3228, %v4980
        %5040 = vst.msk [vmem:[#allocation2 + $0x137] sm:$0x1] %vm3228, %v4981
        %5041 = vst.msk [vmem:[#allocation2 + $0x147] sm:$0x1] %vm3228, %v4982
        %5042 = vst.msk [vmem:[#allocation2 + $0x157] sm:$0x1] %vm3228, %v4983
        %5043 = vst.msk [vmem:[#allocation2 + $0x167] sm:$0x1] %vm3228, %v4984
        %5044 = vst.msk [vmem:[#allocation2 + $0x177] sm:$0x1] %vm3228, %v4985
        %5045 = vst.msk [vmem:[#allocation2 + $0x187] sm:$0x1] %vm3228, %v4948
        %5046 = vst.msk [vmem:[#allocation2 + $0x197] sm:$0x1] %vm3228, %v4986
        %5047 = vst.msk [vmem:[#allocation2 + $0x1a7] sm:$0x1] %vm3228, %v4987
        %5048 = vst.msk [vmem:[#allocation2 + $0x1b7] sm:$0x1] %vm3228, %v4988
        %5049 = vst.msk [vmem:[#allocation2 + $0x1c7] sm:$0x1] %vm3228, %v4989
        %5050 = vst.msk [vmem:[#allocation2 + $0x1d7] sm:$0x1] %vm3228, %v4990
        %5051 = vst.msk [vmem:[#allocation2 + $0x1e7] sm:$0x1] %vm3228, %v4991
        %5052 = vst.msk [vmem:[#allocation2 + $0x1f7] sm:$0x1] %vm3228, %v4992
        %5055 = vrot.lane.b32.xlu0 %v3118, 96
        %v5056 = vpop.permute.xlu0 %5055
        %5057 = vrot.lane.b32.xlu0 %v3119, 96
        %v5058 = vpop.permute.xlu0 %5057
        %5061 = vxpose.xlu0.b32.start [1/16] %v5056, 128
        %5062 = vxpose.xlu0.b32.cont [2/16] %v5058, 128
        %5063 = vxpose.xlu0.b32.cont [3/16] 0.0, 128
        %5064 = vxpose.xlu0.b32.cont [4/16] 0.0, 128
        %5065 = vxpose.xlu0.b32.cont [5/16] 0.0, 128
        %5066 = vxpose.xlu0.b32.cont [6/16] 0.0, 128
        %5067 = vxpose.xlu0.b32.cont [7/16] 0.0, 128
        %5068 = vxpose.xlu0.b32.cont [8/16] 0.0, 128
        %5069 = vxpose.xlu0.b32.cont [9/16] 0.0, 128
        %5070 = vxpose.xlu0.b32.cont [10/16] 0.0, 128
        %5071 = vxpose.xlu0.b32.cont [11/16] 0.0, 128
        %5072 = vxpose.xlu0.b32.cont [12/16] 0.0, 128
        %5073 = vxpose.xlu0.b32.cont [13/16] 0.0, 128
        %5074 = vxpose.xlu0.b32.cont [14/16] 0.0, 128
        %5075 = vxpose.xlu0.b32.cont [15/16] 0.0, 128
        %5076 = vxpose.xlu0.b32.end [16/16] 0.0, 128
        %v5077 = vpop.trf.xlu0
        %v5078 = vpop.trf.xlu0
        %v5079 = vpop.trf.xlu0
        %v5080 = vpop.trf.xlu0
        %v5081 = vpop.trf.xlu0
        %v5082 = vpop.trf.xlu0
        %v5083 = vpop.trf.xlu0
        %v5084 = vpop.trf.xlu0
        %v5085 = vpop.trf.xlu0
        %v5086 = vpop.trf.xlu0
        %v5087 = vpop.trf.xlu0
        %v5088 = vpop.trf.xlu0
        %v5089 = vpop.trf.xlu0
        %v5090 = vpop.trf.xlu0
        %v5091 = vpop.trf.xlu0
        %v5092 = vpop.trf.xlu0
        %v5097 = vrot.slane %v5077, 1
        %v5098 = vrot.slane %v5077, 2
        %v5099 = vrot.slane %v5077, 3
        %v5100 = vrot.slane %v5077, 4
        %v5101 = vrot.slane %v5077, 5
        %v5102 = vrot.slane %v5077, 6
        %v5103 = vrot.slane %v5077, 7
        %v5104 = vrot.slane %v5078, 1
        %v5105 = vrot.slane %v5078, 2
        %v5106 = vrot.slane %v5078, 3
        %v5107 = vrot.slane %v5078, 4
        %v5108 = vrot.slane %v5078, 5
        %v5109 = vrot.slane %v5078, 6
        %v5110 = vrot.slane %v5078, 7
        %v5111 = vrot.slane %v5079, 1
        %v5112 = vrot.slane %v5079, 2
        %v5113 = vrot.slane %v5079, 3
        %v5114 = vrot.slane %v5079, 4
        %v5115 = vrot.slane %v5079, 5
        %v5116 = vrot.slane %v5079, 6
        %v5117 = vrot.slane %v5079, 7
        %v5118 = vrot.slane %v5080, 1
        %v5119 = vrot.slane %v5080, 2
        %v5120 = vrot.slane %v5080, 3
        %v5121 = vrot.slane %v5080, 4
        %v5122 = vrot.slane %v5080, 5
        %v5123 = vrot.slane %v5080, 6
        %v5124 = vrot.slane %v5080, 7
        %5153 = vst.msk [vmem:[#allocation3 + $0x7] sm:$0x1] %vm3228, %v5077
        %5154 = vst.msk [vmem:[#allocation3 + $0x17] sm:$0x1] %vm3228, %v5097
        %5155 = vst.msk [vmem:[#allocation3 + $0x27] sm:$0x1] %vm3228, %v5098
        %5156 = vst.msk [vmem:[#allocation3 + $0x37] sm:$0x1] %vm3228, %v5099
        %5157 = vst.msk [vmem:[#allocation3 + $0x47] sm:$0x1] %vm3228, %v5100
        %5158 = vst.msk [vmem:[#allocation3 + $0x57] sm:$0x1] %vm3228, %v5101
        %5159 = vst.msk [vmem:[#allocation3 + $0x67] sm:$0x1] %vm3228, %v5102
        %5160 = vst.msk [vmem:[#allocation3 + $0x77] sm:$0x1] %vm3228, %v5103
        %5161 = vst.msk [vmem:[#allocation3 + $0x87] sm:$0x1] %vm3228, %v5078
        %5162 = vst.msk [vmem:[#allocation3 + $0x97] sm:$0x1] %vm3228, %v5104
        %5163 = vst.msk [vmem:[#allocation3 + $0xa7] sm:$0x1] %vm3228, %v5105
        %5164 = vst.msk [vmem:[#allocation3 + $0xb7] sm:$0x1] %vm3228, %v5106
        %5165 = vst.msk [vmem:[#allocation3 + $0xc7] sm:$0x1] %vm3228, %v5107
        %5166 = vst.msk [vmem:[#allocation3 + $0xd7] sm:$0x1] %vm3228, %v5108
        %5167 = vst.msk [vmem:[#allocation3 + $0xe7] sm:$0x1] %vm3228, %v5109
        %5168 = vst.msk [vmem:[#allocation3 + $0xf7] sm:$0x1] %vm3228, %v5110
        %5169 = vst.msk [vmem:[#allocation3 + $0x107] sm:$0x1] %vm3228, %v5079
        %5170 = vst.msk [vmem:[#allocation3 + $0x117] sm:$0x1] %vm3228, %v5111
        %5171 = vst.msk [vmem:[#allocation3 + $0x127] sm:$0x1] %vm3228, %v5112
        %5172 = vst.msk [vmem:[#allocation3 + $0x137] sm:$0x1] %vm3228, %v5113
        %5173 = vst.msk [vmem:[#allocation3 + $0x147] sm:$0x1] %vm3228, %v5114
        %5174 = vst.msk [vmem:[#allocation3 + $0x157] sm:$0x1] %vm3228, %v5115
        %5175 = vst.msk [vmem:[#allocation3 + $0x167] sm:$0x1] %vm3228, %v5116
        %5176 = vst.msk [vmem:[#allocation3 + $0x177] sm:$0x1] %vm3228, %v5117
        %5177 = vst.msk [vmem:[#allocation3 + $0x187] sm:$0x1] %vm3228, %v5080
        %5178 = vst.msk [vmem:[#allocation3 + $0x197] sm:$0x1] %vm3228, %v5118
        %5179 = vst.msk [vmem:[#allocation3 + $0x1a7] sm:$0x1] %vm3228, %v5119
        %5180 = vst.msk [vmem:[#allocation3 + $0x1b7] sm:$0x1] %vm3228, %v5120
        %5181 = vst.msk [vmem:[#allocation3 + $0x1c7] sm:$0x1] %vm3228, %v5121
        %5182 = vst.msk [vmem:[#allocation3 + $0x1d7] sm:$0x1] %vm3228, %v5122
        %5183 = vst.msk [vmem:[#allocation3 + $0x1e7] sm:$0x1] %vm3228, %v5123
        %5184 = vst.msk [vmem:[#allocation3 + $0x1f7] sm:$0x1] %vm3228, %v5124
        %5185 = vxpose.xlu0.b32.start [1/16] %v3120, 128
        %5186 = vxpose.xlu0.b32.cont [2/16] %v3121, 128
        %5187 = vxpose.xlu0.b32.cont [3/16] 0.0, 128
        %5188 = vxpose.xlu0.b32.cont [4/16] 0.0, 128
        %5189 = vxpose.xlu0.b32.cont [5/16] 0.0, 128
        %5190 = vxpose.xlu0.b32.cont [6/16] 0.0, 128
        %5191 = vxpose.xlu0.b32.cont [7/16] 0.0, 128
        %5192 = vxpose.xlu0.b32.cont [8/16] 0.0, 128
        %5193 = vxpose.xlu0.b32.cont [9/16] 0.0, 128
        %5194 = vxpose.xlu0.b32.cont [10/16] 0.0, 128
        %5195 = vxpose.xlu0.b32.cont [11/16] 0.0, 128
        %5196 = vxpose.xlu0.b32.cont [12/16] 0.0, 128
        %5197 = vxpose.xlu0.b32.cont [13/16] 0.0, 128
        %5198 = vxpose.xlu0.b32.cont [14/16] 0.0, 128
        %5199 = vxpose.xlu0.b32.cont [15/16] 0.0, 128
        %5200 = vxpose.xlu0.b32.end [16/16] 0.0, 128
        %v5201 = vpop.trf.xlu0
        %v5202 = vpop.trf.xlu0
        %v5203 = vpop.trf.xlu0
        %v5204 = vpop.trf.xlu0
        %v5205 = vpop.trf.xlu0
        %v5206 = vpop.trf.xlu0
        %v5207 = vpop.trf.xlu0
        %v5208 = vpop.trf.xlu0
        %v5209 = vpop.trf.xlu0
        %v5210 = vpop.trf.xlu0
        %v5211 = vpop.trf.xlu0
        %v5212 = vpop.trf.xlu0
        %v5213 = vpop.trf.xlu0
        %v5214 = vpop.trf.xlu0
        %v5215 = vpop.trf.xlu0
        %v5216 = vpop.trf.xlu0
        %v5221 = vrot.slane %v5201, 1
        %v5222 = vrot.slane %v5201, 2
        %v5223 = vrot.slane %v5201, 3
        %v5224 = vrot.slane %v5201, 4
        %v5225 = vrot.slane %v5201, 5
        %v5226 = vrot.slane %v5201, 6
        %v5227 = vrot.slane %v5201, 7
        %v5228 = vrot.slane %v5202, 1
        %v5229 = vrot.slane %v5202, 2
        %v5230 = vrot.slane %v5202, 3
        %v5231 = vrot.slane %v5202, 4
        %v5232 = vrot.slane %v5202, 5
        %v5233 = vrot.slane %v5202, 6
        %v5234 = vrot.slane %v5202, 7
        %v5235 = vrot.slane %v5203, 1
        %v5236 = vrot.slane %v5203, 2
        %v5237 = vrot.slane %v5203, 3
        %v5238 = vrot.slane %v5203, 4
        %v5239 = vrot.slane %v5203, 5
        %v5240 = vrot.slane %v5203, 6
        %v5241 = vrot.slane %v5203, 7
        %v5242 = vrot.slane %v5204, 1
        %v5243 = vrot.slane %v5204, 2
        %v5244 = vrot.slane %v5204, 3
        %v5245 = vrot.slane %v5204, 4
        %v5246 = vrot.slane %v5204, 5
        %v5247 = vrot.slane %v5204, 6
        %v5248 = vrot.slane %v5204, 7
        %5277 = vst.msk [vmem:[#allocation2 + $0x8] sm:$0x1] %vm3228, %v5201
        %5278 = vst.msk [vmem:[#allocation2 + $0x18] sm:$0x1] %vm3228, %v5221
        %5279 = vst.msk [vmem:[#allocation2 + $0x28] sm:$0x1] %vm3228, %v5222
        %5280 = vst.msk [vmem:[#allocation2 + $0x38] sm:$0x1] %vm3228, %v5223
        %5281 = vst.msk [vmem:[#allocation2 + $0x48] sm:$0x1] %vm3228, %v5224
        %5282 = vst.msk [vmem:[#allocation2 + $0x58] sm:$0x1] %vm3228, %v5225
        %5283 = vst.msk [vmem:[#allocation2 + $0x68] sm:$0x1] %vm3228, %v5226
        %5284 = vst.msk [vmem:[#allocation2 + $0x78] sm:$0x1] %vm3228, %v5227
        %5285 = vst.msk [vmem:[#allocation2 + $0x88] sm:$0x1] %vm3228, %v5202
        %5286 = vst.msk [vmem:[#allocation2 + $0x98] sm:$0x1] %vm3228, %v5228
        %5287 = vst.msk [vmem:[#allocation2 + $0xa8] sm:$0x1] %vm3228, %v5229
        %5288 = vst.msk [vmem:[#allocation2 + $0xb8] sm:$0x1] %vm3228, %v5230
        %5289 = vst.msk [vmem:[#allocation2 + $0xc8] sm:$0x1] %vm3228, %v5231
        %5290 = vst.msk [vmem:[#allocation2 + $0xd8] sm:$0x1] %vm3228, %v5232
        %5291 = vst.msk [vmem:[#allocation2 + $0xe8] sm:$0x1] %vm3228, %v5233
        %5292 = vst.msk [vmem:[#allocation2 + $0xf8] sm:$0x1] %vm3228, %v5234
        %5293 = vst.msk [vmem:[#allocation2 + $0x108] sm:$0x1] %vm3228, %v5203
        %5294 = vst.msk [vmem:[#allocation2 + $0x118] sm:$0x1] %vm3228, %v5235
        %5295 = vst.msk [vmem:[#allocation2 + $0x128] sm:$0x1] %vm3228, %v5236
        %5296 = vst.msk [vmem:[#allocation2 + $0x138] sm:$0x1] %vm3228, %v5237
        %5297 = vst.msk [vmem:[#allocation2 + $0x148] sm:$0x1] %vm3228, %v5238
        %5298 = vst.msk [vmem:[#allocation2 + $0x158] sm:$0x1] %vm3228, %v5239
        %5299 = vst.msk [vmem:[#allocation2 + $0x168] sm:$0x1] %vm3228, %v5240
        %5300 = vst.msk [vmem:[#allocation2 + $0x178] sm:$0x1] %vm3228, %v5241
        %5301 = vst.msk [vmem:[#allocation2 + $0x188] sm:$0x1] %vm3228, %v5204
        %5302 = vst.msk [vmem:[#allocation2 + $0x198] sm:$0x1] %vm3228, %v5242
        %5303 = vst.msk [vmem:[#allocation2 + $0x1a8] sm:$0x1] %vm3228, %v5243
        %5304 = vst.msk [vmem:[#allocation2 + $0x1b8] sm:$0x1] %vm3228, %v5244
        %5305 = vst.msk [vmem:[#allocation2 + $0x1c8] sm:$0x1] %vm3228, %v5245
        %5306 = vst.msk [vmem:[#allocation2 + $0x1d8] sm:$0x1] %vm3228, %v5246
        %5307 = vst.msk [vmem:[#allocation2 + $0x1e8] sm:$0x1] %vm3228, %v5247
        %5308 = vst.msk [vmem:[#allocation2 + $0x1f8] sm:$0x1] %vm3228, %v5248
        %5311 = vrot.lane.b32.xlu0 %v3120, 96
        %v5312 = vpop.permute.xlu0 %5311
        %5313 = vrot.lane.b32.xlu0 %v3121, 96
        %v5314 = vpop.permute.xlu0 %5313
        %5317 = vxpose.xlu0.b32.start [1/16] %v5312, 128
        %5318 = vxpose.xlu0.b32.cont [2/16] %v5314, 128
        %5319 = vxpose.xlu0.b32.cont [3/16] 0.0, 128
        %5320 = vxpose.xlu0.b32.cont [4/16] 0.0, 128
        %5321 = vxpose.xlu0.b32.cont [5/16] 0.0, 128
        %5322 = vxpose.xlu0.b32.cont [6/16] 0.0, 128
        %5323 = vxpose.xlu0.b32.cont [7/16] 0.0, 128
        %5324 = vxpose.xlu0.b32.cont [8/16] 0.0, 128
        %5325 = vxpose.xlu0.b32.cont [9/16] 0.0, 128
        %5326 = vxpose.xlu0.b32.cont [10/16] 0.0, 128
        %5327 = vxpose.xlu0.b32.cont [11/16] 0.0, 128
        %5328 = vxpose.xlu0.b32.cont [12/16] 0.0, 128
        %5329 = vxpose.xlu0.b32.cont [13/16] 0.0, 128
        %5330 = vxpose.xlu0.b32.cont [14/16] 0.0, 128
        %5331 = vxpose.xlu0.b32.cont [15/16] 0.0, 128
        %5332 = vxpose.xlu0.b32.end [16/16] 0.0, 128
        %v5333 = vpop.trf.xlu0
        %v5334 = vpop.trf.xlu0
        %v5335 = vpop.trf.xlu0
        %v5336 = vpop.trf.xlu0
        %v5337 = vpop.trf.xlu0
        %v5338 = vpop.trf.xlu0
        %v5339 = vpop.trf.xlu0
        %v5340 = vpop.trf.xlu0
        %v5341 = vpop.trf.xlu0
        %v5342 = vpop.trf.xlu0
        %v5343 = vpop.trf.xlu0
        %v5344 = vpop.trf.xlu0
        %v5345 = vpop.trf.xlu0
        %v5346 = vpop.trf.xlu0
        %v5347 = vpop.trf.xlu0
        %v5348 = vpop.trf.xlu0
        %v5353 = vrot.slane %v5333, 1
        %v5354 = vrot.slane %v5333, 2
        %v5355 = vrot.slane %v5333, 3
        %v5356 = vrot.slane %v5333, 4
        %v5357 = vrot.slane %v5333, 5
        %v5358 = vrot.slane %v5333, 6
        %v5359 = vrot.slane %v5333, 7
        %v5360 = vrot.slane %v5334, 1
        %v5361 = vrot.slane %v5334, 2
        %v5362 = vrot.slane %v5334, 3
        %v5363 = vrot.slane %v5334, 4
        %v5364 = vrot.slane %v5334, 5
        %v5365 = vrot.slane %v5334, 6
        %v5366 = vrot.slane %v5334, 7
        %v5367 = vrot.slane %v5335, 1
        %v5368 = vrot.slane %v5335, 2
        %v5369 = vrot.slane %v5335, 3
        %v5370 = vrot.slane %v5335, 4
        %v5371 = vrot.slane %v5335, 5
        %v5372 = vrot.slane %v5335, 6
        %v5373 = vrot.slane %v5335, 7
        %v5374 = vrot.slane %v5336, 1
        %v5375 = vrot.slane %v5336, 2
        %v5376 = vrot.slane %v5336, 3
        %v5377 = vrot.slane %v5336, 4
        %v5378 = vrot.slane %v5336, 5
        %v5379 = vrot.slane %v5336, 6
        %v5380 = vrot.slane %v5336, 7
        %5409 = vst.msk [vmem:[#allocation3 + $0x8] sm:$0x1] %vm3228, %v5333
        %5410 = vst.msk [vmem:[#allocation3 + $0x18] sm:$0x1] %vm3228, %v5353
        %5411 = vst.msk [vmem:[#allocation3 + $0x28] sm:$0x1] %vm3228, %v5354
        %5412 = vst.msk [vmem:[#allocation3 + $0x38] sm:$0x1] %vm3228, %v5355
        %5413 = vst.msk [vmem:[#allocation3 + $0x48] sm:$0x1] %vm3228, %v5356
        %5414 = vst.msk [vmem:[#allocation3 + $0x58] sm:$0x1] %vm3228, %v5357
        %5415 = vst.msk [vmem:[#allocation3 + $0x68] sm:$0x1] %vm3228, %v5358
        %5416 = vst.msk [vmem:[#allocation3 + $0x78] sm:$0x1] %vm3228, %v5359
        %5417 = vst.msk [vmem:[#allocation3 + $0x88] sm:$0x1] %vm3228, %v5334
        %5418 = vst.msk [vmem:[#allocation3 + $0x98] sm:$0x1] %vm3228, %v5360
        %5419 = vst.msk [vmem:[#allocation3 + $0xa8] sm:$0x1] %vm3228, %v5361
        %5420 = vst.msk [vmem:[#allocation3 + $0xb8] sm:$0x1] %vm3228, %v5362
        %5421 = vst.msk [vmem:[#allocation3 + $0xc8] sm:$0x1] %vm3228, %v5363
        %5422 = vst.msk [vmem:[#allocation3 + $0xd8] sm:$0x1] %vm3228, %v5364
        %5423 = vst.msk [vmem:[#allocation3 + $0xe8] sm:$0x1] %vm3228, %v5365
        %5424 = vst.msk [vmem:[#allocation3 + $0xf8] sm:$0x1] %vm3228, %v5366
        %5425 = vst.msk [vmem:[#allocation3 + $0x108] sm:$0x1] %vm3228, %v5335
        %5426 = vst.msk [vmem:[#allocation3 + $0x118] sm:$0x1] %vm3228, %v5367
        %5427 = vst.msk [vmem:[#allocation3 + $0x128] sm:$0x1] %vm3228, %v5368
        %5428 = vst.msk [vmem:[#allocation3 + $0x138] sm:$0x1] %vm3228, %v5369
        %5429 = vst.msk [vmem:[#allocation3 + $0x148] sm:$0x1] %vm3228, %v5370
        %5430 = vst.msk [vmem:[#allocation3 + $0x158] sm:$0x1] %vm3228, %v5371
        %5431 = vst.msk [vmem:[#allocation3 + $0x168] sm:$0x1] %vm3228, %v5372
        %5432 = vst.msk [vmem:[#allocation3 + $0x178] sm:$0x1] %vm3228, %v5373
        %5433 = vst.msk [vmem:[#allocation3 + $0x188] sm:$0x1] %vm3228, %v5336
        %5434 = vst.msk [vmem:[#allocation3 + $0x198] sm:$0x1] %vm3228, %v5374
        %5435 = vst.msk [vmem:[#allocation3 + $0x1a8] sm:$0x1] %vm3228, %v5375
        %5436 = vst.msk [vmem:[#allocation3 + $0x1b8] sm:$0x1] %vm3228, %v5376
        %5437 = vst.msk [vmem:[#allocation3 + $0x1c8] sm:$0x1] %vm3228, %v5377
        %5438 = vst.msk [vmem:[#allocation3 + $0x1d8] sm:$0x1] %vm3228, %v5378
        %5439 = vst.msk [vmem:[#allocation3 + $0x1e8] sm:$0x1] %vm3228, %v5379
        %5440 = vst.msk [vmem:[#allocation3 + $0x1f8] sm:$0x1] %vm3228, %v5380
        %5441 = vxpose.xlu0.b32.start [1/16] %v3122, 128
        %5442 = vxpose.xlu0.b32.cont [2/16] %v3123, 128
        %5443 = vxpose.xlu0.b32.cont [3/16] 0.0, 128
        %5444 = vxpose.xlu0.b32.cont [4/16] 0.0, 128
        %5445 = vxpose.xlu0.b32.cont [5/16] 0.0, 128
        %5446 = vxpose.xlu0.b32.cont [6/16] 0.0, 128
        %5447 = vxpose.xlu0.b32.cont [7/16] 0.0, 128
        %5448 = vxpose.xlu0.b32.cont [8/16] 0.0, 128
        %5449 = vxpose.xlu0.b32.cont [9/16] 0.0, 128
        %5450 = vxpose.xlu0.b32.cont [10/16] 0.0, 128
        %5451 = vxpose.xlu0.b32.cont [11/16] 0.0, 128
        %5452 = vxpose.xlu0.b32.cont [12/16] 0.0, 128
        %5453 = vxpose.xlu0.b32.cont [13/16] 0.0, 128
        %5454 = vxpose.xlu0.b32.cont [14/16] 0.0, 128
        %5455 = vxpose.xlu0.b32.cont [15/16] 0.0, 128
        %5456 = vxpose.xlu0.b32.end [16/16] 0.0, 128
        %v5457 = vpop.trf.xlu0
        %v5458 = vpop.trf.xlu0
        %v5459 = vpop.trf.xlu0
        %v5460 = vpop.trf.xlu0
        %v5461 = vpop.trf.xlu0
        %v5462 = vpop.trf.xlu0
        %v5463 = vpop.trf.xlu0
        %v5464 = vpop.trf.xlu0
        %v5465 = vpop.trf.xlu0
        %v5466 = vpop.trf.xlu0
        %v5467 = vpop.trf.xlu0
        %v5468 = vpop.trf.xlu0
        %v5469 = vpop.trf.xlu0
        %v5470 = vpop.trf.xlu0
        %v5471 = vpop.trf.xlu0
        %v5472 = vpop.trf.xlu0
        %v5477 = vrot.slane %v5457, 1
        %v5478 = vrot.slane %v5457, 2
        %v5479 = vrot.slane %v5457, 3
        %v5480 = vrot.slane %v5457, 4
        %v5481 = vrot.slane %v5457, 5
        %v5482 = vrot.slane %v5457, 6
        %v5483 = vrot.slane %v5457, 7
        %v5484 = vrot.slane %v5458, 1
        %v5485 = vrot.slane %v5458, 2
        %v5486 = vrot.slane %v5458, 3
        %v5487 = vrot.slane %v5458, 4
        %v5488 = vrot.slane %v5458, 5
        %v5489 = vrot.slane %v5458, 6
        %v5490 = vrot.slane %v5458, 7
        %v5491 = vrot.slane %v5459, 1
        %v5492 = vrot.slane %v5459, 2
        %v5493 = vrot.slane %v5459, 3
        %v5494 = vrot.slane %v5459, 4
        %v5495 = vrot.slane %v5459, 5
        %v5496 = vrot.slane %v5459, 6
        %v5497 = vrot.slane %v5459, 7
        %v5498 = vrot.slane %v5460, 1
        %v5499 = vrot.slane %v5460, 2
        %v5500 = vrot.slane %v5460, 3
        %v5501 = vrot.slane %v5460, 4
        %v5502 = vrot.slane %v5460, 5
        %v5503 = vrot.slane %v5460, 6
        %v5504 = vrot.slane %v5460, 7
        %5533 = vst.msk [vmem:[#allocation2 + $0x9] sm:$0x1] %vm3228, %v5457
        %5534 = vst.msk [vmem:[#allocation2 + $0x19] sm:$0x1] %vm3228, %v5477
        %5535 = vst.msk [vmem:[#allocation2 + $0x29] sm:$0x1] %vm3228, %v5478
        %5536 = vst.msk [vmem:[#allocation2 + $0x39] sm:$0x1] %vm3228, %v5479
        %5537 = vst.msk [vmem:[#allocation2 + $0x49] sm:$0x1] %vm3228, %v5480
        %5538 = vst.msk [vmem:[#allocation2 + $0x59] sm:$0x1] %vm3228, %v5481
        %5539 = vst.msk [vmem:[#allocation2 + $0x69] sm:$0x1] %vm3228, %v5482
        %5540 = vst.msk [vmem:[#allocation2 + $0x79] sm:$0x1] %vm3228, %v5483
        %5541 = vst.msk [vmem:[#allocation2 + $0x89] sm:$0x1] %vm3228, %v5458
        %5542 = vst.msk [vmem:[#allocation2 + $0x99] sm:$0x1] %vm3228, %v5484
        %5543 = vst.msk [vmem:[#allocation2 + $0xa9] sm:$0x1] %vm3228, %v5485
        %5544 = vst.msk [vmem:[#allocation2 + $0xb9] sm:$0x1] %vm3228, %v5486
        %5545 = vst.msk [vmem:[#allocation2 + $0xc9] sm:$0x1] %vm3228, %v5487
        %5546 = vst.msk [vmem:[#allocation2 + $0xd9] sm:$0x1] %vm3228, %v5488
        %5547 = vst.msk [vmem:[#allocation2 + $0xe9] sm:$0x1] %vm3228, %v5489
        %5548 = vst.msk [vmem:[#allocation2 + $0xf9] sm:$0x1] %vm3228, %v5490
        %5549 = vst.msk [vmem:[#allocation2 + $0x109] sm:$0x1] %vm3228, %v5459
        %5550 = vst.msk [vmem:[#allocation2 + $0x119] sm:$0x1] %vm3228, %v5491
        %5551 = vst.msk [vmem:[#allocation2 + $0x129] sm:$0x1] %vm3228, %v5492
        %5552 = vst.msk [vmem:[#allocation2 + $0x139] sm:$0x1] %vm3228, %v5493
        %5553 = vst.msk [vmem:[#allocation2 + $0x149] sm:$0x1] %vm3228, %v5494
        %5554 = vst.msk [vmem:[#allocation2 + $0x159] sm:$0x1] %vm3228, %v5495
        %5555 = vst.msk [vmem:[#allocation2 + $0x169] sm:$0x1] %vm3228, %v5496
        %5556 = vst.msk [vmem:[#allocation2 + $0x179] sm:$0x1] %vm3228, %v5497
        %5557 = vst.msk [vmem:[#allocation2 + $0x189] sm:$0x1] %vm3228, %v5460
        %5558 = vst.msk [vmem:[#allocation2 + $0x199] sm:$0x1] %vm3228, %v5498
        %5559 = vst.msk [vmem:[#allocation2 + $0x1a9] sm:$0x1] %vm3228, %v5499
        %5560 = vst.msk [vmem:[#allocation2 + $0x1b9] sm:$0x1] %vm3228, %v5500
        %5561 = vst.msk [vmem:[#allocation2 + $0x1c9] sm:$0x1] %vm3228, %v5501
        %5562 = vst.msk [vmem:[#allocation2 + $0x1d9] sm:$0x1] %vm3228, %v5502
        %5563 = vst.msk [vmem:[#allocation2 + $0x1e9] sm:$0x1] %vm3228, %v5503
        %5564 = vst.msk [vmem:[#allocation2 + $0x1f9] sm:$0x1] %vm3228, %v5504
        %5567 = vrot.lane.b32.xlu0 %v3122, 96
        %v5568 = vpop.permute.xlu0 %5567
        %5569 = vrot.lane.b32.xlu0 %v3123, 96
        %v5570 = vpop.permute.xlu0 %5569
        %5573 = vxpose.xlu0.b32.start [1/16] %v5568, 128
        %5574 = vxpose.xlu0.b32.cont [2/16] %v5570, 128
        %5575 = vxpose.xlu0.b32.cont [3/16] 0.0, 128
        %5576 = vxpose.xlu0.b32.cont [4/16] 0.0, 128
        %5577 = vxpose.xlu0.b32.cont [5/16] 0.0, 128
        %5578 = vxpose.xlu0.b32.cont [6/16] 0.0, 128
        %5579 = vxpose.xlu0.b32.cont [7/16] 0.0, 128
        %5580 = vxpose.xlu0.b32.cont [8/16] 0.0, 128
        %5581 = vxpose.xlu0.b32.cont [9/16] 0.0, 128
        %5582 = vxpose.xlu0.b32.cont [10/16] 0.0, 128
        %5583 = vxpose.xlu0.b32.cont [11/16] 0.0, 128
        %5584 = vxpose.xlu0.b32.cont [12/16] 0.0, 128
        %5585 = vxpose.xlu0.b32.cont [13/16] 0.0, 128
        %5586 = vxpose.xlu0.b32.cont [14/16] 0.0, 128
        %5587 = vxpose.xlu0.b32.cont [15/16] 0.0, 128
        %5588 = vxpose.xlu0.b32.end [16/16] 0.0, 128
        %v5589 = vpop.trf.xlu0
        %v5590 = vpop.trf.xlu0
        %v5591 = vpop.trf.xlu0
        %v5592 = vpop.trf.xlu0
        %v5593 = vpop.trf.xlu0
        %v5594 = vpop.trf.xlu0
        %v5595 = vpop.trf.xlu0
        %v5596 = vpop.trf.xlu0
        %v5597 = vpop.trf.xlu0
        %v5598 = vpop.trf.xlu0
        %v5599 = vpop.trf.xlu0
        %v5600 = vpop.trf.xlu0
        %v5601 = vpop.trf.xlu0
        %v5602 = vpop.trf.xlu0
        %v5603 = vpop.trf.xlu0
        %v5604 = vpop.trf.xlu0
        %v5609 = vrot.slane %v5589, 1
        %v5610 = vrot.slane %v5589, 2
        %v5611 = vrot.slane %v5589, 3
        %v5612 = vrot.slane %v5589, 4
        %v5613 = vrot.slane %v5589, 5
        %v5614 = vrot.slane %v5589, 6
        %v5615 = vrot.slane %v5589, 7
        %v5616 = vrot.slane %v5590, 1
        %v5617 = vrot.slane %v5590, 2
        %v5618 = vrot.slane %v5590, 3
        %v5619 = vrot.slane %v5590, 4
        %v5620 = vrot.slane %v5590, 5
        %v5621 = vrot.slane %v5590, 6
        %v5622 = vrot.slane %v5590, 7
        %v5623 = vrot.slane %v5591, 1
        %v5624 = vrot.slane %v5591, 2
        %v5625 = vrot.slane %v5591, 3
        %v5626 = vrot.slane %v5591, 4
        %v5627 = vrot.slane %v5591, 5
        %v5628 = vrot.slane %v5591, 6
        %v5629 = vrot.slane %v5591, 7
        %v5630 = vrot.slane %v5592, 1
        %v5631 = vrot.slane %v5592, 2
        %v5632 = vrot.slane %v5592, 3
        %v5633 = vrot.slane %v5592, 4
        %v5634 = vrot.slane %v5592, 5
        %v5635 = vrot.slane %v5592, 6
        %v5636 = vrot.slane %v5592, 7
        %5665 = vst.msk [vmem:[#allocation3 + $0x9] sm:$0x1] %vm3228, %v5589
        %5666 = vst.msk [vmem:[#allocation3 + $0x19] sm:$0x1] %vm3228, %v5609
        %5667 = vst.msk [vmem:[#allocation3 + $0x29] sm:$0x1] %vm3228, %v5610
        %5668 = vst.msk [vmem:[#allocation3 + $0x39] sm:$0x1] %vm3228, %v5611
        %5669 = vst.msk [vmem:[#allocation3 + $0x49] sm:$0x1] %vm3228, %v5612
        %5670 = vst.msk [vmem:[#allocation3 + $0x59] sm:$0x1] %vm3228, %v5613
        %5671 = vst.msk [vmem:[#allocation3 + $0x69] sm:$0x1] %vm3228, %v5614
        %5672 = vst.msk [vmem:[#allocation3 + $0x79] sm:$0x1] %vm3228, %v5615
        %5673 = vst.msk [vmem:[#allocation3 + $0x89] sm:$0x1] %vm3228, %v5590
        %5674 = vst.msk [vmem:[#allocation3 + $0x99] sm:$0x1] %vm3228, %v5616
        %5675 = vst.msk [vmem:[#allocation3 + $0xa9] sm:$0x1] %vm3228, %v5617
        %5676 = vst.msk [vmem:[#allocation3 + $0xb9] sm:$0x1] %vm3228, %v5618
        %5677 = vst.msk [vmem:[#allocation3 + $0xc9] sm:$0x1] %vm3228, %v5619
        %5678 = vst.msk [vmem:[#allocation3 + $0xd9] sm:$0x1] %vm3228, %v5620
        %5679 = vst.msk [vmem:[#allocation3 + $0xe9] sm:$0x1] %vm3228, %v5621
        %5680 = vst.msk [vmem:[#allocation3 + $0xf9] sm:$0x1] %vm3228, %v5622
        %5681 = vst.msk [vmem:[#allocation3 + $0x109] sm:$0x1] %vm3228, %v5591
        %5682 = vst.msk [vmem:[#allocation3 + $0x119] sm:$0x1] %vm3228, %v5623
        %5683 = vst.msk [vmem:[#allocation3 + $0x129] sm:$0x1] %vm3228, %v5624
        %5684 = vst.msk [vmem:[#allocation3 + $0x139] sm:$0x1] %vm3228, %v5625
        %5685 = vst.msk [vmem:[#allocation3 + $0x149] sm:$0x1] %vm3228, %v5626
        %5686 = vst.msk [vmem:[#allocation3 + $0x159] sm:$0x1] %vm3228, %v5627
        %5687 = vst.msk [vmem:[#allocation3 + $0x169] sm:$0x1] %vm3228, %v5628
        %5688 = vst.msk [vmem:[#allocation3 + $0x179] sm:$0x1] %vm3228, %v5629
        %5689 = vst.msk [vmem:[#allocation3 + $0x189] sm:$0x1] %vm3228, %v5592
        %5690 = vst.msk [vmem:[#allocation3 + $0x199] sm:$0x1] %vm3228, %v5630
        %5691 = vst.msk [vmem:[#allocation3 + $0x1a9] sm:$0x1] %vm3228, %v5631
        %5692 = vst.msk [vmem:[#allocation3 + $0x1b9] sm:$0x1] %vm3228, %v5632
        %5693 = vst.msk [vmem:[#allocation3 + $0x1c9] sm:$0x1] %vm3228, %v5633
        %5694 = vst.msk [vmem:[#allocation3 + $0x1d9] sm:$0x1] %vm3228, %v5634
        %5695 = vst.msk [vmem:[#allocation3 + $0x1e9] sm:$0x1] %vm3228, %v5635
        %5696 = vst.msk [vmem:[#allocation3 + $0x1f9] sm:$0x1] %vm3228, %v5636
        %5697 = vxpose.xlu0.b32.start [1/16] %v3124, 128
        %5698 = vxpose.xlu0.b32.cont [2/16] %v3125, 128
        %5699 = vxpose.xlu0.b32.cont [3/16] 0.0, 128
        %5700 = vxpose.xlu0.b32.cont [4/16] 0.0, 128
        %5701 = vxpose.xlu0.b32.cont [5/16] 0.0, 128
        %5702 = vxpose.xlu0.b32.cont [6/16] 0.0, 128
        %5703 = vxpose.xlu0.b32.cont [7/16] 0.0, 128
        %5704 = vxpose.xlu0.b32.cont [8/16] 0.0, 128
        %5705 = vxpose.xlu0.b32.cont [9/16] 0.0, 128
        %5706 = vxpose.xlu0.b32.cont [10/16] 0.0, 128
        %5707 = vxpose.xlu0.b32.cont [11/16] 0.0, 128
        %5708 = vxpose.xlu0.b32.cont [12/16] 0.0, 128
        %5709 = vxpose.xlu0.b32.cont [13/16] 0.0, 128
        %5710 = vxpose.xlu0.b32.cont [14/16] 0.0, 128
        %5711 = vxpose.xlu0.b32.cont [15/16] 0.0, 128
        %5712 = vxpose.xlu0.b32.end [16/16] 0.0, 128
        %v5713 = vpop.trf.xlu0
        %v5714 = vpop.trf.xlu0
        %v5715 = vpop.trf.xlu0
        %v5716 = vpop.trf.xlu0
        %v5717 = vpop.trf.xlu0
        %v5718 = vpop.trf.xlu0
        %v5719 = vpop.trf.xlu0
        %v5720 = vpop.trf.xlu0
        %v5721 = vpop.trf.xlu0
        %v5722 = vpop.trf.xlu0
        %v5723 = vpop.trf.xlu0
        %v5724 = vpop.trf.xlu0
        %v5725 = vpop.trf.xlu0
        %v5726 = vpop.trf.xlu0
        %v5727 = vpop.trf.xlu0
        %v5728 = vpop.trf.xlu0
        %v5733 = vrot.slane %v5713, 1
        %v5734 = vrot.slane %v5713, 2
        %v5735 = vrot.slane %v5713, 3
        %v5736 = vrot.slane %v5713, 4
        %v5737 = vrot.slane %v5713, 5
        %v5738 = vrot.slane %v5713, 6
        %v5739 = vrot.slane %v5713, 7
        %v5740 = vrot.slane %v5714, 1
        %v5741 = vrot.slane %v5714, 2
        %v5742 = vrot.slane %v5714, 3
        %v5743 = vrot.slane %v5714, 4
        %v5744 = vrot.slane %v5714, 5
        %v5745 = vrot.slane %v5714, 6
        %v5746 = vrot.slane %v5714, 7
        %v5747 = vrot.slane %v5715, 1
        %v5748 = vrot.slane %v5715, 2
        %v5749 = vrot.slane %v5715, 3
        %v5750 = vrot.slane %v5715, 4
        %v5751 = vrot.slane %v5715, 5
        %v5752 = vrot.slane %v5715, 6
        %v5753 = vrot.slane %v5715, 7
        %v5754 = vrot.slane %v5716, 1
        %v5755 = vrot.slane %v5716, 2
        %v5756 = vrot.slane %v5716, 3
        %v5757 = vrot.slane %v5716, 4
        %v5758 = vrot.slane %v5716, 5
        %v5759 = vrot.slane %v5716, 6
        %v5760 = vrot.slane %v5716, 7
        %5789 = vst.msk [vmem:[#allocation2 + $0xa] sm:$0x1] %vm3228, %v5713
        %5790 = vst.msk [vmem:[#allocation2 + $0x1a] sm:$0x1] %vm3228, %v5733
        %5791 = vst.msk [vmem:[#allocation2 + $0x2a] sm:$0x1] %vm3228, %v5734
        %5792 = vst.msk [vmem:[#allocation2 + $0x3a] sm:$0x1] %vm3228, %v5735
        %5793 = vst.msk [vmem:[#allocation2 + $0x4a] sm:$0x1] %vm3228, %v5736
        %5794 = vst.msk [vmem:[#allocation2 + $0x5a] sm:$0x1] %vm3228, %v5737
        %5795 = vst.msk [vmem:[#allocation2 + $0x6a] sm:$0x1] %vm3228, %v5738
        %5796 = vst.msk [vmem:[#allocation2 + $0x7a] sm:$0x1] %vm3228, %v5739
        %5797 = vst.msk [vmem:[#allocation2 + $0x8a] sm:$0x1] %vm3228, %v5714
        %5798 = vst.msk [vmem:[#allocation2 + $0x9a] sm:$0x1] %vm3228, %v5740
        %5799 = vst.msk [vmem:[#allocation2 + $0xaa] sm:$0x1] %vm3228, %v5741
        %5800 = vst.msk [vmem:[#allocation2 + $0xba] sm:$0x1] %vm3228, %v5742
        %5801 = vst.msk [vmem:[#allocation2 + $0xca] sm:$0x1] %vm3228, %v5743
        %5802 = vst.msk [vmem:[#allocation2 + $0xda] sm:$0x1] %vm3228, %v5744
        %5803 = vst.msk [vmem:[#allocation2 + $0xea] sm:$0x1] %vm3228, %v5745
        %5804 = vst.msk [vmem:[#allocation2 + $0xfa] sm:$0x1] %vm3228, %v5746
        %5805 = vst.msk [vmem:[#allocation2 + $0x10a] sm:$0x1] %vm3228, %v5715
        %5806 = vst.msk [vmem:[#allocation2 + $0x11a] sm:$0x1] %vm3228, %v5747
        %5807 = vst.msk [vmem:[#allocation2 + $0x12a] sm:$0x1] %vm3228, %v5748
        %5808 = vst.msk [vmem:[#allocation2 + $0x13a] sm:$0x1] %vm3228, %v5749
        %5809 = vst.msk [vmem:[#allocation2 + $0x14a] sm:$0x1] %vm3228, %v5750
        %5810 = vst.msk [vmem:[#allocation2 + $0x15a] sm:$0x1] %vm3228, %v5751
        %5811 = vst.msk [vmem:[#allocation2 + $0x16a] sm:$0x1] %vm3228, %v5752
        %5812 = vst.msk [vmem:[#allocation2 + $0x17a] sm:$0x1] %vm3228, %v5753
        %5813 = vst.msk [vmem:[#allocation2 + $0x18a] sm:$0x1] %vm3228, %v5716
        %5814 = vst.msk [vmem:[#allocation2 + $0x19a] sm:$0x1] %vm3228, %v5754
        %5815 = vst.msk [vmem:[#allocation2 + $0x1aa] sm:$0x1] %vm3228, %v5755
        %5816 = vst.msk [vmem:[#allocation2 + $0x1ba] sm:$0x1] %vm3228, %v5756
        %5817 = vst.msk [vmem:[#allocation2 + $0x1ca] sm:$0x1] %vm3228, %v5757
        %5818 = vst.msk [vmem:[#allocation2 + $0x1da] sm:$0x1] %vm3228, %v5758
        %5819 = vst.msk [vmem:[#allocation2 + $0x1ea] sm:$0x1] %vm3228, %v5759
        %5820 = vst.msk [vmem:[#allocation2 + $0x1fa] sm:$0x1] %vm3228, %v5760
        %5823 = vrot.lane.b32.xlu0 %v3124, 96
        %v5824 = vpop.permute.xlu0 %5823
        %5825 = vrot.lane.b32.xlu0 %v3125, 96
        %v5826 = vpop.permute.xlu0 %5825
        %5829 = vxpose.xlu0.b32.start [1/16] %v5824, 128
        %5830 = vxpose.xlu0.b32.cont [2/16] %v5826, 128
        %5831 = vxpose.xlu0.b32.cont [3/16] 0.0, 128
        %5832 = vxpose.xlu0.b32.cont [4/16] 0.0, 128
        %5833 = vxpose.xlu0.b32.cont [5/16] 0.0, 128
        %5834 = vxpose.xlu0.b32.cont [6/16] 0.0, 128
        %5835 = vxpose.xlu0.b32.cont [7/16] 0.0, 128
        %5836 = vxpose.xlu0.b32.cont [8/16] 0.0, 128
        %5837 = vxpose.xlu0.b32.cont [9/16] 0.0, 128
        %5838 = vxpose.xlu0.b32.cont [10/16] 0.0, 128
        %5839 = vxpose.xlu0.b32.cont [11/16] 0.0, 128
        %5840 = vxpose.xlu0.b32.cont [12/16] 0.0, 128
        %5841 = vxpose.xlu0.b32.cont [13/16] 0.0, 128
        %5842 = vxpose.xlu0.b32.cont [14/16] 0.0, 128
        %5843 = vxpose.xlu0.b32.cont [15/16] 0.0, 128
        %5844 = vxpose.xlu0.b32.end [16/16] 0.0, 128
        %v5845 = vpop.trf.xlu0
        %v5846 = vpop.trf.xlu0
        %v5847 = vpop.trf.xlu0
        %v5848 = vpop.trf.xlu0
        %v5849 = vpop.trf.xlu0
        %v5850 = vpop.trf.xlu0
        %v5851 = vpop.trf.xlu0
        %v5852 = vpop.trf.xlu0
        %v5853 = vpop.trf.xlu0
        %v5854 = vpop.trf.xlu0
        %v5855 = vpop.trf.xlu0
        %v5856 = vpop.trf.xlu0
        %v5857 = vpop.trf.xlu0
        %v5858 = vpop.trf.xlu0
        %v5859 = vpop.trf.xlu0
        %v5860 = vpop.trf.xlu0
        %v5865 = vrot.slane %v5845, 1
        %v5866 = vrot.slane %v5845, 2
        %v5867 = vrot.slane %v5845, 3
        %v5868 = vrot.slane %v5845, 4
        %v5869 = vrot.slane %v5845, 5
        %v5870 = vrot.slane %v5845, 6
        %v5871 = vrot.slane %v5845, 7
        %v5872 = vrot.slane %v5846, 1
        %v5873 = vrot.slane %v5846, 2
        %v5874 = vrot.slane %v5846, 3
        %v5875 = vrot.slane %v5846, 4
        %v5876 = vrot.slane %v5846, 5
        %v5877 = vrot.slane %v5846, 6
        %v5878 = vrot.slane %v5846, 7
        %v5879 = vrot.slane %v5847, 1
        %v5880 = vrot.slane %v5847, 2
        %v5881 = vrot.slane %v5847, 3
        %v5882 = vrot.slane %v5847, 4
        %v5883 = vrot.slane %v5847, 5
        %v5884 = vrot.slane %v5847, 6
        %v5885 = vrot.slane %v5847, 7
        %v5886 = vrot.slane %v5848, 1
        %v5887 = vrot.slane %v5848, 2
        %v5888 = vrot.slane %v5848, 3
        %v5889 = vrot.slane %v5848, 4
        %v5890 = vrot.slane %v5848, 5
        %v5891 = vrot.slane %v5848, 6
        %v5892 = vrot.slane %v5848, 7
        %5921 = vst.msk [vmem:[#allocation3 + $0xa] sm:$0x1] %vm3228, %v5845
        %5922 = vst.msk [vmem:[#allocation3 + $0x1a] sm:$0x1] %vm3228, %v5865
        %5923 = vst.msk [vmem:[#allocation3 + $0x2a] sm:$0x1] %vm3228, %v5866
        %5924 = vst.msk [vmem:[#allocation3 + $0x3a] sm:$0x1] %vm3228, %v5867
        %5925 = vst.msk [vmem:[#allocation3 + $0x4a] sm:$0x1] %vm3228, %v5868
        %5926 = vst.msk [vmem:[#allocation3 + $0x5a] sm:$0x1] %vm3228, %v5869
        %5927 = vst.msk [vmem:[#allocation3 + $0x6a] sm:$0x1] %vm3228, %v5870
        %5928 = vst.msk [vmem:[#allocation3 + $0x7a] sm:$0x1] %vm3228, %v5871
        %5929 = vst.msk [vmem:[#allocation3 + $0x8a] sm:$0x1] %vm3228, %v5846
        %5930 = vst.msk [vmem:[#allocation3 + $0x9a] sm:$0x1] %vm3228, %v5872
        %5931 = vst.msk [vmem:[#allocation3 + $0xaa] sm:$0x1] %vm3228, %v5873
        %5932 = vst.msk [vmem:[#allocation3 + $0xba] sm:$0x1] %vm3228, %v5874
        %5933 = vst.msk [vmem:[#allocation3 + $0xca] sm:$0x1] %vm3228, %v5875
        %5934 = vst.msk [vmem:[#allocation3 + $0xda] sm:$0x1] %vm3228, %v5876
        %5935 = vst.msk [vmem:[#allocation3 + $0xea] sm:$0x1] %vm3228, %v5877
        %5936 = vst.msk [vmem:[#allocation3 + $0xfa] sm:$0x1] %vm3228, %v5878
        %5937 = vst.msk [vmem:[#allocation3 + $0x10a] sm:$0x1] %vm3228, %v5847
        %5938 = vst.msk [vmem:[#allocation3 + $0x11a] sm:$0x1] %vm3228, %v5879
        %5939 = vst.msk [vmem:[#allocation3 + $0x12a] sm:$0x1] %vm3228, %v5880
        %5940 = vst.msk [vmem:[#allocation3 + $0x13a] sm:$0x1] %vm3228, %v5881
        %5941 = vst.msk [vmem:[#allocation3 + $0x14a] sm:$0x1] %vm3228, %v5882
        %5942 = vst.msk [vmem:[#allocation3 + $0x15a] sm:$0x1] %vm3228, %v5883
        %5943 = vst.msk [vmem:[#allocation3 + $0x16a] sm:$0x1] %vm3228, %v5884
        %5944 = vst.msk [vmem:[#allocation3 + $0x17a] sm:$0x1] %vm3228, %v5885
        %5945 = vst.msk [vmem:[#allocation3 + $0x18a] sm:$0x1] %vm3228, %v5848
        %5946 = vst.msk [vmem:[#allocation3 + $0x19a] sm:$0x1] %vm3228, %v5886
        %5947 = vst.msk [vmem:[#allocation3 + $0x1aa] sm:$0x1] %vm3228, %v5887
        %5948 = vst.msk [vmem:[#allocation3 + $0x1ba] sm:$0x1] %vm3228, %v5888
        %5949 = vst.msk [vmem:[#allocation3 + $0x1ca] sm:$0x1] %vm3228, %v5889
        %5950 = vst.msk [vmem:[#allocation3 + $0x1da] sm:$0x1] %vm3228, %v5890
        %5951 = vst.msk [vmem:[#allocation3 + $0x1ea] sm:$0x1] %vm3228, %v5891
        %5952 = vst.msk [vmem:[#allocation3 + $0x1fa] sm:$0x1] %vm3228, %v5892
        %5953 = vxpose.xlu0.b32.start [1/16] %v3126, 128
        %5954 = vxpose.xlu0.b32.cont [2/16] %v3127, 128
        %5955 = vxpose.xlu0.b32.cont [3/16] 0.0, 128
        %5956 = vxpose.xlu0.b32.cont [4/16] 0.0, 128
        %5957 = vxpose.xlu0.b32.cont [5/16] 0.0, 128
        %5958 = vxpose.xlu0.b32.cont [6/16] 0.0, 128
        %5959 = vxpose.xlu0.b32.cont [7/16] 0.0, 128
        %5960 = vxpose.xlu0.b32.cont [8/16] 0.0, 128
        %5961 = vxpose.xlu0.b32.cont [9/16] 0.0, 128
        %5962 = vxpose.xlu0.b32.cont [10/16] 0.0, 128
        %5963 = vxpose.xlu0.b32.cont [11/16] 0.0, 128
        %5964 = vxpose.xlu0.b32.cont [12/16] 0.0, 128
        %5965 = vxpose.xlu0.b32.cont [13/16] 0.0, 128
        %5966 = vxpose.xlu0.b32.cont [14/16] 0.0, 128
        %5967 = vxpose.xlu0.b32.cont [15/16] 0.0, 128
        %5968 = vxpose.xlu0.b32.end [16/16] 0.0, 128
        %v5969 = vpop.trf.xlu0
        %v5970 = vpop.trf.xlu0
        %v5971 = vpop.trf.xlu0
        %v5972 = vpop.trf.xlu0
        %v5973 = vpop.trf.xlu0
        %v5974 = vpop.trf.xlu0
        %v5975 = vpop.trf.xlu0
        %v5976 = vpop.trf.xlu0
        %v5977 = vpop.trf.xlu0
        %v5978 = vpop.trf.xlu0
        %v5979 = vpop.trf.xlu0
        %v5980 = vpop.trf.xlu0
        %v5981 = vpop.trf.xlu0
        %v5982 = vpop.trf.xlu0
        %v5983 = vpop.trf.xlu0
        %v5984 = vpop.trf.xlu0
        %v5989 = vrot.slane %v5969, 1
        %v5990 = vrot.slane %v5969, 2
        %v5991 = vrot.slane %v5969, 3
        %v5992 = vrot.slane %v5969, 4
        %v5993 = vrot.slane %v5969, 5
        %v5994 = vrot.slane %v5969, 6
        %v5995 = vrot.slane %v5969, 7
        %v5996 = vrot.slane %v5970, 1
        %v5997 = vrot.slane %v5970, 2
        %v5998 = vrot.slane %v5970, 3
        %v5999 = vrot.slane %v5970, 4
        %v6000 = vrot.slane %v5970, 5
        %v6001 = vrot.slane %v5970, 6
        %v6002 = vrot.slane %v5970, 7
        %v6003 = vrot.slane %v5971, 1
        %v6004 = vrot.slane %v5971, 2
        %v6005 = vrot.slane %v5971, 3
        %v6006 = vrot.slane %v5971, 4
        %v6007 = vrot.slane %v5971, 5
        %v6008 = vrot.slane %v5971, 6
        %v6009 = vrot.slane %v5971, 7
        %v6010 = vrot.slane %v5972, 1
        %v6011 = vrot.slane %v5972, 2
        %v6012 = vrot.slane %v5972, 3
        %v6013 = vrot.slane %v5972, 4
        %v6014 = vrot.slane %v5972, 5
        %v6015 = vrot.slane %v5972, 6
        %v6016 = vrot.slane %v5972, 7
        %6045 = vst.msk [vmem:[#allocation2 + $0xb] sm:$0x1] %vm3228, %v5969
        %6046 = vst.msk [vmem:[#allocation2 + $0x1b] sm:$0x1] %vm3228, %v5989
        %6047 = vst.msk [vmem:[#allocation2 + $0x2b] sm:$0x1] %vm3228, %v5990
        %6048 = vst.msk [vmem:[#allocation2 + $0x3b] sm:$0x1] %vm3228, %v5991
        %6049 = vst.msk [vmem:[#allocation2 + $0x4b] sm:$0x1] %vm3228, %v5992
        %6050 = vst.msk [vmem:[#allocation2 + $0x5b] sm:$0x1] %vm3228, %v5993
        %6051 = vst.msk [vmem:[#allocation2 + $0x6b] sm:$0x1] %vm3228, %v5994
        %6052 = vst.msk [vmem:[#allocation2 + $0x7b] sm:$0x1] %vm3228, %v5995
        %6053 = vst.msk [vmem:[#allocation2 + $0x8b] sm:$0x1] %vm3228, %v5970
        %6054 = vst.msk [vmem:[#allocation2 + $0x9b] sm:$0x1] %vm3228, %v5996
        %6055 = vst.msk [vmem:[#allocation2 + $0xab] sm:$0x1] %vm3228, %v5997
        %6056 = vst.msk [vmem:[#allocation2 + $0xbb] sm:$0x1] %vm3228, %v5998
        %6057 = vst.msk [vmem:[#allocation2 + $0xcb] sm:$0x1] %vm3228, %v5999
        %6058 = vst.msk [vmem:[#allocation2 + $0xdb] sm:$0x1] %vm3228, %v6000
        %6059 = vst.msk [vmem:[#allocation2 + $0xeb] sm:$0x1] %vm3228, %v6001
        %6060 = vst.msk [vmem:[#allocation2 + $0xfb] sm:$0x1] %vm3228, %v6002
        %6061 = vst.msk [vmem:[#allocation2 + $0x10b] sm:$0x1] %vm3228, %v5971
        %6062 = vst.msk [vmem:[#allocation2 + $0x11b] sm:$0x1] %vm3228, %v6003
        %6063 = vst.msk [vmem:[#allocation2 + $0x12b] sm:$0x1] %vm3228, %v6004
        %6064 = vst.msk [vmem:[#allocation2 + $0x13b] sm:$0x1] %vm3228, %v6005
        %6065 = vst.msk [vmem:[#allocation2 + $0x14b] sm:$0x1] %vm3228, %v6006
        %6066 = vst.msk [vmem:[#allocation2 + $0x15b] sm:$0x1] %vm3228, %v6007
        %6067 = vst.msk [vmem:[#allocation2 + $0x16b] sm:$0x1] %vm3228, %v6008
        %6068 = vst.msk [vmem:[#allocation2 + $0x17b] sm:$0x1] %vm3228, %v6009
        %6069 = vst.msk [vmem:[#allocation2 + $0x18b] sm:$0x1] %vm3228, %v5972
        %6070 = vst.msk [vmem:[#allocation2 + $0x19b] sm:$0x1] %vm3228, %v6010
        %6071 = vst.msk [vmem:[#allocation2 + $0x1ab] sm:$0x1] %vm3228, %v6011
        %6072 = vst.msk [vmem:[#allocation2 + $0x1bb] sm:$0x1] %vm3228, %v6012
        %6073 = vst.msk [vmem:[#allocation2 + $0x1cb] sm:$0x1] %vm3228, %v6013
        %6074 = vst.msk [vmem:[#allocation2 + $0x1db] sm:$0x1] %vm3228, %v6014
        %6075 = vst.msk [vmem:[#allocation2 + $0x1eb] sm:$0x1] %vm3228, %v6015
        %6076 = vst.msk [vmem:[#allocation2 + $0x1fb] sm:$0x1] %vm3228, %v6016
        %6079 = vrot.lane.b32.xlu0 %v3126, 96
        %v6080 = vpop.permute.xlu0 %6079
        %6081 = vrot.lane.b32.xlu0 %v3127, 96
        %v6082 = vpop.permute.xlu0 %6081
        %6085 = vxpose.xlu0.b32.start [1/16] %v6080, 128
        %6086 = vxpose.xlu0.b32.cont [2/16] %v6082, 128
        %6087 = vxpose.xlu0.b32.cont [3/16] 0.0, 128
        %6088 = vxpose.xlu0.b32.cont [4/16] 0.0, 128
        %6089 = vxpose.xlu0.b32.cont [5/16] 0.0, 128
        %6090 = vxpose.xlu0.b32.cont [6/16] 0.0, 128
        %6091 = vxpose.xlu0.b32.cont [7/16] 0.0, 128
        %6092 = vxpose.xlu0.b32.cont [8/16] 0.0, 128
        %6093 = vxpose.xlu0.b32.cont [9/16] 0.0, 128
        %6094 = vxpose.xlu0.b32.cont [10/16] 0.0, 128
        %6095 = vxpose.xlu0.b32.cont [11/16] 0.0, 128
        %6096 = vxpose.xlu0.b32.cont [12/16] 0.0, 128
        %6097 = vxpose.xlu0.b32.cont [13/16] 0.0, 128
        %6098 = vxpose.xlu0.b32.cont [14/16] 0.0, 128
        %6099 = vxpose.xlu0.b32.cont [15/16] 0.0, 128
        %6100 = vxpose.xlu0.b32.end [16/16] 0.0, 128
        %v6101 = vpop.trf.xlu0
        %v6102 = vpop.trf.xlu0
        %v6103 = vpop.trf.xlu0
        %v6104 = vpop.trf.xlu0
        %v6105 = vpop.trf.xlu0
        %v6106 = vpop.trf.xlu0
        %v6107 = vpop.trf.xlu0
        %v6108 = vpop.trf.xlu0
        %v6109 = vpop.trf.xlu0
        %v6110 = vpop.trf.xlu0
        %v6111 = vpop.trf.xlu0
        %v6112 = vpop.trf.xlu0
        %v6113 = vpop.trf.xlu0
        %v6114 = vpop.trf.xlu0
        %v6115 = vpop.trf.xlu0
        %v6116 = vpop.trf.xlu0
        %v6121 = vrot.slane %v6101, 1
        %v6122 = vrot.slane %v6101, 2
        %v6123 = vrot.slane %v6101, 3
        %v6124 = vrot.slane %v6101, 4
        %v6125 = vrot.slane %v6101, 5
        %v6126 = vrot.slane %v6101, 6
        %v6127 = vrot.slane %v6101, 7
        %v6128 = vrot.slane %v6102, 1
        %v6129 = vrot.slane %v6102, 2
        %v6130 = vrot.slane %v6102, 3
        %v6131 = vrot.slane %v6102, 4
        %v6132 = vrot.slane %v6102, 5
        %v6133 = vrot.slane %v6102, 6
        %v6134 = vrot.slane %v6102, 7
        %v6135 = vrot.slane %v6103, 1
        %v6136 = vrot.slane %v6103, 2
        %v6137 = vrot.slane %v6103, 3
        %v6138 = vrot.slane %v6103, 4
        %v6139 = vrot.slane %v6103, 5
        %v6140 = vrot.slane %v6103, 6
        %v6141 = vrot.slane %v6103, 7
        %v6142 = vrot.slane %v6104, 1
        %v6143 = vrot.slane %v6104, 2
        %v6144 = vrot.slane %v6104, 3
        %v6145 = vrot.slane %v6104, 4
        %v6146 = vrot.slane %v6104, 5
        %v6147 = vrot.slane %v6104, 6
        %v6148 = vrot.slane %v6104, 7
        %6177 = vst.msk [vmem:[#allocation3 + $0xb] sm:$0x1] %vm3228, %v6101
        %6178 = vst.msk [vmem:[#allocation3 + $0x1b] sm:$0x1] %vm3228, %v6121
        %6179 = vst.msk [vmem:[#allocation3 + $0x2b] sm:$0x1] %vm3228, %v6122
        %6180 = vst.msk [vmem:[#allocation3 + $0x3b] sm:$0x1] %vm3228, %v6123
        %6181 = vst.msk [vmem:[#allocation3 + $0x4b] sm:$0x1] %vm3228, %v6124
        %6182 = vst.msk [vmem:[#allocation3 + $0x5b] sm:$0x1] %vm3228, %v6125
        %6183 = vst.msk [vmem:[#allocation3 + $0x6b] sm:$0x1] %vm3228, %v6126
        %6184 = vst.msk [vmem:[#allocation3 + $0x7b] sm:$0x1] %vm3228, %v6127
        %6185 = vst.msk [vmem:[#allocation3 + $0x8b] sm:$0x1] %vm3228, %v6102
        %6186 = vst.msk [vmem:[#allocation3 + $0x9b] sm:$0x1] %vm3228, %v6128
        %6187 = vst.msk [vmem:[#allocation3 + $0xab] sm:$0x1] %vm3228, %v6129
        %6188 = vst.msk [vmem:[#allocation3 + $0xbb] sm:$0x1] %vm3228, %v6130
        %6189 = vst.msk [vmem:[#allocation3 + $0xcb] sm:$0x1] %vm3228, %v6131
        %6190 = vst.msk [vmem:[#allocation3 + $0xdb] sm:$0x1] %vm3228, %v6132
        %6191 = vst.msk [vmem:[#allocation3 + $0xeb] sm:$0x1] %vm3228, %v6133
        %6192 = vst.msk [vmem:[#allocation3 + $0xfb] sm:$0x1] %vm3228, %v6134
        %6193 = vst.msk [vmem:[#allocation3 + $0x10b] sm:$0x1] %vm3228, %v6103
        %6194 = vst.msk [vmem:[#allocation3 + $0x11b] sm:$0x1] %vm3228, %v6135
        %6195 = vst.msk [vmem:[#allocation3 + $0x12b] sm:$0x1] %vm3228, %v6136
        %6196 = vst.msk [vmem:[#allocation3 + $0x13b] sm:$0x1] %vm3228, %v6137
        %6197 = vst.msk [vmem:[#allocation3 + $0x14b] sm:$0x1] %vm3228, %v6138
        %6198 = vst.msk [vmem:[#allocation3 + $0x15b] sm:$0x1] %vm3228, %v6139
        %6199 = vst.msk [vmem:[#allocation3 + $0x16b] sm:$0x1] %vm3228, %v6140
        %6200 = vst.msk [vmem:[#allocation3 + $0x17b] sm:$0x1] %vm3228, %v6141
        %6201 = vst.msk [vmem:[#allocation3 + $0x18b] sm:$0x1] %vm3228, %v6104
        %6202 = vst.msk [vmem:[#allocation3 + $0x19b] sm:$0x1] %vm3228, %v6142
        %6203 = vst.msk [vmem:[#allocation3 + $0x1ab] sm:$0x1] %vm3228, %v6143
        %6204 = vst.msk [vmem:[#allocation3 + $0x1bb] sm:$0x1] %vm3228, %v6144
        %6205 = vst.msk [vmem:[#allocation3 + $0x1cb] sm:$0x1] %vm3228, %v6145
        %6206 = vst.msk [vmem:[#allocation3 + $0x1db] sm:$0x1] %vm3228, %v6146
        %6207 = vst.msk [vmem:[#allocation3 + $0x1eb] sm:$0x1] %vm3228, %v6147
        %6208 = vst.msk [vmem:[#allocation3 + $0x1fb] sm:$0x1] %vm3228, %v6148
        %6209 = vxpose.xlu0.b32.start [1/16] %v3128, 128
        %6210 = vxpose.xlu0.b32.cont [2/16] %v3129, 128
        %6211 = vxpose.xlu0.b32.cont [3/16] 0.0, 128
        %6212 = vxpose.xlu0.b32.cont [4/16] 0.0, 128
        %6213 = vxpose.xlu0.b32.cont [5/16] 0.0, 128
        %6214 = vxpose.xlu0.b32.cont [6/16] 0.0, 128
        %6215 = vxpose.xlu0.b32.cont [7/16] 0.0, 128
        %6216 = vxpose.xlu0.b32.cont [8/16] 0.0, 128
        %6217 = vxpose.xlu0.b32.cont [9/16] 0.0, 128
        %6218 = vxpose.xlu0.b32.cont [10/16] 0.0, 128
        %6219 = vxpose.xlu0.b32.cont [11/16] 0.0, 128
        %6220 = vxpose.xlu0.b32.cont [12/16] 0.0, 128
        %6221 = vxpose.xlu0.b32.cont [13/16] 0.0, 128
        %6222 = vxpose.xlu0.b32.cont [14/16] 0.0, 128
        %6223 = vxpose.xlu0.b32.cont [15/16] 0.0, 128
        %6224 = vxpose.xlu0.b32.end [16/16] 0.0, 128
        %v6225 = vpop.trf.xlu0
        %v6226 = vpop.trf.xlu0
        %v6227 = vpop.trf.xlu0
        %v6228 = vpop.trf.xlu0
        %v6229 = vpop.trf.xlu0
        %v6230 = vpop.trf.xlu0
        %v6231 = vpop.trf.xlu0
        %v6232 = vpop.trf.xlu0
        %v6233 = vpop.trf.xlu0
        %v6234 = vpop.trf.xlu0
        %v6235 = vpop.trf.xlu0
        %v6236 = vpop.trf.xlu0
        %v6237 = vpop.trf.xlu0
        %v6238 = vpop.trf.xlu0
        %v6239 = vpop.trf.xlu0
        %v6240 = vpop.trf.xlu0
        %v6245 = vrot.slane %v6225, 1
        %v6246 = vrot.slane %v6225, 2
        %v6247 = vrot.slane %v6225, 3
        %v6248 = vrot.slane %v6225, 4
        %v6249 = vrot.slane %v6225, 5
        %v6250 = vrot.slane %v6225, 6
        %v6251 = vrot.slane %v6225, 7
        %v6252 = vrot.slane %v6226, 1
        %v6253 = vrot.slane %v6226, 2
        %v6254 = vrot.slane %v6226, 3
        %v6255 = vrot.slane %v6226, 4
        %v6256 = vrot.slane %v6226, 5
        %v6257 = vrot.slane %v6226, 6
        %v6258 = vrot.slane %v6226, 7
        %v6259 = vrot.slane %v6227, 1
        %v6260 = vrot.slane %v6227, 2
        %v6261 = vrot.slane %v6227, 3
        %v6262 = vrot.slane %v6227, 4
        %v6263 = vrot.slane %v6227, 5
        %v6264 = vrot.slane %v6227, 6
        %v6265 = vrot.slane %v6227, 7
        %v6266 = vrot.slane %v6228, 1
        %v6267 = vrot.slane %v6228, 2
        %v6268 = vrot.slane %v6228, 3
        %v6269 = vrot.slane %v6228, 4
        %v6270 = vrot.slane %v6228, 5
        %v6271 = vrot.slane %v6228, 6
        %v6272 = vrot.slane %v6228, 7
        %6301 = vst.msk [vmem:[#allocation2 + $0xc] sm:$0x1] %vm3228, %v6225
        %6302 = vst.msk [vmem:[#allocation2 + $0x1c] sm:$0x1] %vm3228, %v6245
        %6303 = vst.msk [vmem:[#allocation2 + $0x2c] sm:$0x1] %vm3228, %v6246
        %6304 = vst.msk [vmem:[#allocation2 + $0x3c] sm:$0x1] %vm3228, %v6247
        %6305 = vst.msk [vmem:[#allocation2 + $0x4c] sm:$0x1] %vm3228, %v6248
        %6306 = vst.msk [vmem:[#allocation2 + $0x5c] sm:$0x1] %vm3228, %v6249
        %6307 = vst.msk [vmem:[#allocation2 + $0x6c] sm:$0x1] %vm3228, %v6250
        %6308 = vst.msk [vmem:[#allocation2 + $0x7c] sm:$0x1] %vm3228, %v6251
        %6309 = vst.msk [vmem:[#allocation2 + $0x8c] sm:$0x1] %vm3228, %v6226
        %6310 = vst.msk [vmem:[#allocation2 + $0x9c] sm:$0x1] %vm3228, %v6252
        %6311 = vst.msk [vmem:[#allocation2 + $0xac] sm:$0x1] %vm3228, %v6253
        %6312 = vst.msk [vmem:[#allocation2 + $0xbc] sm:$0x1] %vm3228, %v6254
        %6313 = vst.msk [vmem:[#allocation2 + $0xcc] sm:$0x1] %vm3228, %v6255
        %6314 = vst.msk [vmem:[#allocation2 + $0xdc] sm:$0x1] %vm3228, %v6256
        %6315 = vst.msk [vmem:[#allocation2 + $0xec] sm:$0x1] %vm3228, %v6257
        %6316 = vst.msk [vmem:[#allocation2 + $0xfc] sm:$0x1] %vm3228, %v6258
        %6317 = vst.msk [vmem:[#allocation2 + $0x10c] sm:$0x1] %vm3228, %v6227
        %6318 = vst.msk [vmem:[#allocation2 + $0x11c] sm:$0x1] %vm3228, %v6259
        %6319 = vst.msk [vmem:[#allocation2 + $0x12c] sm:$0x1] %vm3228, %v6260
        %6320 = vst.msk [vmem:[#allocation2 + $0x13c] sm:$0x1] %vm3228, %v6261
        %6321 = vst.msk [vmem:[#allocation2 + $0x14c] sm:$0x1] %vm3228, %v6262
        %6322 = vst.msk [vmem:[#allocation2 + $0x15c] sm:$0x1] %vm3228, %v6263
        %6323 = vst.msk [vmem:[#allocation2 + $0x16c] sm:$0x1] %vm3228, %v6264
        %6324 = vst.msk [vmem:[#allocation2 + $0x17c] sm:$0x1] %vm3228, %v6265
        %6325 = vst.msk [vmem:[#allocation2 + $0x18c] sm:$0x1] %vm3228, %v6228
        %6326 = vst.msk [vmem:[#allocation2 + $0x19c] sm:$0x1] %vm3228, %v6266
        %6327 = vst.msk [vmem:[#allocation2 + $0x1ac] sm:$0x1] %vm3228, %v6267
        %6328 = vst.msk [vmem:[#allocation2 + $0x1bc] sm:$0x1] %vm3228, %v6268
        %6329 = vst.msk [vmem:[#allocation2 + $0x1cc] sm:$0x1] %vm3228, %v6269
        %6330 = vst.msk [vmem:[#allocation2 + $0x1dc] sm:$0x1] %vm3228, %v6270
        %6331 = vst.msk [vmem:[#allocation2 + $0x1ec] sm:$0x1] %vm3228, %v6271
        %6332 = vst.msk [vmem:[#allocation2 + $0x1fc] sm:$0x1] %vm3228, %v6272
        %6335 = vrot.lane.b32.xlu0 %v3128, 96
        %v6336 = vpop.permute.xlu0 %6335
        %6337 = vrot.lane.b32.xlu0 %v3129, 96
        %v6338 = vpop.permute.xlu0 %6337
        %6341 = vxpose.xlu0.b32.start [1/16] %v6336, 128
        %6342 = vxpose.xlu0.b32.cont [2/16] %v6338, 128
        %6343 = vxpose.xlu0.b32.cont [3/16] 0.0, 128
        %6344 = vxpose.xlu0.b32.cont [4/16] 0.0, 128
        %6345 = vxpose.xlu0.b32.cont [5/16] 0.0, 128
        %6346 = vxpose.xlu0.b32.cont [6/16] 0.0, 128
        %6347 = vxpose.xlu0.b32.cont [7/16] 0.0, 128
        %6348 = vxpose.xlu0.b32.cont [8/16] 0.0, 128
        %6349 = vxpose.xlu0.b32.cont [9/16] 0.0, 128
        %6350 = vxpose.xlu0.b32.cont [10/16] 0.0, 128
        %6351 = vxpose.xlu0.b32.cont [11/16] 0.0, 128
        %6352 = vxpose.xlu0.b32.cont [12/16] 0.0, 128
        %6353 = vxpose.xlu0.b32.cont [13/16] 0.0, 128
        %6354 = vxpose.xlu0.b32.cont [14/16] 0.0, 128
        %6355 = vxpose.xlu0.b32.cont [15/16] 0.0, 128
        %6356 = vxpose.xlu0.b32.end [16/16] 0.0, 128
        %v6357 = vpop.trf.xlu0
        %v6358 = vpop.trf.xlu0
        %v6359 = vpop.trf.xlu0
        %v6360 = vpop.trf.xlu0
        %v6361 = vpop.trf.xlu0
        %v6362 = vpop.trf.xlu0
        %v6363 = vpop.trf.xlu0
        %v6364 = vpop.trf.xlu0
        %v6365 = vpop.trf.xlu0
        %v6366 = vpop.trf.xlu0
        %v6367 = vpop.trf.xlu0
        %v6368 = vpop.trf.xlu0
        %v6369 = vpop.trf.xlu0
        %v6370 = vpop.trf.xlu0
        %v6371 = vpop.trf.xlu0
        %v6372 = vpop.trf.xlu0
        %v6377 = vrot.slane %v6357, 1
        %v6378 = vrot.slane %v6357, 2
        %v6379 = vrot.slane %v6357, 3
        %v6380 = vrot.slane %v6357, 4
        %v6381 = vrot.slane %v6357, 5
        %v6382 = vrot.slane %v6357, 6
        %v6383 = vrot.slane %v6357, 7
        %v6384 = vrot.slane %v6358, 1
        %v6385 = vrot.slane %v6358, 2
        %v6386 = vrot.slane %v6358, 3
        %v6387 = vrot.slane %v6358, 4
        %v6388 = vrot.slane %v6358, 5
        %v6389 = vrot.slane %v6358, 6
        %v6390 = vrot.slane %v6358, 7
        %v6391 = vrot.slane %v6359, 1
        %v6392 = vrot.slane %v6359, 2
        %v6393 = vrot.slane %v6359, 3
        %v6394 = vrot.slane %v6359, 4
        %v6395 = vrot.slane %v6359, 5
        %v6396 = vrot.slane %v6359, 6
        %v6397 = vrot.slane %v6359, 7
        %v6398 = vrot.slane %v6360, 1
        %v6399 = vrot.slane %v6360, 2
        %v6400 = vrot.slane %v6360, 3
        %v6401 = vrot.slane %v6360, 4
        %v6402 = vrot.slane %v6360, 5
        %v6403 = vrot.slane %v6360, 6
        %v6404 = vrot.slane %v6360, 7
        %6433 = vst.msk [vmem:[#allocation3 + $0xc] sm:$0x1] %vm3228, %v6357
        %6434 = vst.msk [vmem:[#allocation3 + $0x1c] sm:$0x1] %vm3228, %v6377
        %6435 = vst.msk [vmem:[#allocation3 + $0x2c] sm:$0x1] %vm3228, %v6378
        %6436 = vst.msk [vmem:[#allocation3 + $0x3c] sm:$0x1] %vm3228, %v6379
        %6437 = vst.msk [vmem:[#allocation3 + $0x4c] sm:$0x1] %vm3228, %v6380
        %6438 = vst.msk [vmem:[#allocation3 + $0x5c] sm:$0x1] %vm3228, %v6381
        %6439 = vst.msk [vmem:[#allocation3 + $0x6c] sm:$0x1] %vm3228, %v6382
        %6440 = vst.msk [vmem:[#allocation3 + $0x7c] sm:$0x1] %vm3228, %v6383
        %6441 = vst.msk [vmem:[#allocation3 + $0x8c] sm:$0x1] %vm3228, %v6358
        %6442 = vst.msk [vmem:[#allocation3 + $0x9c] sm:$0x1] %vm3228, %v6384
        %6443 = vst.msk [vmem:[#allocation3 + $0xac] sm:$0x1] %vm3228, %v6385
        %6444 = vst.msk [vmem:[#allocation3 + $0xbc] sm:$0x1] %vm3228, %v6386
        %6445 = vst.msk [vmem:[#allocation3 + $0xcc] sm:$0x1] %vm3228, %v6387
        %6446 = vst.msk [vmem:[#allocation3 + $0xdc] sm:$0x1] %vm3228, %v6388
        %6447 = vst.msk [vmem:[#allocation3 + $0xec] sm:$0x1] %vm3228, %v6389
        %6448 = vst.msk [vmem:[#allocation3 + $0xfc] sm:$0x1] %vm3228, %v6390
        %6449 = vst.msk [vmem:[#allocation3 + $0x10c] sm:$0x1] %vm3228, %v6359
        %6450 = vst.msk [vmem:[#allocation3 + $0x11c] sm:$0x1] %vm3228, %v6391
        %6451 = vst.msk [vmem:[#allocation3 + $0x12c] sm:$0x1] %vm3228, %v6392
        %6452 = vst.msk [vmem:[#allocation3 + $0x13c] sm:$0x1] %vm3228, %v6393
        %6453 = vst.msk [vmem:[#allocation3 + $0x14c] sm:$0x1] %vm3228, %v6394
        %6454 = vst.msk [vmem:[#allocation3 + $0x15c] sm:$0x1] %vm3228, %v6395
        %6455 = vst.msk [vmem:[#allocation3 + $0x16c] sm:$0x1] %vm3228, %v6396
        %6456 = vst.msk [vmem:[#allocation3 + $0x17c] sm:$0x1] %vm3228, %v6397
        %6457 = vst.msk [vmem:[#allocation3 + $0x18c] sm:$0x1] %vm3228, %v6360
        %6458 = vst.msk [vmem:[#allocation3 + $0x19c] sm:$0x1] %vm3228, %v6398
        %6459 = vst.msk [vmem:[#allocation3 + $0x1ac] sm:$0x1] %vm3228, %v6399
        %6460 = vst.msk [vmem:[#allocation3 + $0x1bc] sm:$0x1] %vm3228, %v6400
        %6461 = vst.msk [vmem:[#allocation3 + $0x1cc] sm:$0x1] %vm3228, %v6401
        %6462 = vst.msk [vmem:[#allocation3 + $0x1dc] sm:$0x1] %vm3228, %v6402
        %6463 = vst.msk [vmem:[#allocation3 + $0x1ec] sm:$0x1] %vm3228, %v6403
        %6464 = vst.msk [vmem:[#allocation3 + $0x1fc] sm:$0x1] %vm3228, %v6404
        %6465 = vxpose.xlu0.b32.start [1/16] %v3130, 128
        %6466 = vxpose.xlu0.b32.cont [2/16] %v3131, 128
        %6467 = vxpose.xlu0.b32.cont [3/16] 0.0, 128
        %6468 = vxpose.xlu0.b32.cont [4/16] 0.0, 128
        %6469 = vxpose.xlu0.b32.cont [5/16] 0.0, 128
        %6470 = vxpose.xlu0.b32.cont [6/16] 0.0, 128
        %6471 = vxpose.xlu0.b32.cont [7/16] 0.0, 128
        %6472 = vxpose.xlu0.b32.cont [8/16] 0.0, 128
        %6473 = vxpose.xlu0.b32.cont [9/16] 0.0, 128
        %6474 = vxpose.xlu0.b32.cont [10/16] 0.0, 128
        %6475 = vxpose.xlu0.b32.cont [11/16] 0.0, 128
        %6476 = vxpose.xlu0.b32.cont [12/16] 0.0, 128
        %6477 = vxpose.xlu0.b32.cont [13/16] 0.0, 128
        %6478 = vxpose.xlu0.b32.cont [14/16] 0.0, 128
        %6479 = vxpose.xlu0.b32.cont [15/16] 0.0, 128
        %6480 = vxpose.xlu0.b32.end [16/16] 0.0, 128
        %v6481 = vpop.trf.xlu0
        %v6482 = vpop.trf.xlu0
        %v6483 = vpop.trf.xlu0
        %v6484 = vpop.trf.xlu0
        %v6485 = vpop.trf.xlu0
        %v6486 = vpop.trf.xlu0
        %v6487 = vpop.trf.xlu0
        %v6488 = vpop.trf.xlu0
        %v6489 = vpop.trf.xlu0
        %v6490 = vpop.trf.xlu0
        %v6491 = vpop.trf.xlu0
        %v6492 = vpop.trf.xlu0
        %v6493 = vpop.trf.xlu0
        %v6494 = vpop.trf.xlu0
        %v6495 = vpop.trf.xlu0
        %v6496 = vpop.trf.xlu0
        %v6501 = vrot.slane %v6481, 1
        %v6502 = vrot.slane %v6481, 2
        %v6503 = vrot.slane %v6481, 3
        %v6504 = vrot.slane %v6481, 4
        %v6505 = vrot.slane %v6481, 5
        %v6506 = vrot.slane %v6481, 6
        %v6507 = vrot.slane %v6481, 7
        %v6508 = vrot.slane %v6482, 1
        %v6509 = vrot.slane %v6482, 2
        %v6510 = vrot.slane %v6482, 3
        %v6511 = vrot.slane %v6482, 4
        %v6512 = vrot.slane %v6482, 5
        %v6513 = vrot.slane %v6482, 6
        %v6514 = vrot.slane %v6482, 7
        %v6515 = vrot.slane %v6483, 1
        %v6516 = vrot.slane %v6483, 2
        %v6517 = vrot.slane %v6483, 3
        %v6518 = vrot.slane %v6483, 4
        %v6519 = vrot.slane %v6483, 5
        %v6520 = vrot.slane %v6483, 6
        %v6521 = vrot.slane %v6483, 7
        %v6522 = vrot.slane %v6484, 1
        %v6523 = vrot.slane %v6484, 2
        %v6524 = vrot.slane %v6484, 3
        %v6525 = vrot.slane %v6484, 4
        %v6526 = vrot.slane %v6484, 5
        %v6527 = vrot.slane %v6484, 6
        %v6528 = vrot.slane %v6484, 7
        %6557 = vst.msk [vmem:[#allocation2 + $0xd] sm:$0x1] %vm3228, %v6481
        %6558 = vst.msk [vmem:[#allocation2 + $0x1d] sm:$0x1] %vm3228, %v6501
        %6559 = vst.msk [vmem:[#allocation2 + $0x2d] sm:$0x1] %vm3228, %v6502
        %6560 = vst.msk [vmem:[#allocation2 + $0x3d] sm:$0x1] %vm3228, %v6503
        %6561 = vst.msk [vmem:[#allocation2 + $0x4d] sm:$0x1] %vm3228, %v6504
        %6562 = vst.msk [vmem:[#allocation2 + $0x5d] sm:$0x1] %vm3228, %v6505
        %6563 = vst.msk [vmem:[#allocation2 + $0x6d] sm:$0x1] %vm3228, %v6506
        %6564 = vst.msk [vmem:[#allocation2 + $0x7d] sm:$0x1] %vm3228, %v6507
        %6565 = vst.msk [vmem:[#allocation2 + $0x8d] sm:$0x1] %vm3228, %v6482
        %6566 = vst.msk [vmem:[#allocation2 + $0x9d] sm:$0x1] %vm3228, %v6508
        %6567 = vst.msk [vmem:[#allocation2 + $0xad] sm:$0x1] %vm3228, %v6509
        %6568 = vst.msk [vmem:[#allocation2 + $0xbd] sm:$0x1] %vm3228, %v6510
        %6569 = vst.msk [vmem:[#allocation2 + $0xcd] sm:$0x1] %vm3228, %v6511
        %6570 = vst.msk [vmem:[#allocation2 + $0xdd] sm:$0x1] %vm3228, %v6512
        %6571 = vst.msk [vmem:[#allocation2 + $0xed] sm:$0x1] %vm3228, %v6513
        %6572 = vst.msk [vmem:[#allocation2 + $0xfd] sm:$0x1] %vm3228, %v6514
        %6573 = vst.msk [vmem:[#allocation2 + $0x10d] sm:$0x1] %vm3228, %v6483
        %6574 = vst.msk [vmem:[#allocation2 + $0x11d] sm:$0x1] %vm3228, %v6515
        %6575 = vst.msk [vmem:[#allocation2 + $0x12d] sm:$0x1] %vm3228, %v6516
        %6576 = vst.msk [vmem:[#allocation2 + $0x13d] sm:$0x1] %vm3228, %v6517
        %6577 = vst.msk [vmem:[#allocation2 + $0x14d] sm:$0x1] %vm3228, %v6518
        %6578 = vst.msk [vmem:[#allocation2 + $0x15d] sm:$0x1] %vm3228, %v6519
        %6579 = vst.msk [vmem:[#allocation2 + $0x16d] sm:$0x1] %vm3228, %v6520
        %6580 = vst.msk [vmem:[#allocation2 + $0x17d] sm:$0x1] %vm3228, %v6521
        %6581 = vst.msk [vmem:[#allocation2 + $0x18d] sm:$0x1] %vm3228, %v6484
        %6582 = vst.msk [vmem:[#allocation2 + $0x19d] sm:$0x1] %vm3228, %v6522
        %6583 = vst.msk [vmem:[#allocation2 + $0x1ad] sm:$0x1] %vm3228, %v6523
        %6584 = vst.msk [vmem:[#allocation2 + $0x1bd] sm:$0x1] %vm3228, %v6524
        %6585 = vst.msk [vmem:[#allocation2 + $0x1cd] sm:$0x1] %vm3228, %v6525
        %6586 = vst.msk [vmem:[#allocation2 + $0x1dd] sm:$0x1] %vm3228, %v6526
        %6587 = vst.msk [vmem:[#allocation2 + $0x1ed] sm:$0x1] %vm3228, %v6527
        %6588 = vst.msk [vmem:[#allocation2 + $0x1fd] sm:$0x1] %vm3228, %v6528
        %6591 = vrot.lane.b32.xlu0 %v3130, 96
        %v6592 = vpop.permute.xlu0 %6591
        %6593 = vrot.lane.b32.xlu0 %v3131, 96
        %v6594 = vpop.permute.xlu0 %6593
        %6597 = vxpose.xlu0.b32.start [1/16] %v6592, 128
        %6598 = vxpose.xlu0.b32.cont [2/16] %v6594, 128
        %6599 = vxpose.xlu0.b32.cont [3/16] 0.0, 128
        %6600 = vxpose.xlu0.b32.cont [4/16] 0.0, 128
        %6601 = vxpose.xlu0.b32.cont [5/16] 0.0, 128
        %6602 = vxpose.xlu0.b32.cont [6/16] 0.0, 128
        %6603 = vxpose.xlu0.b32.cont [7/16] 0.0, 128
        %6604 = vxpose.xlu0.b32.cont [8/16] 0.0, 128
        %6605 = vxpose.xlu0.b32.cont [9/16] 0.0, 128
        %6606 = vxpose.xlu0.b32.cont [10/16] 0.0, 128
        %6607 = vxpose.xlu0.b32.cont [11/16] 0.0, 128
        %6608 = vxpose.xlu0.b32.cont [12/16] 0.0, 128
        %6609 = vxpose.xlu0.b32.cont [13/16] 0.0, 128
        %6610 = vxpose.xlu0.b32.cont [14/16] 0.0, 128
        %6611 = vxpose.xlu0.b32.cont [15/16] 0.0, 128
        %6612 = vxpose.xlu0.b32.end [16/16] 0.0, 128
        %v6613 = vpop.trf.xlu0
        %v6614 = vpop.trf.xlu0
        %v6615 = vpop.trf.xlu0
        %v6616 = vpop.trf.xlu0
        %v6617 = vpop.trf.xlu0
        %v6618 = vpop.trf.xlu0
        %v6619 = vpop.trf.xlu0
        %v6620 = vpop.trf.xlu0
        %v6621 = vpop.trf.xlu0
        %v6622 = vpop.trf.xlu0
        %v6623 = vpop.trf.xlu0
        %v6624 = vpop.trf.xlu0
        %v6625 = vpop.trf.xlu0
        %v6626 = vpop.trf.xlu0
        %v6627 = vpop.trf.xlu0
        %v6628 = vpop.trf.xlu0
        %v6633 = vrot.slane %v6613, 1
        %v6634 = vrot.slane %v6613, 2
        %v6635 = vrot.slane %v6613, 3
        %v6636 = vrot.slane %v6613, 4
        %v6637 = vrot.slane %v6613, 5
        %v6638 = vrot.slane %v6613, 6
        %v6639 = vrot.slane %v6613, 7
        %v6640 = vrot.slane %v6614, 1
        %v6641 = vrot.slane %v6614, 2
        %v6642 = vrot.slane %v6614, 3
        %v6643 = vrot.slane %v6614, 4
        %v6644 = vrot.slane %v6614, 5
        %v6645 = vrot.slane %v6614, 6
        %v6646 = vrot.slane %v6614, 7
        %v6647 = vrot.slane %v6615, 1
        %v6648 = vrot.slane %v6615, 2
        %v6649 = vrot.slane %v6615, 3
        %v6650 = vrot.slane %v6615, 4
        %v6651 = vrot.slane %v6615, 5
        %v6652 = vrot.slane %v6615, 6
        %v6653 = vrot.slane %v6615, 7
        %v6654 = vrot.slane %v6616, 1
        %v6655 = vrot.slane %v6616, 2
        %v6656 = vrot.slane %v6616, 3
        %v6657 = vrot.slane %v6616, 4
        %v6658 = vrot.slane %v6616, 5
        %v6659 = vrot.slane %v6616, 6
        %v6660 = vrot.slane %v6616, 7
        %6689 = vst.msk [vmem:[#allocation3 + $0xd] sm:$0x1] %vm3228, %v6613
        %6690 = vst.msk [vmem:[#allocation3 + $0x1d] sm:$0x1] %vm3228, %v6633
        %6691 = vst.msk [vmem:[#allocation3 + $0x2d] sm:$0x1] %vm3228, %v6634
        %6692 = vst.msk [vmem:[#allocation3 + $0x3d] sm:$0x1] %vm3228, %v6635
        %6693 = vst.msk [vmem:[#allocation3 + $0x4d] sm:$0x1] %vm3228, %v6636
        %6694 = vst.msk [vmem:[#allocation3 + $0x5d] sm:$0x1] %vm3228, %v6637
        %6695 = vst.msk [vmem:[#allocation3 + $0x6d] sm:$0x1] %vm3228, %v6638
        %6696 = vst.msk [vmem:[#allocation3 + $0x7d] sm:$0x1] %vm3228, %v6639
        %6697 = vst.msk [vmem:[#allocation3 + $0x8d] sm:$0x1] %vm3228, %v6614
        %6698 = vst.msk [vmem:[#allocation3 + $0x9d] sm:$0x1] %vm3228, %v6640
        %6699 = vst.msk [vmem:[#allocation3 + $0xad] sm:$0x1] %vm3228, %v6641
        %6700 = vst.msk [vmem:[#allocation3 + $0xbd] sm:$0x1] %vm3228, %v6642
        %6701 = vst.msk [vmem:[#allocation3 + $0xcd] sm:$0x1] %vm3228, %v6643
        %6702 = vst.msk [vmem:[#allocation3 + $0xdd] sm:$0x1] %vm3228, %v6644
        %6703 = vst.msk [vmem:[#allocation3 + $0xed] sm:$0x1] %vm3228, %v6645
        %6704 = vst.msk [vmem:[#allocation3 + $0xfd] sm:$0x1] %vm3228, %v6646
        %6705 = vst.msk [vmem:[#allocation3 + $0x10d] sm:$0x1] %vm3228, %v6615
        %6706 = vst.msk [vmem:[#allocation3 + $0x11d] sm:$0x1] %vm3228, %v6647
        %6707 = vst.msk [vmem:[#allocation3 + $0x12d] sm:$0x1] %vm3228, %v6648
        %6708 = vst.msk [vmem:[#allocation3 + $0x13d] sm:$0x1] %vm3228, %v6649
        %6709 = vst.msk [vmem:[#allocation3 + $0x14d] sm:$0x1] %vm3228, %v6650
        %6710 = vst.msk [vmem:[#allocation3 + $0x15d] sm:$0x1] %vm3228, %v6651
        %6711 = vst.msk [vmem:[#allocation3 + $0x16d] sm:$0x1] %vm3228, %v6652
        %6712 = vst.msk [vmem:[#allocation3 + $0x17d] sm:$0x1] %vm3228, %v6653
        %6713 = vst.msk [vmem:[#allocation3 + $0x18d] sm:$0x1] %vm3228, %v6616
        %6714 = vst.msk [vmem:[#allocation3 + $0x19d] sm:$0x1] %vm3228, %v6654
        %6715 = vst.msk [vmem:[#allocation3 + $0x1ad] sm:$0x1] %vm3228, %v6655
        %6716 = vst.msk [vmem:[#allocation3 + $0x1bd] sm:$0x1] %vm3228, %v6656
        %6717 = vst.msk [vmem:[#allocation3 + $0x1cd] sm:$0x1] %vm3228, %v6657
        %6718 = vst.msk [vmem:[#allocation3 + $0x1dd] sm:$0x1] %vm3228, %v6658
        %6719 = vst.msk [vmem:[#allocation3 + $0x1ed] sm:$0x1] %vm3228, %v6659
        %6720 = vst.msk [vmem:[#allocation3 + $0x1fd] sm:$0x1] %vm3228, %v6660
        %6721 = vxpose.xlu0.b32.start [1/16] %v3132, 128
        %6722 = vxpose.xlu0.b32.cont [2/16] %v3133, 128
        %6723 = vxpose.xlu0.b32.cont [3/16] 0.0, 128
        %6724 = vxpose.xlu0.b32.cont [4/16] 0.0, 128
        %6725 = vxpose.xlu0.b32.cont [5/16] 0.0, 128
        %6726 = vxpose.xlu0.b32.cont [6/16] 0.0, 128
        %6727 = vxpose.xlu0.b32.cont [7/16] 0.0, 128
        %6728 = vxpose.xlu0.b32.cont [8/16] 0.0, 128
        %6729 = vxpose.xlu0.b32.cont [9/16] 0.0, 128
        %6730 = vxpose.xlu0.b32.cont [10/16] 0.0, 128
        %6731 = vxpose.xlu0.b32.cont [11/16] 0.0, 128
        %6732 = vxpose.xlu0.b32.cont [12/16] 0.0, 128
        %6733 = vxpose.xlu0.b32.cont [13/16] 0.0, 128
        %6734 = vxpose.xlu0.b32.cont [14/16] 0.0, 128
        %6735 = vxpose.xlu0.b32.cont [15/16] 0.0, 128
        %6736 = vxpose.xlu0.b32.end [16/16] 0.0, 128
        %v6737 = vpop.trf.xlu0
        %v6738 = vpop.trf.xlu0
        %v6739 = vpop.trf.xlu0
        %v6740 = vpop.trf.xlu0
        %v6741 = vpop.trf.xlu0
        %v6742 = vpop.trf.xlu0
        %v6743 = vpop.trf.xlu0
        %v6744 = vpop.trf.xlu0
        %v6745 = vpop.trf.xlu0
        %v6746 = vpop.trf.xlu0
        %v6747 = vpop.trf.xlu0
        %v6748 = vpop.trf.xlu0
        %v6749 = vpop.trf.xlu0
        %v6750 = vpop.trf.xlu0
        %v6751 = vpop.trf.xlu0
        %v6752 = vpop.trf.xlu0
        %v6757 = vrot.slane %v6737, 1
        %v6758 = vrot.slane %v6737, 2
        %v6759 = vrot.slane %v6737, 3
        %v6760 = vrot.slane %v6737, 4
        %v6761 = vrot.slane %v6737, 5
        %v6762 = vrot.slane %v6737, 6
        %v6763 = vrot.slane %v6737, 7
        %v6764 = vrot.slane %v6738, 1
        %v6765 = vrot.slane %v6738, 2
        %v6766 = vrot.slane %v6738, 3
        %v6767 = vrot.slane %v6738, 4
        %v6768 = vrot.slane %v6738, 5
        %v6769 = vrot.slane %v6738, 6
        %v6770 = vrot.slane %v6738, 7
        %v6771 = vrot.slane %v6739, 1
        %v6772 = vrot.slane %v6739, 2
        %v6773 = vrot.slane %v6739, 3
        %v6774 = vrot.slane %v6739, 4
        %v6775 = vrot.slane %v6739, 5
        %v6776 = vrot.slane %v6739, 6
        %v6777 = vrot.slane %v6739, 7
        %v6778 = vrot.slane %v6740, 1
        %v6779 = vrot.slane %v6740, 2
        %v6780 = vrot.slane %v6740, 3
        %v6781 = vrot.slane %v6740, 4
        %v6782 = vrot.slane %v6740, 5
        %v6783 = vrot.slane %v6740, 6
        %v6784 = vrot.slane %v6740, 7
        %6813 = vst.msk [vmem:[#allocation2 + $0xe] sm:$0x1] %vm3228, %v6737
        %6814 = vst.msk [vmem:[#allocation2 + $0x1e] sm:$0x1] %vm3228, %v6757
        %6815 = vst.msk [vmem:[#allocation2 + $0x2e] sm:$0x1] %vm3228, %v6758
        %6816 = vst.msk [vmem:[#allocation2 + $0x3e] sm:$0x1] %vm3228, %v6759
        %6817 = vst.msk [vmem:[#allocation2 + $0x4e] sm:$0x1] %vm3228, %v6760
        %6818 = vst.msk [vmem:[#allocation2 + $0x5e] sm:$0x1] %vm3228, %v6761
        %6819 = vst.msk [vmem:[#allocation2 + $0x6e] sm:$0x1] %vm3228, %v6762
        %6820 = vst.msk [vmem:[#allocation2 + $0x7e] sm:$0x1] %vm3228, %v6763
        %6821 = vst.msk [vmem:[#allocation2 + $0x8e] sm:$0x1] %vm3228, %v6738
        %6822 = vst.msk [vmem:[#allocation2 + $0x9e] sm:$0x1] %vm3228, %v6764
        %6823 = vst.msk [vmem:[#allocation2 + $0xae] sm:$0x1] %vm3228, %v6765
        %6824 = vst.msk [vmem:[#allocation2 + $0xbe] sm:$0x1] %vm3228, %v6766
        %6825 = vst.msk [vmem:[#allocation2 + $0xce] sm:$0x1] %vm3228, %v6767
        %6826 = vst.msk [vmem:[#allocation2 + $0xde] sm:$0x1] %vm3228, %v6768
        %6827 = vst.msk [vmem:[#allocation2 + $0xee] sm:$0x1] %vm3228, %v6769
        %6828 = vst.msk [vmem:[#allocation2 + $0xfe] sm:$0x1] %vm3228, %v6770
        %6829 = vst.msk [vmem:[#allocation2 + $0x10e] sm:$0x1] %vm3228, %v6739
        %6830 = vst.msk [vmem:[#allocation2 + $0x11e] sm:$0x1] %vm3228, %v6771
        %6831 = vst.msk [vmem:[#allocation2 + $0x12e] sm:$0x1] %vm3228, %v6772
        %6832 = vst.msk [vmem:[#allocation2 + $0x13e] sm:$0x1] %vm3228, %v6773
        %6833 = vst.msk [vmem:[#allocation2 + $0x14e] sm:$0x1] %vm3228, %v6774
        %6834 = vst.msk [vmem:[#allocation2 + $0x15e] sm:$0x1] %vm3228, %v6775
        %6835 = vst.msk [vmem:[#allocation2 + $0x16e] sm:$0x1] %vm3228, %v6776
        %6836 = vst.msk [vmem:[#allocation2 + $0x17e] sm:$0x1] %vm3228, %v6777
        %6837 = vst.msk [vmem:[#allocation2 + $0x18e] sm:$0x1] %vm3228, %v6740
        %6838 = vst.msk [vmem:[#allocation2 + $0x19e] sm:$0x1] %vm3228, %v6778
        %6839 = vst.msk [vmem:[#allocation2 + $0x1ae] sm:$0x1] %vm3228, %v6779
        %6840 = vst.msk [vmem:[#allocation2 + $0x1be] sm:$0x1] %vm3228, %v6780
        %6841 = vst.msk [vmem:[#allocation2 + $0x1ce] sm:$0x1] %vm3228, %v6781
        %6842 = vst.msk [vmem:[#allocation2 + $0x1de] sm:$0x1] %vm3228, %v6782
        %6843 = vst.msk [vmem:[#allocation2 + $0x1ee] sm:$0x1] %vm3228, %v6783
        %6844 = vst.msk [vmem:[#allocation2 + $0x1fe] sm:$0x1] %vm3228, %v6784
        %6847 = vrot.lane.b32.xlu0 %v3132, 96
        %v6848 = vpop.permute.xlu0 %6847
        %6849 = vrot.lane.b32.xlu0 %v3133, 96
        %v6850 = vpop.permute.xlu0 %6849
        %6853 = vxpose.xlu0.b32.start [1/16] %v6848, 128
        %6854 = vxpose.xlu0.b32.cont [2/16] %v6850, 128
        %6855 = vxpose.xlu0.b32.cont [3/16] 0.0, 128
        %6856 = vxpose.xlu0.b32.cont [4/16] 0.0, 128
        %6857 = vxpose.xlu0.b32.cont [5/16] 0.0, 128
        %6858 = vxpose.xlu0.b32.cont [6/16] 0.0, 128
        %6859 = vxpose.xlu0.b32.cont [7/16] 0.0, 128
        %6860 = vxpose.xlu0.b32.cont [8/16] 0.0, 128
        %6861 = vxpose.xlu0.b32.cont [9/16] 0.0, 128
        %6862 = vxpose.xlu0.b32.cont [10/16] 0.0, 128
        %6863 = vxpose.xlu0.b32.cont [11/16] 0.0, 128
        %6864 = vxpose.xlu0.b32.cont [12/16] 0.0, 128
        %6865 = vxpose.xlu0.b32.cont [13/16] 0.0, 128
        %6866 = vxpose.xlu0.b32.cont [14/16] 0.0, 128
        %6867 = vxpose.xlu0.b32.cont [15/16] 0.0, 128
        %6868 = vxpose.xlu0.b32.end [16/16] 0.0, 128
        %v6869 = vpop.trf.xlu0
        %v6870 = vpop.trf.xlu0
        %v6871 = vpop.trf.xlu0
        %v6872 = vpop.trf.xlu0
        %v6873 = vpop.trf.xlu0
        %v6874 = vpop.trf.xlu0
        %v6875 = vpop.trf.xlu0
        %v6876 = vpop.trf.xlu0
        %v6877 = vpop.trf.xlu0
        %v6878 = vpop.trf.xlu0
        %v6879 = vpop.trf.xlu0
        %v6880 = vpop.trf.xlu0
        %v6881 = vpop.trf.xlu0
        %v6882 = vpop.trf.xlu0
        %v6883 = vpop.trf.xlu0
        %v6884 = vpop.trf.xlu0
        %v6889 = vrot.slane %v6869, 1
        %v6890 = vrot.slane %v6869, 2
        %v6891 = vrot.slane %v6869, 3
        %v6892 = vrot.slane %v6869, 4
        %v6893 = vrot.slane %v6869, 5
        %v6894 = vrot.slane %v6869, 6
        %v6895 = vrot.slane %v6869, 7
        %v6896 = vrot.slane %v6870, 1
        %v6897 = vrot.slane %v6870, 2
        %v6898 = vrot.slane %v6870, 3
        %v6899 = vrot.slane %v6870, 4
        %v6900 = vrot.slane %v6870, 5
        %v6901 = vrot.slane %v6870, 6
        %v6902 = vrot.slane %v6870, 7
        %v6903 = vrot.slane %v6871, 1
        %v6904 = vrot.slane %v6871, 2
        %v6905 = vrot.slane %v6871, 3
        %v6906 = vrot.slane %v6871, 4
        %v6907 = vrot.slane %v6871, 5
        %v6908 = vrot.slane %v6871, 6
        %v6909 = vrot.slane %v6871, 7
        %v6910 = vrot.slane %v6872, 1
        %v6911 = vrot.slane %v6872, 2
        %v6912 = vrot.slane %v6872, 3
        %v6913 = vrot.slane %v6872, 4
        %v6914 = vrot.slane %v6872, 5
        %v6915 = vrot.slane %v6872, 6
        %v6916 = vrot.slane %v6872, 7
        %6945 = vst.msk [vmem:[#allocation3 + $0xe] sm:$0x1] %vm3228, %v6869
        %6946 = vst.msk [vmem:[#allocation3 + $0x1e] sm:$0x1] %vm3228, %v6889
        %6947 = vst.msk [vmem:[#allocation3 + $0x2e] sm:$0x1] %vm3228, %v6890
        %6948 = vst.msk [vmem:[#allocation3 + $0x3e] sm:$0x1] %vm3228, %v6891
        %6949 = vst.msk [vmem:[#allocation3 + $0x4e] sm:$0x1] %vm3228, %v6892
        %6950 = vst.msk [vmem:[#allocation3 + $0x5e] sm:$0x1] %vm3228, %v6893
        %6951 = vst.msk [vmem:[#allocation3 + $0x6e] sm:$0x1] %vm3228, %v6894
        %6952 = vst.msk [vmem:[#allocation3 + $0x7e] sm:$0x1] %vm3228, %v6895
        %6953 = vst.msk [vmem:[#allocation3 + $0x8e] sm:$0x1] %vm3228, %v6870
        %6954 = vst.msk [vmem:[#allocation3 + $0x9e] sm:$0x1] %vm3228, %v6896
        %6955 = vst.msk [vmem:[#allocation3 + $0xae] sm:$0x1] %vm3228, %v6897
        %6956 = vst.msk [vmem:[#allocation3 + $0xbe] sm:$0x1] %vm3228, %v6898
        %6957 = vst.msk [vmem:[#allocation3 + $0xce] sm:$0x1] %vm3228, %v6899
        %6958 = vst.msk [vmem:[#allocation3 + $0xde] sm:$0x1] %vm3228, %v6900
        %6959 = vst.msk [vmem:[#allocation3 + $0xee] sm:$0x1] %vm3228, %v6901
        %6960 = vst.msk [vmem:[#allocation3 + $0xfe] sm:$0x1] %vm3228, %v6902
        %6961 = vst.msk [vmem:[#allocation3 + $0x10e] sm:$0x1] %vm3228, %v6871
        %6962 = vst.msk [vmem:[#allocation3 + $0x11e] sm:$0x1] %vm3228, %v6903
        %6963 = vst.msk [vmem:[#allocation3 + $0x12e] sm:$0x1] %vm3228, %v6904
        %6964 = vst.msk [vmem:[#allocation3 + $0x13e] sm:$0x1] %vm3228, %v6905
        %6965 = vst.msk [vmem:[#allocation3 + $0x14e] sm:$0x1] %vm3228, %v6906
        %6966 = vst.msk [vmem:[#allocation3 + $0x15e] sm:$0x1] %vm3228, %v6907
        %6967 = vst.msk [vmem:[#allocation3 + $0x16e] sm:$0x1] %vm3228, %v6908
        %6968 = vst.msk [vmem:[#allocation3 + $0x17e] sm:$0x1] %vm3228, %v6909
        %6969 = vst.msk [vmem:[#allocation3 + $0x18e] sm:$0x1] %vm3228, %v6872
        %6970 = vst.msk [vmem:[#allocation3 + $0x19e] sm:$0x1] %vm3228, %v6910
        %6971 = vst.msk [vmem:[#allocation3 + $0x1ae] sm:$0x1] %vm3228, %v6911
        %6972 = vst.msk [vmem:[#allocation3 + $0x1be] sm:$0x1] %vm3228, %v6912
        %6973 = vst.msk [vmem:[#allocation3 + $0x1ce] sm:$0x1] %vm3228, %v6913
        %6974 = vst.msk [vmem:[#allocation3 + $0x1de] sm:$0x1] %vm3228, %v6914
        %6975 = vst.msk [vmem:[#allocation3 + $0x1ee] sm:$0x1] %vm3228, %v6915
        %6976 = vst.msk [vmem:[#allocation3 + $0x1fe] sm:$0x1] %vm3228, %v6916
        %6977 = vxpose.xlu0.b32.start [1/16] %v3134, 128
        %6978 = vxpose.xlu0.b32.cont [2/16] %v3135, 128
        %6979 = vxpose.xlu0.b32.cont [3/16] 0.0, 128
        %6980 = vxpose.xlu0.b32.cont [4/16] 0.0, 128
        %6981 = vxpose.xlu0.b32.cont [5/16] 0.0, 128
        %6982 = vxpose.xlu0.b32.cont [6/16] 0.0, 128
        %6983 = vxpose.xlu0.b32.cont [7/16] 0.0, 128
        %6984 = vxpose.xlu0.b32.cont [8/16] 0.0, 128
        %6985 = vxpose.xlu0.b32.cont [9/16] 0.0, 128
        %6986 = vxpose.xlu0.b32.cont [10/16] 0.0, 128
        %6987 = vxpose.xlu0.b32.cont [11/16] 0.0, 128
        %6988 = vxpose.xlu0.b32.cont [12/16] 0.0, 128
        %6989 = vxpose.xlu0.b32.cont [13/16] 0.0, 128
        %6990 = vxpose.xlu0.b32.cont [14/16] 0.0, 128
        %6991 = vxpose.xlu0.b32.cont [15/16] 0.0, 128
        %6992 = vxpose.xlu0.b32.end [16/16] 0.0, 128
        %v6993 = vpop.trf.xlu0
        %v6994 = vpop.trf.xlu0
        %v6995 = vpop.trf.xlu0
        %v6996 = vpop.trf.xlu0
        %v6997 = vpop.trf.xlu0
        %v6998 = vpop.trf.xlu0
        %v6999 = vpop.trf.xlu0
        %v7000 = vpop.trf.xlu0
        %v7001 = vpop.trf.xlu0
        %v7002 = vpop.trf.xlu0
        %v7003 = vpop.trf.xlu0
        %v7004 = vpop.trf.xlu0
        %v7005 = vpop.trf.xlu0
        %v7006 = vpop.trf.xlu0
        %v7007 = vpop.trf.xlu0
        %v7008 = vpop.trf.xlu0
        %v7013 = vrot.slane %v6993, 1
        %v7014 = vrot.slane %v6993, 2
        %v7015 = vrot.slane %v6993, 3
        %v7016 = vrot.slane %v6993, 4
        %v7017 = vrot.slane %v6993, 5
        %v7018 = vrot.slane %v6993, 6
        %v7019 = vrot.slane %v6993, 7
        %v7020 = vrot.slane %v6994, 1
        %v7021 = vrot.slane %v6994, 2
        %v7022 = vrot.slane %v6994, 3
        %v7023 = vrot.slane %v6994, 4
        %v7024 = vrot.slane %v6994, 5
        %v7025 = vrot.slane %v6994, 6
        %v7026 = vrot.slane %v6994, 7
        %v7027 = vrot.slane %v6995, 1
        %v7028 = vrot.slane %v6995, 2
        %v7029 = vrot.slane %v6995, 3
        %v7030 = vrot.slane %v6995, 4
        %v7031 = vrot.slane %v6995, 5
        %v7032 = vrot.slane %v6995, 6
        %v7033 = vrot.slane %v6995, 7
        %v7034 = vrot.slane %v6996, 1
        %v7035 = vrot.slane %v6996, 2
        %v7036 = vrot.slane %v6996, 3
        %v7037 = vrot.slane %v6996, 4
        %v7038 = vrot.slane %v6996, 5
        %v7039 = vrot.slane %v6996, 6
        %v7040 = vrot.slane %v6996, 7
        %7069 = vst.msk [vmem:[#allocation2 + $0xf] sm:$0x1] %vm3228, %v6993
        %7070 = vst.msk [vmem:[#allocation2 + $0x1f] sm:$0x1] %vm3228, %v7013
        %7071 = vst.msk [vmem:[#allocation2 + $0x2f] sm:$0x1] %vm3228, %v7014
        %7072 = vst.msk [vmem:[#allocation2 + $0x3f] sm:$0x1] %vm3228, %v7015
        %7073 = vst.msk [vmem:[#allocation2 + $0x4f] sm:$0x1] %vm3228, %v7016
        %7074 = vst.msk [vmem:[#allocation2 + $0x5f] sm:$0x1] %vm3228, %v7017
        %7075 = vst.msk [vmem:[#allocation2 + $0x6f] sm:$0x1] %vm3228, %v7018
        %7076 = vst.msk [vmem:[#allocation2 + $0x7f] sm:$0x1] %vm3228, %v7019
        %7077 = vst.msk [vmem:[#allocation2 + $0x8f] sm:$0x1] %vm3228, %v6994
        %7078 = vst.msk [vmem:[#allocation2 + $0x9f] sm:$0x1] %vm3228, %v7020
        %7079 = vst.msk [vmem:[#allocation2 + $0xaf] sm:$0x1] %vm3228, %v7021
        %7080 = vst.msk [vmem:[#allocation2 + $0xbf] sm:$0x1] %vm3228, %v7022
        %7081 = vst.msk [vmem:[#allocation2 + $0xcf] sm:$0x1] %vm3228, %v7023
        %7082 = vst.msk [vmem:[#allocation2 + $0xdf] sm:$0x1] %vm3228, %v7024
        %7083 = vst.msk [vmem:[#allocation2 + $0xef] sm:$0x1] %vm3228, %v7025
        %7084 = vst.msk [vmem:[#allocation2 + $0xff] sm:$0x1] %vm3228, %v7026
        %7085 = vst.msk [vmem:[#allocation2 + $0x10f] sm:$0x1] %vm3228, %v6995
        %7086 = vst.msk [vmem:[#allocation2 + $0x11f] sm:$0x1] %vm3228, %v7027
        %7087 = vst.msk [vmem:[#allocation2 + $0x12f] sm:$0x1] %vm3228, %v7028
        %7088 = vst.msk [vmem:[#allocation2 + $0x13f] sm:$0x1] %vm3228, %v7029
        %7089 = vst.msk [vmem:[#allocation2 + $0x14f] sm:$0x1] %vm3228, %v7030
        %7090 = vst.msk [vmem:[#allocation2 + $0x15f] sm:$0x1] %vm3228, %v7031
        %7091 = vst.msk [vmem:[#allocation2 + $0x16f] sm:$0x1] %vm3228, %v7032
        %7092 = vst.msk [vmem:[#allocation2 + $0x17f] sm:$0x1] %vm3228, %v7033
        %7093 = vst.msk [vmem:[#allocation2 + $0x18f] sm:$0x1] %vm3228, %v6996
        %7094 = vst.msk [vmem:[#allocation2 + $0x19f] sm:$0x1] %vm3228, %v7034
        %7095 = vst.msk [vmem:[#allocation2 + $0x1af] sm:$0x1] %vm3228, %v7035
        %7096 = vst.msk [vmem:[#allocation2 + $0x1bf] sm:$0x1] %vm3228, %v7036
        %7097 = vst.msk [vmem:[#allocation2 + $0x1cf] sm:$0x1] %vm3228, %v7037
        %7098 = vst.msk [vmem:[#allocation2 + $0x1df] sm:$0x1] %vm3228, %v7038
        %7099 = vst.msk [vmem:[#allocation2 + $0x1ef] sm:$0x1] %vm3228, %v7039
        %7100 = vst.msk [vmem:[#allocation2 + $0x1ff] sm:$0x1] %vm3228, %v7040
        %7103 = vrot.lane.b32.xlu0 %v3134, 96
        %v7104 = vpop.permute.xlu0 %7103
        %7105 = vrot.lane.b32.xlu0 %v3135, 96
        %v7106 = vpop.permute.xlu0 %7105
        %7109 = vxpose.xlu0.b32.start [1/16] %v7104, 128
        %7110 = vxpose.xlu0.b32.cont [2/16] %v7106, 128
        %7111 = vxpose.xlu0.b32.cont [3/16] 0.0, 128
        %7112 = vxpose.xlu0.b32.cont [4/16] 0.0, 128
        %7113 = vxpose.xlu0.b32.cont [5/16] 0.0, 128
        %7114 = vxpose.xlu0.b32.cont [6/16] 0.0, 128
        %7115 = vxpose.xlu0.b32.cont [7/16] 0.0, 128
        %7116 = vxpose.xlu0.b32.cont [8/16] 0.0, 128
        %7117 = vxpose.xlu0.b32.cont [9/16] 0.0, 128
        %7118 = vxpose.xlu0.b32.cont [10/16] 0.0, 128
        %7119 = vxpose.xlu0.b32.cont [11/16] 0.0, 128
        %7120 = vxpose.xlu0.b32.cont [12/16] 0.0, 128
        %7121 = vxpose.xlu0.b32.cont [13/16] 0.0, 128
        %7122 = vxpose.xlu0.b32.cont [14/16] 0.0, 128
        %7123 = vxpose.xlu0.b32.cont [15/16] 0.0, 128
        %7124 = vxpose.xlu0.b32.end [16/16] 0.0, 128
        %v7125 = vpop.trf.xlu0
        %v7126 = vpop.trf.xlu0
        %v7127 = vpop.trf.xlu0
        %v7128 = vpop.trf.xlu0
        %v7129 = vpop.trf.xlu0
        %v7130 = vpop.trf.xlu0
        %v7131 = vpop.trf.xlu0
        %v7132 = vpop.trf.xlu0
        %v7133 = vpop.trf.xlu0
        %v7134 = vpop.trf.xlu0
        %v7135 = vpop.trf.xlu0
        %v7136 = vpop.trf.xlu0
        %v7137 = vpop.trf.xlu0
        %v7138 = vpop.trf.xlu0
        %v7139 = vpop.trf.xlu0
        %v7140 = vpop.trf.xlu0
        %v7145 = vrot.slane %v7125, 1
        %v7146 = vrot.slane %v7125, 2
        %v7147 = vrot.slane %v7125, 3
        %v7148 = vrot.slane %v7125, 4
        %v7149 = vrot.slane %v7125, 5
        %v7150 = vrot.slane %v7125, 6
        %v7151 = vrot.slane %v7125, 7
        %v7152 = vrot.slane %v7126, 1
        %v7153 = vrot.slane %v7126, 2
        %v7154 = vrot.slane %v7126, 3
        %v7155 = vrot.slane %v7126, 4
        %v7156 = vrot.slane %v7126, 5
        %v7157 = vrot.slane %v7126, 6
        %v7158 = vrot.slane %v7126, 7
        %v7159 = vrot.slane %v7127, 1
        %v7160 = vrot.slane %v7127, 2
        %v7161 = vrot.slane %v7127, 3
        %v7162 = vrot.slane %v7127, 4
        %v7163 = vrot.slane %v7127, 5
        %v7164 = vrot.slane %v7127, 6
        %v7165 = vrot.slane %v7127, 7
        %v7166 = vrot.slane %v7128, 1
        %v7167 = vrot.slane %v7128, 2
        %v7168 = vrot.slane %v7128, 3
        %v7169 = vrot.slane %v7128, 4
        %v7170 = vrot.slane %v7128, 5
        %v7171 = vrot.slane %v7128, 6
        %v7172 = vrot.slane %v7128, 7
        %7201 = vst.msk [vmem:[#allocation3 + $0xf] sm:$0x1] %vm3228, %v7125
        %7202 = vst.msk [vmem:[#allocation3 + $0x1f] sm:$0x1] %vm3228, %v7145
        %7203 = vst.msk [vmem:[#allocation3 + $0x2f] sm:$0x1] %vm3228, %v7146
        %7204 = vst.msk [vmem:[#allocation3 + $0x3f] sm:$0x1] %vm3228, %v7147
        %7205 = vst.msk [vmem:[#allocation3 + $0x4f] sm:$0x1] %vm3228, %v7148
        %7206 = vst.msk [vmem:[#allocation3 + $0x5f] sm:$0x1] %vm3228, %v7149
        %7207 = vst.msk [vmem:[#allocation3 + $0x6f] sm:$0x1] %vm3228, %v7150
        %7208 = vst.msk [vmem:[#allocation3 + $0x7f] sm:$0x1] %vm3228, %v7151
        %7209 = vst.msk [vmem:[#allocation3 + $0x8f] sm:$0x1] %vm3228, %v7126
        %7210 = vst.msk [vmem:[#allocation3 + $0x9f] sm:$0x1] %vm3228, %v7152
        %7211 = vst.msk [vmem:[#allocation3 + $0xaf] sm:$0x1] %vm3228, %v7153
        %7212 = vst.msk [vmem:[#allocation3 + $0xbf] sm:$0x1] %vm3228, %v7154
        %7213 = vst.msk [vmem:[#allocation3 + $0xcf] sm:$0x1] %vm3228, %v7155
        %7214 = vst.msk [vmem:[#allocation3 + $0xdf] sm:$0x1] %vm3228, %v7156
        %7215 = vst.msk [vmem:[#allocation3 + $0xef] sm:$0x1] %vm3228, %v7157
        %7216 = vst.msk [vmem:[#allocation3 + $0xff] sm:$0x1] %vm3228, %v7158
        %7217 = vst.msk [vmem:[#allocation3 + $0x10f] sm:$0x1] %vm3228, %v7127
        %7218 = vst.msk [vmem:[#allocation3 + $0x11f] sm:$0x1] %vm3228, %v7159
        %7219 = vst.msk [vmem:[#allocation3 + $0x12f] sm:$0x1] %vm3228, %v7160
        %7220 = vst.msk [vmem:[#allocation3 + $0x13f] sm:$0x1] %vm3228, %v7161
        %7221 = vst.msk [vmem:[#allocation3 + $0x14f] sm:$0x1] %vm3228, %v7162
        %7222 = vst.msk [vmem:[#allocation3 + $0x15f] sm:$0x1] %vm3228, %v7163
        %7223 = vst.msk [vmem:[#allocation3 + $0x16f] sm:$0x1] %vm3228, %v7164
        %7224 = vst.msk [vmem:[#allocation3 + $0x17f] sm:$0x1] %vm3228, %v7165
        %7225 = vst.msk [vmem:[#allocation3 + $0x18f] sm:$0x1] %vm3228, %v7128
        %7226 = vst.msk [vmem:[#allocation3 + $0x19f] sm:$0x1] %vm3228, %v7166
        %7227 = vst.msk [vmem:[#allocation3 + $0x1af] sm:$0x1] %vm3228, %v7167
        %7228 = vst.msk [vmem:[#allocation3 + $0x1bf] sm:$0x1] %vm3228, %v7168
        %7229 = vst.msk [vmem:[#allocation3 + $0x1cf] sm:$0x1] %vm3228, %v7169
        %7230 = vst.msk [vmem:[#allocation3 + $0x1df] sm:$0x1] %vm3228, %v7170
        %7231 = vst.msk [vmem:[#allocation3 + $0x1ef] sm:$0x1] %vm3228, %v7171
        %7232 = vst.msk [vmem:[#allocation3 + $0x1ff] sm:$0x1] %vm3228, %v7172
      $region68: #{tpu_custom_call.1} parent=63 // pred_fallthru
        _
      %s7233 = smul.u32 %s27, 8
      %s7234 = scalar_lea.vmem [#allocation2], %s7233
      %v7235 = vld [vmem:[%s7234] sm:$0xff]
      %v7236 = vld [vmem:[%s7234 + $0x10] sm:$0xff]
      %v7237 = vld [vmem:[%s7234 + $0x20] sm:$0xff]
      %v7238 = vld [vmem:[%s7234 + $0x30] sm:$0xff]
      %v7239 = vld [vmem:[%s7234 + $0x40] sm:$0xff]
      %v7240 = vld [vmem:[%s7234 + $0x50] sm:$0xff]
      %v7241 = vld [vmem:[%s7234 + $0x60] sm:$0xff]
      %v7242 = vld [vmem:[%s7234 + $0x70] sm:$0xff]
      %v7243 = vld [vmem:[%s7234 + $0x80] sm:$0xff]
      %v7244 = vld [vmem:[%s7234 + $0x90] sm:$0xff]
      %v7245 = vld [vmem:[%s7234 + $0xa0] sm:$0xff]
      %v7246 = vld [vmem:[%s7234 + $0xb0] sm:$0xff]
      %v7247 = vld [vmem:[%s7234 + $0xc0] sm:$0xff]
      %v7248 = vld [vmem:[%s7234 + $0xd0] sm:$0xff]
      %v7249 = vld [vmem:[%s7234 + $0xe0] sm:$0xff]
      %v7250 = vld [vmem:[%s7234 + $0xf0] sm:$0xff]
      %v7251 = vld [vmem:[%s7234 + $0x100] sm:$0xff]
      %v7252 = vld [vmem:[%s7234 + $0x110] sm:$0xff]
      %v7253 = vld [vmem:[%s7234 + $0x120] sm:$0xff]
      %v7254 = vld [vmem:[%s7234 + $0x130] sm:$0xff]
      %v7255 = vld [vmem:[%s7234 + $0x140] sm:$0xff]
      %v7256 = vld [vmem:[%s7234 + $0x150] sm:$0xff]
      %v7257 = vld [vmem:[%s7234 + $0x160] sm:$0xff]
      %v7258 = vld [vmem:[%s7234 + $0x170] sm:$0xff]
      %v7259 = vld [vmem:[%s7234 + $0x180] sm:$0xff]
      %v7260 = vld [vmem:[%s7234 + $0x190] sm:$0xff]
      %v7261 = vld [vmem:[%s7234 + $0x1a0] sm:$0xff]
      %v7262 = vld [vmem:[%s7234 + $0x1b0] sm:$0xff]
      %v7263 = vld [vmem:[%s7234 + $0x1c0] sm:$0xff]
      %v7264 = vld [vmem:[%s7234 + $0x1d0] sm:$0xff]
      %v7265 = vld [vmem:[%s7234 + $0x1e0] sm:$0xff]
      %v7266 = vld [vmem:[%s7234 + $0x1f0] sm:$0xff]
      %v7267 = vpack.c.bf16 %v7235, %v7235
      %v7268 = vpack.c.bf16 %v7236, %v7236
      %v7269 = vpack.c.bf16 %v7237, %v7237
      %v7270 = vpack.c.bf16 %v7238, %v7238
      %v7271 = vpack.c.bf16 %v7239, %v7239
      %v7272 = vpack.c.bf16 %v7240, %v7240
      %v7273 = vpack.c.bf16 %v7241, %v7241
      %v7274 = vpack.c.bf16 %v7242, %v7242
      %v7275 = vpack.c.bf16 %v7243, %v7243
      %v7276 = vpack.c.bf16 %v7244, %v7244
      %v7277 = vpack.c.bf16 %v7245, %v7245
      %v7278 = vpack.c.bf16 %v7246, %v7246
      %v7279 = vpack.c.bf16 %v7247, %v7247
      %v7280 = vpack.c.bf16 %v7248, %v7248
      %v7281 = vpack.c.bf16 %v7249, %v7249
      %v7282 = vpack.c.bf16 %v7250, %v7250
      %v7283 = vpack.c.bf16 %v7251, %v7251
      %v7284 = vpack.c.bf16 %v7252, %v7252
      %v7285 = vpack.c.bf16 %v7253, %v7253
      %v7286 = vpack.c.bf16 %v7254, %v7254
      %v7287 = vpack.c.bf16 %v7255, %v7255
      %v7288 = vpack.c.bf16 %v7256, %v7256
      %v7289 = vpack.c.bf16 %v7257, %v7257
      %v7290 = vpack.c.bf16 %v7258, %v7258
      %v7291 = vpack.c.bf16 %v7259, %v7259
      %v7292 = vpack.c.bf16 %v7260, %v7260
      %v7293 = vpack.c.bf16 %v7261, %v7261
      %v7294 = vpack.c.bf16 %v7262, %v7262
      %v7295 = vpack.c.bf16 %v7263, %v7263
      %v7296 = vpack.c.bf16 %v7264, %v7264
      %v7297 = vpack.c.bf16 %v7265, %v7265
      %v7298 = vpack.c.bf16 %v7266, %v7266
      %v7299 = vld [vmem:[#allocation3] sm:$0xff]
      %v7300 = vld [vmem:[#allocation3 + $0x8] sm:$0xff]
      %v7301 = vld [vmem:[#allocation3 + $0x10] sm:$0xff]
      %v7302 = vld [vmem:[#allocation3 + $0x18] sm:$0xff]
      %v7303 = vld [vmem:[#allocation3 + $0x20] sm:$0xff]
      %v7304 = vld [vmem:[#allocation3 + $0x28] sm:$0xff]
      %v7305 = vld [vmem:[#allocation3 + $0x30] sm:$0xff]
      %v7306 = vld [vmem:[#allocation3 + $0x38] sm:$0xff]
      %v7307 = vld [vmem:[#allocation3 + $0x40] sm:$0xff]
      %v7308 = vld [vmem:[#allocation3 + $0x48] sm:$0xff]
      %v7309 = vld [vmem:[#allocation3 + $0x50] sm:$0xff]
      %v7310 = vld [vmem:[#allocation3 + $0x58] sm:$0xff]
      %v7311 = vld [vmem:[#allocation3 + $0x60] sm:$0xff]
      %v7312 = vld [vmem:[#allocation3 + $0x68] sm:$0xff]
      %v7313 = vld [vmem:[#allocation3 + $0x70] sm:$0xff]
      %v7314 = vld [vmem:[#allocation3 + $0x78] sm:$0xff]
      %v7315 = vld [vmem:[#allocation3 + $0x80] sm:$0xff]
      %v7316 = vld [vmem:[#allocation3 + $0x88] sm:$0xff]
      %v7317 = vld [vmem:[#allocation3 + $0x90] sm:$0xff]
      %v7318 = vld [vmem:[#allocation3 + $0x98] sm:$0xff]
      %v7319 = vld [vmem:[#allocation3 + $0xa0] sm:$0xff]
      %v7320 = vld [vmem:[#allocation3 + $0xa8] sm:$0xff]
      %v7321 = vld [vmem:[#allocation3 + $0xb0] sm:$0xff]
      %v7322 = vld [vmem:[#allocation3 + $0xb8] sm:$0xff]
      %v7323 = vld [vmem:[#allocation3 + $0xc0] sm:$0xff]
      %v7324 = vld [vmem:[#allocation3 + $0xc8] sm:$0xff]
      %v7325 = vld [vmem:[#allocation3 + $0xd0] sm:$0xff]
      %v7326 = vld [vmem:[#allocation3 + $0xd8] sm:$0xff]
      %v7327 = vld [vmem:[#allocation3 + $0xe0] sm:$0xff]
      %v7328 = vld [vmem:[#allocation3 + $0xe8] sm:$0xff]
      %v7329 = vld [vmem:[#allocation3 + $0xf0] sm:$0xff]
      %v7330 = vld [vmem:[#allocation3 + $0xf8] sm:$0xff]
      %v7331 = vld [vmem:[#allocation3 + $0x100] sm:$0xff]
      %v7332 = vld [vmem:[#allocation3 + $0x108] sm:$0xff]
      %v7333 = vld [vmem:[#allocation3 + $0x110] sm:$0xff]
      %v7334 = vld [vmem:[#allocation3 + $0x118] sm:$0xff]
      %v7335 = vld [vmem:[#allocation3 + $0x120] sm:$0xff]
      %v7336 = vld [vmem:[#allocation3 + $0x128] sm:$0xff]
      %v7337 = vld [vmem:[#allocation3 + $0x130] sm:$0xff]
      %v7338 = vld [vmem:[#allocation3 + $0x138] sm:$0xff]
      %v7339 = vld [vmem:[#allocation3 + $0x140] sm:$0xff]
      %v7340 = vld [vmem:[#allocation3 + $0x148] sm:$0xff]
      %v7341 = vld [vmem:[#allocation3 + $0x150] sm:$0xff]
      %v7342 = vld [vmem:[#allocation3 + $0x158] sm:$0xff]
      %v7343 = vld [vmem:[#allocation3 + $0x160] sm:$0xff]
      %v7344 = vld [vmem:[#allocation3 + $0x168] sm:$0xff]
      %v7345 = vld [vmem:[#allocation3 + $0x170] sm:$0xff]
      %v7346 = vld [vmem:[#allocation3 + $0x178] sm:$0xff]
      %v7347 = vld [vmem:[#allocation3 + $0x180] sm:$0xff]
      %v7348 = vld [vmem:[#allocation3 + $0x188] sm:$0xff]
      %v7349 = vld [vmem:[#allocation3 + $0x190] sm:$0xff]
      %v7350 = vld [vmem:[#allocation3 + $0x198] sm:$0xff]
      %v7351 = vld [vmem:[#allocation3 + $0x1a0] sm:$0xff]
      %v7352 = vld [vmem:[#allocation3 + $0x1a8] sm:$0xff]
      %v7353 = vld [vmem:[#allocation3 + $0x1b0] sm:$0xff]
      %v7354 = vld [vmem:[#allocation3 + $0x1b8] sm:$0xff]
      %v7355 = vld [vmem:[#allocation3 + $0x1c0] sm:$0xff]
      %v7356 = vld [vmem:[#allocation3 + $0x1c8] sm:$0xff]
      %v7357 = vld [vmem:[#allocation3 + $0x1d0] sm:$0xff]
      %v7358 = vld [vmem:[#allocation3 + $0x1d8] sm:$0xff]
      %v7359 = vld [vmem:[#allocation3 + $0x1e0] sm:$0xff]
      %v7360 = vld [vmem:[#allocation3 + $0x1e8] sm:$0xff]
      %v7361 = vld [vmem:[#allocation3 + $0x1f0] sm:$0xff]
      %v7362 = vld [vmem:[#allocation3 + $0x1f8] sm:$0xff]
      %v7363 = vpack.c.bf16 %v7299, %v7299
      %v7364 = vpack.c.bf16 %v7300, %v7300
      %v7365 = vpack.c.bf16 %v7301, %v7301
      %v7366 = vpack.c.bf16 %v7302, %v7302
      %v7367 = vpack.c.bf16 %v7303, %v7303
      %v7368 = vpack.c.bf16 %v7304, %v7304
      %v7369 = vpack.c.bf16 %v7305, %v7305
      %v7370 = vpack.c.bf16 %v7306, %v7306
      %v7371 = vpack.c.bf16 %v7307, %v7307
      %v7372 = vpack.c.bf16 %v7308, %v7308
      %v7373 = vpack.c.bf16 %v7309, %v7309
      %v7374 = vpack.c.bf16 %v7310, %v7310
      %v7375 = vpack.c.bf16 %v7311, %v7311
      %v7376 = vpack.c.bf16 %v7312, %v7312
      %v7377 = vpack.c.bf16 %v7313, %v7313
      %v7378 = vpack.c.bf16 %v7314, %v7314
      %v7379 = vpack.c.bf16 %v7315, %v7315
      %v7380 = vpack.c.bf16 %v7316, %v7316
      %v7381 = vpack.c.bf16 %v7317, %v7317
      %v7382 = vpack.c.bf16 %v7318, %v7318
      %v7383 = vpack.c.bf16 %v7319, %v7319
      %v7384 = vpack.c.bf16 %v7320, %v7320
      %v7385 = vpack.c.bf16 %v7321, %v7321
      %v7386 = vpack.c.bf16 %v7322, %v7322
      %v7387 = vpack.c.bf16 %v7323, %v7323
      %v7388 = vpack.c.bf16 %v7324, %v7324
      %v7389 = vpack.c.bf16 %v7325, %v7325
      %v7390 = vpack.c.bf16 %v7326, %v7326
      %v7391 = vpack.c.bf16 %v7327, %v7327
      %v7392 = vpack.c.bf16 %v7328, %v7328
      %v7393 = vpack.c.bf16 %v7329, %v7329
      %v7394 = vpack.c.bf16 %v7330, %v7330
      %v7395 = vpack.c.bf16 %v7331, %v7331
      %v7396 = vpack.c.bf16 %v7332, %v7332
      %v7397 = vpack.c.bf16 %v7333, %v7333
      %v7398 = vpack.c.bf16 %v7334, %v7334
      %v7399 = vpack.c.bf16 %v7335, %v7335
      %v7400 = vpack.c.bf16 %v7336, %v7336
      %v7401 = vpack.c.bf16 %v7337, %v7337
      %v7402 = vpack.c.bf16 %v7338, %v7338
      %v7403 = vpack.c.bf16 %v7339, %v7339
      %v7404 = vpack.c.bf16 %v7340, %v7340
      %v7405 = vpack.c.bf16 %v7341, %v7341
      %v7406 = vpack.c.bf16 %v7342, %v7342
      %v7407 = vpack.c.bf16 %v7343, %v7343
      %v7408 = vpack.c.bf16 %v7344, %v7344
      %v7409 = vpack.c.bf16 %v7345, %v7345
      %v7410 = vpack.c.bf16 %v7346, %v7346
      %v7411 = vpack.c.bf16 %v7347, %v7347
      %v7412 = vpack.c.bf16 %v7348, %v7348
      %v7413 = vpack.c.bf16 %v7349, %v7349
      %v7414 = vpack.c.bf16 %v7350, %v7350
      %v7415 = vpack.c.bf16 %v7351, %v7351
      %v7416 = vpack.c.bf16 %v7352, %v7352
      %v7417 = vpack.c.bf16 %v7353, %v7353
      %v7418 = vpack.c.bf16 %v7354, %v7354
      %v7419 = vpack.c.bf16 %v7355, %v7355
      %v7420 = vpack.c.bf16 %v7356, %v7356
      %v7421 = vpack.c.bf16 %v7357, %v7357
      %v7422 = vpack.c.bf16 %v7358, %v7358
      %v7423 = vpack.c.bf16 %v7359, %v7359
      %v7424 = vpack.c.bf16 %v7360, %v7360
      %v7425 = vpack.c.bf16 %v7361, %v7361
      %v7426 = vpack.c.bf16 %v7362, %v7362
      %v7429 = vunpack.c.l.b16 %v7363
      %v7430 = vunpack.c.l.b16 %v7364
      %v7431 = vpack.c.b16 %v7430, %v7429
      %vm7432 = vcmask 130048
      %v7434 = vsel %vm7432, %v7267, 0
      %v7437 = vsel %vm7432, %v7431, 0
      %7439 = vmatpush.bf16.xpose.msra.mxu0 0
      %7440 = vmatpush.bf16.xpose.msra.mxu0 0
      %7441 = vmatpush.bf16.xpose.msra.mxu0 0
      %7442 = vmatpush.bf16.xpose.msra.mxu0 0
      %7443 = vmatpush.bf16.xpose.msra.mxu0 0
      %7444 = vmatpush.bf16.xpose.msra.mxu0 0
      %7445 = vmatpush.bf16.xpose.msra.mxu0 0
      %7446 = vmatpush.bf16.xpose.msra.mxu0 %v7437
      %7447 = vmatmul.bf16.gmra.mxu0 %v7434
      %v7448 = vpop.f32.mrf.mxu0
      %v7449 = vadd.f32 0.0, %v7448
      %v7450 = vpop.f32.mrf.mxu0
      %7451 = vdwg.mxu0
      %v7454 = vunpack.c.l.b16 %v7365
      %v7455 = vunpack.c.l.b16 %v7366
      %v7456 = vpack.c.b16 %v7455, %v7454
      %v7458 = vsel %vm7432, %v7268, 0
      %v7461 = vsel %vm7432, %v7456, 0
      %7463 = vmatpush.bf16.xpose.msra.mxu0 0
      %7464 = vmatpush.bf16.xpose.msra.mxu0 0
      %7465 = vmatpush.bf16.xpose.msra.mxu0 0
      %7466 = vmatpush.bf16.xpose.msra.mxu0 0
      %7467 = vmatpush.bf16.xpose.msra.mxu0 0
      %7468 = vmatpush.bf16.xpose.msra.mxu0 0
      %7469 = vmatpush.bf16.xpose.msra.mxu0 0
      %7470 = vmatpush.bf16.xpose.msra.mxu0 %v7461
      %7471 = vmatmul.bf16.gmra.mxu0 %v7458
      %v7472 = vpop.f32.mrf.mxu0
      %v7473 = vadd.f32 0.0, %v7472
      %v7474 = vpop.f32.mrf.mxu0
      %7475 = vdwg.mxu0
      %v7478 = vunpack.c.l.b16 %v7367
      %v7479 = vunpack.c.l.b16 %v7368
      %v7480 = vpack.c.b16 %v7479, %v7478
      %v7482 = vsel %vm7432, %v7269, 0
      %v7485 = vsel %vm7432, %v7480, 0
      %7487 = vmatpush.bf16.xpose.msra.mxu0 0
      %7488 = vmatpush.bf16.xpose.msra.mxu0 0
      %7489 = vmatpush.bf16.xpose.msra.mxu0 0
      %7490 = vmatpush.bf16.xpose.msra.mxu0 0
      %7491 = vmatpush.bf16.xpose.msra.mxu0 0
      %7492 = vmatpush.bf16.xpose.msra.mxu0 0
      %7493 = vmatpush.bf16.xpose.msra.mxu0 0
      %7494 = vmatpush.bf16.xpose.msra.mxu0 %v7485
      %7495 = vmatmul.bf16.gmra.mxu0 %v7482
      %v7496 = vpop.f32.mrf.mxu0
      %v7497 = vadd.f32 0.0, %v7496
      %v7498 = vpop.f32.mrf.mxu0
      %7499 = vdwg.mxu0
      %v7502 = vunpack.c.l.b16 %v7369
      %v7503 = vunpack.c.l.b16 %v7370
      %v7504 = vpack.c.b16 %v7503, %v7502
      %v7506 = vsel %vm7432, %v7270, 0
      %v7509 = vsel %vm7432, %v7504, 0
      %7511 = vmatpush.bf16.xpose.msra.mxu0 0
      %7512 = vmatpush.bf16.xpose.msra.mxu0 0
      %7513 = vmatpush.bf16.xpose.msra.mxu0 0
      %7514 = vmatpush.bf16.xpose.msra.mxu0 0
      %7515 = vmatpush.bf16.xpose.msra.mxu0 0
      %7516 = vmatpush.bf16.xpose.msra.mxu0 0
      %7517 = vmatpush.bf16.xpose.msra.mxu0 0
      %7518 = vmatpush.bf16.xpose.msra.mxu0 %v7509
      %7519 = vmatmul.bf16.gmra.mxu0 %v7506
      %v7520 = vpop.f32.mrf.mxu0
      %v7521 = vadd.f32 0.0, %v7520
      %v7522 = vpop.f32.mrf.mxu0
      %7523 = vdwg.mxu0
      %v7526 = vunpack.c.l.b16 %v7371
      %v7527 = vunpack.c.l.b16 %v7372
      %v7528 = vpack.c.b16 %v7527, %v7526
      %v7530 = vsel %vm7432, %v7271, 0
      %v7533 = vsel %vm7432, %v7528, 0
      %7535 = vmatpush.bf16.xpose.msra.mxu0 0
      %7536 = vmatpush.bf16.xpose.msra.mxu0 0
      %7537 = vmatpush.bf16.xpose.msra.mxu0 0
      %7538 = vmatpush.bf16.xpose.msra.mxu0 0
      %7539 = vmatpush.bf16.xpose.msra.mxu0 0
      %7540 = vmatpush.bf16.xpose.msra.mxu0 0
      %7541 = vmatpush.bf16.xpose.msra.mxu0 0
      %7542 = vmatpush.bf16.xpose.msra.mxu0 %v7533
      %7543 = vmatmul.bf16.gmra.mxu0 %v7530
      %v7544 = vpop.f32.mrf.mxu0
      %v7545 = vadd.f32 0.0, %v7544
      %v7546 = vpop.f32.mrf.mxu0
      %7547 = vdwg.mxu0
      %v7550 = vunpack.c.l.b16 %v7373
      %v7551 = vunpack.c.l.b16 %v7374
      %v7552 = vpack.c.b16 %v7551, %v7550
      %v7554 = vsel %vm7432, %v7272, 0
      %v7557 = vsel %vm7432, %v7552, 0
      %7559 = vmatpush.bf16.xpose.msra.mxu0 0
      %7560 = vmatpush.bf16.xpose.msra.mxu0 0
      %7561 = vmatpush.bf16.xpose.msra.mxu0 0
      %7562 = vmatpush.bf16.xpose.msra.mxu0 0
      %7563 = vmatpush.bf16.xpose.msra.mxu0 0
      %7564 = vmatpush.bf16.xpose.msra.mxu0 0
      %7565 = vmatpush.bf16.xpose.msra.mxu0 0
      %7566 = vmatpush.bf16.xpose.msra.mxu0 %v7557
      %7567 = vmatmul.bf16.gmra.mxu0 %v7554
      %v7568 = vpop.f32.mrf.mxu0
      %v7569 = vadd.f32 0.0, %v7568
      %v7570 = vpop.f32.mrf.mxu0
      %7571 = vdwg.mxu0
      %v7574 = vunpack.c.l.b16 %v7375
      %v7575 = vunpack.c.l.b16 %v7376
      %v7576 = vpack.c.b16 %v7575, %v7574
      %v7578 = vsel %vm7432, %v7273, 0
      %v7581 = vsel %vm7432, %v7576, 0
      %7583 = vmatpush.bf16.xpose.msra.mxu0 0
      %7584 = vmatpush.bf16.xpose.msra.mxu0 0
      %7585 = vmatpush.bf16.xpose.msra.mxu0 0
      %7586 = vmatpush.bf16.xpose.msra.mxu0 0
      %7587 = vmatpush.bf16.xpose.msra.mxu0 0
      %7588 = vmatpush.bf16.xpose.msra.mxu0 0
      %7589 = vmatpush.bf16.xpose.msra.mxu0 0
      %7590 = vmatpush.bf16.xpose.msra.mxu0 %v7581
      %7591 = vmatmul.bf16.gmra.mxu0 %v7578
      %v7592 = vpop.f32.mrf.mxu0
      %v7593 = vadd.f32 0.0, %v7592
      %v7594 = vpop.f32.mrf.mxu0
      %7595 = vdwg.mxu0
      %v7598 = vunpack.c.l.b16 %v7377
      %v7599 = vunpack.c.l.b16 %v7378
      %v7600 = vpack.c.b16 %v7599, %v7598
      %v7602 = vsel %vm7432, %v7274, 0
      %v7605 = vsel %vm7432, %v7600, 0
      %7607 = vmatpush.bf16.xpose.msra.mxu0 0
      %7608 = vmatpush.bf16.xpose.msra.mxu0 0
      %7609 = vmatpush.bf16.xpose.msra.mxu0 0
      %7610 = vmatpush.bf16.xpose.msra.mxu0 0
      %7611 = vmatpush.bf16.xpose.msra.mxu0 0
      %7612 = vmatpush.bf16.xpose.msra.mxu0 0
      %7613 = vmatpush.bf16.xpose.msra.mxu0 0
      %7614 = vmatpush.bf16.xpose.msra.mxu0 %v7605
      %7615 = vmatmul.bf16.gmra.mxu0 %v7602
      %v7616 = vpop.f32.mrf.mxu0
      %v7617 = vadd.f32 0.0, %v7616
      %v7618 = vpop.f32.mrf.mxu0
      %7619 = vdwg.mxu0
      %v7622 = vunpack.c.l.b16 %v7379
      %v7623 = vunpack.c.l.b16 %v7380
      %v7624 = vpack.c.b16 %v7623, %v7622
      %v7626 = vsel %vm7432, %v7275, 0
      %v7629 = vsel %vm7432, %v7624, 0
      %7631 = vmatpush.bf16.xpose.msra.mxu0 0
      %7632 = vmatpush.bf16.xpose.msra.mxu0 0
      %7633 = vmatpush.bf16.xpose.msra.mxu0 0
      %7634 = vmatpush.bf16.xpose.msra.mxu0 0
      %7635 = vmatpush.bf16.xpose.msra.mxu0 0
      %7636 = vmatpush.bf16.xpose.msra.mxu0 0
      %7637 = vmatpush.bf16.xpose.msra.mxu0 0
      %7638 = vmatpush.bf16.xpose.msra.mxu0 %v7629
      %7639 = vmatmul.bf16.gmra.mxu0 %v7626
      %v7640 = vpop.f32.mrf.mxu0
      %v7641 = vadd.f32 0.0, %v7640
      %v7642 = vpop.f32.mrf.mxu0
      %7643 = vdwg.mxu0
      %v7646 = vunpack.c.l.b16 %v7381
      %v7647 = vunpack.c.l.b16 %v7382
      %v7648 = vpack.c.b16 %v7647, %v7646
      %v7650 = vsel %vm7432, %v7276, 0
      %v7653 = vsel %vm7432, %v7648, 0
      %7655 = vmatpush.bf16.xpose.msra.mxu0 0
      %7656 = vmatpush.bf16.xpose.msra.mxu0 0
      %7657 = vmatpush.bf16.xpose.msra.mxu0 0
      %7658 = vmatpush.bf16.xpose.msra.mxu0 0
      %7659 = vmatpush.bf16.xpose.msra.mxu0 0
      %7660 = vmatpush.bf16.xpose.msra.mxu0 0
      %7661 = vmatpush.bf16.xpose.msra.mxu0 0
      %7662 = vmatpush.bf16.xpose.msra.mxu0 %v7653
      %7663 = vmatmul.bf16.gmra.mxu0 %v7650
      %v7664 = vpop.f32.mrf.mxu0
      %v7665 = vadd.f32 0.0, %v7664
      %v7666 = vpop.f32.mrf.mxu0
      %7667 = vdwg.mxu0
      %v7670 = vunpack.c.l.b16 %v7383
      %v7671 = vunpack.c.l.b16 %v7384
      %v7672 = vpack.c.b16 %v7671, %v7670
      %v7674 = vsel %vm7432, %v7277, 0
      %v7677 = vsel %vm7432, %v7672, 0
      %7679 = vmatpush.bf16.xpose.msra.mxu0 0
      %7680 = vmatpush.bf16.xpose.msra.mxu0 0
      %7681 = vmatpush.bf16.xpose.msra.mxu0 0
      %7682 = vmatpush.bf16.xpose.msra.mxu0 0
      %7683 = vmatpush.bf16.xpose.msra.mxu0 0
      %7684 = vmatpush.bf16.xpose.msra.mxu0 0
      %7685 = vmatpush.bf16.xpose.msra.mxu0 0
      %7686 = vmatpush.bf16.xpose.msra.mxu0 %v7677
      %7687 = vmatmul.bf16.gmra.mxu0 %v7674
      %v7688 = vpop.f32.mrf.mxu0
      %v7689 = vadd.f32 0.0, %v7688
      %v7690 = vpop.f32.mrf.mxu0
      %7691 = vdwg.mxu0
      %v7694 = vunpack.c.l.b16 %v7385
      %v7695 = vunpack.c.l.b16 %v7386
      %v7696 = vpack.c.b16 %v7695, %v7694
      %v7698 = vsel %vm7432, %v7278, 0
      %v7701 = vsel %vm7432, %v7696, 0
      %7703 = vmatpush.bf16.xpose.msra.mxu0 0
      %7704 = vmatpush.bf16.xpose.msra.mxu0 0
      %7705 = vmatpush.bf16.xpose.msra.mxu0 0
      %7706 = vmatpush.bf16.xpose.msra.mxu0 0
      %7707 = vmatpush.bf16.xpose.msra.mxu0 0
      %7708 = vmatpush.bf16.xpose.msra.mxu0 0
      %7709 = vmatpush.bf16.xpose.msra.mxu0 0
      %7710 = vmatpush.bf16.xpose.msra.mxu0 %v7701
      %7711 = vmatmul.bf16.gmra.mxu0 %v7698
      %v7712 = vpop.f32.mrf.mxu0
      %v7713 = vadd.f32 0.0, %v7712
      %v7714 = vpop.f32.mrf.mxu0
      %7715 = vdwg.mxu0
      %v7718 = vunpack.c.l.b16 %v7387
      %v7719 = vunpack.c.l.b16 %v7388
      %v7720 = vpack.c.b16 %v7719, %v7718
      %v7722 = vsel %vm7432, %v7279, 0
      %v7725 = vsel %vm7432, %v7720, 0
      %7727 = vmatpush.bf16.xpose.msra.mxu0 0
      %7728 = vmatpush.bf16.xpose.msra.mxu0 0
      %7729 = vmatpush.bf16.xpose.msra.mxu0 0
      %7730 = vmatpush.bf16.xpose.msra.mxu0 0
      %7731 = vmatpush.bf16.xpose.msra.mxu0 0
      %7732 = vmatpush.bf16.xpose.msra.mxu0 0
      %7733 = vmatpush.bf16.xpose.msra.mxu0 0
      %7734 = vmatpush.bf16.xpose.msra.mxu0 %v7725
      %7735 = vmatmul.bf16.gmra.mxu0 %v7722
      %v7736 = vpop.f32.mrf.mxu0
      %v7737 = vadd.f32 0.0, %v7736
      %v7738 = vpop.f32.mrf.mxu0
      %7739 = vdwg.mxu0
      %v7742 = vunpack.c.l.b16 %v7389
      %v7743 = vunpack.c.l.b16 %v7390
      %v7744 = vpack.c.b16 %v7743, %v7742
      %v7746 = vsel %vm7432, %v7280, 0
      %v7749 = vsel %vm7432, %v7744, 0
      %7751 = vmatpush.bf16.xpose.msra.mxu0 0
      %7752 = vmatpush.bf16.xpose.msra.mxu0 0
      %7753 = vmatpush.bf16.xpose.msra.mxu0 0
      %7754 = vmatpush.bf16.xpose.msra.mxu0 0
      %7755 = vmatpush.bf16.xpose.msra.mxu0 0
      %7756 = vmatpush.bf16.xpose.msra.mxu0 0
      %7757 = vmatpush.bf16.xpose.msra.mxu0 0
      %7758 = vmatpush.bf16.xpose.msra.mxu0 %v7749
      %7759 = vmatmul.bf16.gmra.mxu0 %v7746
      %v7760 = vpop.f32.mrf.mxu0
      %v7761 = vadd.f32 0.0, %v7760
      %v7762 = vpop.f32.mrf.mxu0
      %7763 = vdwg.mxu0
      %v7766 = vunpack.c.l.b16 %v7391
      %v7767 = vunpack.c.l.b16 %v7392
      %v7768 = vpack.c.b16 %v7767, %v7766
      %v7770 = vsel %vm7432, %v7281, 0
      %v7773 = vsel %vm7432, %v7768, 0
      %7775 = vmatpush.bf16.xpose.msra.mxu0 0
      %7776 = vmatpush.bf16.xpose.msra.mxu0 0
      %7777 = vmatpush.bf16.xpose.msra.mxu0 0
      %7778 = vmatpush.bf16.xpose.msra.mxu0 0
      %7779 = vmatpush.bf16.xpose.msra.mxu0 0
      %7780 = vmatpush.bf16.xpose.msra.mxu0 0
      %7781 = vmatpush.bf16.xpose.msra.mxu0 0
      %7782 = vmatpush.bf16.xpose.msra.mxu0 %v7773
      %7783 = vmatmul.bf16.gmra.mxu0 %v7770
      %v7784 = vpop.f32.mrf.mxu0
      %v7785 = vadd.f32 0.0, %v7784
      %v7786 = vpop.f32.mrf.mxu0
      %7787 = vdwg.mxu0
      %v7790 = vunpack.c.l.b16 %v7393
      %v7791 = vunpack.c.l.b16 %v7394
      %v7792 = vpack.c.b16 %v7791, %v7790
      %v7794 = vsel %vm7432, %v7282, 0
      %v7797 = vsel %vm7432, %v7792, 0
      %7799 = vmatpush.bf16.xpose.msra.mxu0 0
      %7800 = vmatpush.bf16.xpose.msra.mxu0 0
      %7801 = vmatpush.bf16.xpose.msra.mxu0 0
      %7802 = vmatpush.bf16.xpose.msra.mxu0 0
      %7803 = vmatpush.bf16.xpose.msra.mxu0 0
      %7804 = vmatpush.bf16.xpose.msra.mxu0 0
      %7805 = vmatpush.bf16.xpose.msra.mxu0 0
      %7806 = vmatpush.bf16.xpose.msra.mxu0 %v7797
      %7807 = vmatmul.bf16.gmra.mxu0 %v7794
      %v7808 = vpop.f32.mrf.mxu0
      %v7809 = vadd.f32 0.0, %v7808
      %v7810 = vpop.f32.mrf.mxu0
      %7811 = vdwg.mxu0
      %v7814 = vunpack.c.l.b16 %v7395
      %v7815 = vunpack.c.l.b16 %v7396
      %v7816 = vpack.c.b16 %v7815, %v7814
      %v7818 = vsel %vm7432, %v7283, 0
      %v7821 = vsel %vm7432, %v7816, 0
      %7823 = vmatpush.bf16.xpose.msra.mxu0 0
      %7824 = vmatpush.bf16.xpose.msra.mxu0 0
      %7825 = vmatpush.bf16.xpose.msra.mxu0 0
      %7826 = vmatpush.bf16.xpose.msra.mxu0 0
      %7827 = vmatpush.bf16.xpose.msra.mxu0 0
      %7828 = vmatpush.bf16.xpose.msra.mxu0 0
      %7829 = vmatpush.bf16.xpose.msra.mxu0 0
      %7830 = vmatpush.bf16.xpose.msra.mxu0 %v7821
      %7831 = vmatmul.bf16.gmra.mxu0 %v7818
      %v7832 = vpop.f32.mrf.mxu0
      %v7833 = vadd.f32 0.0, %v7832
      %v7834 = vpop.f32.mrf.mxu0
      %7835 = vdwg.mxu0
      %v7838 = vunpack.c.l.b16 %v7397
      %v7839 = vunpack.c.l.b16 %v7398
      %v7840 = vpack.c.b16 %v7839, %v7838
      %v7842 = vsel %vm7432, %v7284, 0
      %v7845 = vsel %vm7432, %v7840, 0
      %7847 = vmatpush.bf16.xpose.msra.mxu0 0
      %7848 = vmatpush.bf16.xpose.msra.mxu0 0
      %7849 = vmatpush.bf16.xpose.msra.mxu0 0
      %7850 = vmatpush.bf16.xpose.msra.mxu0 0
      %7851 = vmatpush.bf16.xpose.msra.mxu0 0
      %7852 = vmatpush.bf16.xpose.msra.mxu0 0
      %7853 = vmatpush.bf16.xpose.msra.mxu0 0
      %7854 = vmatpush.bf16.xpose.msra.mxu0 %v7845
      %7855 = vmatmul.bf16.gmra.mxu0 %v7842
      %v7856 = vpop.f32.mrf.mxu0
      %v7857 = vadd.f32 0.0, %v7856
      %v7858 = vpop.f32.mrf.mxu0
      %7859 = vdwg.mxu0
      %v7862 = vunpack.c.l.b16 %v7399
      %v7863 = vunpack.c.l.b16 %v7400
      %v7864 = vpack.c.b16 %v7863, %v7862
      %v7866 = vsel %vm7432, %v7285, 0
      %v7869 = vsel %vm7432, %v7864, 0
      %7871 = vmatpush.bf16.xpose.msra.mxu0 0
      %7872 = vmatpush.bf16.xpose.msra.mxu0 0
      %7873 = vmatpush.bf16.xpose.msra.mxu0 0
      %7874 = vmatpush.bf16.xpose.msra.mxu0 0
      %7875 = vmatpush.bf16.xpose.msra.mxu0 0
      %7876 = vmatpush.bf16.xpose.msra.mxu0 0
      %7877 = vmatpush.bf16.xpose.msra.mxu0 0
      %7878 = vmatpush.bf16.xpose.msra.mxu0 %v7869
      %7879 = vmatmul.bf16.gmra.mxu0 %v7866
      %v7880 = vpop.f32.mrf.mxu0
      %v7881 = vadd.f32 0.0, %v7880
      %v7882 = vpop.f32.mrf.mxu0
      %7883 = vdwg.mxu0
      %v7886 = vunpack.c.l.b16 %v7401
      %v7887 = vunpack.c.l.b16 %v7402
      %v7888 = vpack.c.b16 %v7887, %v7886
      %v7890 = vsel %vm7432, %v7286, 0
      %v7893 = vsel %vm7432, %v7888, 0
      %7895 = vmatpush.bf16.xpose.msra.mxu0 0
      %7896 = vmatpush.bf16.xpose.msra.mxu0 0
      %7897 = vmatpush.bf16.xpose.msra.mxu0 0
      %7898 = vmatpush.bf16.xpose.msra.mxu0 0
      %7899 = vmatpush.bf16.xpose.msra.mxu0 0
      %7900 = vmatpush.bf16.xpose.msra.mxu0 0
      %7901 = vmatpush.bf16.xpose.msra.mxu0 0
      %7902 = vmatpush.bf16.xpose.msra.mxu0 %v7893
      %7903 = vmatmul.bf16.gmra.mxu0 %v7890
      %v7904 = vpop.f32.mrf.mxu0
      %v7905 = vadd.f32 0.0, %v7904
      %v7906 = vpop.f32.mrf.mxu0
      %7907 = vdwg.mxu0
      %v7910 = vunpack.c.l.b16 %v7403
      %v7911 = vunpack.c.l.b16 %v7404
      %v7912 = vpack.c.b16 %v7911, %v7910
      %v7914 = vsel %vm7432, %v7287, 0
      %v7917 = vsel %vm7432, %v7912, 0
      %7919 = vmatpush.bf16.xpose.msra.mxu0 0
      %7920 = vmatpush.bf16.xpose.msra.mxu0 0
      %7921 = vmatpush.bf16.xpose.msra.mxu0 0
      %7922 = vmatpush.bf16.xpose.msra.mxu0 0
      %7923 = vmatpush.bf16.xpose.msra.mxu0 0
      %7924 = vmatpush.bf16.xpose.msra.mxu0 0
      %7925 = vmatpush.bf16.xpose.msra.mxu0 0
      %7926 = vmatpush.bf16.xpose.msra.mxu0 %v7917
      %7927 = vmatmul.bf16.gmra.mxu0 %v7914
      %v7928 = vpop.f32.mrf.mxu0
      %v7929 = vadd.f32 0.0, %v7928
      %v7930 = vpop.f32.mrf.mxu0
      %7931 = vdwg.mxu0
      %v7934 = vunpack.c.l.b16 %v7405
      %v7935 = vunpack.c.l.b16 %v7406
      %v7936 = vpack.c.b16 %v7935, %v7934
      %v7938 = vsel %vm7432, %v7288, 0
      %v7941 = vsel %vm7432, %v7936, 0
      %7943 = vmatpush.bf16.xpose.msra.mxu0 0
      %7944 = vmatpush.bf16.xpose.msra.mxu0 0
      %7945 = vmatpush.bf16.xpose.msra.mxu0 0
      %7946 = vmatpush.bf16.xpose.msra.mxu0 0
      %7947 = vmatpush.bf16.xpose.msra.mxu0 0
      %7948 = vmatpush.bf16.xpose.msra.mxu0 0
      %7949 = vmatpush.bf16.xpose.msra.mxu0 0
      %7950 = vmatpush.bf16.xpose.msra.mxu0 %v7941
      %7951 = vmatmul.bf16.gmra.mxu0 %v7938
      %v7952 = vpop.f32.mrf.mxu0
      %v7953 = vadd.f32 0.0, %v7952
      %v7954 = vpop.f32.mrf.mxu0
      %7955 = vdwg.mxu0
      %v7958 = vunpack.c.l.b16 %v7407
      %v7959 = vunpack.c.l.b16 %v7408
      %v7960 = vpack.c.b16 %v7959, %v7958
      %v7962 = vsel %vm7432, %v7289, 0
      %v7965 = vsel %vm7432, %v7960, 0
      %7967 = vmatpush.bf16.xpose.msra.mxu0 0
      %7968 = vmatpush.bf16.xpose.msra.mxu0 0
      %7969 = vmatpush.bf16.xpose.msra.mxu0 0
      %7970 = vmatpush.bf16.xpose.msra.mxu0 0
      %7971 = vmatpush.bf16.xpose.msra.mxu0 0
      %7972 = vmatpush.bf16.xpose.msra.mxu0 0
      %7973 = vmatpush.bf16.xpose.msra.mxu0 0
      %7974 = vmatpush.bf16.xpose.msra.mxu0 %v7965
      %7975 = vmatmul.bf16.gmra.mxu0 %v7962
      %v7976 = vpop.f32.mrf.mxu0
      %v7977 = vadd.f32 0.0, %v7976
      %v7978 = vpop.f32.mrf.mxu0
      %7979 = vdwg.mxu0
      %v7982 = vunpack.c.l.b16 %v7409
      %v7983 = vunpack.c.l.b16 %v7410
      %v7984 = vpack.c.b16 %v7983, %v7982
      %v7986 = vsel %vm7432, %v7290, 0
      %v7989 = vsel %vm7432, %v7984, 0
      %7991 = vmatpush.bf16.xpose.msra.mxu0 0
      %7992 = vmatpush.bf16.xpose.msra.mxu0 0
      %7993 = vmatpush.bf16.xpose.msra.mxu0 0
      %7994 = vmatpush.bf16.xpose.msra.mxu0 0
      %7995 = vmatpush.bf16.xpose.msra.mxu0 0
      %7996 = vmatpush.bf16.xpose.msra.mxu0 0
      %7997 = vmatpush.bf16.xpose.msra.mxu0 0
      %7998 = vmatpush.bf16.xpose.msra.mxu0 %v7989
      %7999 = vmatmul.bf16.gmra.mxu0 %v7986
      %v8000 = vpop.f32.mrf.mxu0
      %v8001 = vadd.f32 0.0, %v8000
      %v8002 = vpop.f32.mrf.mxu0
      %8003 = vdwg.mxu0
      %v8006 = vunpack.c.l.b16 %v7411
      %v8007 = vunpack.c.l.b16 %v7412
      %v8008 = vpack.c.b16 %v8007, %v8006
      %v8010 = vsel %vm7432, %v7291, 0
      %v8013 = vsel %vm7432, %v8008, 0
      %8015 = vmatpush.bf16.xpose.msra.mxu0 0
      %8016 = vmatpush.bf16.xpose.msra.mxu0 0
      %8017 = vmatpush.bf16.xpose.msra.mxu0 0
      %8018 = vmatpush.bf16.xpose.msra.mxu0 0
      %8019 = vmatpush.bf16.xpose.msra.mxu0 0
      %8020 = vmatpush.bf16.xpose.msra.mxu0 0
      %8021 = vmatpush.bf16.xpose.msra.mxu0 0
      %8022 = vmatpush.bf16.xpose.msra.mxu0 %v8013
      %8023 = vmatmul.bf16.gmra.mxu0 %v8010
      %v8024 = vpop.f32.mrf.mxu0
      %v8025 = vadd.f32 0.0, %v8024
      %v8026 = vpop.f32.mrf.mxu0
      %8027 = vdwg.mxu0
      %v8030 = vunpack.c.l.b16 %v7413
      %v8031 = vunpack.c.l.b16 %v7414
      %v8032 = vpack.c.b16 %v8031, %v8030
      %v8034 = vsel %vm7432, %v7292, 0
      %v8037 = vsel %vm7432, %v8032, 0
      %8039 = vmatpush.bf16.xpose.msra.mxu0 0
      %8040 = vmatpush.bf16.xpose.msra.mxu0 0
      %8041 = vmatpush.bf16.xpose.msra.mxu0 0
      %8042 = vmatpush.bf16.xpose.msra.mxu0 0
      %8043 = vmatpush.bf16.xpose.msra.mxu0 0
      %8044 = vmatpush.bf16.xpose.msra.mxu0 0
      %8045 = vmatpush.bf16.xpose.msra.mxu0 0
      %8046 = vmatpush.bf16.xpose.msra.mxu0 %v8037
      %8047 = vmatmul.bf16.gmra.mxu0 %v8034
      %v8048 = vpop.f32.mrf.mxu0
      %v8049 = vadd.f32 0.0, %v8048
      %v8050 = vpop.f32.mrf.mxu0
      %8051 = vdwg.mxu0
      %v8054 = vunpack.c.l.b16 %v7415
      %v8055 = vunpack.c.l.b16 %v7416
      %v8056 = vpack.c.b16 %v8055, %v8054
      %v8058 = vsel %vm7432, %v7293, 0
      %v8061 = vsel %vm7432, %v8056, 0
      %8063 = vmatpush.bf16.xpose.msra.mxu0 0
      %8064 = vmatpush.bf16.xpose.msra.mxu0 0
      %8065 = vmatpush.bf16.xpose.msra.mxu0 0
      %8066 = vmatpush.bf16.xpose.msra.mxu0 0
      %8067 = vmatpush.bf16.xpose.msra.mxu0 0
      %8068 = vmatpush.bf16.xpose.msra.mxu0 0
      %8069 = vmatpush.bf16.xpose.msra.mxu0 0
      %8070 = vmatpush.bf16.xpose.msra.mxu0 %v8061
      %8071 = vmatmul.bf16.gmra.mxu0 %v8058
      %v8072 = vpop.f32.mrf.mxu0
      %v8073 = vadd.f32 0.0, %v8072
      %v8074 = vpop.f32.mrf.mxu0
      %8075 = vdwg.mxu0
      %v8078 = vunpack.c.l.b16 %v7417
      %v8079 = vunpack.c.l.b16 %v7418
      %v8080 = vpack.c.b16 %v8079, %v8078
      %v8082 = vsel %vm7432, %v7294, 0
      %v8085 = vsel %vm7432, %v8080, 0
      %8087 = vmatpush.bf16.xpose.msra.mxu0 0
      %8088 = vmatpush.bf16.xpose.msra.mxu0 0
      %8089 = vmatpush.bf16.xpose.msra.mxu0 0
      %8090 = vmatpush.bf16.xpose.msra.mxu0 0
      %8091 = vmatpush.bf16.xpose.msra.mxu0 0
      %8092 = vmatpush.bf16.xpose.msra.mxu0 0
      %8093 = vmatpush.bf16.xpose.msra.mxu0 0
      %8094 = vmatpush.bf16.xpose.msra.mxu0 %v8085
      %8095 = vmatmul.bf16.gmra.mxu0 %v8082
      %v8096 = vpop.f32.mrf.mxu0
      %v8097 = vadd.f32 0.0, %v8096
      %v8098 = vpop.f32.mrf.mxu0
      %8099 = vdwg.mxu0
      %v8102 = vunpack.c.l.b16 %v7419
      %v8103 = vunpack.c.l.b16 %v7420
      %v8104 = vpack.c.b16 %v8103, %v8102
      %v8106 = vsel %vm7432, %v7295, 0
      %v8109 = vsel %vm7432, %v8104, 0
      %8111 = vmatpush.bf16.xpose.msra.mxu0 0
      %8112 = vmatpush.bf16.xpose.msra.mxu0 0
      %8113 = vmatpush.bf16.xpose.msra.mxu0 0
      %8114 = vmatpush.bf16.xpose.msra.mxu0 0
      %8115 = vmatpush.bf16.xpose.msra.mxu0 0
      %8116 = vmatpush.bf16.xpose.msra.mxu0 0
      %8117 = vmatpush.bf16.xpose.msra.mxu0 0
      %8118 = vmatpush.bf16.xpose.msra.mxu0 %v8109
      %8119 = vmatmul.bf16.gmra.mxu0 %v8106
      %v8120 = vpop.f32.mrf.mxu0
      %v8121 = vadd.f32 0.0, %v8120
      %v8122 = vpop.f32.mrf.mxu0
      %8123 = vdwg.mxu0
      %v8126 = vunpack.c.l.b16 %v7421
      %v8127 = vunpack.c.l.b16 %v7422
      %v8128 = vpack.c.b16 %v8127, %v8126
      %v8130 = vsel %vm7432, %v7296, 0
      %v8133 = vsel %vm7432, %v8128, 0
      %8135 = vmatpush.bf16.xpose.msra.mxu0 0
      %8136 = vmatpush.bf16.xpose.msra.mxu0 0
      %8137 = vmatpush.bf16.xpose.msra.mxu0 0
      %8138 = vmatpush.bf16.xpose.msra.mxu0 0
      %8139 = vmatpush.bf16.xpose.msra.mxu0 0
      %8140 = vmatpush.bf16.xpose.msra.mxu0 0
      %8141 = vmatpush.bf16.xpose.msra.mxu0 0
      %8142 = vmatpush.bf16.xpose.msra.mxu0 %v8133
      %8143 = vmatmul.bf16.gmra.mxu0 %v8130
      %v8144 = vpop.f32.mrf.mxu0
      %v8145 = vadd.f32 0.0, %v8144
      %v8146 = vpop.f32.mrf.mxu0
      %8147 = vdwg.mxu0
      %v8150 = vunpack.c.l.b16 %v7423
      %v8151 = vunpack.c.l.b16 %v7424
      %v8152 = vpack.c.b16 %v8151, %v8150
      %v8154 = vsel %vm7432, %v7297, 0
      %v8157 = vsel %vm7432, %v8152, 0
      %8159 = vmatpush.bf16.xpose.msra.mxu0 0
      %8160 = vmatpush.bf16.xpose.msra.mxu0 0
      %8161 = vmatpush.bf16.xpose.msra.mxu0 0
      %8162 = vmatpush.bf16.xpose.msra.mxu0 0
      %8163 = vmatpush.bf16.xpose.msra.mxu0 0
      %8164 = vmatpush.bf16.xpose.msra.mxu0 0
      %8165 = vmatpush.bf16.xpose.msra.mxu0 0
      %8166 = vmatpush.bf16.xpose.msra.mxu0 %v8157
      %8167 = vmatmul.bf16.gmra.mxu0 %v8154
      %v8168 = vpop.f32.mrf.mxu0
      %v8169 = vadd.f32 0.0, %v8168
      %v8170 = vpop.f32.mrf.mxu0
      %8171 = vdwg.mxu0
      %v8174 = vunpack.c.l.b16 %v7425
      %v8175 = vunpack.c.l.b16 %v7426
      %v8176 = vpack.c.b16 %v8175, %v8174
      %v8178 = vsel %vm7432, %v7298, 0
      %v8181 = vsel %vm7432, %v8176, 0
      %8183 = vmatpush.bf16.xpose.msra.mxu0 0
      %8184 = vmatpush.bf16.xpose.msra.mxu0 0
      %8185 = vmatpush.bf16.xpose.msra.mxu0 0
      %8186 = vmatpush.bf16.xpose.msra.mxu0 0
      %8187 = vmatpush.bf16.xpose.msra.mxu0 0
      %8188 = vmatpush.bf16.xpose.msra.mxu0 0
      %8189 = vmatpush.bf16.xpose.msra.mxu0 0
      %8190 = vmatpush.bf16.xpose.msra.mxu0 %v8181
      %8191 = vmatmul.bf16.gmra.mxu0 %v8178
      %v8192 = vpop.f32.mrf.mxu0
      %v8193 = vadd.f32 0.0, %v8192
      %v8194 = vpop.f32.mrf.mxu0
      %8195 = vdwg.mxu0
      %8196 = vst.msk [vmem:[#allocation5] sm:$0xff] %vm7432, %v7449
      %8197 = vst.msk [vmem:[#allocation5 + $0x8] sm:$0xff] %vm7432, %v7473
      %8198 = vst.msk [vmem:[#allocation5 + $0x10] sm:$0xff] %vm7432, %v7497
      %8199 = vst.msk [vmem:[#allocation5 + $0x18] sm:$0xff] %vm7432, %v7521
      %8200 = vst.msk [vmem:[#allocation5 + $0x20] sm:$0xff] %vm7432, %v7545
      %8201 = vst.msk [vmem:[#allocation5 + $0x28] sm:$0xff] %vm7432, %v7569
      %8202 = vst.msk [vmem:[#allocation5 + $0x30] sm:$0xff] %vm7432, %v7593
      %8203 = vst.msk [vmem:[#allocation5 + $0x38] sm:$0xff] %vm7432, %v7617
      %8204 = vst.msk [vmem:[#allocation5 + $0x40] sm:$0xff] %vm7432, %v7641
      %8205 = vst.msk [vmem:[#allocation5 + $0x48] sm:$0xff] %vm7432, %v7665
      %8206 = vst.msk [vmem:[#allocation5 + $0x50] sm:$0xff] %vm7432, %v7689
      %8207 = vst.msk [vmem:[#allocation5 + $0x58] sm:$0xff] %vm7432, %v7713
      %8208 = vst.msk [vmem:[#allocation5 + $0x60] sm:$0xff] %vm7432, %v7737
      %8209 = vst.msk [vmem:[#allocation5 + $0x68] sm:$0xff] %vm7432, %v7761
      %8210 = vst.msk [vmem:[#allocation5 + $0x70] sm:$0xff] %vm7432, %v7785
      %8211 = vst.msk [vmem:[#allocation5 + $0x78] sm:$0xff] %vm7432, %v7809
      %8212 = vst.msk [vmem:[#allocation5 + $0x80] sm:$0xff] %vm7432, %v7833
      %8213 = vst.msk [vmem:[#allocation5 + $0x88] sm:$0xff] %vm7432, %v7857
      %8214 = vst.msk [vmem:[#allocation5 + $0x90] sm:$0xff] %vm7432, %v7881
      %8215 = vst.msk [vmem:[#allocation5 + $0x98] sm:$0xff] %vm7432, %v7905
      %8216 = vst.msk [vmem:[#allocation5 + $0xa0] sm:$0xff] %vm7432, %v7929
      %8217 = vst.msk [vmem:[#allocation5 + $0xa8] sm:$0xff] %vm7432, %v7953
      %8218 = vst.msk [vmem:[#allocation5 + $0xb0] sm:$0xff] %vm7432, %v7977
      %8219 = vst.msk [vmem:[#allocation5 + $0xb8] sm:$0xff] %vm7432, %v8001
      %8220 = vst.msk [vmem:[#allocation5 + $0xc0] sm:$0xff] %vm7432, %v8025
      %8221 = vst.msk [vmem:[#allocation5 + $0xc8] sm:$0xff] %vm7432, %v8049
      %8222 = vst.msk [vmem:[#allocation5 + $0xd0] sm:$0xff] %vm7432, %v8073
      %8223 = vst.msk [vmem:[#allocation5 + $0xd8] sm:$0xff] %vm7432, %v8097
      %8224 = vst.msk [vmem:[#allocation5 + $0xe0] sm:$0xff] %vm7432, %v8121
      %8225 = vst.msk [vmem:[#allocation5 + $0xe8] sm:$0xff] %vm7432, %v8145
      %8226 = vst.msk [vmem:[#allocation5 + $0xf0] sm:$0xff] %vm7432, %v8169
      %8227 = vst.msk [vmem:[#allocation5 + $0xf8] sm:$0xff] %vm7432, %v8193
      %v8228 = vld [vmem:[#allocation5] sm:$0x1]
      %v8229 = vld [vmem:[#allocation5 + $0x8] sm:$0x1]
      %v8230 = vld [vmem:[#allocation5 + $0x10] sm:$0x1]
      %v8231 = vld [vmem:[#allocation5 + $0x18] sm:$0x1]
      %v8232 = vld [vmem:[#allocation5 + $0x20] sm:$0x1]
      %v8233 = vld [vmem:[#allocation5 + $0x28] sm:$0x1]
      %v8234 = vld [vmem:[#allocation5 + $0x30] sm:$0x1]
      %v8235 = vld [vmem:[#allocation5 + $0x38] sm:$0x1]
      %v8236 = vld [vmem:[#allocation5 + $0x40] sm:$0x1]
      %v8237 = vld [vmem:[#allocation5 + $0x48] sm:$0x1]
      %v8238 = vld [vmem:[#allocation5 + $0x50] sm:$0x1]
      %v8239 = vld [vmem:[#allocation5 + $0x58] sm:$0x1]
      %v8240 = vld [vmem:[#allocation5 + $0x60] sm:$0x1]
      %v8241 = vld [vmem:[#allocation5 + $0x68] sm:$0x1]
      %v8242 = vld [vmem:[#allocation5 + $0x70] sm:$0x1]
      %v8243 = vld [vmem:[#allocation5 + $0x78] sm:$0x1]
      %v8244 = vld [vmem:[#allocation5 + $0x80] sm:$0x1]
      %v8245 = vld [vmem:[#allocation5 + $0x88] sm:$0x1]
      %v8246 = vld [vmem:[#allocation5 + $0x90] sm:$0x1]
      %v8247 = vld [vmem:[#allocation5 + $0x98] sm:$0x1]
      %v8248 = vld [vmem:[#allocation5 + $0xa0] sm:$0x1]
      %v8249 = vld [vmem:[#allocation5 + $0xa8] sm:$0x1]
      %v8250 = vld [vmem:[#allocation5 + $0xb0] sm:$0x1]
      %v8251 = vld [vmem:[#allocation5 + $0xb8] sm:$0x1]
      %v8252 = vld [vmem:[#allocation5 + $0xc0] sm:$0x1]
      %v8253 = vld [vmem:[#allocation5 + $0xc8] sm:$0x1]
      %v8254 = vld [vmem:[#allocation5 + $0xd0] sm:$0x1]
      %v8255 = vld [vmem:[#allocation5 + $0xd8] sm:$0x1]
      %v8256 = vld [vmem:[#allocation5 + $0xe0] sm:$0x1]
      %v8257 = vld [vmem:[#allocation5 + $0xe8] sm:$0x1]
      %v8258 = vld [vmem:[#allocation5 + $0xf0] sm:$0x1]
      %v8259 = vld [vmem:[#allocation5 + $0xf8] sm:$0x1]
      %v8292 = vrot.slane %v8229, 7
      %vm8293 = vcmask 1041409
      %v8294 = vsel %vm8293, %v8292, %v8228
      %v8295 = vrot.slane %v8230, 6
      %vm8296 = vcmask 1042434
      %v8297 = vsel %vm8296, %v8295, %v8294
      %v8298 = vrot.slane %v8231, 5
      %vm8299 = vcmask 1043459
      %v8300 = vsel %vm8299, %v8298, %v8297
      %v8301 = vrot.slane %v8232, 4
      %vm8302 = vcmask 1044484
      %v8303 = vsel %vm8302, %v8301, %v8300
      %v8304 = vrot.slane %v8233, 3
      %vm8305 = vcmask 1045509
      %v8306 = vsel %vm8305, %v8304, %v8303
      %v8307 = vrot.slane %v8234, 2
      %vm8308 = vcmask 1046534
      %v8309 = vsel %vm8308, %v8307, %v8306
      %v8310 = vrot.slane %v8235, 1
      %vm8311 = vcmask 1047559
      %v8312 = vsel %vm8311, %v8310, %v8309
      %v8313 = vrot.slane %v8237, 7
      %v8314 = vsel %vm8293, %v8313, %v8236
      %v8315 = vrot.slane %v8238, 6
      %v8316 = vsel %vm8296, %v8315, %v8314
      %v8317 = vrot.slane %v8239, 5
      %v8318 = vsel %vm8299, %v8317, %v8316
      %v8319 = vrot.slane %v8240, 4
      %v8320 = vsel %vm8302, %v8319, %v8318
      %v8321 = vrot.slane %v8241, 3
      %v8322 = vsel %vm8305, %v8321, %v8320
      %v8323 = vrot.slane %v8242, 2
      %v8324 = vsel %vm8308, %v8323, %v8322
      %v8325 = vrot.slane %v8243, 1
      %v8326 = vsel %vm8311, %v8325, %v8324
      %v8327 = vrot.slane %v8245, 7
      %v8328 = vsel %vm8293, %v8327, %v8244
      %v8329 = vrot.slane %v8246, 6
      %v8330 = vsel %vm8296, %v8329, %v8328
      %v8331 = vrot.slane %v8247, 5
      %v8332 = vsel %vm8299, %v8331, %v8330
      %v8333 = vrot.slane %v8248, 4
      %v8334 = vsel %vm8302, %v8333, %v8332
      %v8335 = vrot.slane %v8249, 3
      %v8336 = vsel %vm8305, %v8335, %v8334
      %v8337 = vrot.slane %v8250, 2
      %v8338 = vsel %vm8308, %v8337, %v8336
      %v8339 = vrot.slane %v8251, 1
      %v8340 = vsel %vm8311, %v8339, %v8338
      %v8341 = vrot.slane %v8253, 7
      %v8342 = vsel %vm8293, %v8341, %v8252
      %v8343 = vrot.slane %v8254, 6
      %v8344 = vsel %vm8296, %v8343, %v8342
      %v8345 = vrot.slane %v8255, 5
      %v8346 = vsel %vm8299, %v8345, %v8344
      %v8347 = vrot.slane %v8256, 4
      %v8348 = vsel %vm8302, %v8347, %v8346
      %v8349 = vrot.slane %v8257, 3
      %v8350 = vsel %vm8305, %v8349, %v8348
      %v8351 = vrot.slane %v8258, 2
      %v8352 = vsel %vm8308, %v8351, %v8350
      %v8353 = vrot.slane %v8259, 1
      %v8354 = vsel %vm8311, %v8353, %v8352
      %8359 = vxpose.xlu0.b32.start [1/16] %v8312, 128
      %8360 = vxpose.xlu0.b32.cont [2/16] %v8326, 128
      %8361 = vxpose.xlu0.b32.cont [3/16] %v8340, 128
      %8362 = vxpose.xlu0.b32.cont [4/16] %v8354, 128
      %8363 = vxpose.xlu0.b32.cont [5/16] 0.0, 128
      %8364 = vxpose.xlu0.b32.cont [6/16] 0.0, 128
      %8365 = vxpose.xlu0.b32.cont [7/16] 0.0, 128
      %8366 = vxpose.xlu0.b32.cont [8/16] 0.0, 128
      %8367 = vxpose.xlu0.b32.cont [9/16] 0.0, 128
      %8368 = vxpose.xlu0.b32.cont [10/16] 0.0, 128
      %8369 = vxpose.xlu0.b32.cont [11/16] 0.0, 128
      %8370 = vxpose.xlu0.b32.cont [12/16] 0.0, 128
      %8371 = vxpose.xlu0.b32.cont [13/16] 0.0, 128
      %8372 = vxpose.xlu0.b32.cont [14/16] 0.0, 128
      %8373 = vxpose.xlu0.b32.cont [15/16] 0.0, 128
      %8374 = vxpose.xlu0.b32.end [16/16] 0.0, 128
      %v8375 = vpop.trf.xlu0
      %v8376 = vpop.trf.xlu0
      %v8377 = vpop.trf.xlu0
      %v8378 = vpop.trf.xlu0
      %v8379 = vpop.trf.xlu0
      %v8380 = vpop.trf.xlu0
      %v8381 = vpop.trf.xlu0
      %v8382 = vpop.trf.xlu0
      %v8383 = vpop.trf.xlu0
      %v8384 = vpop.trf.xlu0
      %v8385 = vpop.trf.xlu0
      %v8386 = vpop.trf.xlu0
      %v8387 = vpop.trf.xlu0
      %v8388 = vpop.trf.xlu0
      %v8389 = vpop.trf.xlu0
      %v8390 = vpop.trf.xlu0
      %v8391 = vld [vmem:[#allocation5 + $0x1] sm:$0x1]
      %v8392 = vld [vmem:[#allocation5 + $0x9] sm:$0x1]
      %v8393 = vld [vmem:[#allocation5 + $0x11] sm:$0x1]
      %v8394 = vld [vmem:[#allocation5 + $0x19] sm:$0x1]
      %v8395 = vld [vmem:[#allocation5 + $0x21] sm:$0x1]
      %v8396 = vld [vmem:[#allocation5 + $0x29] sm:$0x1]
      %v8397 = vld [vmem:[#allocation5 + $0x31] sm:$0x1]
      %v8398 = vld [vmem:[#allocation5 + $0x39] sm:$0x1]
      %v8399 = vld [vmem:[#allocation5 + $0x41] sm:$0x1]
      %v8400 = vld [vmem:[#allocation5 + $0x49] sm:$0x1]
      %v8401 = vld [vmem:[#allocation5 + $0x51] sm:$0x1]
      %v8402 = vld [vmem:[#allocation5 + $0x59] sm:$0x1]
      %v8403 = vld [vmem:[#allocation5 + $0x61] sm:$0x1]
      %v8404 = vld [vmem:[#allocation5 + $0x69] sm:$0x1]
      %v8405 = vld [vmem:[#allocation5 + $0x71] sm:$0x1]
      %v8406 = vld [vmem:[#allocation5 + $0x79] sm:$0x1]
      %v8407 = vld [vmem:[#allocation5 + $0x81] sm:$0x1]
      %v8408 = vld [vmem:[#allocation5 + $0x89] sm:$0x1]
      %v8409 = vld [vmem:[#allocation5 + $0x91] sm:$0x1]
      %v8410 = vld [vmem:[#allocation5 + $0x99] sm:$0x1]
      %v8411 = vld [vmem:[#allocation5 + $0xa1] sm:$0x1]
      %v8412 = vld [vmem:[#allocation5 + $0xa9] sm:$0x1]
      %v8413 = vld [vmem:[#allocation5 + $0xb1] sm:$0x1]
      %v8414 = vld [vmem:[#allocation5 + $0xb9] sm:$0x1]
      %v8415 = vld [vmem:[#allocation5 + $0xc1] sm:$0x1]
      %v8416 = vld [vmem:[#allocation5 + $0xc9] sm:$0x1]
      %v8417 = vld [vmem:[#allocation5 + $0xd1] sm:$0x1]
      %v8418 = vld [vmem:[#allocation5 + $0xd9] sm:$0x1]
      %v8419 = vld [vmem:[#allocation5 + $0xe1] sm:$0x1]
      %v8420 = vld [vmem:[#allocation5 + $0xe9] sm:$0x1]
      %v8421 = vld [vmem:[#allocation5 + $0xf1] sm:$0x1]
      %v8422 = vld [vmem:[#allocation5 + $0xf9] sm:$0x1]
      %v8455 = vrot.slane %v8392, 7
      %v8456 = vsel %vm8293, %v8455, %v8391
      %v8457 = vrot.slane %v8393, 6
      %v8458 = vsel %vm8296, %v8457, %v8456
      %v8459 = vrot.slane %v8394, 5
      %v8460 = vsel %vm8299, %v8459, %v8458
      %v8461 = vrot.slane %v8395, 4
      %v8462 = vsel %vm8302, %v8461, %v8460
      %v8463 = vrot.slane %v8396, 3
      %v8464 = vsel %vm8305, %v8463, %v8462
      %v8465 = vrot.slane %v8397, 2
      %v8466 = vsel %vm8308, %v8465, %v8464
      %v8467 = vrot.slane %v8398, 1
      %v8468 = vsel %vm8311, %v8467, %v8466
      %v8469 = vrot.slane %v8400, 7
      %v8470 = vsel %vm8293, %v8469, %v8399
      %v8471 = vrot.slane %v8401, 6
      %v8472 = vsel %vm8296, %v8471, %v8470
      %v8473 = vrot.slane %v8402, 5
      %v8474 = vsel %vm8299, %v8473, %v8472
      %v8475 = vrot.slane %v8403, 4
      %v8476 = vsel %vm8302, %v8475, %v8474
      %v8477 = vrot.slane %v8404, 3
      %v8478 = vsel %vm8305, %v8477, %v8476
      %v8479 = vrot.slane %v8405, 2
      %v8480 = vsel %vm8308, %v8479, %v8478
      %v8481 = vrot.slane %v8406, 1
      %v8482 = vsel %vm8311, %v8481, %v8480
      %v8483 = vrot.slane %v8408, 7
      %v8484 = vsel %vm8293, %v8483, %v8407
      %v8485 = vrot.slane %v8409, 6
      %v8486 = vsel %vm8296, %v8485, %v8484
      %v8487 = vrot.slane %v8410, 5
      %v8488 = vsel %vm8299, %v8487, %v8486
      %v8489 = vrot.slane %v8411, 4
      %v8490 = vsel %vm8302, %v8489, %v8488
      %v8491 = vrot.slane %v8412, 3
      %v8492 = vsel %vm8305, %v8491, %v8490
      %v8493 = vrot.slane %v8413, 2
      %v8494 = vsel %vm8308, %v8493, %v8492
      %v8495 = vrot.slane %v8414, 1
      %v8496 = vsel %vm8311, %v8495, %v8494
      %v8497 = vrot.slane %v8416, 7
      %v8498 = vsel %vm8293, %v8497, %v8415
      %v8499 = vrot.slane %v8417, 6
      %v8500 = vsel %vm8296, %v8499, %v8498
      %v8501 = vrot.slane %v8418, 5
      %v8502 = vsel %vm8299, %v8501, %v8500
      %v8503 = vrot.slane %v8419, 4
      %v8504 = vsel %vm8302, %v8503, %v8502
      %v8505 = vrot.slane %v8420, 3
      %v8506 = vsel %vm8305, %v8505, %v8504
      %v8507 = vrot.slane %v8421, 2
      %v8508 = vsel %vm8308, %v8507, %v8506
      %v8509 = vrot.slane %v8422, 1
      %v8510 = vsel %vm8311, %v8509, %v8508
      %8515 = vxpose.xlu0.b32.start [1/16] %v8468, 128
      %8516 = vxpose.xlu0.b32.cont [2/16] %v8482, 128
      %8517 = vxpose.xlu0.b32.cont [3/16] %v8496, 128
      %8518 = vxpose.xlu0.b32.cont [4/16] %v8510, 128
      %8519 = vxpose.xlu0.b32.cont [5/16] 0.0, 128
      %8520 = vxpose.xlu0.b32.cont [6/16] 0.0, 128
      %8521 = vxpose.xlu0.b32.cont [7/16] 0.0, 128
      %8522 = vxpose.xlu0.b32.cont [8/16] 0.0, 128
      %8523 = vxpose.xlu0.b32.cont [9/16] 0.0, 128
      %8524 = vxpose.xlu0.b32.cont [10/16] 0.0, 128
      %8525 = vxpose.xlu0.b32.cont [11/16] 0.0, 128
      %8526 = vxpose.xlu0.b32.cont [12/16] 0.0, 128
      %8527 = vxpose.xlu0.b32.cont [13/16] 0.0, 128
      %8528 = vxpose.xlu0.b32.cont [14/16] 0.0, 128
      %8529 = vxpose.xlu0.b32.cont [15/16] 0.0, 128
      %8530 = vxpose.xlu0.b32.end [16/16] 0.0, 128
      %v8531 = vpop.trf.xlu0
      %v8532 = vpop.trf.xlu0
      %v8533 = vpop.trf.xlu0
      %v8534 = vpop.trf.xlu0
      %v8535 = vpop.trf.xlu0
      %v8536 = vpop.trf.xlu0
      %v8537 = vpop.trf.xlu0
      %v8538 = vpop.trf.xlu0
      %v8539 = vpop.trf.xlu0
      %v8540 = vpop.trf.xlu0
      %v8541 = vpop.trf.xlu0
      %v8542 = vpop.trf.xlu0
      %v8543 = vpop.trf.xlu0
      %v8544 = vpop.trf.xlu0
      %v8545 = vpop.trf.xlu0
      %v8546 = vpop.trf.xlu0
      %v8547 = vld [vmem:[#allocation5 + $0x2] sm:$0x1]
      %v8548 = vld [vmem:[#allocation5 + $0xa] sm:$0x1]
      %v8549 = vld [vmem:[#allocation5 + $0x12] sm:$0x1]
      %v8550 = vld [vmem:[#allocation5 + $0x1a] sm:$0x1]
      %v8551 = vld [vmem:[#allocation5 + $0x22] sm:$0x1]
      %v8552 = vld [vmem:[#allocation5 + $0x2a] sm:$0x1]
      %v8553 = vld [vmem:[#allocation5 + $0x32] sm:$0x1]
      %v8554 = vld [vmem:[#allocation5 + $0x3a] sm:$0x1]
      %v8555 = vld [vmem:[#allocation5 + $0x42] sm:$0x1]
      %v8556 = vld [vmem:[#allocation5 + $0x4a] sm:$0x1]
      %v8557 = vld [vmem:[#allocation5 + $0x52] sm:$0x1]
      %v8558 = vld [vmem:[#allocation5 + $0x5a] sm:$0x1]
      %v8559 = vld [vmem:[#allocation5 + $0x62] sm:$0x1]
      %v8560 = vld [vmem:[#allocation5 + $0x6a] sm:$0x1]
      %v8561 = vld [vmem:[#allocation5 + $0x72] sm:$0x1]
      %v8562 = vld [vmem:[#allocation5 + $0x7a] sm:$0x1]
      %v8563 = vld [vmem:[#allocation5 + $0x82] sm:$0x1]
      %v8564 = vld [vmem:[#allocation5 + $0x8a] sm:$0x1]
      %v8565 = vld [vmem:[#allocation5 + $0x92] sm:$0x1]
      %v8566 = vld [vmem:[#allocation5 + $0x9a] sm:$0x1]
      %v8567 = vld [vmem:[#allocation5 + $0xa2] sm:$0x1]
      %v8568 = vld [vmem:[#allocation5 + $0xaa] sm:$0x1]
      %v8569 = vld [vmem:[#allocation5 + $0xb2] sm:$0x1]
      %v8570 = vld [vmem:[#allocation5 + $0xba] sm:$0x1]
      %v8571 = vld [vmem:[#allocation5 + $0xc2] sm:$0x1]
      %v8572 = vld [vmem:[#allocation5 + $0xca] sm:$0x1]
      %v8573 = vld [vmem:[#allocation5 + $0xd2] sm:$0x1]
      %v8574 = vld [vmem:[#allocation5 + $0xda] sm:$0x1]
      %v8575 = vld [vmem:[#allocation5 + $0xe2] sm:$0x1]
      %v8576 = vld [vmem:[#allocation5 + $0xea] sm:$0x1]
      %v8577 = vld [vmem:[#allocation5 + $0xf2] sm:$0x1]
      %v8578 = vld [vmem:[#allocation5 + $0xfa] sm:$0x1]
      %v8611 = vrot.slane %v8548, 7
      %v8612 = vsel %vm8293, %v8611, %v8547
      %v8613 = vrot.slane %v8549, 6
      %v8614 = vsel %vm8296, %v8613, %v8612
      %v8615 = vrot.slane %v8550, 5
      %v8616 = vsel %vm8299, %v8615, %v8614
      %v8617 = vrot.slane %v8551, 4
      %v8618 = vsel %vm8302, %v8617, %v8616
      %v8619 = vrot.slane %v8552, 3
      %v8620 = vsel %vm8305, %v8619, %v8618
      %v8621 = vrot.slane %v8553, 2
      %v8622 = vsel %vm8308, %v8621, %v8620
      %v8623 = vrot.slane %v8554, 1
      %v8624 = vsel %vm8311, %v8623, %v8622
      %v8625 = vrot.slane %v8556, 7
      %v8626 = vsel %vm8293, %v8625, %v8555
      %v8627 = vrot.slane %v8557, 6
      %v8628 = vsel %vm8296, %v8627, %v8626
      %v8629 = vrot.slane %v8558, 5
      %v8630 = vsel %vm8299, %v8629, %v8628
      %v8631 = vrot.slane %v8559, 4
      %v8632 = vsel %vm8302, %v8631, %v8630
      %v8633 = vrot.slane %v8560, 3
      %v8634 = vsel %vm8305, %v8633, %v8632
      %v8635 = vrot.slane %v8561, 2
      %v8636 = vsel %vm8308, %v8635, %v8634
      %v8637 = vrot.slane %v8562, 1
      %v8638 = vsel %vm8311, %v8637, %v8636
      %v8639 = vrot.slane %v8564, 7
      %v8640 = vsel %vm8293, %v8639, %v8563
      %v8641 = vrot.slane %v8565, 6
      %v8642 = vsel %vm8296, %v8641, %v8640
      %v8643 = vrot.slane %v8566, 5
      %v8644 = vsel %vm8299, %v8643, %v8642
      %v8645 = vrot.slane %v8567, 4
      %v8646 = vsel %vm8302, %v8645, %v8644
      %v8647 = vrot.slane %v8568, 3
      %v8648 = vsel %vm8305, %v8647, %v8646
      %v8649 = vrot.slane %v8569, 2
      %v8650 = vsel %vm8308, %v8649, %v8648
      %v8651 = vrot.slane %v8570, 1
      %v8652 = vsel %vm8311, %v8651, %v8650
      %v8653 = vrot.slane %v8572, 7
      %v8654 = vsel %vm8293, %v8653, %v8571
      %v8655 = vrot.slane %v8573, 6
      %v8656 = vsel %vm8296, %v8655, %v8654
      %v8657 = vrot.slane %v8574, 5
      %v8658 = vsel %vm8299, %v8657, %v8656
      %v8659 = vrot.slane %v8575, 4
      %v8660 = vsel %vm8302, %v8659, %v8658
      %v8661 = vrot.slane %v8576, 3
      %v8662 = vsel %vm8305, %v8661, %v8660
      %v8663 = vrot.slane %v8577, 2
      %v8664 = vsel %vm8308, %v8663, %v8662
      %v8665 = vrot.slane %v8578, 1
      %v8666 = vsel %vm8311, %v8665, %v8664
      %8671 = vxpose.xlu0.b32.start [1/16] %v8624, 128
      %8672 = vxpose.xlu0.b32.cont [2/16] %v8638, 128
      %8673 = vxpose.xlu0.b32.cont [3/16] %v8652, 128
      %8674 = vxpose.xlu0.b32.cont [4/16] %v8666, 128
      %8675 = vxpose.xlu0.b32.cont [5/16] 0.0, 128
      %8676 = vxpose.xlu0.b32.cont [6/16] 0.0, 128
      %8677 = vxpose.xlu0.b32.cont [7/16] 0.0, 128
      %8678 = vxpose.xlu0.b32.cont [8/16] 0.0, 128
      %8679 = vxpose.xlu0.b32.cont [9/16] 0.0, 128
      %8680 = vxpose.xlu0.b32.cont [10/16] 0.0, 128
      %8681 = vxpose.xlu0.b32.cont [11/16] 0.0, 128
      %8682 = vxpose.xlu0.b32.cont [12/16] 0.0, 128
      %8683 = vxpose.xlu0.b32.cont [13/16] 0.0, 128
      %8684 = vxpose.xlu0.b32.cont [14/16] 0.0, 128
      %8685 = vxpose.xlu0.b32.cont [15/16] 0.0, 128
      %8686 = vxpose.xlu0.b32.end [16/16] 0.0, 128
      %v8687 = vpop.trf.xlu0
      %v8688 = vpop.trf.xlu0
      %v8689 = vpop.trf.xlu0
      %v8690 = vpop.trf.xlu0
      %v8691 = vpop.trf.xlu0
      %v8692 = vpop.trf.xlu0
      %v8693 = vpop.trf.xlu0
      %v8694 = vpop.trf.xlu0
      %v8695 = vpop.trf.xlu0
      %v8696 = vpop.trf.xlu0
      %v8697 = vpop.trf.xlu0
      %v8698 = vpop.trf.xlu0
      %v8699 = vpop.trf.xlu0
      %v8700 = vpop.trf.xlu0
      %v8701 = vpop.trf.xlu0
      %v8702 = vpop.trf.xlu0
      %v8703 = vld [vmem:[#allocation5 + $0x3] sm:$0x1]
      %v8704 = vld [vmem:[#allocation5 + $0xb] sm:$0x1]
      %v8705 = vld [vmem:[#allocation5 + $0x13] sm:$0x1]
      %v8706 = vld [vmem:[#allocation5 + $0x1b] sm:$0x1]
      %v8707 = vld [vmem:[#allocation5 + $0x23] sm:$0x1]
      %v8708 = vld [vmem:[#allocation5 + $0x2b] sm:$0x1]
      %v8709 = vld [vmem:[#allocation5 + $0x33] sm:$0x1]
      %v8710 = vld [vmem:[#allocation5 + $0x3b] sm:$0x1]
      %v8711 = vld [vmem:[#allocation5 + $0x43] sm:$0x1]
      %v8712 = vld [vmem:[#allocation5 + $0x4b] sm:$0x1]
      %v8713 = vld [vmem:[#allocation5 + $0x53] sm:$0x1]
      %v8714 = vld [vmem:[#allocation5 + $0x5b] sm:$0x1]
      %v8715 = vld [vmem:[#allocation5 + $0x63] sm:$0x1]
      %v8716 = vld [vmem:[#allocation5 + $0x6b] sm:$0x1]
      %v8717 = vld [vmem:[#allocation5 + $0x73] sm:$0x1]
      %v8718 = vld [vmem:[#allocation5 + $0x7b] sm:$0x1]
      %v8719 = vld [vmem:[#allocation5 + $0x83] sm:$0x1]
      %v8720 = vld [vmem:[#allocation5 + $0x8b] sm:$0x1]
      %v8721 = vld [vmem:[#allocation5 + $0x93] sm:$0x1]
      %v8722 = vld [vmem:[#allocation5 + $0x9b] sm:$0x1]
      %v8723 = vld [vmem:[#allocation5 + $0xa3] sm:$0x1]
      %v8724 = vld [vmem:[#allocation5 + $0xab] sm:$0x1]
      %v8725 = vld [vmem:[#allocation5 + $0xb3] sm:$0x1]
      %v8726 = vld [vmem:[#allocation5 + $0xbb] sm:$0x1]
      %v8727 = vld [vmem:[#allocation5 + $0xc3] sm:$0x1]
      %v8728 = vld [vmem:[#allocation5 + $0xcb] sm:$0x1]
      %v8729 = vld [vmem:[#allocation5 + $0xd3] sm:$0x1]
      %v8730 = vld [vmem:[#allocation5 + $0xdb] sm:$0x1]
      %v8731 = vld [vmem:[#allocation5 + $0xe3] sm:$0x1]
      %v8732 = vld [vmem:[#allocation5 + $0xeb] sm:$0x1]
      %v8733 = vld [vmem:[#allocation5 + $0xf3] sm:$0x1]
      %v8734 = vld [vmem:[#allocation5 + $0xfb] sm:$0x1]
      %v8767 = vrot.slane %v8704, 7
      %v8768 = vsel %vm8293, %v8767, %v8703
      %v8769 = vrot.slane %v8705, 6
      %v8770 = vsel %vm8296, %v8769, %v8768
      %v8771 = vrot.slane %v8706, 5
      %v8772 = vsel %vm8299, %v8771, %v8770
      %v8773 = vrot.slane %v8707, 4
      %v8774 = vsel %vm8302, %v8773, %v8772
      %v8775 = vrot.slane %v8708, 3
      %v8776 = vsel %vm8305, %v8775, %v8774
      %v8777 = vrot.slane %v8709, 2
      %v8778 = vsel %vm8308, %v8777, %v8776
      %v8779 = vrot.slane %v8710, 1
      %v8780 = vsel %vm8311, %v8779, %v8778
      %v8781 = vrot.slane %v8712, 7
      %v8782 = vsel %vm8293, %v8781, %v8711
      %v8783 = vrot.slane %v8713, 6
      %v8784 = vsel %vm8296, %v8783, %v8782
      %v8785 = vrot.slane %v8714, 5
      %v8786 = vsel %vm8299, %v8785, %v8784
      %v8787 = vrot.slane %v8715, 4
      %v8788 = vsel %vm8302, %v8787, %v8786
      %v8789 = vrot.slane %v8716, 3
      %v8790 = vsel %vm8305, %v8789, %v8788
      %v8791 = vrot.slane %v8717, 2
      %v8792 = vsel %vm8308, %v8791, %v8790
      %v8793 = vrot.slane %v8718, 1
      %v8794 = vsel %vm8311, %v8793, %v8792
      %v8795 = vrot.slane %v8720, 7
      %v8796 = vsel %vm8293, %v8795, %v8719
      %v8797 = vrot.slane %v8721, 6
      %v8798 = vsel %vm8296, %v8797, %v8796
      %v8799 = vrot.slane %v8722, 5
      %v8800 = vsel %vm8299, %v8799, %v8798
      %v8801 = vrot.slane %v8723, 4
      %v8802 = vsel %vm8302, %v8801, %v8800
      %v8803 = vrot.slane %v8724, 3
      %v8804 = vsel %vm8305, %v8803, %v8802
      %v8805 = vrot.slane %v8725, 2
      %v8806 = vsel %vm8308, %v8805, %v8804
      %v8807 = vrot.slane %v8726, 1
      %v8808 = vsel %vm8311, %v8807, %v8806
      %v8809 = vrot.slane %v8728, 7
      %v8810 = vsel %vm8293, %v8809, %v8727
      %v8811 = vrot.slane %v8729, 6
      %v8812 = vsel %vm8296, %v8811, %v8810
      %v8813 = vrot.slane %v8730, 5
      %v8814 = vsel %vm8299, %v8813, %v8812
      %v8815 = vrot.slane %v8731, 4
      %v8816 = vsel %vm8302, %v8815, %v8814
      %v8817 = vrot.slane %v8732, 3
      %v8818 = vsel %vm8305, %v8817, %v8816
      %v8819 = vrot.slane %v8733, 2
      %v8820 = vsel %vm8308, %v8819, %v8818
      %v8821 = vrot.slane %v8734, 1
      %v8822 = vsel %vm8311, %v8821, %v8820
      %8827 = vxpose.xlu0.b32.start [1/16] %v8780, 128
      %8828 = vxpose.xlu0.b32.cont [2/16] %v8794, 128
      %8829 = vxpose.xlu0.b32.cont [3/16] %v8808, 128
      %8830 = vxpose.xlu0.b32.cont [4/16] %v8822, 128
      %8831 = vxpose.xlu0.b32.cont [5/16] 0.0, 128
      %8832 = vxpose.xlu0.b32.cont [6/16] 0.0, 128
      %8833 = vxpose.xlu0.b32.cont [7/16] 0.0, 128
      %8834 = vxpose.xlu0.b32.cont [8/16] 0.0, 128
      %8835 = vxpose.xlu0.b32.cont [9/16] 0.0, 128
      %8836 = vxpose.xlu0.b32.cont [10/16] 0.0, 128
      %8837 = vxpose.xlu0.b32.cont [11/16] 0.0, 128
      %8838 = vxpose.xlu0.b32.cont [12/16] 0.0, 128
      %8839 = vxpose.xlu0.b32.cont [13/16] 0.0, 128
      %8840 = vxpose.xlu0.b32.cont [14/16] 0.0, 128
      %8841 = vxpose.xlu0.b32.cont [15/16] 0.0, 128
      %8842 = vxpose.xlu0.b32.end [16/16] 0.0, 128
      %v8843 = vpop.trf.xlu0
      %v8844 = vpop.trf.xlu0
      %v8845 = vpop.trf.xlu0
      %v8846 = vpop.trf.xlu0
      %v8847 = vpop.trf.xlu0
      %v8848 = vpop.trf.xlu0
      %v8849 = vpop.trf.xlu0
      %v8850 = vpop.trf.xlu0
      %v8851 = vpop.trf.xlu0
      %v8852 = vpop.trf.xlu0
      %v8853 = vpop.trf.xlu0
      %v8854 = vpop.trf.xlu0
      %v8855 = vpop.trf.xlu0
      %v8856 = vpop.trf.xlu0
      %v8857 = vpop.trf.xlu0
      %v8858 = vpop.trf.xlu0
      %v8859 = vld [vmem:[#allocation5 + $0x4] sm:$0x1]
      %v8860 = vld [vmem:[#allocation5 + $0xc] sm:$0x1]
      %v8861 = vld [vmem:[#allocation5 + $0x14] sm:$0x1]
      %v8862 = vld [vmem:[#allocation5 + $0x1c] sm:$0x1]
      %v8863 = vld [vmem:[#allocation5 + $0x24] sm:$0x1]
      %v8864 = vld [vmem:[#allocation5 + $0x2c] sm:$0x1]
      %v8865 = vld [vmem:[#allocation5 + $0x34] sm:$0x1]
      %v8866 = vld [vmem:[#allocation5 + $0x3c] sm:$0x1]
      %v8867 = vld [vmem:[#allocation5 + $0x44] sm:$0x1]
      %v8868 = vld [vmem:[#allocation5 + $0x4c] sm:$0x1]
      %v8869 = vld [vmem:[#allocation5 + $0x54] sm:$0x1]
      %v8870 = vld [vmem:[#allocation5 + $0x5c] sm:$0x1]
      %v8871 = vld [vmem:[#allocation5 + $0x64] sm:$0x1]
      %v8872 = vld [vmem:[#allocation5 + $0x6c] sm:$0x1]
      %v8873 = vld [vmem:[#allocation5 + $0x74] sm:$0x1]
      %v8874 = vld [vmem:[#allocation5 + $0x7c] sm:$0x1]
      %v8875 = vld [vmem:[#allocation5 + $0x84] sm:$0x1]
      %v8876 = vld [vmem:[#allocation5 + $0x8c] sm:$0x1]
      %v8877 = vld [vmem:[#allocation5 + $0x94] sm:$0x1]
      %v8878 = vld [vmem:[#allocation5 + $0x9c] sm:$0x1]
      %v8879 = vld [vmem:[#allocation5 + $0xa4] sm:$0x1]
      %v8880 = vld [vmem:[#allocation5 + $0xac] sm:$0x1]
      %v8881 = vld [vmem:[#allocation5 + $0xb4] sm:$0x1]
      %v8882 = vld [vmem:[#allocation5 + $0xbc] sm:$0x1]
      %v8883 = vld [vmem:[#allocation5 + $0xc4] sm:$0x1]
      %v8884 = vld [vmem:[#allocation5 + $0xcc] sm:$0x1]
      %v8885 = vld [vmem:[#allocation5 + $0xd4] sm:$0x1]
      %v8886 = vld [vmem:[#allocation5 + $0xdc] sm:$0x1]
      %v8887 = vld [vmem:[#allocation5 + $0xe4] sm:$0x1]
      %v8888 = vld [vmem:[#allocation5 + $0xec] sm:$0x1]
      %v8889 = vld [vmem:[#allocation5 + $0xf4] sm:$0x1]
      %v8890 = vld [vmem:[#allocation5 + $0xfc] sm:$0x1]
      %v8923 = vrot.slane %v8860, 7
      %v8924 = vsel %vm8293, %v8923, %v8859
      %v8925 = vrot.slane %v8861, 6
      %v8926 = vsel %vm8296, %v8925, %v8924
      %v8927 = vrot.slane %v8862, 5
      %v8928 = vsel %vm8299, %v8927, %v8926
      %v8929 = vrot.slane %v8863, 4
      %v8930 = vsel %vm8302, %v8929, %v8928
      %v8931 = vrot.slane %v8864, 3
      %v8932 = vsel %vm8305, %v8931, %v8930
      %v8933 = vrot.slane %v8865, 2
      %v8934 = vsel %vm8308, %v8933, %v8932
      %v8935 = vrot.slane %v8866, 1
      %v8936 = vsel %vm8311, %v8935, %v8934
      %v8937 = vrot.slane %v8868, 7
      %v8938 = vsel %vm8293, %v8937, %v8867
      %v8939 = vrot.slane %v8869, 6
      %v8940 = vsel %vm8296, %v8939, %v8938
      %v8941 = vrot.slane %v8870, 5
      %v8942 = vsel %vm8299, %v8941, %v8940
      %v8943 = vrot.slane %v8871, 4
      %v8944 = vsel %vm8302, %v8943, %v8942
      %v8945 = vrot.slane %v8872, 3
      %v8946 = vsel %vm8305, %v8945, %v8944
      %v8947 = vrot.slane %v8873, 2
      %v8948 = vsel %vm8308, %v8947, %v8946
      %v8949 = vrot.slane %v8874, 1
      %v8950 = vsel %vm8311, %v8949, %v8948
      %v8951 = vrot.slane %v8876, 7
      %v8952 = vsel %vm8293, %v8951, %v8875
      %v8953 = vrot.slane %v8877, 6
      %v8954 = vsel %vm8296, %v8953, %v8952
      %v8955 = vrot.slane %v8878, 5
      %v8956 = vsel %vm8299, %v8955, %v8954
      %v8957 = vrot.slane %v8879, 4
      %v8958 = vsel %vm8302, %v8957, %v8956
      %v8959 = vrot.slane %v8880, 3
      %v8960 = vsel %vm8305, %v8959, %v8958
      %v8961 = vrot.slane %v8881, 2
      %v8962 = vsel %vm8308, %v8961, %v8960
      %v8963 = vrot.slane %v8882, 1
      %v8964 = vsel %vm8311, %v8963, %v8962
      %v8965 = vrot.slane %v8884, 7
      %v8966 = vsel %vm8293, %v8965, %v8883
      %v8967 = vrot.slane %v8885, 6
      %v8968 = vsel %vm8296, %v8967, %v8966
      %v8969 = vrot.slane %v8886, 5
      %v8970 = vsel %vm8299, %v8969, %v8968
      %v8971 = vrot.slane %v8887, 4
      %v8972 = vsel %vm8302, %v8971, %v8970
      %v8973 = vrot.slane %v8888, 3
      %v8974 = vsel %vm8305, %v8973, %v8972
      %v8975 = vrot.slane %v8889, 2
      %v8976 = vsel %vm8308, %v8975, %v8974
      %v8977 = vrot.slane %v8890, 1
      %v8978 = vsel %vm8311, %v8977, %v8976
      %8983 = vxpose.xlu0.b32.start [1/16] %v8936, 128
      %8984 = vxpose.xlu0.b32.cont [2/16] %v8950, 128
      %8985 = vxpose.xlu0.b32.cont [3/16] %v8964, 128
      %8986 = vxpose.xlu0.b32.cont [4/16] %v8978, 128
      %8987 = vxpose.xlu0.b32.cont [5/16] 0.0, 128
      %8988 = vxpose.xlu0.b32.cont [6/16] 0.0, 128
      %8989 = vxpose.xlu0.b32.cont [7/16] 0.0, 128
      %8990 = vxpose.xlu0.b32.cont [8/16] 0.0, 128
      %8991 = vxpose.xlu0.b32.cont [9/16] 0.0, 128
      %8992 = vxpose.xlu0.b32.cont [10/16] 0.0, 128
      %8993 = vxpose.xlu0.b32.cont [11/16] 0.0, 128
      %8994 = vxpose.xlu0.b32.cont [12/16] 0.0, 128
      %8995 = vxpose.xlu0.b32.cont [13/16] 0.0, 128
      %8996 = vxpose.xlu0.b32.cont [14/16] 0.0, 128
      %8997 = vxpose.xlu0.b32.cont [15/16] 0.0, 128
      %8998 = vxpose.xlu0.b32.end [16/16] 0.0, 128
      %v8999 = vpop.trf.xlu0
      %v9000 = vpop.trf.xlu0
      %v9001 = vpop.trf.xlu0
      %v9002 = vpop.trf.xlu0
      %v9003 = vpop.trf.xlu0
      %v9004 = vpop.trf.xlu0
      %v9005 = vpop.trf.xlu0
      %v9006 = vpop.trf.xlu0
      %v9007 = vpop.trf.xlu0
      %v9008 = vpop.trf.xlu0
      %v9009 = vpop.trf.xlu0
      %v9010 = vpop.trf.xlu0
      %v9011 = vpop.trf.xlu0
      %v9012 = vpop.trf.xlu0
      %v9013 = vpop.trf.xlu0
      %v9014 = vpop.trf.xlu0
      %v9015 = vld [vmem:[#allocation5 + $0x5] sm:$0x1]
      %v9016 = vld [vmem:[#allocation5 + $0xd] sm:$0x1]
      %v9017 = vld [vmem:[#allocation5 + $0x15] sm:$0x1]
      %v9018 = vld [vmem:[#allocation5 + $0x1d] sm:$0x1]
      %v9019 = vld [vmem:[#allocation5 + $0x25] sm:$0x1]
      %v9020 = vld [vmem:[#allocation5 + $0x2d] sm:$0x1]
      %v9021 = vld [vmem:[#allocation5 + $0x35] sm:$0x1]
      %v9022 = vld [vmem:[#allocation5 + $0x3d] sm:$0x1]
      %v9023 = vld [vmem:[#allocation5 + $0x45] sm:$0x1]
      %v9024 = vld [vmem:[#allocation5 + $0x4d] sm:$0x1]
      %v9025 = vld [vmem:[#allocation5 + $0x55] sm:$0x1]
      %v9026 = vld [vmem:[#allocation5 + $0x5d] sm:$0x1]
      %v9027 = vld [vmem:[#allocation5 + $0x65] sm:$0x1]
      %v9028 = vld [vmem:[#allocation5 + $0x6d] sm:$0x1]
      %v9029 = vld [vmem:[#allocation5 + $0x75] sm:$0x1]
      %v9030 = vld [vmem:[#allocation5 + $0x7d] sm:$0x1]
      %v9031 = vld [vmem:[#allocation5 + $0x85] sm:$0x1]
      %v9032 = vld [vmem:[#allocation5 + $0x8d] sm:$0x1]
      %v9033 = vld [vmem:[#allocation5 + $0x95] sm:$0x1]
      %v9034 = vld [vmem:[#allocation5 + $0x9d] sm:$0x1]
      %v9035 = vld [vmem:[#allocation5 + $0xa5] sm:$0x1]
      %v9036 = vld [vmem:[#allocation5 + $0xad] sm:$0x1]
      %v9037 = vld [vmem:[#allocation5 + $0xb5] sm:$0x1]
      %v9038 = vld [vmem:[#allocation5 + $0xbd] sm:$0x1]
      %v9039 = vld [vmem:[#allocation5 + $0xc5] sm:$0x1]
      %v9040 = vld [vmem:[#allocation5 + $0xcd] sm:$0x1]
      %v9041 = vld [vmem:[#allocation5 + $0xd5] sm:$0x1]
      %v9042 = vld [vmem:[#allocation5 + $0xdd] sm:$0x1]
      %v9043 = vld [vmem:[#allocation5 + $0xe5] sm:$0x1]
      %v9044 = vld [vmem:[#allocation5 + $0xed] sm:$0x1]
      %v9045 = vld [vmem:[#allocation5 + $0xf5] sm:$0x1]
      %v9046 = vld [vmem:[#allocation5 + $0xfd] sm:$0x1]
      %v9079 = vrot.slane %v9016, 7
      %v9080 = vsel %vm8293, %v9079, %v9015
      %v9081 = vrot.slane %v9017, 6
      %v9082 = vsel %vm8296, %v9081, %v9080
      %v9083 = vrot.slane %v9018, 5
      %v9084 = vsel %vm8299, %v9083, %v9082
      %v9085 = vrot.slane %v9019, 4
      %v9086 = vsel %vm8302, %v9085, %v9084
      %v9087 = vrot.slane %v9020, 3
      %v9088 = vsel %vm8305, %v9087, %v9086
      %v9089 = vrot.slane %v9021, 2
      %v9090 = vsel %vm8308, %v9089, %v9088
      %v9091 = vrot.slane %v9022, 1
      %v9092 = vsel %vm8311, %v9091, %v9090
      %v9093 = vrot.slane %v9024, 7
      %v9094 = vsel %vm8293, %v9093, %v9023
      %v9095 = vrot.slane %v9025, 6
      %v9096 = vsel %vm8296, %v9095, %v9094
      %v9097 = vrot.slane %v9026, 5
      %v9098 = vsel %vm8299, %v9097, %v9096
      %v9099 = vrot.slane %v9027, 4
      %v9100 = vsel %vm8302, %v9099, %v9098
      %v9101 = vrot.slane %v9028, 3
      %v9102 = vsel %vm8305, %v9101, %v9100
      %v9103 = vrot.slane %v9029, 2
      %v9104 = vsel %vm8308, %v9103, %v9102
      %v9105 = vrot.slane %v9030, 1
      %v9106 = vsel %vm8311, %v9105, %v9104
      %v9107 = vrot.slane %v9032, 7
      %v9108 = vsel %vm8293, %v9107, %v9031
      %v9109 = vrot.slane %v9033, 6
      %v9110 = vsel %vm8296, %v9109, %v9108
      %v9111 = vrot.slane %v9034, 5
      %v9112 = vsel %vm8299, %v9111, %v9110
      %v9113 = vrot.slane %v9035, 4
      %v9114 = vsel %vm8302, %v9113, %v9112
      %v9115 = vrot.slane %v9036, 3
      %v9116 = vsel %vm8305, %v9115, %v9114
      %v9117 = vrot.slane %v9037, 2
      %v9118 = vsel %vm8308, %v9117, %v9116
      %v9119 = vrot.slane %v9038, 1
      %v9120 = vsel %vm8311, %v9119, %v9118
      %v9121 = vrot.slane %v9040, 7
      %v9122 = vsel %vm8293, %v9121, %v9039
      %v9123 = vrot.slane %v9041, 6
      %v9124 = vsel %vm8296, %v9123, %v9122
      %v9125 = vrot.slane %v9042, 5
      %v9126 = vsel %vm8299, %v9125, %v9124
      %v9127 = vrot.slane %v9043, 4
      %v9128 = vsel %vm8302, %v9127, %v9126
      %v9129 = vrot.slane %v9044, 3
      %v9130 = vsel %vm8305, %v9129, %v9128
      %v9131 = vrot.slane %v9045, 2
      %v9132 = vsel %vm8308, %v9131, %v9130
      %v9133 = vrot.slane %v9046, 1
      %v9134 = vsel %vm8311, %v9133, %v9132
      %9139 = vxpose.xlu0.b32.start [1/16] %v9092, 128
      %9140 = vxpose.xlu0.b32.cont [2/16] %v9106, 128
      %9141 = vxpose.xlu0.b32.cont [3/16] %v9120, 128
      %9142 = vxpose.xlu0.b32.cont [4/16] %v9134, 128
      %9143 = vxpose.xlu0.b32.cont [5/16] 0.0, 128
      %9144 = vxpose.xlu0.b32.cont [6/16] 0.0, 128
      %9145 = vxpose.xlu0.b32.cont [7/16] 0.0, 128
      %9146 = vxpose.xlu0.b32.cont [8/16] 0.0, 128
      %9147 = vxpose.xlu0.b32.cont [9/16] 0.0, 128
      %9148 = vxpose.xlu0.b32.cont [10/16] 0.0, 128
      %9149 = vxpose.xlu0.b32.cont [11/16] 0.0, 128
      %9150 = vxpose.xlu0.b32.cont [12/16] 0.0, 128
      %9151 = vxpose.xlu0.b32.cont [13/16] 0.0, 128
      %9152 = vxpose.xlu0.b32.cont [14/16] 0.0, 128
      %9153 = vxpose.xlu0.b32.cont [15/16] 0.0, 128
      %9154 = vxpose.xlu0.b32.end [16/16] 0.0, 128
      %v9155 = vpop.trf.xlu0
      %v9156 = vpop.trf.xlu0
      %v9157 = vpop.trf.xlu0
      %v9158 = vpop.trf.xlu0
      %v9159 = vpop.trf.xlu0
      %v9160 = vpop.trf.xlu0
      %v9161 = vpop.trf.xlu0
      %v9162 = vpop.trf.xlu0
      %v9163 = vpop.trf.xlu0
      %v9164 = vpop.trf.xlu0
      %v9165 = vpop.trf.xlu0
      %v9166 = vpop.trf.xlu0
      %v9167 = vpop.trf.xlu0
      %v9168 = vpop.trf.xlu0
      %v9169 = vpop.trf.xlu0
      %v9170 = vpop.trf.xlu0
      %v9171 = vld [vmem:[#allocation5 + $0x6] sm:$0x1]
      %v9172 = vld [vmem:[#allocation5 + $0xe] sm:$0x1]
      %v9173 = vld [vmem:[#allocation5 + $0x16] sm:$0x1]
      %v9174 = vld [vmem:[#allocation5 + $0x1e] sm:$0x1]
      %v9175 = vld [vmem:[#allocation5 + $0x26] sm:$0x1]
      %v9176 = vld [vmem:[#allocation5 + $0x2e] sm:$0x1]
      %v9177 = vld [vmem:[#allocation5 + $0x36] sm:$0x1]
      %v9178 = vld [vmem:[#allocation5 + $0x3e] sm:$0x1]
      %v9179 = vld [vmem:[#allocation5 + $0x46] sm:$0x1]
      %v9180 = vld [vmem:[#allocation5 + $0x4e] sm:$0x1]
      %v9181 = vld [vmem:[#allocation5 + $0x56] sm:$0x1]
      %v9182 = vld [vmem:[#allocation5 + $0x5e] sm:$0x1]
      %v9183 = vld [vmem:[#allocation5 + $0x66] sm:$0x1]
      %v9184 = vld [vmem:[#allocation5 + $0x6e] sm:$0x1]
      %v9185 = vld [vmem:[#allocation5 + $0x76] sm:$0x1]
      %v9186 = vld [vmem:[#allocation5 + $0x7e] sm:$0x1]
      %v9187 = vld [vmem:[#allocation5 + $0x86] sm:$0x1]
      %v9188 = vld [vmem:[#allocation5 + $0x8e] sm:$0x1]
      %v9189 = vld [vmem:[#allocation5 + $0x96] sm:$0x1]
      %v9190 = vld [vmem:[#allocation5 + $0x9e] sm:$0x1]
      %v9191 = vld [vmem:[#allocation5 + $0xa6] sm:$0x1]
      %v9192 = vld [vmem:[#allocation5 + $0xae] sm:$0x1]
      %v9193 = vld [vmem:[#allocation5 + $0xb6] sm:$0x1]
      %v9194 = vld [vmem:[#allocation5 + $0xbe] sm:$0x1]
      %v9195 = vld [vmem:[#allocation5 + $0xc6] sm:$0x1]
      %v9196 = vld [vmem:[#allocation5 + $0xce] sm:$0x1]
      %v9197 = vld [vmem:[#allocation5 + $0xd6] sm:$0x1]
      %v9198 = vld [vmem:[#allocation5 + $0xde] sm:$0x1]
      %v9199 = vld [vmem:[#allocation5 + $0xe6] sm:$0x1]
      %v9200 = vld [vmem:[#allocation5 + $0xee] sm:$0x1]
      %v9201 = vld [vmem:[#allocation5 + $0xf6] sm:$0x1]
      %v9202 = vld [vmem:[#allocation5 + $0xfe] sm:$0x1]
      %v9235 = vrot.slane %v9172, 7
      %v9236 = vsel %vm8293, %v9235, %v9171
      %v9237 = vrot.slane %v9173, 6
      %v9238 = vsel %vm8296, %v9237, %v9236
      %v9239 = vrot.slane %v9174, 5
      %v9240 = vsel %vm8299, %v9239, %v9238
      %v9241 = vrot.slane %v9175, 4
      %v9242 = vsel %vm8302, %v9241, %v9240
      %v9243 = vrot.slane %v9176, 3
      %v9244 = vsel %vm8305, %v9243, %v9242
      %v9245 = vrot.slane %v9177, 2
      %v9246 = vsel %vm8308, %v9245, %v9244
      %v9247 = vrot.slane %v9178, 1
      %v9248 = vsel %vm8311, %v9247, %v9246
      %v9249 = vrot.slane %v9180, 7
      %v9250 = vsel %vm8293, %v9249, %v9179
      %v9251 = vrot.slane %v9181, 6
      %v9252 = vsel %vm8296, %v9251, %v9250
      %v9253 = vrot.slane %v9182, 5
      %v9254 = vsel %vm8299, %v9253, %v9252
      %v9255 = vrot.slane %v9183, 4
      %v9256 = vsel %vm8302, %v9255, %v9254
      %v9257 = vrot.slane %v9184, 3
      %v9258 = vsel %vm8305, %v9257, %v9256
      %v9259 = vrot.slane %v9185, 2
      %v9260 = vsel %vm8308, %v9259, %v9258
      %v9261 = vrot.slane %v9186, 1
      %v9262 = vsel %vm8311, %v9261, %v9260
      %v9263 = vrot.slane %v9188, 7
      %v9264 = vsel %vm8293, %v9263, %v9187
      %v9265 = vrot.slane %v9189, 6
      %v9266 = vsel %vm8296, %v9265, %v9264
      %v9267 = vrot.slane %v9190, 5
      %v9268 = vsel %vm8299, %v9267, %v9266
      %v9269 = vrot.slane %v9191, 4
      %v9270 = vsel %vm8302, %v9269, %v9268
      %v9271 = vrot.slane %v9192, 3
      %v9272 = vsel %vm8305, %v9271, %v9270
      %v9273 = vrot.slane %v9193, 2
      %v9274 = vsel %vm8308, %v9273, %v9272
      %v9275 = vrot.slane %v9194, 1
      %v9276 = vsel %vm8311, %v9275, %v9274
      %v9277 = vrot.slane %v9196, 7
      %v9278 = vsel %vm8293, %v9277, %v9195
      %v9279 = vrot.slane %v9197, 6
      %v9280 = vsel %vm8296, %v9279, %v9278
      %v9281 = vrot.slane %v9198, 5
      %v9282 = vsel %vm8299, %v9281, %v9280
      %v9283 = vrot.slane %v9199, 4
      %v9284 = vsel %vm8302, %v9283, %v9282
      %v9285 = vrot.slane %v9200, 3
      %v9286 = vsel %vm8305, %v9285, %v9284
      %v9287 = vrot.slane %v9201, 2
      %v9288 = vsel %vm8308, %v9287, %v9286
      %v9289 = vrot.slane %v9202, 1
      %v9290 = vsel %vm8311, %v9289, %v9288
      %9295 = vxpose.xlu0.b32.start [1/16] %v9248, 128
      %9296 = vxpose.xlu0.b32.cont [2/16] %v9262, 128
      %9297 = vxpose.xlu0.b32.cont [3/16] %v9276, 128
      %9298 = vxpose.xlu0.b32.cont [4/16] %v9290, 128
      %9299 = vxpose.xlu0.b32.cont [5/16] 0.0, 128
      %9300 = vxpose.xlu0.b32.cont [6/16] 0.0, 128
      %9301 = vxpose.xlu0.b32.cont [7/16] 0.0, 128
      %9302 = vxpose.xlu0.b32.cont [8/16] 0.0, 128
      %9303 = vxpose.xlu0.b32.cont [9/16] 0.0, 128
      %9304 = vxpose.xlu0.b32.cont [10/16] 0.0, 128
      %9305 = vxpose.xlu0.b32.cont [11/16] 0.0, 128
      %9306 = vxpose.xlu0.b32.cont [12/16] 0.0, 128
      %9307 = vxpose.xlu0.b32.cont [13/16] 0.0, 128
      %9308 = vxpose.xlu0.b32.cont [14/16] 0.0, 128
      %9309 = vxpose.xlu0.b32.cont [15/16] 0.0, 128
      %9310 = vxpose.xlu0.b32.end [16/16] 0.0, 128
      %v9311 = vpop.trf.xlu0
      %v9312 = vpop.trf.xlu0
      %v9313 = vpop.trf.xlu0
      %v9314 = vpop.trf.xlu0
      %v9315 = vpop.trf.xlu0
      %v9316 = vpop.trf.xlu0
      %v9317 = vpop.trf.xlu0
      %v9318 = vpop.trf.xlu0
      %v9319 = vpop.trf.xlu0
      %v9320 = vpop.trf.xlu0
      %v9321 = vpop.trf.xlu0
      %v9322 = vpop.trf.xlu0
      %v9323 = vpop.trf.xlu0
      %v9324 = vpop.trf.xlu0
      %v9325 = vpop.trf.xlu0
      %v9326 = vpop.trf.xlu0
      %v9327 = vld [vmem:[#allocation5 + $0x7] sm:$0x1]
      %v9328 = vld [vmem:[#allocation5 + $0xf] sm:$0x1]
      %v9329 = vld [vmem:[#allocation5 + $0x17] sm:$0x1]
      %v9330 = vld [vmem:[#allocation5 + $0x1f] sm:$0x1]
      %v9331 = vld [vmem:[#allocation5 + $0x27] sm:$0x1]
      %v9332 = vld [vmem:[#allocation5 + $0x2f] sm:$0x1]
      %v9333 = vld [vmem:[#allocation5 + $0x37] sm:$0x1]
      %v9334 = vld [vmem:[#allocation5 + $0x3f] sm:$0x1]
      %v9335 = vld [vmem:[#allocation5 + $0x47] sm:$0x1]
      %v9336 = vld [vmem:[#allocation5 + $0x4f] sm:$0x1]
      %v9337 = vld [vmem:[#allocation5 + $0x57] sm:$0x1]
      %v9338 = vld [vmem:[#allocation5 + $0x5f] sm:$0x1]
      %v9339 = vld [vmem:[#allocation5 + $0x67] sm:$0x1]
      %v9340 = vld [vmem:[#allocation5 + $0x6f] sm:$0x1]
      %v9341 = vld [vmem:[#allocation5 + $0x77] sm:$0x1]
      %v9342 = vld [vmem:[#allocation5 + $0x7f] sm:$0x1]
      %v9343 = vld [vmem:[#allocation5 + $0x87] sm:$0x1]
      %v9344 = vld [vmem:[#allocation5 + $0x8f] sm:$0x1]
      %v9345 = vld [vmem:[#allocation5 + $0x97] sm:$0x1]
      %v9346 = vld [vmem:[#allocation5 + $0x9f] sm:$0x1]
      %v9347 = vld [vmem:[#allocation5 + $0xa7] sm:$0x1]
      %v9348 = vld [vmem:[#allocation5 + $0xaf] sm:$0x1]
      %v9349 = vld [vmem:[#allocation5 + $0xb7] sm:$0x1]
      %v9350 = vld [vmem:[#allocation5 + $0xbf] sm:$0x1]
      %v9351 = vld [vmem:[#allocation5 + $0xc7] sm:$0x1]
      %v9352 = vld [vmem:[#allocation5 + $0xcf] sm:$0x1]
      %v9353 = vld [vmem:[#allocation5 + $0xd7] sm:$0x1]
      %v9354 = vld [vmem:[#allocation5 + $0xdf] sm:$0x1]
      %v9355 = vld [vmem:[#allocation5 + $0xe7] sm:$0x1]
      %v9356 = vld [vmem:[#allocation5 + $0xef] sm:$0x1]
      %v9357 = vld [vmem:[#allocation5 + $0xf7] sm:$0x1]
      %v9358 = vld [vmem:[#allocation5 + $0xff] sm:$0x1]
      %v9391 = vrot.slane %v9328, 7
      %v9392 = vsel %vm8293, %v9391, %v9327
      %v9393 = vrot.slane %v9329, 6
      %v9394 = vsel %vm8296, %v9393, %v9392
      %v9395 = vrot.slane %v9330, 5
      %v9396 = vsel %vm8299, %v9395, %v9394
      %v9397 = vrot.slane %v9331, 4
      %v9398 = vsel %vm8302, %v9397, %v9396
      %v9399 = vrot.slane %v9332, 3
      %v9400 = vsel %vm8305, %v9399, %v9398
      %v9401 = vrot.slane %v9333, 2
      %v9402 = vsel %vm8308, %v9401, %v9400
      %v9403 = vrot.slane %v9334, 1
      %v9404 = vsel %vm8311, %v9403, %v9402
      %v9405 = vrot.slane %v9336, 7
      %v9406 = vsel %vm8293, %v9405, %v9335
      %v9407 = vrot.slane %v9337, 6
      %v9408 = vsel %vm8296, %v9407, %v9406
      %v9409 = vrot.slane %v9338, 5
      %v9410 = vsel %vm8299, %v9409, %v9408
      %v9411 = vrot.slane %v9339, 4
      %v9412 = vsel %vm8302, %v9411, %v9410
      %v9413 = vrot.slane %v9340, 3
      %v9414 = vsel %vm8305, %v9413, %v9412
      %v9415 = vrot.slane %v9341, 2
      %v9416 = vsel %vm8308, %v9415, %v9414
      %v9417 = vrot.slane %v9342, 1
      %v9418 = vsel %vm8311, %v9417, %v9416
      %v9419 = vrot.slane %v9344, 7
      %v9420 = vsel %vm8293, %v9419, %v9343
      %v9421 = vrot.slane %v9345, 6
      %v9422 = vsel %vm8296, %v9421, %v9420
      %v9423 = vrot.slane %v9346, 5
      %v9424 = vsel %vm8299, %v9423, %v9422
      %v9425 = vrot.slane %v9347, 4
      %v9426 = vsel %vm8302, %v9425, %v9424
      %v9427 = vrot.slane %v9348, 3
      %v9428 = vsel %vm8305, %v9427, %v9426
      %v9429 = vrot.slane %v9349, 2
      %v9430 = vsel %vm8308, %v9429, %v9428
      %v9431 = vrot.slane %v9350, 1
      %v9432 = vsel %vm8311, %v9431, %v9430
      %v9433 = vrot.slane %v9352, 7
      %v9434 = vsel %vm8293, %v9433, %v9351
      %v9435 = vrot.slane %v9353, 6
      %v9436 = vsel %vm8296, %v9435, %v9434
      %v9437 = vrot.slane %v9354, 5
      %v9438 = vsel %vm8299, %v9437, %v9436
      %v9439 = vrot.slane %v9355, 4
      %v9440 = vsel %vm8302, %v9439, %v9438
      %v9441 = vrot.slane %v9356, 3
      %v9442 = vsel %vm8305, %v9441, %v9440
      %v9443 = vrot.slane %v9357, 2
      %v9444 = vsel %vm8308, %v9443, %v9442
      %v9445 = vrot.slane %v9358, 1
      %v9446 = vsel %vm8311, %v9445, %v9444
      %9451 = vxpose.xlu0.b32.start [1/16] %v9404, 128
      %9452 = vxpose.xlu0.b32.cont [2/16] %v9418, 128
      %9453 = vxpose.xlu0.b32.cont [3/16] %v9432, 128
      %9454 = vxpose.xlu0.b32.cont [4/16] %v9446, 128
      %9455 = vxpose.xlu0.b32.cont [5/16] 0.0, 128
      %9456 = vxpose.xlu0.b32.cont [6/16] 0.0, 128
      %9457 = vxpose.xlu0.b32.cont [7/16] 0.0, 128
      %9458 = vxpose.xlu0.b32.cont [8/16] 0.0, 128
      %9459 = vxpose.xlu0.b32.cont [9/16] 0.0, 128
      %9460 = vxpose.xlu0.b32.cont [10/16] 0.0, 128
      %9461 = vxpose.xlu0.b32.cont [11/16] 0.0, 128
      %9462 = vxpose.xlu0.b32.cont [12/16] 0.0, 128
      %9463 = vxpose.xlu0.b32.cont [13/16] 0.0, 128
      %9464 = vxpose.xlu0.b32.cont [14/16] 0.0, 128
      %9465 = vxpose.xlu0.b32.cont [15/16] 0.0, 128
      %9466 = vxpose.xlu0.b32.end [16/16] 0.0, 128
      %v9467 = vpop.trf.xlu0
      %v9468 = vpop.trf.xlu0
      %v9469 = vpop.trf.xlu0
      %v9470 = vpop.trf.xlu0
      %v9471 = vpop.trf.xlu0
      %v9472 = vpop.trf.xlu0
      %v9473 = vpop.trf.xlu0
      %v9474 = vpop.trf.xlu0
      %v9475 = vpop.trf.xlu0
      %v9476 = vpop.trf.xlu0
      %v9477 = vpop.trf.xlu0
      %v9478 = vpop.trf.xlu0
      %v9479 = vpop.trf.xlu0
      %v9480 = vpop.trf.xlu0
      %v9481 = vpop.trf.xlu0
      %v9482 = vpop.trf.xlu0
      %s9483 = smul.u32 %s27, 128
      %s9484 = scalar_lea.vmem [#allocation4], %s9483
      %v9485 = vld [vmem:[%s9484] sm:$0xff]
      %v9486 = vld [vmem:[%s9484 + $0x8] sm:$0xff]
      %v9487 = vld [vmem:[%s9484 + $0x10] sm:$0xff]
      %v9488 = vld [vmem:[%s9484 + $0x18] sm:$0xff]
      %v9489 = vld [vmem:[%s9484 + $0x20] sm:$0xff]
      %v9490 = vld [vmem:[%s9484 + $0x28] sm:$0xff]
      %v9491 = vld [vmem:[%s9484 + $0x30] sm:$0xff]
      %v9492 = vld [vmem:[%s9484 + $0x38] sm:$0xff]
      %v9493 = vld [vmem:[%s9484 + $0x40] sm:$0xff]
      %v9494 = vld [vmem:[%s9484 + $0x48] sm:$0xff]
      %v9495 = vld [vmem:[%s9484 + $0x50] sm:$0xff]
      %v9496 = vld [vmem:[%s9484 + $0x58] sm:$0xff]
      %v9497 = vld [vmem:[%s9484 + $0x60] sm:$0xff]
      %v9498 = vld [vmem:[%s9484 + $0x68] sm:$0xff]
      %v9499 = vld [vmem:[%s9484 + $0x70] sm:$0xff]
      %v9500 = vld [vmem:[%s9484 + $0x78] sm:$0xff]
      %v9501 = vld [vmem:[%s7] sm:$0x1]
      %v9502 = vld [vmem:[%s8] sm:$0x1]
      %vm9503 = vcmask 261120
      %v9504 = vsel %vm9503, %v8375, 0.0
      %9505 = vadd.xlane.f32.xlu0 %v9504
      %v9506 = vpop.xlane.xlu0 %9505
      %v9507 = vsel %vm9503, %v8376, 0.0
      %9508 = vadd.xlane.f32.xlu0 %v9507
      %v9509 = vpop.xlane.xlu0 %9508
      %v9510 = vsel %vm9503, %v8531, 0.0
      %9511 = vadd.xlane.f32.xlu0 %v9510
      %v9512 = vpop.xlane.xlu0 %9511
      %v9513 = vsel %vm9503, %v8532, 0.0
      %9514 = vadd.xlane.f32.xlu0 %v9513
      %v9515 = vpop.xlane.xlu0 %9514
      %v9516 = vsel %vm9503, %v8687, 0.0
      %9517 = vadd.xlane.f32.xlu0 %v9516
      %v9518 = vpop.xlane.xlu0 %9517
      %v9519 = vsel %vm9503, %v8688, 0.0
      %9520 = vadd.xlane.f32.xlu0 %v9519
      %v9521 = vpop.xlane.xlu0 %9520
      %v9522 = vsel %vm9503, %v8843, 0.0
      %9523 = vadd.xlane.f32.xlu0 %v9522
      %v9524 = vpop.xlane.xlu0 %9523
      %v9525 = vsel %vm9503, %v8844, 0.0
      %9526 = vadd.xlane.f32.xlu0 %v9525
      %v9527 = vpop.xlane.xlu0 %9526
      %v9528 = vsel %vm9503, %v8999, 0.0
      %9529 = vadd.xlane.f32.xlu0 %v9528
      %v9530 = vpop.xlane.xlu0 %9529
      %v9531 = vsel %vm9503, %v9000, 0.0
      %9532 = vadd.xlane.f32.xlu0 %v9531
      %v9533 = vpop.xlane.xlu0 %9532
      %v9534 = vsel %vm9503, %v9155, 0.0
      %9535 = vadd.xlane.f32.xlu0 %v9534
      %v9536 = vpop.xlane.xlu0 %9535
      %v9537 = vsel %vm9503, %v9156, 0.0
      %9538 = vadd.xlane.f32.xlu0 %v9537
      %v9539 = vpop.xlane.xlu0 %9538
      %v9540 = vsel %vm9503, %v9311, 0.0
      %9541 = vadd.xlane.f32.xlu0 %v9540
      %v9542 = vpop.xlane.xlu0 %9541
      %v9543 = vsel %vm9503, %v9312, 0.0
      %9544 = vadd.xlane.f32.xlu0 %v9543
      %v9545 = vpop.xlane.xlu0 %9544
      %v9546 = vsel %vm9503, %v9467, 0.0
      %9547 = vadd.xlane.f32.xlu0 %v9546
      %v9548 = vpop.xlane.xlu0 %9547
      %v9549 = vsel %vm9503, %v9468, 0.0
      %9550 = vadd.xlane.f32.xlu0 %v9549
      %v9551 = vpop.xlane.xlu0 %9550
      %v9552 = vrcp.pop 32.0
      %v9553 = vmul.f32 32.0, %v9552
      %v9554 = vsub.f32 1.0, %v9553
      %v9555 = vmul.f32 %v9552, %v9554
      %v9556 = vadd.f32 %v9552, %v9555
      %vm9557 = vweird.f32 %v9552
      %v9558 = vsel %vm9557, %v9552, %v9556
      %v9559 = vmul.f32 %v9506, %v9558
      %v9560 = vmul.f32 %v9509, %v9558
      %v9561 = vmul.f32 %v9512, %v9558
      %v9562 = vmul.f32 %v9515, %v9558
      %v9563 = vmul.f32 %v9518, %v9558
      %v9564 = vmul.f32 %v9521, %v9558
      %v9565 = vmul.f32 %v9524, %v9558
      %v9566 = vmul.f32 %v9527, %v9558
      %v9567 = vmul.f32 %v9530, %v9558
      %v9568 = vmul.f32 %v9533, %v9558
      %v9569 = vmul.f32 %v9536, %v9558
      %v9570 = vmul.f32 %v9539, %v9558
      %v9571 = vmul.f32 %v9542, %v9558
      %v9572 = vmul.f32 %v9545, %v9558
      %v9573 = vmul.f32 %v9548, %v9558
      %v9574 = vmul.f32 %v9551, %v9558
      %v9575 = vsub.f32 %v8375, %v9559
      %v9576 = vsub.f32 %v8376, %v9560
      %v9577 = vsub.f32 %v8531, %v9561
      %v9578 = vsub.f32 %v8532, %v9562
      %v9579 = vsub.f32 %v8687, %v9563
      %v9580 = vsub.f32 %v8688, %v9564
      %v9581 = vsub.f32 %v8843, %v9565
      %v9582 = vsub.f32 %v8844, %v9566
      %v9583 = vsub.f32 %v8999, %v9567
      %v9584 = vsub.f32 %v9000, %v9568
      %v9585 = vsub.f32 %v9155, %v9569
      %v9586 = vsub.f32 %v9156, %v9570
      %v9587 = vsub.f32 %v9311, %v9571
      %v9588 = vsub.f32 %v9312, %v9572
      %v9589 = vsub.f32 %v9467, %v9573
      %v9590 = vsub.f32 %v9468, %v9574
      %v9591 = vmul.f32 %v9575, %v9575
      %v9592 = vmul.f32 %v9576, %v9576
      %v9593 = vmul.f32 %v9577, %v9577
      %v9594 = vmul.f32 %v9578, %v9578
      %v9595 = vmul.f32 %v9579, %v9579
      %v9596 = vmul.f32 %v9580, %v9580
      %v9597 = vmul.f32 %v9581, %v9581
      %v9598 = vmul.f32 %v9582, %v9582
      %v9599 = vmul.f32 %v9583, %v9583
      %v9600 = vmul.f32 %v9584, %v9584
      %v9601 = vmul.f32 %v9585, %v9585
      %v9602 = vmul.f32 %v9586, %v9586
      %v9603 = vmul.f32 %v9587, %v9587
      %v9604 = vmul.f32 %v9588, %v9588
      %v9605 = vmul.f32 %v9589, %v9589
      %v9606 = vmul.f32 %v9590, %v9590
      %v9607 = vsel %vm9503, %v9591, 0.0
      %9608 = vadd.xlane.f32.xlu0 %v9607
      %v9609 = vpop.xlane.xlu0 %9608
      %v9610 = vsel %vm9503, %v9592, 0.0
      %9611 = vadd.xlane.f32.xlu0 %v9610
      %v9612 = vpop.xlane.xlu0 %9611
      %v9613 = vsel %vm9503, %v9593, 0.0
      %9614 = vadd.xlane.f32.xlu0 %v9613
      %v9615 = vpop.xlane.xlu0 %9614
      %v9616 = vsel %vm9503, %v9594, 0.0
      %9617 = vadd.xlane.f32.xlu0 %v9616
      %v9618 = vpop.xlane.xlu0 %9617
      %v9619 = vsel %vm9503, %v9595, 0.0
      %9620 = vadd.xlane.f32.xlu0 %v9619
      %v9621 = vpop.xlane.xlu0 %9620
      %v9622 = vsel %vm9503, %v9596, 0.0
      %9623 = vadd.xlane.f32.xlu0 %v9622
      %v9624 = vpop.xlane.xlu0 %9623
      %v9625 = vsel %vm9503, %v9597, 0.0
      %9626 = vadd.xlane.f32.xlu0 %v9625
      %v9627 = vpop.xlane.xlu0 %9626
      %v9628 = vsel %vm9503, %v9598, 0.0
      %9629 = vadd.xlane.f32.xlu0 %v9628
      %v9630 = vpop.xlane.xlu0 %9629
      %v9631 = vsel %vm9503, %v9599, 0.0
      %9632 = vadd.xlane.f32.xlu0 %v9631
      %v9633 = vpop.xlane.xlu0 %9632
      %v9634 = vsel %vm9503, %v9600, 0.0
      %9635 = vadd.xlane.f32.xlu0 %v9634
      %v9636 = vpop.xlane.xlu0 %9635
      %v9637 = vsel %vm9503, %v9601, 0.0
      %9638 = vadd.xlane.f32.xlu0 %v9637
      %v9639 = vpop.xlane.xlu0 %9638
      %v9640 = vsel %vm9503, %v9602, 0.0
      %9641 = vadd.xlane.f32.xlu0 %v9640
      %v9642 = vpop.xlane.xlu0 %9641
      %v9643 = vsel %vm9503, %v9603, 0.0
      %9644 = vadd.xlane.f32.xlu0 %v9643
      %v9645 = vpop.xlane.xlu0 %9644
      %v9646 = vsel %vm9503, %v9604, 0.0
      %9647 = vadd.xlane.f32.xlu0 %v9646
      %v9648 = vpop.xlane.xlu0 %9647
      %v9649 = vsel %vm9503, %v9605, 0.0
      %9650 = vadd.xlane.f32.xlu0 %v9649
      %v9651 = vpop.xlane.xlu0 %9650
      %v9652 = vsel %vm9503, %v9606, 0.0
      %9653 = vadd.xlane.f32.xlu0 %v9652
      %v9654 = vpop.xlane.xlu0 %9653
      %v9655 = vmul.f32 %v9609, %v9558
      %v9656 = vmul.f32 %v9612, %v9558
      %v9657 = vmul.f32 %v9615, %v9558
      %v9658 = vmul.f32 %v9618, %v9558
      %v9659 = vmul.f32 %v9621, %v9558
      %v9660 = vmul.f32 %v9624, %v9558
      %v9661 = vmul.f32 %v9627, %v9558
      %v9662 = vmul.f32 %v9630, %v9558
      %v9663 = vmul.f32 %v9633, %v9558
      %v9664 = vmul.f32 %v9636, %v9558
      %v9665 = vmul.f32 %v9639, %v9558
      %v9666 = vmul.f32 %v9642, %v9558
      %v9667 = vmul.f32 %v9645, %v9558
      %v9668 = vmul.f32 %v9648, %v9558
      %v9669 = vmul.f32 %v9651, %v9558
      %v9670 = vmul.f32 %v9654, %v9558
      %v9671 = vadd.f32 %v9655, 1e-05
      %v9672 = vadd.f32 %v9656, 1e-05
      %v9673 = vadd.f32 %v9657, 1e-05
      %v9674 = vadd.f32 %v9658, 1e-05
      %v9675 = vadd.f32 %v9659, 1e-05
      %v9676 = vadd.f32 %v9660, 1e-05
      %v9677 = vadd.f32 %v9661, 1e-05
      %v9678 = vadd.f32 %v9662, 1e-05
      %v9679 = vadd.f32 %v9663, 1e-05
      %v9680 = vadd.f32 %v9664, 1e-05
      %v9681 = vadd.f32 %v9665, 1e-05
      %v9682 = vadd.f32 %v9666, 1e-05
      %v9683 = vadd.f32 %v9667, 1e-05
      %v9684 = vadd.f32 %v9668, 1e-05
      %v9685 = vadd.f32 %v9669, 1e-05
      %v9686 = vadd.f32 %v9670, 1e-05
      %v9687 = vrsqrt.pop %v9671
      %v9688 = vmul.f32 %v9687, %v9671
      %v9689 = vmul.f32 %v9688, %v9687
      %v9690 = vmul.f32 0.5, %v9689
      %v9691 = vsub.f32 1.5, %v9690
      %v9692 = vmul.f32 %v9687, %v9691
      %vm9693 = vweird.f32 %v9671
      %vm9694 = vweird.f32 %v9687
      %vm9695 = vmor %vm9693, %vm9694
      %v9696 = vsel %vm9695, %v9687, %v9692
      %v9697 = vrsqrt.pop %v9672
      %v9698 = vmul.f32 %v9697, %v9672
      %v9699 = vmul.f32 %v9698, %v9697
      %v9700 = vmul.f32 0.5, %v9699
      %v9701 = vsub.f32 1.5, %v9700
      %v9702 = vmul.f32 %v9697, %v9701
      %vm9703 = vweird.f32 %v9672
      %vm9704 = vweird.f32 %v9697
      %vm9705 = vmor %vm9703, %vm9704
      %v9706 = vsel %vm9705, %v9697, %v9702
      %v9707 = vrsqrt.pop %v9673
      %v9708 = vmul.f32 %v9707, %v9673
      %v9709 = vmul.f32 %v9708, %v9707
      %v9710 = vmul.f32 0.5, %v9709
      %v9711 = vsub.f32 1.5, %v9710
      %v9712 = vmul.f32 %v9707, %v9711
      %vm9713 = vweird.f32 %v9673
      %vm9714 = vweird.f32 %v9707
      %vm9715 = vmor %vm9713, %vm9714
      %v9716 = vsel %vm9715, %v9707, %v9712
      %v9717 = vrsqrt.pop %v9674
      %v9718 = vmul.f32 %v9717, %v9674
      %v9719 = vmul.f32 %v9718, %v9717
      %v9720 = vmul.f32 0.5, %v9719
      %v9721 = vsub.f32 1.5, %v9720
      %v9722 = vmul.f32 %v9717, %v9721
      %vm9723 = vweird.f32 %v9674
      %vm9724 = vweird.f32 %v9717
      %vm9725 = vmor %vm9723, %vm9724
      %v9726 = vsel %vm9725, %v9717, %v9722
      %v9727 = vrsqrt.pop %v9675
      %v9728 = vmul.f32 %v9727, %v9675
      %v9729 = vmul.f32 %v9728, %v9727
      %v9730 = vmul.f32 0.5, %v9729
      %v9731 = vsub.f32 1.5, %v9730
      %v9732 = vmul.f32 %v9727, %v9731
      %vm9733 = vweird.f32 %v9675
      %vm9734 = vweird.f32 %v9727
      %vm9735 = vmor %vm9733, %vm9734
      %v9736 = vsel %vm9735, %v9727, %v9732
      %v9737 = vrsqrt.pop %v9676
      %v9738 = vmul.f32 %v9737, %v9676
      %v9739 = vmul.f32 %v9738, %v9737
      %v9740 = vmul.f32 0.5, %v9739
      %v9741 = vsub.f32 1.5, %v9740
      %v9742 = vmul.f32 %v9737, %v9741
      %vm9743 = vweird.f32 %v9676
      %vm9744 = vweird.f32 %v9737
      %vm9745 = vmor %vm9743, %vm9744
      %v9746 = vsel %vm9745, %v9737, %v9742
      %v9747 = vrsqrt.pop %v9677
      %v9748 = vmul.f32 %v9747, %v9677
      %v9749 = vmul.f32 %v9748, %v9747
      %v9750 = vmul.f32 0.5, %v9749
      %v9751 = vsub.f32 1.5, %v9750
      %v9752 = vmul.f32 %v9747, %v9751
      %vm9753 = vweird.f32 %v9677
      %vm9754 = vweird.f32 %v9747
      %vm9755 = vmor %vm9753, %vm9754
      %v9756 = vsel %vm9755, %v9747, %v9752
      %v9757 = vrsqrt.pop %v9678
      %v9758 = vmul.f32 %v9757, %v9678
      %v9759 = vmul.f32 %v9758, %v9757
      %v9760 = vmul.f32 0.5, %v9759
      %v9761 = vsub.f32 1.5, %v9760
      %v9762 = vmul.f32 %v9757, %v9761
      %vm9763 = vweird.f32 %v9678
      %vm9764 = vweird.f32 %v9757
      %vm9765 = vmor %vm9763, %vm9764
      %v9766 = vsel %vm9765, %v9757, %v9762
      %v9767 = vrsqrt.pop %v9679
      %v9768 = vmul.f32 %v9767, %v9679
      %v9769 = vmul.f32 %v9768, %v9767
      %v9770 = vmul.f32 0.5, %v9769
      %v9771 = vsub.f32 1.5, %v9770
      %v9772 = vmul.f32 %v9767, %v9771
      %vm9773 = vweird.f32 %v9679
      %vm9774 = vweird.f32 %v9767
      %vm9775 = vmor %vm9773, %vm9774
      %v9776 = vsel %vm9775, %v9767, %v9772
      %v9777 = vrsqrt.pop %v9680
      %v9778 = vmul.f32 %v9777, %v9680
      %v9779 = vmul.f32 %v9778, %v9777
      %v9780 = vmul.f32 0.5, %v9779
      %v9781 = vsub.f32 1.5, %v9780
      %v9782 = vmul.f32 %v9777, %v9781
      %vm9783 = vweird.f32 %v9680
      %vm9784 = vweird.f32 %v9777
      %vm9785 = vmor %vm9783, %vm9784
      %v9786 = vsel %vm9785, %v9777, %v9782
      %v9787 = vrsqrt.pop %v9681
      %v9788 = vmul.f32 %v9787, %v9681
      %v9789 = vmul.f32 %v9788, %v9787
      %v9790 = vmul.f32 0.5, %v9789
      %v9791 = vsub.f32 1.5, %v9790
      %v9792 = vmul.f32 %v9787, %v9791
      %vm9793 = vweird.f32 %v9681
      %vm9794 = vweird.f32 %v9787
      %vm9795 = vmor %vm9793, %vm9794
      %v9796 = vsel %vm9795, %v9787, %v9792
      %v9797 = vrsqrt.pop %v9682
      %v9798 = vmul.f32 %v9797, %v9682
      %v9799 = vmul.f32 %v9798, %v9797
      %v9800 = vmul.f32 0.5, %v9799
      %v9801 = vsub.f32 1.5, %v9800
      %v9802 = vmul.f32 %v9797, %v9801
      %vm9803 = vweird.f32 %v9682
      %vm9804 = vweird.f32 %v9797
      %vm9805 = vmor %vm9803, %vm9804
      %v9806 = vsel %vm9805, %v9797, %v9802
      %v9807 = vrsqrt.pop %v9683
      %v9808 = vmul.f32 %v9807, %v9683
      %v9809 = vmul.f32 %v9808, %v9807
      %v9810 = vmul.f32 0.5, %v9809
      %v9811 = vsub.f32 1.5, %v9810
      %v9812 = vmul.f32 %v9807, %v9811
      %vm9813 = vweird.f32 %v9683
      %vm9814 = vweird.f32 %v9807
      %vm9815 = vmor %vm9813, %vm9814
      %v9816 = vsel %vm9815, %v9807, %v9812
      %v9817 = vrsqrt.pop %v9684
      %v9818 = vmul.f32 %v9817, %v9684
      %v9819 = vmul.f32 %v9818, %v9817
      %v9820 = vmul.f32 0.5, %v9819
      %v9821 = vsub.f32 1.5, %v9820
      %v9822 = vmul.f32 %v9817, %v9821
      %vm9823 = vweird.f32 %v9684
      %vm9824 = vweird.f32 %v9817
      %vm9825 = vmor %vm9823, %vm9824
      %v9826 = vsel %vm9825, %v9817, %v9822
      %v9827 = vrsqrt.pop %v9685
      %v9828 = vmul.f32 %v9827, %v9685
      %v9829 = vmul.f32 %v9828, %v9827
      %v9830 = vmul.f32 0.5, %v9829
      %v9831 = vsub.f32 1.5, %v9830
      %v9832 = vmul.f32 %v9827, %v9831
      %vm9833 = vweird.f32 %v9685
      %vm9834 = vweird.f32 %v9827
      %vm9835 = vmor %vm9833, %vm9834
      %v9836 = vsel %vm9835, %v9827, %v9832
      %v9837 = vrsqrt.pop %v9686
      %v9838 = vmul.f32 %v9837, %v9686
      %v9839 = vmul.f32 %v9838, %v9837
      %v9840 = vmul.f32 0.5, %v9839
      %v9841 = vsub.f32 1.5, %v9840
      %v9842 = vmul.f32 %v9837, %v9841
      %vm9843 = vweird.f32 %v9686
      %vm9844 = vweird.f32 %v9837
      %vm9845 = vmor %vm9843, %vm9844
      %v9846 = vsel %vm9845, %v9837, %v9842
      %v9847 = vmul.f32 %v9575, %v9696
      %v9848 = vmul.f32 %v9576, %v9706
      %v9849 = vmul.f32 %v9577, %v9716
      %v9850 = vmul.f32 %v9578, %v9726
      %v9851 = vmul.f32 %v9579, %v9736
      %v9852 = vmul.f32 %v9580, %v9746
      %v9853 = vmul.f32 %v9581, %v9756
      %v9854 = vmul.f32 %v9582, %v9766
      %v9855 = vmul.f32 %v9583, %v9776
      %v9856 = vmul.f32 %v9584, %v9786
      %v9857 = vmul.f32 %v9585, %v9796
      %v9858 = vmul.f32 %v9586, %v9806
      %v9859 = vmul.f32 %v9587, %v9816
      %v9860 = vmul.f32 %v9588, %v9826
      %v9861 = vmul.f32 %v9589, %v9836
      %v9862 = vmul.f32 %v9590, %v9846
      %v9864 = vperm.slane %v9501, 0
      %v9866 = vmul.f32 %v9847, %v9864
      %v9867 = vmul.f32 %v9848, %v9864
      %v9868 = vmul.f32 %v9849, %v9864
      %v9869 = vmul.f32 %v9850, %v9864
      %v9870 = vmul.f32 %v9851, %v9864
      %v9871 = vmul.f32 %v9852, %v9864
      %v9872 = vmul.f32 %v9853, %v9864
      %v9873 = vmul.f32 %v9854, %v9864
      %v9874 = vmul.f32 %v9855, %v9864
      %v9875 = vmul.f32 %v9856, %v9864
      %v9876 = vmul.f32 %v9857, %v9864
      %v9877 = vmul.f32 %v9858, %v9864
      %v9878 = vmul.f32 %v9859, %v9864
      %v9879 = vmul.f32 %v9860, %v9864
      %v9880 = vmul.f32 %v9861, %v9864
      %v9881 = vmul.f32 %v9862, %v9864
      %v9883 = vperm.slane %v9502, 0
      %v9885 = vadd.f32 %v9866, %v9883
      %v9886 = vadd.f32 %v9867, %v9883
      %v9887 = vadd.f32 %v9868, %v9883
      %v9888 = vadd.f32 %v9869, %v9883
      %v9889 = vadd.f32 %v9870, %v9883
      %v9890 = vadd.f32 %v9871, %v9883
      %v9891 = vadd.f32 %v9872, %v9883
      %v9892 = vadd.f32 %v9873, %v9883
      %v9893 = vadd.f32 %v9874, %v9883
      %v9894 = vadd.f32 %v9875, %v9883
      %v9895 = vadd.f32 %v9876, %v9883
      %v9896 = vadd.f32 %v9877, %v9883
      %v9897 = vadd.f32 %v9878, %v9883
      %v9898 = vadd.f32 %v9879, %v9883
      %v9899 = vadd.f32 %v9880, %v9883
      %v9900 = vadd.f32 %v9881, %v9883
      %v9901 = vmul.f32 %v9885, %v9485
      %v9902 = vmul.f32 %v9886, %v9486
      %v9903 = vmul.f32 %v9887, %v9487
      %v9904 = vmul.f32 %v9888, %v9488
      %v9905 = vmul.f32 %v9889, %v9489
      %v9906 = vmul.f32 %v9890, %v9490
      %v9907 = vmul.f32 %v9891, %v9491
      %v9908 = vmul.f32 %v9892, %v9492
      %v9909 = vmul.f32 %v9893, %v9493
      %v9910 = vmul.f32 %v9894, %v9494
      %v9911 = vmul.f32 %v9895, %v9495
      %v9912 = vmul.f32 %v9896, %v9496
      %v9913 = vmul.f32 %v9897, %v9497
      %v9914 = vmul.f32 %v9898, %v9498
      %v9915 = vmul.f32 %v9899, %v9499
      %v9916 = vmul.f32 %v9900, %v9500
      %v9917 = vpack.c.bf16 %v9902, %v9901
      %v9918 = vpack.c.bf16 %v9904, %v9903
      %v9919 = vpack.c.bf16 %v9906, %v9905
      %v9920 = vpack.c.bf16 %v9908, %v9907
      %v9921 = vpack.c.bf16 %v9910, %v9909
      %v9922 = vpack.c.bf16 %v9912, %v9911
      %v9923 = vpack.c.bf16 %v9914, %v9913
      %v9924 = vpack.c.bf16 %v9916, %v9915
      %v9925 = vld [vmem:[%s9] sm:$0xf]
      %v9926 = vld [vmem:[%s9 + $0x4] sm:$0xf]
      %v9927 = vld [vmem:[%s9 + $0x8] sm:$0xf]
      %v9928 = vld [vmem:[%s9 + $0xc] sm:$0xf]
      %v9929 = vld [vmem:[%s10] sm:$0x1]
      %v9931 = vperm.slane %v9929, 0
      %v9937 = vunpack.c.l.b16 %v9925
      %v9938 = vunpack.c.l.b16 %v9926
      %v9939 = vunpack.c.l.b16 %v9927
      %v9940 = vunpack.c.l.b16 %v9928
      %v9941 = vpack.c.b16 %v9938, %v9937
      %v9942 = vpack.c.b16 %v9940, %v9939
      %v9946 = vsel %vm9503, %v9917, 0
      %v9949 = vsel %vm9503, %v9918, 0
      %v9952 = vsel %vm9503, %v9919, 0
      %v9955 = vsel %vm9503, %v9920, 0
      %v9958 = vsel %vm9503, %v9921, 0
      %v9961 = vsel %vm9503, %v9922, 0
      %v9964 = vsel %vm9503, %v9923, 0
      %v9967 = vsel %vm9503, %v9924, 0
      %9969 = vmatpush.bf16.msra.mxu0 0
      %9970 = vmatpush.bf16.msra.mxu0 0
      %9971 = vmatpush.bf16.msra.mxu0 0
      %9972 = vmatpush.bf16.msra.mxu0 0
      %9973 = vmatpush.bf16.msra.mxu0 0
      %9974 = vmatpush.bf16.msra.mxu0 0
      %9975 = vmatpush.bf16.msra.mxu0 %v9942
      %9976 = vmatpush.bf16.msra.mxu0 %v9941
      %9977 = vmatmul.bf16.gmra.mxu0 %v9946
      %v9978 = vpop.f32.mrf.mxu0
      %v9979 = vadd.f32 %v9931, %v9978
      %v9980 = vpop.f32.mrf.mxu0
      %v9981 = vadd.f32 %v9931, %v9980
      %9982 = vmatmul.bf16.gmra.mxu0 %v9949
      %v9983 = vpop.f32.mrf.mxu0
      %v9984 = vadd.f32 %v9931, %v9983
      %v9985 = vpop.f32.mrf.mxu0
      %v9986 = vadd.f32 %v9931, %v9985
      %9987 = vmatmul.bf16.gmra.mxu0 %v9952
      %v9988 = vpop.f32.mrf.mxu0
      %v9989 = vadd.f32 %v9931, %v9988
      %v9990 = vpop.f32.mrf.mxu0
      %v9991 = vadd.f32 %v9931, %v9990
      %9992 = vmatmul.bf16.gmra.mxu0 %v9955
      %v9993 = vpop.f32.mrf.mxu0
      %v9994 = vadd.f32 %v9931, %v9993
      %v9995 = vpop.f32.mrf.mxu0
      %v9996 = vadd.f32 %v9931, %v9995
      %9997 = vmatmul.bf16.gmra.mxu0 %v9958
      %v9998 = vpop.f32.mrf.mxu0
      %v9999 = vadd.f32 %v9931, %v9998
      %v10000 = vpop.f32.mrf.mxu0
      %v10001 = vadd.f32 %v9931, %v10000
      %10002 = vmatmul.bf16.gmra.mxu0 %v9961
      %v10003 = vpop.f32.mrf.mxu0
      %v10004 = vadd.f32 %v9931, %v10003
      %v10005 = vpop.f32.mrf.mxu0
      %v10006 = vadd.f32 %v9931, %v10005
      %10007 = vmatmul.bf16.gmra.mxu0 %v9964
      %v10008 = vpop.f32.mrf.mxu0
      %v10009 = vadd.f32 %v9931, %v10008
      %v10010 = vpop.f32.mrf.mxu0
      %v10011 = vadd.f32 %v9931, %v10010
      %10012 = vmatmul.bf16.gmra.mxu0 %v9967
      %v10013 = vpop.f32.mrf.mxu0
      %v10014 = vadd.f32 %v9931, %v10013
      %v10015 = vpop.f32.mrf.mxu0
      %v10016 = vadd.f32 %v9931, %v10015
      %10017 = vdwg.mxu0
      %10018 = vst.msk [vmem:[%s445] sm:$0xff] %vm9503, %v9979
      %10019 = vst.msk [vmem:[%s445 + $0x8] sm:$0xff] %vm9503, %v9981
      %10020 = vst.msk [vmem:[%s445 + $0x10] sm:$0xff] %vm9503, %v9984
      %10021 = vst.msk [vmem:[%s445 + $0x18] sm:$0xff] %vm9503, %v9986
      %10022 = vst.msk [vmem:[%s445 + $0x20] sm:$0xff] %vm9503, %v9989
      %10023 = vst.msk [vmem:[%s445 + $0x28] sm:$0xff] %vm9503, %v9991
      %10024 = vst.msk [vmem:[%s445 + $0x30] sm:$0xff] %vm9503, %v9994
      %10025 = vst.msk [vmem:[%s445 + $0x38] sm:$0xff] %vm9503, %v9996
      %10026 = vst.msk [vmem:[%s445 + $0x40] sm:$0xff] %vm9503, %v9999
      %10027 = vst.msk [vmem:[%s445 + $0x48] sm:$0xff] %vm9503, %v10001
      %10028 = vst.msk [vmem:[%s445 + $0x50] sm:$0xff] %vm9503, %v10004
      %10029 = vst.msk [vmem:[%s445 + $0x58] sm:$0xff] %vm9503, %v10006
      %10030 = vst.msk [vmem:[%s445 + $0x60] sm:$0xff] %vm9503, %v10009
      %10031 = vst.msk [vmem:[%s445 + $0x68] sm:$0xff] %vm9503, %v10011
      %10032 = vst.msk [vmem:[%s445 + $0x70] sm:$0xff] %vm9503, %v10014
      %10033 = vst.msk [vmem:[%s445 + $0x78] sm:$0xff] %vm9503, %v10016
      %s10034 = smul.u32 16, %s27
      %p10035 = scmp.lt.s32.totalorder %s26, 1
      %s10036 = scalar_select %p10035, %s26, 1
      %p10037 = scmp.lt.s32.totalorder %s10034, 31
      %s10038 = scalar_select %p10037, %s10034, 31
      %s10039 = smul.addr %s10036, 32
      %s10040 = sadd.s32 %s10038, %s10039
      %s10041 = smul.addr %s10040, 8
      %s10042 = scalar_lea.vmem %s11, %s10041
      // Predicated region
      $region69: #{tpu_custom_call.1} parent=63 // pred_check
        %p10043 = pneg %p300
      $region70: #{tpu_custom_call.1} parent=63 // pred_check_branch
        %10045 = sbr.rel (%p10043) target = $region72
      $region71: #{tpu_custom_call.1} parent=63 // pred_region
        %s10046 = smul.u32 16, %s27
      $region72: #{tpu_custom_call.1} parent=63 // pred_fallthru
        _
    $region64: #{tpu_custom_call.1} parent=5 // pred_fallthru
      _
    %p10047 = scmp.le.s32.totalorder 2, %s17
    // Predicated region
    $region73: #{tpu_custom_call.1} parent=5 // pred_check
      %p10048 = pneg %p10047
    $region74: #{tpu_custom_call.1} parent=5 // pred_check_branch
      %10050 = sbr.rel (%p10048) target = $region76
    $region75: #{tpu_custom_call.1} parent=5 // pred_region
      %s10051 = ssub.s32 %s17, 2
      // Predicated region
      $region77: #{tpu_custom_call.1} parent=75 // pred_check
        %p10052 = pneg %p306
      $region78: #{tpu_custom_call.1} parent=75 // pred_check_branch
        %10054 = sbr.rel (%p10052) target = $region80
      $region79: #{tpu_custom_call.1} parent=75 // pred_region
        %s10055 = smul.u32 16, %s29
        %p10056 = scmp.lt.s32.totalorder %s28, 1
        %s10057 = scalar_select %p10056, %s28, 1
        %p10058 = scmp.lt.s32.totalorder %s10055, 31
        %s10059 = scalar_select %p10058, %s10055, 31
        %s10060 = smul.addr %s10057, 32
        %s10061 = sadd.s32 %s10059, %s10060
        %s10062 = smul.addr %s10061, 8
        %s10063 = scalar_lea.vmem %s11, %s10062
      $region80: #{tpu_custom_call.1} parent=75 // pred_fallthru
        _
    $region76: #{tpu_custom_call.1} parent=5 // pred_fallthru
      _
  $region6: #{tpu_custom_call.1} parent=0 // loop_footer
    %s21 = sadd.s32 1, %s17
  $region7: #{tpu_custom_call.1} parent=0 // loop_footer_branch
    %16 = sbr.rel target = $region3
  $region8: #{tpu_custom_call.1} parent=0 // loop_exit
    _

</llo_original>
